<compile_context>
chip_gen: v6e
topology: v6e:2x2x1
jax: 0.10.0
libtpu: 0.0.40
codegen_flags: <defaults>
</compile_context>

<pallas_src>
import numpy as np
import jax
import jax.numpy as jnp
from jax import lax
from jax.experimental import pallas as pl
from jax.experimental.pallas import tpu as pltpu

# ---------------- hparams ----------------
B = 2
CHANNELS = 3
IMG = 8                          # image_size
HIDDEN = 32
HEADS = 4
FILTER = 64
NLAYERS = 2
NUM_MIXTURES = 2
DEPTH_OUT = NUM_MIXTURES * 10    # 20
DEPTH_PAD = 24                   # padded to a multiple of 8 sublanes
SEQ = IMG * IMG                  # 64 tokens
HEAD_DIM = HIDDEN // HEADS       # 8
CPAD = 8                         # pixel-channel lanes: [r, g, b, 1.0, 0, 0, 0, 0]
WCOLS = 4 * HIDDEN + 2 * FILTER  # 256 packed weight columns per layer
EPS = 1e-6

# TODO(synk): dropout (p=0.0 -> identity), sampling loop and the DML loss/accuracy
# paths are not part of the deterministic forward pass and are not implemented.


def _batches_per_grid_step():
    """v7x has 2 TensorCores: shard the batch across them. v5e/v6e: single shot."""
    try:
        kind = jax.devices()[0].device_kind.lower()
    except Exception:
        return B
    return 1 if "7" in kind else B


NB = _batches_per_grid_step()    # batches handled per grid step
GRID = (B // NB,)


# ---------------- fused Pallas kernel ----------------
def _layernorm(z, g, b):
    mu = jnp.mean(z, axis=-1, keepdims=True)
    d = z - mu
    var = jnp.mean(d * d, axis=-1, keepdims=True)
    return d * lax.rsqrt(var + EPS) * g + b


_NT = (((1,), (1,)), ((), ()))   # contract last dim of both operands (A @ B^T)


def _make_kernel(nb):
    rows = nb * SEQ

    def kernel(xs_ref, embwb_ref, timing_ref, bias_ref, wmat_ref, vecs_ref,
               outwt_ref, o_ref):
        # ---- embedding "conv" (per-pixel linear, bias folded via 1.0 column) ----
        # xs is already token-shifted in the wrapper; boundary rows are all-zero.
        emb = jnp.dot(xs_ref[...], embwb_ref[...],
                      preferred_element_type=jnp.float32)           # (rows, D)
        x = jnp.maximum(emb, 0.0) + timing_ref[...]                  # f32

        bias = bias_ref[...]                                         # (nb*H*S, S) f32

        for l in range(NLAYERS):
            W = wmat_ref[l]                                           # (D, 256) bf16
            wqkv = W[:, 0:3 * HIDDEN]                                 # (D, 3D), Q scaled
            wo = W[:, 3 * HIDDEN:4 * HIDDEN]                          # (D, D)
            w1 = W[:, 4 * HIDDEN:4 * HIDDEN + FILTER]                 # (D, F)
            w2t = W[:, 4 * HIDDEN + FILTER:4 * HIDDEN + 2 * FILTER]   # (D, F) == W2^T
            v = vecs_ref[l]                                           # (8, F) f32
            g1 = v[0:1, 0:HIDDEN]
            bln1 = v[1:2, 0:HIDDEN]
            b1 = v[2:3, :]                                            # (1, F)
            b2 = v[3:4, 0:HIDDEN]
            g2 = v[4:5, 0:HIDDEN]
            bln2 = v[5:6, 0:HIDDEN]

            # fused QKV projection (bf16 operands, f32 accumulation)
            xb = x.astype(jnp.bfloat16)
            qkv = jnp.dot(xb, wqkv, preferred_element_type=jnp.float32)  # (rows, 3D)
            qkv_b = qkv.astype(jnp.bfloat16)

            # per-(batch, head) logits, stacked along sublanes; NT matmul (no kh.T)
            blocks = []
            for b in range(nb):
                base = b * SEQ
                for h in range(HEADS):
                    qh = qkv_b[base:base + SEQ, h * HEAD_DIM:(h + 1) * HEAD_DIM]
                    kh = qkv_b[base:base + SEQ,
                               HIDDEN + h * HEAD_DIM:HIDDEN + (h + 1) * HEAD_DIM]
                    blocks.append(lax.dot_general(
                        qh, kh, _NT, preferred_element_type=jnp.float32))
            logits = jnp.concatenate(blocks, axis=0) + bias           # (nb*H*S, S)

            # one softmax chain over the whole slab; divide on the EUP
            m = jnp.max(logits, axis=-1, keepdims=True)
            e = jnp.exp(logits - m)
            denom = jnp.sum(e, axis=-1, keepdims=True)
            wts = (e * pl.reciprocal(denom, approx=True)).astype(jnp.bfloat16)

            # per-head (wts @ v) pushed through its Wo row-slice and accumulated
            # (no lane concatenation of 8-wide head outputs)
            y_parts = []
            for b in range(nb):
                base = b * SEQ
                acc = None
                for h in range(HEADS):
                    blk = b * HEADS + h
                    wblk = wts[blk * SEQ:(blk + 1) * SEQ, :]
                    vh = qkv_b[base:base + SEQ,
                               2 * HIDDEN + h * HEAD_DIM:
                               2 * HIDDEN + (h + 1) * HEAD_DIM]
                    hv = jnp.dot(wblk, vh, preferred_element_type=jnp.float32)
                    contrib = jnp.dot(hv.astype(jnp.bfloat16),
                                      wo[h * HEAD_DIM:(h + 1) * HEAD_DIM, :],
                                      preferred_element_type=jnp.float32)
                    acc = contrib if acc is None else acc + contrib
                y_parts.append(acc)
            y = y_parts[0] if nb == 1 else jnp.concatenate(y_parts, axis=0)

            # attention residual + LayerNorm (f32)
            x = _layernorm(y + x, g1, bln1)

            # FFN + residual + LayerNorm
            xb = x.astype(jnp.bfloat16)
            h1 = jnp.maximum(
                jnp.dot(xb, w1, preferred_element_type=jnp.float32) + b1, 0.0)
            y2 = lax.dot_general(h1.astype(jnp.bfloat16), w2t, _NT,
                                 preferred_element_type=jnp.float32) + b2
            x = _layernorm(y2 + x, g2, bln2)

        # output projection, transposed so the store is lane-dense; padded to 24 rows
        out_t = lax.dot_general(outwt_ref[...], x.astype(jnp.bfloat16), _NT,
                                preferred_element_type=jnp.float32)   # (24, rows)
        o_ref[...] = out_t[None, :, :]

    return kernel


# ---------------- wrapper (layout plumbing + parameter packing) ----------------
def timing_signal(h, w, d):
    num_dims = 2
    nts = d // (num_dims * 2)
    inc = np.log(10000.0) / (nts - 1)
    inv = jnp.exp(jnp.arange(nts, dtype=jnp.float32) * -inc)
    sig = jnp.zeros((1, h, w, d), jnp.float32)
    for dim, length in enumerate([h, w]):
        pos = jnp.arange(length, dtype=jnp.float32)
        scaled = pos[:, None] * inv[None, :]
        s = jnp.concatenate([jnp.sin(scaled), jnp.cos(scaled)], axis=1)
        prepad = dim * 2 * nts
        postpad = d - (dim + 1) * 2 * nts
        s = jnp.pad(s, ((0, 0), (prepad, postpad)))
        s = s[None, :, None, :] if dim == 0 else s[None, None, :, :]
        sig = sig + s
    return sig


@jax.jit
def pallas_forward(x_nchw, params):
    bsz, c, h, w = x_nchw.shape

    # ---- shifted pixel rows with folded bias column (shift_and_pad_ done here) ----
    xpix = jnp.transpose(x_nchw, (0, 2, 3, 1)).reshape(bsz, h * w, c)
    xpix_s = jnp.pad(xpix[:, :-1, :], ((0, 0), (1, 0), (0, 0)))       # token shift
    ones = jnp.pad(jnp.ones((bsz, h * w - 1, 1), jnp.float32),
                   ((0, 0), (1, 0), (0, 0)))                          # bias col, 0 at row 0
    zeros = jnp.zeros((bsz, h * w, CPAD - CHANNELS - 1), jnp.float32)
    xs = jnp.concatenate([xpix_s, ones, zeros], axis=-1)
    xs = xs.reshape(bsz * h * w, CPAD).astype(jnp.bfloat16)           # (B*S, 8)

    # embedding weight + bias packed into one (8, D) slab (row 3 = bias)
    emb_wb = jnp.concatenate(
        [params["emb_w"], params["emb_b"],
         jnp.zeros((CPAD - CHANNELS - 1, HIDDEN), jnp.float32)],
        axis=0).astype(jnp.bfloat16)                                  # (8, 32)

    timing = timing_signal(h, w, HIDDEN).reshape(h * w, HIDDEN)
    timing = jnp.tile(timing, (NB, 1))                                # (NB*S, D) f32

    # additive causal bias for all (batch, head) blocks handled per grid step
    tri = jnp.triu(jnp.ones((SEQ, SEQ), jnp.float32), 1)
    cb = jnp.where(tri > 0, jnp.float32(-1e9), jnp.float32(0.0))
    bias = jnp.tile(cb, (NB * HEADS, 1))                              # (NB*H*S, S) f32

    # packed per-layer weights / vectors; 1/sqrt(head_dim) folded into Q columns
    scale = jnp.float32(HEAD_DIM) ** -0.5

    def pad_f(v):
        return jnp.pad(v, ((0, 0), (0, FILTER - v.shape[1])))

    wmats, vecs = [], []
    for lp in params["layers"]:
        wq, wk, wv, wo, g1, bln1, w1, b1, w2, b2, g2, bln2 = lp
        wqkv = jnp.concatenate([wq * scale, wk, wv], axis=1)          # (D, 3D)
        wmats.append(jnp.concatenate([wqkv, wo, w1, w2.T], axis=1))   # (D, 256)
        vecs.append(jnp.concatenate(
            [pad_f(g1), pad_f(bln1), pad_f(b1), pad_f(b2), pad_f(g2), pad_f(bln2),
             jnp.zeros((2, FILTER), jnp.float32)], axis=0))           # (8, F)
    wmats = jnp.stack(wmats).astype(jnp.bfloat16)                     # (L, 32, 256)
    vecs = jnp.stack(vecs)                                            # (L, 8, 64) f32

    outw_t = jnp.pad(params["out_w"].T,
                     ((0, DEPTH_PAD - DEPTH_OUT), (0, 0))).astype(jnp.bfloat16)

    out = pl.pallas_call(
        _make_kernel(NB),
        out_shape=jax.ShapeDtypeStruct((B // NB, DEPTH_PAD, NB * SEQ), jnp.float32),
        grid_spec=pltpu.PrefetchScalarGridSpec(
            num_scalar_prefetch=0,
            grid=GRID,
            in_specs=[
                pl.BlockSpec((NB * SEQ, CPAD), lambda i: (i, 0)),          # xs
                pl.BlockSpec((CPAD, HIDDEN), lambda i: (0, 0)),            # emb_wb
                pl.BlockSpec((NB * SEQ, HIDDEN), lambda i: (0, 0)),        # timing
                pl.BlockSpec((NB * HEADS * SEQ, SEQ), lambda i: (0, 0)),   # causal bias
                pl.BlockSpec((NLAYERS, HIDDEN, WCOLS), lambda i: (0, 0, 0)),
                pl.BlockSpec((NLAYERS, 8, FILTER), lambda i: (0, 0, 0)),
                pl.BlockSpec((DEPTH_PAD, HIDDEN), lambda i: (0, 0)),       # out_w^T
            ],
            out_specs=pl.BlockSpec((1, DEPTH_PAD, NB * SEQ), lambda i: (i, 0, 0)),
        ),
        compiler_params=pltpu.CompilerParams(
            dimension_semantics=("parallel",)),
    )(xs, emb_wb, timing, bias, wmats, vecs, outw_t)

    # (B//NB, 24, NB*S) -> (B, S, 24) -> slice -> (B, H, W, 20)
    out = jnp.transpose(out, (0, 2, 1)).reshape(bsz, h * w, DEPTH_PAD)
    return out[..., :DEPTH_OUT].reshape(bsz, h, w, DEPTH_OUT)


# ---------------- pure-JAX reference (for correctness check) ----------------
def _ln_ref(z, g, b):
    mu = jnp.mean(z, axis=-1, keepdims=True)
    var = jnp.mean((z - mu) ** 2, axis=-1, keepdims=True)
    return (z - mu) / jnp.sqrt(var + EPS) * g + b


def shift_and_pad(x):  # x: (B, H, W, D)
    bsz, h, w, d = x.shape
    xf = x.reshape(bsz, h * w, d)
    xf = jnp.pad(xf[:, :-1, :], ((0, 0), (1, 0), (0, 0)))
    return xf.reshape(bsz, h, w, d)


def decoder_layer_ref(X, p):
    wq, wk, wv, wo, g1, bln1, w1, b1, w2, b2, g2, bln2 = p
    bsz, s, d = X.shape
    hd = d // HEADS
    q = (X @ wq).reshape(bsz, s, HEADS, hd).transpose(0, 2, 1, 3) * hd ** -0.5
    k = (X @ wk).reshape(bsz, s, HEADS, hd).transpose(0, 2, 1, 3)
    v = (X @ wv).reshape(bsz, s, HEADS, hd).transpose(0, 2, 1, 3)
    bias = jnp.where(jnp.triu(jnp.ones((s, s)), 1) > 0, -1e9, 0.0)
    logits = jnp.einsum('bhkd,bhqd->bhqk', k, q) + bias
    wts = jax.nn.softmax(logits, axis=-1)
    out = jnp.einsum('bhqk,bhkd->bhqd', wts, v).transpose(0, 2, 1, 3).reshape(bsz, s, d)
    X = _ln_ref(out @ wo + X, g1[0], bln1[0])
    hid = jnp.maximum(X @ w1 + b1[0], 0.0)
    X = _ln_ref(hid @ w2 + b2[0] + X, g2[0], bln2[0])
    return X


def forward_ref(x_nchw, params):
    bsz, c, h, w = x_nchw.shape
    xp = jnp.transpose(x_nchw, (0, 2, 3, 1)).reshape(bsz * h * w, c)
    emb = jnp.maximum(xp @ params["emb_w"] + params["emb_b"][0], 0.0)
    X = emb.reshape(bsz, h, w, HIDDEN)
    X = shift_and_pad(X)
    X = X + timing_signal(h, w, HIDDEN)
    Xs = X.reshape(bsz, h * w, HIDDEN)
    for lp in params["layers"]:
        Xs = decoder_layer_ref(Xs, lp)
    flat = Xs.reshape(bsz * h * w, HIDDEN)
    out = flat @ params["out_w"]                # output_dense has no bias
    return out.reshape(bsz, h, w, DEPTH_OUT)


# ---------------- deterministic parameter init ----------------
def init_params(key):
    def nrm(k, shape, scale=0.05):
        return (jax.random.normal(k, shape) * scale).astype(jnp.float32)

    keys = jax.random.split(key, 4 + NLAYERS * 8)
    params = {
        "emb_w": nrm(keys[0], (CHANNELS, HIDDEN), 0.2),
        "emb_b": nrm(keys[1], (1, HIDDEN), 0.1),
        "out_w": nrm(keys[2], (HIDDEN, DEPTH_OUT), 0.1),
        "layers": [],
    }
    kidx = 4
    for _ in range(NLAYERS):
        wq = nrm(keys[kidx + 0], (HIDDEN, HIDDEN))
        wk = nrm(keys[kidx + 1], (HIDDEN, HIDDEN))
        wv = nrm(keys[kidx + 2], (HIDDEN, HIDDEN))
        wo = nrm(keys[kidx + 3], (HIDDEN, HIDDEN))
        g1 = jnp.ones((1, HIDDEN), jnp.float32)
        bln1 = jnp.zeros((1, HIDDEN), jnp.float32)
        w1 = nrm(keys[kidx + 4], (HIDDEN, FILTER))
        b1 = nrm(keys[kidx + 5], (1, FILTER), 0.02)
        w2 = nrm(keys[kidx + 6], (FILTER, HIDDEN))
        b2 = nrm(keys[kidx + 7], (1, HIDDEN), 0.02)
        g2 = jnp.ones((1, HIDDEN), jnp.float32)
        bln2 = jnp.zeros((1, HIDDEN), jnp.float32)
        params["layers"].append((wq, wk, wv, wo, g1, bln1, w1, b1, w2, b2, g2, bln2))
        kidx += 8
    return params


if __name__ == "__main__":
    key = jax.random.PRNGKey(0)
    kx, kp = jax.random.split(key)
    x = jax.random.uniform(kx, (B, CHANNELS, IMG, IMG), dtype=jnp.float32)
    params = init_params(kp)

    out = jax.block_until_ready(pallas_forward(x, params))
    ref = jax.block_until_ready(forward_ref(x, params))

    assert out.shape == (B, IMG, IMG, DEPTH_OUT), out.shape
    assert bool(jnp.all(jnp.isfinite(out)))
    # bf16 matmul operands + approx-reciprocal softmax: slightly looser tolerance.
    err = float(jnp.max(jnp.abs(out - ref)))
    assert np.allclose(np.asarray(out), np.asarray(ref), atol=2e-2, rtol=2e-2), err
    print("KERNEL_OK")
</pallas_src>

<mosaic_0001>
module attributes {stable_mosaic.version = 11 : i64} {
  func.func @kernel(%arg0: i32, %arg1: memref<128x8xbf16, #tpu.memory_space<vmem>>, %arg2: memref<8x32xbf16, #tpu.memory_space<vmem>>, %arg3: memref<128x32xf32, #tpu.memory_space<vmem>>, %arg4: memref<512x64xf32, #tpu.memory_space<vmem>>, %arg5: memref<2x32x256xbf16, #tpu.memory_space<vmem>>, %arg6: memref<2x8x64xf32, #tpu.memory_space<vmem>>, %arg7: memref<24x32xbf16, #tpu.memory_space<vmem>>, %arg8: memref<1x24x128xf32, #tpu.memory_space<vmem>>) attributes {dimension_semantics = [#tpu.dimension_semantics<parallel>], iteration_bounds = array<i64: 1>, scalar_prefetch = 0 : i64, scratch_operands = 0 : i64, tpu.core_type = #tpu.core_type<tc>, window_params = [{transform_indices = @transform_0, window_bounds = array<i64: 128, 8>}, {pipeline_mode = #tpu.pipeline_mode<synchronous>, transform_indices = @transform_1, window_bounds = array<i64: 8, 32>}, {pipeline_mode = #tpu.pipeline_mode<synchronous>, transform_indices = @transform_2, window_bounds = array<i64: 128, 32>}, {pipeline_mode = #tpu.pipeline_mode<synchronous>, transform_indices = @transform_3, window_bounds = array<i64: 512, 64>}, {pipeline_mode = #tpu.pipeline_mode<synchronous>, transform_indices = @transform_4, window_bounds = array<i64: 2, 32, 256>}, {pipeline_mode = #tpu.pipeline_mode<synchronous>, transform_indices = @transform_5, window_bounds = array<i64: 2, 8, 64>}, {pipeline_mode = #tpu.pipeline_mode<synchronous>, transform_indices = @transform_6, window_bounds = array<i64: 24, 32>}, {transform_indices = @transform_7, window_bounds = array<i64: 1, 24, 128>}]} {
    %c0 = arith.constant 0 : index
    %c0_0 = arith.constant 0 : index
    %0 = vector.load %arg1[%c0, %c0_0] : memref<128x8xbf16, #tpu.memory_space<vmem>>, vector<128x8xbf16>
    %c0_1 = arith.constant 0 : index
    %c0_2 = arith.constant 0 : index
    %1 = vector.load %arg2[%c0_1, %c0_2] : memref<8x32xbf16, #tpu.memory_space<vmem>>, vector<8x32xbf16>
    %cst = arith.constant dense<0.000000e+00> : vector<128x32xf32>
    %2 = tpu.matmul %0, %1, %cst {dimension_numbers = #tpu.dot_dimension_numbers<[1], [0], [0], [1], [0, 0, 1, 1], [], []>} : vector<128x8xbf16>, vector<8x32xbf16>, vector<128x32xf32> -> vector<128x32xf32>
    %cst_3 = arith.constant 0.000000e+00 : f32
    %3 = vector.broadcast %cst_3 : f32 to vector<128x32xf32>
    %4 = arith.maximumf %2, %3 : vector<128x32xf32>
    %c0_4 = arith.constant 0 : index
    %c0_5 = arith.constant 0 : index
    %5 = vector.load %arg3[%c0_4, %c0_5] : memref<128x32xf32, #tpu.memory_space<vmem>>, vector<128x32xf32>
    %6 = arith.addf %4, %5 : vector<128x32xf32>
    %c0_6 = arith.constant 0 : index
    %c0_7 = arith.constant 0 : index
    %7 = vector.load %arg4[%c0_6, %c0_7] : memref<512x64xf32, #tpu.memory_space<vmem>>, vector<512x64xf32>
    %c0_8 = arith.constant 0 : index
    %c0_9 = arith.constant 0 : index
    %c0_10 = arith.constant 0 : index
    %8 = vector.load %arg5[%c0_8, %c0_9, %c0_10] : memref<2x32x256xbf16, #tpu.memory_space<vmem>>, vector<1x32x256xbf16>
    %9 = vector.shape_cast %8 : vector<1x32x256xbf16> to vector<32x256xbf16>
    %10 = vector.extract_strided_slice %9 {offsets = [0, 0], sizes = [32, 96], strides = [1, 1]} : vector<32x256xbf16> to vector<32x96xbf16>
    %11 = vector.extract_strided_slice %9 {offsets = [0, 96], sizes = [32, 32], strides = [1, 1]} : vector<32x256xbf16> to vector<32x32xbf16>
    %12 = vector.extract_strided_slice %9 {offsets = [0, 128], sizes = [32, 64], strides = [1, 1]} : vector<32x256xbf16> to vector<32x64xbf16>
    %13 = vector.extract_strided_slice %9 {offsets = [0, 192], sizes = [32, 64], strides = [1, 1]} : vector<32x256xbf16> to vector<32x64xbf16>
    %c0_11 = arith.constant 0 : index
    %c0_12 = arith.constant 0 : index
    %c0_13 = arith.constant 0 : index
    %14 = vector.load %arg6[%c0_11, %c0_12, %c0_13] : memref<2x8x64xf32, #tpu.memory_space<vmem>>, vector<1x8x64xf32>
    %15 = vector.shape_cast %14 : vector<1x8x64xf32> to vector<8x64xf32>
    %16 = vector.extract_strided_slice %15 {offsets = [0, 0], sizes = [1, 32], strides = [1, 1]} : vector<8x64xf32> to vector<1x32xf32>
    %17 = vector.extract_strided_slice %15 {offsets = [1, 0], sizes = [1, 32], strides = [1, 1]} : vector<8x64xf32> to vector<1x32xf32>
    %18 = vector.extract_strided_slice %15 {offsets = [2, 0], sizes = [1, 64], strides = [1, 1]} : vector<8x64xf32> to vector<1x64xf32>
    %19 = vector.extract_strided_slice %15 {offsets = [3, 0], sizes = [1, 32], strides = [1, 1]} : vector<8x64xf32> to vector<1x32xf32>
    %20 = vector.extract_strided_slice %15 {offsets = [4, 0], sizes = [1, 32], strides = [1, 1]} : vector<8x64xf32> to vector<1x32xf32>
    %21 = vector.extract_strided_slice %15 {offsets = [5, 0], sizes = [1, 32], strides = [1, 1]} : vector<8x64xf32> to vector<1x32xf32>
    %22 = arith.truncf %6 : vector<128x32xf32> to vector<128x32xbf16>
    %cst_14 = arith.constant dense<0.000000e+00> : vector<128x96xf32>
    %23 = tpu.matmul %22, %10, %cst_14 {dimension_numbers = #tpu.dot_dimension_numbers<[1], [0], [0], [1], [0, 0, 1, 1], [], []>} : vector<128x32xbf16>, vector<32x96xbf16>, vector<128x96xf32> -> vector<128x96xf32>
    %24 = arith.truncf %23 : vector<128x96xf32> to vector<128x96xbf16>
    %25 = vector.extract_strided_slice %24 {offsets = [0, 0], sizes = [64, 8], strides = [1, 1]} : vector<128x96xbf16> to vector<64x8xbf16>
    %26 = vector.extract_strided_slice %24 {offsets = [0, 32], sizes = [64, 8], strides = [1, 1]} : vector<128x96xbf16> to vector<64x8xbf16>
    %cst_15 = arith.constant dense<0.000000e+00> : vector<64x64xf32>
    %27 = tpu.matmul %25, %26, %cst_15 {dimension_numbers = #tpu.dot_dimension_numbers<[1], [1], [0], [0], [0, 0, 1, 0], [], []>} : vector<64x8xbf16>, vector<64x8xbf16>, vector<64x64xf32> -> vector<64x64xf32>
    %28 = vector.extract_strided_slice %24 {offsets = [0, 8], sizes = [64, 8], strides = [1, 1]} : vector<128x96xbf16> to vector<64x8xbf16>
    %29 = vector.extract_strided_slice %24 {offsets = [0, 40], sizes = [64, 8], strides = [1, 1]} : vector<128x96xbf16> to vector<64x8xbf16>
    %cst_16 = arith.constant dense<0.000000e+00> : vector<64x64xf32>
    %30 = tpu.matmul %28, %29, %cst_16 {dimension_numbers = #tpu.dot_dimension_numbers<[1], [1], [0], [0], [0, 0, 1, 0], [], []>} : vector<64x8xbf16>, vector<64x8xbf16>, vector<64x64xf32> -> vector<64x64xf32>
    %31 = vector.extract_strided_slice %24 {offsets = [0, 16], sizes = [64, 8], strides = [1, 1]} : vector<128x96xbf16> to vector<64x8xbf16>
    %32 = vector.extract_strided_slice %24 {offsets = [0, 48], sizes = [64, 8], strides = [1, 1]} : vector<128x96xbf16> to vector<64x8xbf16>
    %cst_17 = arith.constant dense<0.000000e+00> : vector<64x64xf32>
    %33 = tpu.matmul %31, %32, %cst_17 {dimension_numbers = #tpu.dot_dimension_numbers<[1], [1], [0], [0], [0, 0, 1, 0], [], []>} : vector<64x8xbf16>, vector<64x8xbf16>, vector<64x64xf32> -> vector<64x64xf32>
    %34 = vector.extract_strided_slice %24 {offsets = [0, 24], sizes = [64, 8], strides = [1, 1]} : vector<128x96xbf16> to vector<64x8xbf16>
    %35 = vector.extract_strided_slice %24 {offsets = [0, 56], sizes = [64, 8], strides = [1, 1]} : vector<128x96xbf16> to vector<64x8xbf16>
    %cst_18 = arith.constant dense<0.000000e+00> : vector<64x64xf32>
    %36 = tpu.matmul %34, %35, %cst_18 {dimension_numbers = #tpu.dot_dimension_numbers<[1], [1], [0], [0], [0, 0, 1, 0], [], []>} : vector<64x8xbf16>, vector<64x8xbf16>, vector<64x64xf32> -> vector<64x64xf32>
    %37 = vector.extract_strided_slice %24 {offsets = [64, 0], sizes = [64, 8], strides = [1, 1]} : vector<128x96xbf16> to vector<64x8xbf16>
    %38 = vector.extract_strided_slice %24 {offsets = [64, 32], sizes = [64, 8], strides = [1, 1]} : vector<128x96xbf16> to vector<64x8xbf16>
    %cst_19 = arith.constant dense<0.000000e+00> : vector<64x64xf32>
    %39 = tpu.matmul %37, %38, %cst_19 {dimension_numbers = #tpu.dot_dimension_numbers<[1], [1], [0], [0], [0, 0, 1, 0], [], []>} : vector<64x8xbf16>, vector<64x8xbf16>, vector<64x64xf32> -> vector<64x64xf32>
    %40 = vector.extract_strided_slice %24 {offsets = [64, 8], sizes = [64, 8], strides = [1, 1]} : vector<128x96xbf16> to vector<64x8xbf16>
    %41 = vector.extract_strided_slice %24 {offsets = [64, 40], sizes = [64, 8], strides = [1, 1]} : vector<128x96xbf16> to vector<64x8xbf16>
    %cst_20 = arith.constant dense<0.000000e+00> : vector<64x64xf32>
    %42 = tpu.matmul %40, %41, %cst_20 {dimension_numbers = #tpu.dot_dimension_numbers<[1], [1], [0], [0], [0, 0, 1, 0], [], []>} : vector<64x8xbf16>, vector<64x8xbf16>, vector<64x64xf32> -> vector<64x64xf32>
    %43 = vector.extract_strided_slice %24 {offsets = [64, 16], sizes = [64, 8], strides = [1, 1]} : vector<128x96xbf16> to vector<64x8xbf16>
    %44 = vector.extract_strided_slice %24 {offsets = [64, 48], sizes = [64, 8], strides = [1, 1]} : vector<128x96xbf16> to vector<64x8xbf16>
    %cst_21 = arith.constant dense<0.000000e+00> : vector<64x64xf32>
    %45 = tpu.matmul %43, %44, %cst_21 {dimension_numbers = #tpu.dot_dimension_numbers<[1], [1], [0], [0], [0, 0, 1, 0], [], []>} : vector<64x8xbf16>, vector<64x8xbf16>, vector<64x64xf32> -> vector<64x64xf32>
    %46 = vector.extract_strided_slice %24 {offsets = [64, 24], sizes = [64, 8], strides = [1, 1]} : vector<128x96xbf16> to vector<64x8xbf16>
    %47 = vector.extract_strided_slice %24 {offsets = [64, 56], sizes = [64, 8], strides = [1, 1]} : vector<128x96xbf16> to vector<64x8xbf16>
    %cst_22 = arith.constant dense<0.000000e+00> : vector<64x64xf32>
    %48 = tpu.matmul %46, %47, %cst_22 {dimension_numbers = #tpu.dot_dimension_numbers<[1], [1], [0], [0], [0, 0, 1, 0], [], []>} : vector<64x8xbf16>, vector<64x8xbf16>, vector<64x64xf32> -> vector<64x64xf32>
    %49 = tpu.concatenate %27, %30, %33, %36, %39, %42, %45, %48 in 0 : vector<64x64xf32>, vector<64x64xf32>, vector<64x64xf32>, vector<64x64xf32>, vector<64x64xf32>, vector<64x64xf32>, vector<64x64xf32>, vector<64x64xf32> -> vector<512x64xf32>
    %50 = arith.addf %49, %7 : vector<512x64xf32>
    %cst_23 = arith.constant dense<0xFF800000> : vector<512xf32>
    %51 = vector.multi_reduction <maximumf>, %50, %cst_23 [1] : vector<512x64xf32> to vector<512xf32>
    %52 = vector.shape_cast %51 : vector<512xf32> to vector<512x1xf32>
    %53 = vector.broadcast %52 : vector<512x1xf32> to vector<512x64xf32>
    %54 = arith.subf %50, %53 : vector<512x64xf32>
    %55 = math.exp %54 : vector<512x64xf32>
    %cst_24 = arith.constant dense<0.000000e+00> : vector<512xf32>
    %56 = vector.multi_reduction <add>, %55, %cst_24 [1] : vector<512x64xf32> to vector<512xf32>
    %57 = vector.shape_cast %56 : vector<512xf32> to vector<512x1xf32>
    %58 = tpu.reciprocal %57 {approx = true} : vector<512x1xf32> -> vector<512x1xf32>
    %59 = vector.broadcast %58 : vector<512x1xf32> to vector<512x64xf32>
    %60 = arith.mulf %55, %59 : vector<512x64xf32>
    %61 = arith.truncf %60 : vector<512x64xf32> to vector<512x64xbf16>
    %62 = vector.extract_strided_slice %61 {offsets = [0, 0], sizes = [64, 64], strides = [1, 1]} : vector<512x64xbf16> to vector<64x64xbf16>
    %63 = vector.extract_strided_slice %24 {offsets = [0, 64], sizes = [64, 8], strides = [1, 1]} : vector<128x96xbf16> to vector<64x8xbf16>
    %cst_25 = arith.constant dense<0.000000e+00> : vector<64x8xf32>
    %64 = tpu.matmul %62, %63, %cst_25 {dimension_numbers = #tpu.dot_dimension_numbers<[1], [0], [0], [1], [0, 0, 1, 1], [], []>} : vector<64x64xbf16>, vector<64x8xbf16>, vector<64x8xf32> -> vector<64x8xf32>
    %65 = arith.truncf %64 : vector<64x8xf32> to vector<64x8xbf16>
    %66 = vector.extract_strided_slice %11 {offsets = [0, 0], sizes = [8, 32], strides = [1, 1]} : vector<32x32xbf16> to vector<8x32xbf16>
    %cst_26 = arith.constant dense<0.000000e+00> : vector<64x32xf32>
    %67 = tpu.matmul %65, %66, %cst_26 {dimension_numbers = #tpu.dot_dimension_numbers<[1], [0], [0], [1], [0, 0, 1, 1], [], []>} : vector<64x8xbf16>, vector<8x32xbf16>, vector<64x32xf32> -> vector<64x32xf32>
    %68 = vector.extract_strided_slice %61 {offsets = [64, 0], sizes = [64, 64], strides = [1, 1]} : vector<512x64xbf16> to vector<64x64xbf16>
    %69 = vector.extract_strided_slice %24 {offsets = [0, 72], sizes = [64, 8], strides = [1, 1]} : vector<128x96xbf16> to vector<64x8xbf16>
    %cst_27 = arith.constant dense<0.000000e+00> : vector<64x8xf32>
    %70 = tpu.matmul %68, %69, %cst_27 {dimension_numbers = #tpu.dot_dimension_numbers<[1], [0], [0], [1], [0, 0, 1, 1], [], []>} : vector<64x64xbf16>, vector<64x8xbf16>, vector<64x8xf32> -> vector<64x8xf32>
    %71 = arith.truncf %70 : vector<64x8xf32> to vector<64x8xbf16>
    %72 = vector.extract_strided_slice %11 {offsets = [8, 0], sizes = [8, 32], strides = [1, 1]} : vector<32x32xbf16> to vector<8x32xbf16>
    %cst_28 = arith.constant dense<0.000000e+00> : vector<64x32xf32>
    %73 = tpu.matmul %71, %72, %cst_28 {dimension_numbers = #tpu.dot_dimension_numbers<[1], [0], [0], [1], [0, 0, 1, 1], [], []>} : vector<64x8xbf16>, vector<8x32xbf16>, vector<64x32xf32> -> vector<64x32xf32>
    %74 = arith.addf %67, %73 : vector<64x32xf32>
    %75 = vector.extract_strided_slice %61 {offsets = [128, 0], sizes = [64, 64], strides = [1, 1]} : vector<512x64xbf16> to vector<64x64xbf16>
    %76 = vector.extract_strided_slice %24 {offsets = [0, 80], sizes = [64, 8], strides = [1, 1]} : vector<128x96xbf16> to vector<64x8xbf16>
    %cst_29 = arith.constant dense<0.000000e+00> : vector<64x8xf32>
    %77 = tpu.matmul %75, %76, %cst_29 {dimension_numbers = #tpu.dot_dimension_numbers<[1], [0], [0], [1], [0, 0, 1, 1], [], []>} : vector<64x64xbf16>, vector<64x8xbf16>, vector<64x8xf32> -> vector<64x8xf32>
    %78 = arith.truncf %77 : vector<64x8xf32> to vector<64x8xbf16>
    %79 = vector.extract_strided_slice %11 {offsets = [16, 0], sizes = [8, 32], strides = [1, 1]} : vector<32x32xbf16> to vector<8x32xbf16>
    %cst_30 = arith.constant dense<0.000000e+00> : vector<64x32xf32>
    %80 = tpu.matmul %78, %79, %cst_30 {dimension_numbers = #tpu.dot_dimension_numbers<[1], [0], [0], [1], [0, 0, 1, 1], [], []>} : vector<64x8xbf16>, vector<8x32xbf16>, vector<64x32xf32> -> vector<64x32xf32>
    %81 = arith.addf %74, %80 : vector<64x32xf32>
    %82 = vector.extract_strided_slice %61 {offsets = [192, 0], sizes = [64, 64], strides = [1, 1]} : vector<512x64xbf16> to vector<64x64xbf16>
    %83 = vector.extract_strided_slice %24 {offsets = [0, 88], sizes = [64, 8], strides = [1, 1]} : vector<128x96xbf16> to vector<64x8xbf16>
    %cst_31 = arith.constant dense<0.000000e+00> : vector<64x8xf32>
    %84 = tpu.matmul %82, %83, %cst_31 {dimension_numbers = #tpu.dot_dimension_numbers<[1], [0], [0], [1], [0, 0, 1, 1], [], []>} : vector<64x64xbf16>, vector<64x8xbf16>, vector<64x8xf32> -> vector<64x8xf32>
    %85 = arith.truncf %84 : vector<64x8xf32> to vector<64x8xbf16>
    %86 = vector.extract_strided_slice %11 {offsets = [24, 0], sizes = [8, 32], strides = [1, 1]} : vector<32x32xbf16> to vector<8x32xbf16>
    %cst_32 = arith.constant dense<0.000000e+00> : vector<64x32xf32>
    %87 = tpu.matmul %85, %86, %cst_32 {dimension_numbers = #tpu.dot_dimension_numbers<[1], [0], [0], [1], [0, 0, 1, 1], [], []>} : vector<64x8xbf16>, vector<8x32xbf16>, vector<64x32xf32> -> vector<64x32xf32>
    %88 = arith.addf %81, %87 : vector<64x32xf32>
    %89 = vector.extract_strided_slice %61 {offsets = [256, 0], sizes = [64, 64], strides = [1, 1]} : vector<512x64xbf16> to vector<64x64xbf16>
    %90 = vector.extract_strided_slice %24 {offsets = [64, 64], sizes = [64, 8], strides = [1, 1]} : vector<128x96xbf16> to vector<64x8xbf16>
    %cst_33 = arith.constant dense<0.000000e+00> : vector<64x8xf32>
    %91 = tpu.matmul %89, %90, %cst_33 {dimension_numbers = #tpu.dot_dimension_numbers<[1], [0], [0], [1], [0, 0, 1, 1], [], []>} : vector<64x64xbf16>, vector<64x8xbf16>, vector<64x8xf32> -> vector<64x8xf32>
    %92 = arith.truncf %91 : vector<64x8xf32> to vector<64x8xbf16>
    %93 = vector.extract_strided_slice %11 {offsets = [0, 0], sizes = [8, 32], strides = [1, 1]} : vector<32x32xbf16> to vector<8x32xbf16>
    %cst_34 = arith.constant dense<0.000000e+00> : vector<64x32xf32>
    %94 = tpu.matmul %92, %93, %cst_34 {dimension_numbers = #tpu.dot_dimension_numbers<[1], [0], [0], [1], [0, 0, 1, 1], [], []>} : vector<64x8xbf16>, vector<8x32xbf16>, vector<64x32xf32> -> vector<64x32xf32>
    %95 = vector.extract_strided_slice %61 {offsets = [320, 0], sizes = [64, 64], strides = [1, 1]} : vector<512x64xbf16> to vector<64x64xbf16>
    %96 = vector.extract_strided_slice %24 {offsets = [64, 72], sizes = [64, 8], strides = [1, 1]} : vector<128x96xbf16> to vector<64x8xbf16>
    %cst_35 = arith.constant dense<0.000000e+00> : vector<64x8xf32>
    %97 = tpu.matmul %95, %96, %cst_35 {dimension_numbers = #tpu.dot_dimension_numbers<[1], [0], [0], [1], [0, 0, 1, 1], [], []>} : vector<64x64xbf16>, vector<64x8xbf16>, vector<64x8xf32> -> vector<64x8xf32>
    %98 = arith.truncf %97 : vector<64x8xf32> to vector<64x8xbf16>
    %99 = vector.extract_strided_slice %11 {offsets = [8, 0], sizes = [8, 32], strides = [1, 1]} : vector<32x32xbf16> to vector<8x32xbf16>
    %cst_36 = arith.constant dense<0.000000e+00> : vector<64x32xf32>
    %100 = tpu.matmul %98, %99, %cst_36 {dimension_numbers = #tpu.dot_dimension_numbers<[1], [0], [0], [1], [0, 0, 1, 1], [], []>} : vector<64x8xbf16>, vector<8x32xbf16>, vector<64x32xf32> -> vector<64x32xf32>
    %101 = arith.addf %94, %100 : vector<64x32xf32>
    %102 = vector.extract_strided_slice %61 {offsets = [384, 0], sizes = [64, 64], strides = [1, 1]} : vector<512x64xbf16> to vector<64x64xbf16>
    %103 = vector.extract_strided_slice %24 {offsets = [64, 80], sizes = [64, 8], strides = [1, 1]} : vector<128x96xbf16> to vector<64x8xbf16>
    %cst_37 = arith.constant dense<0.000000e+00> : vector<64x8xf32>
    %104 = tpu.matmul %102, %103, %cst_37 {dimension_numbers = #tpu.dot_dimension_numbers<[1], [0], [0], [1], [0, 0, 1, 1], [], []>} : vector<64x64xbf16>, vector<64x8xbf16>, vector<64x8xf32> -> vector<64x8xf32>
    %105 = arith.truncf %104 : vector<64x8xf32> to vector<64x8xbf16>
    %106 = vector.extract_strided_slice %11 {offsets = [16, 0], sizes = [8, 32], strides = [1, 1]} : vector<32x32xbf16> to vector<8x32xbf16>
    %cst_38 = arith.constant dense<0.000000e+00> : vector<64x32xf32>
    %107 = tpu.matmul %105, %106, %cst_38 {dimension_numbers = #tpu.dot_dimension_numbers<[1], [0], [0], [1], [0, 0, 1, 1], [], []>} : vector<64x8xbf16>, vector<8x32xbf16>, vector<64x32xf32> -> vector<64x32xf32>
    %108 = arith.addf %101, %107 : vector<64x32xf32>
    %109 = vector.extract_strided_slice %61 {offsets = [448, 0], sizes = [64, 64], strides = [1, 1]} : vector<512x64xbf16> to vector<64x64xbf16>
    %110 = vector.extract_strided_slice %24 {offsets = [64, 88], sizes = [64, 8], strides = [1, 1]} : vector<128x96xbf16> to vector<64x8xbf16>
    %cst_39 = arith.constant dense<0.000000e+00> : vector<64x8xf32>
    %111 = tpu.matmul %109, %110, %cst_39 {dimension_numbers = #tpu.dot_dimension_numbers<[1], [0], [0], [1], [0, 0, 1, 1], [], []>} : vector<64x64xbf16>, vector<64x8xbf16>, vector<64x8xf32> -> vector<64x8xf32>
    %112 = arith.truncf %111 : vector<64x8xf32> to vector<64x8xbf16>
    %113 = vector.extract_strided_slice %11 {offsets = [24, 0], sizes = [8, 32], strides = [1, 1]} : vector<32x32xbf16> to vector<8x32xbf16>
    %cst_40 = arith.constant dense<0.000000e+00> : vector<64x32xf32>
    %114 = tpu.matmul %112, %113, %cst_40 {dimension_numbers = #tpu.dot_dimension_numbers<[1], [0], [0], [1], [0, 0, 1, 1], [], []>} : vector<64x8xbf16>, vector<8x32xbf16>, vector<64x32xf32> -> vector<64x32xf32>
    %115 = arith.addf %108, %114 : vector<64x32xf32>
    %116 = tpu.concatenate %88, %115 in 0 : vector<64x32xf32>, vector<64x32xf32> -> vector<128x32xf32>
    %117 = arith.addf %116, %6 : vector<128x32xf32>
    %cst_41 = arith.constant dense<0.000000e+00> : vector<128xf32>
    %118 = vector.multi_reduction <add>, %117, %cst_41 [1] : vector<128x32xf32> to vector<128xf32>
    %119 = vector.shape_cast %118 : vector<128xf32> to vector<128x1xf32>
    %cst_42 = arith.constant 3.200000e+01 : f32
    %120 = vector.broadcast %cst_42 : f32 to vector<128x1xf32>
    %121 = arith.divf %119, %120 : vector<128x1xf32>
    %122 = vector.broadcast %121 : vector<128x1xf32> to vector<128x32xf32>
    %123 = arith.subf %117, %122 : vector<128x32xf32>
    %124 = arith.mulf %123, %123 : vector<128x32xf32>
    %cst_43 = arith.constant dense<0.000000e+00> : vector<128xf32>
    %125 = vector.multi_reduction <add>, %124, %cst_43 [1] : vector<128x32xf32> to vector<128xf32>
    %126 = vector.shape_cast %125 : vector<128xf32> to vector<128x1xf32>
    %cst_44 = arith.constant 3.200000e+01 : f32
    %127 = vector.broadcast %cst_44 : f32 to vector<128x1xf32>
    %128 = arith.divf %126, %127 : vector<128x1xf32>
    %cst_45 = arith.constant 9.99999997E-7 : f32
    %129 = vector.broadcast %cst_45 : f32 to vector<128x1xf32>
    %130 = arith.addf %128, %129 : vector<128x1xf32>
    %131 = math.rsqrt %130 : vector<128x1xf32>
    %132 = vector.broadcast %131 : vector<128x1xf32> to vector<128x32xf32>
    %133 = arith.mulf %123, %132 : vector<128x32xf32>
    %134 = vector.broadcast %16 : vector<1x32xf32> to vector<128x32xf32>
    %135 = arith.mulf %133, %134 : vector<128x32xf32>
    %136 = vector.broadcast %17 : vector<1x32xf32> to vector<128x32xf32>
    %137 = arith.addf %135, %136 : vector<128x32xf32>
    %138 = arith.truncf %137 : vector<128x32xf32> to vector<128x32xbf16>
    %cst_46 = arith.constant dense<0.000000e+00> : vector<128x64xf32>
    %139 = tpu.matmul %138, %12, %cst_46 {dimension_numbers = #tpu.dot_dimension_numbers<[1], [0], [0], [1], [0, 0, 1, 1], [], []>} : vector<128x32xbf16>, vector<32x64xbf16>, vector<128x64xf32> -> vector<128x64xf32>
    %140 = vector.broadcast %18 : vector<1x64xf32> to vector<128x64xf32>
    %141 = arith.addf %139, %140 : vector<128x64xf32>
    %cst_47 = arith.constant 0.000000e+00 : f32
    %142 = vector.broadcast %cst_47 : f32 to vector<128x64xf32>
    %143 = arith.maximumf %141, %142 : vector<128x64xf32>
    %144 = arith.truncf %143 : vector<128x64xf32> to vector<128x64xbf16>
    %cst_48 = arith.constant dense<0.000000e+00> : vector<128x32xf32>
    %145 = tpu.matmul %144, %13, %cst_48 {dimension_numbers = #tpu.dot_dimension_numbers<[1], [1], [0], [0], [0, 0, 1, 0], [], []>} : vector<128x64xbf16>, vector<32x64xbf16>, vector<128x32xf32> -> vector<128x32xf32>
    %146 = vector.broadcast %19 : vector<1x32xf32> to vector<128x32xf32>
    %147 = arith.addf %145, %146 : vector<128x32xf32>
    %148 = arith.addf %147, %137 : vector<128x32xf32>
    %cst_49 = arith.constant dense<0.000000e+00> : vector<128xf32>
    %149 = vector.multi_reduction <add>, %148, %cst_49 [1] : vector<128x32xf32> to vector<128xf32>
    %150 = vector.shape_cast %149 : vector<128xf32> to vector<128x1xf32>
    %cst_50 = arith.constant 3.200000e+01 : f32
    %151 = vector.broadcast %cst_50 : f32 to vector<128x1xf32>
    %152 = arith.divf %150, %151 : vector<128x1xf32>
    %153 = vector.broadcast %152 : vector<128x1xf32> to vector<128x32xf32>
    %154 = arith.subf %148, %153 : vector<128x32xf32>
    %155 = arith.mulf %154, %154 : vector<128x32xf32>
    %cst_51 = arith.constant dense<0.000000e+00> : vector<128xf32>
    %156 = vector.multi_reduction <add>, %155, %cst_51 [1] : vector<128x32xf32> to vector<128xf32>
    %157 = vector.shape_cast %156 : vector<128xf32> to vector<128x1xf32>
    %cst_52 = arith.constant 3.200000e+01 : f32
    %158 = vector.broadcast %cst_52 : f32 to vector<128x1xf32>
    %159 = arith.divf %157, %158 : vector<128x1xf32>
    %cst_53 = arith.constant 9.99999997E-7 : f32
    %160 = vector.broadcast %cst_53 : f32 to vector<128x1xf32>
    %161 = arith.addf %159, %160 : vector<128x1xf32>
    %162 = math.rsqrt %161 : vector<128x1xf32>
    %163 = vector.broadcast %162 : vector<128x1xf32> to vector<128x32xf32>
    %164 = arith.mulf %154, %163 : vector<128x32xf32>
    %165 = vector.broadcast %20 : vector<1x32xf32> to vector<128x32xf32>
    %166 = arith.mulf %164, %165 : vector<128x32xf32>
    %167 = vector.broadcast %21 : vector<1x32xf32> to vector<128x32xf32>
    %168 = arith.addf %166, %167 : vector<128x32xf32>
    %c1 = arith.constant 1 : index
    %c0_54 = arith.constant 0 : index
    %c0_55 = arith.constant 0 : index
    %169 = vector.load %arg5[%c1, %c0_54, %c0_55] : memref<2x32x256xbf16, #tpu.memory_space<vmem>>, vector<1x32x256xbf16>
    %170 = vector.shape_cast %169 : vector<1x32x256xbf16> to vector<32x256xbf16>
    %171 = vector.extract_strided_slice %170 {offsets = [0, 0], sizes = [32, 96], strides = [1, 1]} : vector<32x256xbf16> to vector<32x96xbf16>
    %172 = vector.extract_strided_slice %170 {offsets = [0, 96], sizes = [32, 32], strides = [1, 1]} : vector<32x256xbf16> to vector<32x32xbf16>
    %173 = vector.extract_strided_slice %170 {offsets = [0, 128], sizes = [32, 64], strides = [1, 1]} : vector<32x256xbf16> to vector<32x64xbf16>
    %174 = vector.extract_strided_slice %170 {offsets = [0, 192], sizes = [32, 64], strides = [1, 1]} : vector<32x256xbf16> to vector<32x64xbf16>
    %c1_56 = arith.constant 1 : index
    %c0_57 = arith.constant 0 : index
    %c0_58 = arith.constant 0 : index
    %175 = vector.load %arg6[%c1_56, %c0_57, %c0_58] : memref<2x8x64xf32, #tpu.memory_space<vmem>>, vector<1x8x64xf32>
    %176 = vector.shape_cast %175 : vector<1x8x64xf32> to vector<8x64xf32>
    %177 = vector.extract_strided_slice %176 {offsets = [0, 0], sizes = [1, 32], strides = [1, 1]} : vector<8x64xf32> to vector<1x32xf32>
    %178 = vector.extract_strided_slice %176 {offsets = [1, 0], sizes = [1, 32], strides = [1, 1]} : vector<8x64xf32> to vector<1x32xf32>
    %179 = vector.extract_strided_slice %176 {offsets = [2, 0], sizes = [1, 64], strides = [1, 1]} : vector<8x64xf32> to vector<1x64xf32>
    %180 = vector.extract_strided_slice %176 {offsets = [3, 0], sizes = [1, 32], strides = [1, 1]} : vector<8x64xf32> to vector<1x32xf32>
    %181 = vector.extract_strided_slice %176 {offsets = [4, 0], sizes = [1, 32], strides = [1, 1]} : vector<8x64xf32> to vector<1x32xf32>
    %182 = vector.extract_strided_slice %176 {offsets = [5, 0], sizes = [1, 32], strides = [1, 1]} : vector<8x64xf32> to vector<1x32xf32>
    %183 = arith.truncf %168 : vector<128x32xf32> to vector<128x32xbf16>
    %cst_59 = arith.constant dense<0.000000e+00> : vector<128x96xf32>
    %184 = tpu.matmul %183, %171, %cst_59 {dimension_numbers = #tpu.dot_dimension_numbers<[1], [0], [0], [1], [0, 0, 1, 1], [], []>} : vector<128x32xbf16>, vector<32x96xbf16>, vector<128x96xf32> -> vector<128x96xf32>
    %185 = arith.truncf %184 : vector<128x96xf32> to vector<128x96xbf16>
    %186 = vector.extract_strided_slice %185 {offsets = [0, 0], sizes = [64, 8], strides = [1, 1]} : vector<128x96xbf16> to vector<64x8xbf16>
    %187 = vector.extract_strided_slice %185 {offsets = [0, 32], sizes = [64, 8], strides = [1, 1]} : vector<128x96xbf16> to vector<64x8xbf16>
    %cst_60 = arith.constant dense<0.000000e+00> : vector<64x64xf32>
    %188 = tpu.matmul %186, %187, %cst_60 {dimension_numbers = #tpu.dot_dimension_numbers<[1], [1], [0], [0], [0, 0, 1, 0], [], []>} : vector<64x8xbf16>, vector<64x8xbf16>, vector<64x64xf32> -> vector<64x64xf32>
    %189 = vector.extract_strided_slice %185 {offsets = [0, 8], sizes = [64, 8], strides = [1, 1]} : vector<128x96xbf16> to vector<64x8xbf16>
    %190 = vector.extract_strided_slice %185 {offsets = [0, 40], sizes = [64, 8], strides = [1, 1]} : vector<128x96xbf16> to vector<64x8xbf16>
    %cst_61 = arith.constant dense<0.000000e+00> : vector<64x64xf32>
    %191 = tpu.matmul %189, %190, %cst_61 {dimension_numbers = #tpu.dot_dimension_numbers<[1], [1], [0], [0], [0, 0, 1, 0], [], []>} : vector<64x8xbf16>, vector<64x8xbf16>, vector<64x64xf32> -> vector<64x64xf32>
    %192 = vector.extract_strided_slice %185 {offsets = [0, 16], sizes = [64, 8], strides = [1, 1]} : vector<128x96xbf16> to vector<64x8xbf16>
    %193 = vector.extract_strided_slice %185 {offsets = [0, 48], sizes = [64, 8], strides = [1, 1]} : vector<128x96xbf16> to vector<64x8xbf16>
    %cst_62 = arith.constant dense<0.000000e+00> : vector<64x64xf32>
    %194 = tpu.matmul %192, %193, %cst_62 {dimension_numbers = #tpu.dot_dimension_numbers<[1], [1], [0], [0], [0, 0, 1, 0], [], []>} : vector<64x8xbf16>, vector<64x8xbf16>, vector<64x64xf32> -> vector<64x64xf32>
    %195 = vector.extract_strided_slice %185 {offsets = [0, 24], sizes = [64, 8], strides = [1, 1]} : vector<128x96xbf16> to vector<64x8xbf16>
    %196 = vector.extract_strided_slice %185 {offsets = [0, 56], sizes = [64, 8], strides = [1, 1]} : vector<128x96xbf16> to vector<64x8xbf16>
    %cst_63 = arith.constant dense<0.000000e+00> : vector<64x64xf32>
    %197 = tpu.matmul %195, %196, %cst_63 {dimension_numbers = #tpu.dot_dimension_numbers<[1], [1], [0], [0], [0, 0, 1, 0], [], []>} : vector<64x8xbf16>, vector<64x8xbf16>, vector<64x64xf32> -> vector<64x64xf32>
    %198 = vector.extract_strided_slice %185 {offsets = [64, 0], sizes = [64, 8], strides = [1, 1]} : vector<128x96xbf16> to vector<64x8xbf16>
    %199 = vector.extract_strided_slice %185 {offsets = [64, 32], sizes = [64, 8], strides = [1, 1]} : vector<128x96xbf16> to vector<64x8xbf16>
    %cst_64 = arith.constant dense<0.000000e+00> : vector<64x64xf32>
    %200 = tpu.matmul %198, %199, %cst_64 {dimension_numbers = #tpu.dot_dimension_numbers<[1], [1], [0], [0], [0, 0, 1, 0], [], []>} : vector<64x8xbf16>, vector<64x8xbf16>, vector<64x64xf32> -> vector<64x64xf32>
    %201 = vector.extract_strided_slice %185 {offsets = [64, 8], sizes = [64, 8], strides = [1, 1]} : vector<128x96xbf16> to vector<64x8xbf16>
    %202 = vector.extract_strided_slice %185 {offsets = [64, 40], sizes = [64, 8], strides = [1, 1]} : vector<128x96xbf16> to vector<64x8xbf16>
    %cst_65 = arith.constant dense<0.000000e+00> : vector<64x64xf32>
    %203 = tpu.matmul %201, %202, %cst_65 {dimension_numbers = #tpu.dot_dimension_numbers<[1], [1], [0], [0], [0, 0, 1, 0], [], []>} : vector<64x8xbf16>, vector<64x8xbf16>, vector<64x64xf32> -> vector<64x64xf32>
    %204 = vector.extract_strided_slice %185 {offsets = [64, 16], sizes = [64, 8], strides = [1, 1]} : vector<128x96xbf16> to vector<64x8xbf16>
    %205 = vector.extract_strided_slice %185 {offsets = [64, 48], sizes = [64, 8], strides = [1, 1]} : vector<128x96xbf16> to vector<64x8xbf16>
    %cst_66 = arith.constant dense<0.000000e+00> : vector<64x64xf32>
    %206 = tpu.matmul %204, %205, %cst_66 {dimension_numbers = #tpu.dot_dimension_numbers<[1], [1], [0], [0], [0, 0, 1, 0], [], []>} : vector<64x8xbf16>, vector<64x8xbf16>, vector<64x64xf32> -> vector<64x64xf32>
    %207 = vector.extract_strided_slice %185 {offsets = [64, 24], sizes = [64, 8], strides = [1, 1]} : vector<128x96xbf16> to vector<64x8xbf16>
    %208 = vector.extract_strided_slice %185 {offsets = [64, 56], sizes = [64, 8], strides = [1, 1]} : vector<128x96xbf16> to vector<64x8xbf16>
    %cst_67 = arith.constant dense<0.000000e+00> : vector<64x64xf32>
    %209 = tpu.matmul %207, %208, %cst_67 {dimension_numbers = #tpu.dot_dimension_numbers<[1], [1], [0], [0], [0, 0, 1, 0], [], []>} : vector<64x8xbf16>, vector<64x8xbf16>, vector<64x64xf32> -> vector<64x64xf32>
    %210 = tpu.concatenate %188, %191, %194, %197, %200, %203, %206, %209 in 0 : vector<64x64xf32>, vector<64x64xf32>, vector<64x64xf32>, vector<64x64xf32>, vector<64x64xf32>, vector<64x64xf32>, vector<64x64xf32>, vector<64x64xf32> -> vector<512x64xf32>
    %211 = arith.addf %210, %7 : vector<512x64xf32>
    %cst_68 = arith.constant dense<0xFF800000> : vector<512xf32>
    %212 = vector.multi_reduction <maximumf>, %211, %cst_68 [1] : vector<512x64xf32> to vector<512xf32>
    %213 = vector.shape_cast %212 : vector<512xf32> to vector<512x1xf32>
    %214 = vector.broadcast %213 : vector<512x1xf32> to vector<512x64xf32>
    %215 = arith.subf %211, %214 : vector<512x64xf32>
    %216 = math.exp %215 : vector<512x64xf32>
    %cst_69 = arith.constant dense<0.000000e+00> : vector<512xf32>
    %217 = vector.multi_reduction <add>, %216, %cst_69 [1] : vector<512x64xf32> to vector<512xf32>
    %218 = vector.shape_cast %217 : vector<512xf32> to vector<512x1xf32>
    %219 = tpu.reciprocal %218 {approx = true} : vector<512x1xf32> -> vector<512x1xf32>
    %220 = vector.broadcast %219 : vector<512x1xf32> to vector<512x64xf32>
    %221 = arith.mulf %216, %220 : vector<512x64xf32>
    %222 = arith.truncf %221 : vector<512x64xf32> to vector<512x64xbf16>
    %223 = vector.extract_strided_slice %222 {offsets = [0, 0], sizes = [64, 64], strides = [1, 1]} : vector<512x64xbf16> to vector<64x64xbf16>
    %224 = vector.extract_strided_slice %185 {offsets = [0, 64], sizes = [64, 8], strides = [1, 1]} : vector<128x96xbf16> to vector<64x8xbf16>
    %cst_70 = arith.constant dense<0.000000e+00> : vector<64x8xf32>
    %225 = tpu.matmul %223, %224, %cst_70 {dimension_numbers = #tpu.dot_dimension_numbers<[1], [0], [0], [1], [0, 0, 1, 1], [], []>} : vector<64x64xbf16>, vector<64x8xbf16>, vector<64x8xf32> -> vector<64x8xf32>
    %226 = arith.truncf %225 : vector<64x8xf32> to vector<64x8xbf16>
    %227 = vector.extract_strided_slice %172 {offsets = [0, 0], sizes = [8, 32], strides = [1, 1]} : vector<32x32xbf16> to vector<8x32xbf16>
    %cst_71 = arith.constant dense<0.000000e+00> : vector<64x32xf32>
    %228 = tpu.matmul %226, %227, %cst_71 {dimension_numbers = #tpu.dot_dimension_numbers<[1], [0], [0], [1], [0, 0, 1, 1], [], []>} : vector<64x8xbf16>, vector<8x32xbf16>, vector<64x32xf32> -> vector<64x32xf32>
    %229 = vector.extract_strided_slice %222 {offsets = [64, 0], sizes = [64, 64], strides = [1, 1]} : vector<512x64xbf16> to vector<64x64xbf16>
    %230 = vector.extract_strided_slice %185 {offsets = [0, 72], sizes = [64, 8], strides = [1, 1]} : vector<128x96xbf16> to vector<64x8xbf16>
    %cst_72 = arith.constant dense<0.000000e+00> : vector<64x8xf32>
    %231 = tpu.matmul %229, %230, %cst_72 {dimension_numbers = #tpu.dot_dimension_numbers<[1], [0], [0], [1], [0, 0, 1, 1], [], []>} : vector<64x64xbf16>, vector<64x8xbf16>, vector<64x8xf32> -> vector<64x8xf32>
    %232 = arith.truncf %231 : vector<64x8xf32> to vector<64x8xbf16>
    %233 = vector.extract_strided_slice %172 {offsets = [8, 0], sizes = [8, 32], strides = [1, 1]} : vector<32x32xbf16> to vector<8x32xbf16>
    %cst_73 = arith.constant dense<0.000000e+00> : vector<64x32xf32>
    %234 = tpu.matmul %232, %233, %cst_73 {dimension_numbers = #tpu.dot_dimension_numbers<[1], [0], [0], [1], [0, 0, 1, 1], [], []>} : vector<64x8xbf16>, vector<8x32xbf16>, vector<64x32xf32> -> vector<64x32xf32>
    %235 = arith.addf %228, %234 : vector<64x32xf32>
    %236 = vector.extract_strided_slice %222 {offsets = [128, 0], sizes = [64, 64], strides = [1, 1]} : vector<512x64xbf16> to vector<64x64xbf16>
    %237 = vector.extract_strided_slice %185 {offsets = [0, 80], sizes = [64, 8], strides = [1, 1]} : vector<128x96xbf16> to vector<64x8xbf16>
    %cst_74 = arith.constant dense<0.000000e+00> : vector<64x8xf32>
    %238 = tpu.matmul %236, %237, %cst_74 {dimension_numbers = #tpu.dot_dimension_numbers<[1], [0], [0], [1], [0, 0, 1, 1], [], []>} : vector<64x64xbf16>, vector<64x8xbf16>, vector<64x8xf32> -> vector<64x8xf32>
    %239 = arith.truncf %238 : vector<64x8xf32> to vector<64x8xbf16>
    %240 = vector.extract_strided_slice %172 {offsets = [16, 0], sizes = [8, 32], strides = [1, 1]} : vector<32x32xbf16> to vector<8x32xbf16>
    %cst_75 = arith.constant dense<0.000000e+00> : vector<64x32xf32>
    %241 = tpu.matmul %239, %240, %cst_75 {dimension_numbers = #tpu.dot_dimension_numbers<[1], [0], [0], [1], [0, 0, 1, 1], [], []>} : vector<64x8xbf16>, vector<8x32xbf16>, vector<64x32xf32> -> vector<64x32xf32>
    %242 = arith.addf %235, %241 : vector<64x32xf32>
    %243 = vector.extract_strided_slice %222 {offsets = [192, 0], sizes = [64, 64], strides = [1, 1]} : vector<512x64xbf16> to vector<64x64xbf16>
    %244 = vector.extract_strided_slice %185 {offsets = [0, 88], sizes = [64, 8], strides = [1, 1]} : vector<128x96xbf16> to vector<64x8xbf16>
    %cst_76 = arith.constant dense<0.000000e+00> : vector<64x8xf32>
    %245 = tpu.matmul %243, %244, %cst_76 {dimension_numbers = #tpu.dot_dimension_numbers<[1], [0], [0], [1], [0, 0, 1, 1], [], []>} : vector<64x64xbf16>, vector<64x8xbf16>, vector<64x8xf32> -> vector<64x8xf32>
    %246 = arith.truncf %245 : vector<64x8xf32> to vector<64x8xbf16>
    %247 = vector.extract_strided_slice %172 {offsets = [24, 0], sizes = [8, 32], strides = [1, 1]} : vector<32x32xbf16> to vector<8x32xbf16>
    %cst_77 = arith.constant dense<0.000000e+00> : vector<64x32xf32>
    %248 = tpu.matmul %246, %247, %cst_77 {dimension_numbers = #tpu.dot_dimension_numbers<[1], [0], [0], [1], [0, 0, 1, 1], [], []>} : vector<64x8xbf16>, vector<8x32xbf16>, vector<64x32xf32> -> vector<64x32xf32>
    %249 = arith.addf %242, %248 : vector<64x32xf32>
    %250 = vector.extract_strided_slice %222 {offsets = [256, 0], sizes = [64, 64], strides = [1, 1]} : vector<512x64xbf16> to vector<64x64xbf16>
    %251 = vector.extract_strided_slice %185 {offsets = [64, 64], sizes = [64, 8], strides = [1, 1]} : vector<128x96xbf16> to vector<64x8xbf16>
    %cst_78 = arith.constant dense<0.000000e+00> : vector<64x8xf32>
    %252 = tpu.matmul %250, %251, %cst_78 {dimension_numbers = #tpu.dot_dimension_numbers<[1], [0], [0], [1], [0, 0, 1, 1], [], []>} : vector<64x64xbf16>, vector<64x8xbf16>, vector<64x8xf32> -> vector<64x8xf32>
    %253 = arith.truncf %252 : vector<64x8xf32> to vector<64x8xbf16>
    %254 = vector.extract_strided_slice %172 {offsets = [0, 0], sizes = [8, 32], strides = [1, 1]} : vector<32x32xbf16> to vector<8x32xbf16>
    %cst_79 = arith.constant dense<0.000000e+00> : vector<64x32xf32>
    %255 = tpu.matmul %253, %254, %cst_79 {dimension_numbers = #tpu.dot_dimension_numbers<[1], [0], [0], [1], [0, 0, 1, 1], [], []>} : vector<64x8xbf16>, vector<8x32xbf16>, vector<64x32xf32> -> vector<64x32xf32>
    %256 = vector.extract_strided_slice %222 {offsets = [320, 0], sizes = [64, 64], strides = [1, 1]} : vector<512x64xbf16> to vector<64x64xbf16>
    %257 = vector.extract_strided_slice %185 {offsets = [64, 72], sizes = [64, 8], strides = [1, 1]} : vector<128x96xbf16> to vector<64x8xbf16>
    %cst_80 = arith.constant dense<0.000000e+00> : vector<64x8xf32>
    %258 = tpu.matmul %256, %257, %cst_80 {dimension_numbers = #tpu.dot_dimension_numbers<[1], [0], [0], [1], [0, 0, 1, 1], [], []>} : vector<64x64xbf16>, vector<64x8xbf16>, vector<64x8xf32> -> vector<64x8xf32>
    %259 = arith.truncf %258 : vector<64x8xf32> to vector<64x8xbf16>
    %260 = vector.extract_strided_slice %172 {offsets = [8, 0], sizes = [8, 32], strides = [1, 1]} : vector<32x32xbf16> to vector<8x32xbf16>
    %cst_81 = arith.constant dense<0.000000e+00> : vector<64x32xf32>
    %261 = tpu.matmul %259, %260, %cst_81 {dimension_numbers = #tpu.dot_dimension_numbers<[1], [0], [0], [1], [0, 0, 1, 1], [], []>} : vector<64x8xbf16>, vector<8x32xbf16>, vector<64x32xf32> -> vector<64x32xf32>
    %262 = arith.addf %255, %261 : vector<64x32xf32>
    %263 = vector.extract_strided_slice %222 {offsets = [384, 0], sizes = [64, 64], strides = [1, 1]} : vector<512x64xbf16> to vector<64x64xbf16>
    %264 = vector.extract_strided_slice %185 {offsets = [64, 80], sizes = [64, 8], strides = [1, 1]} : vector<128x96xbf16> to vector<64x8xbf16>
    %cst_82 = arith.constant dense<0.000000e+00> : vector<64x8xf32>
    %265 = tpu.matmul %263, %264, %cst_82 {dimension_numbers = #tpu.dot_dimension_numbers<[1], [0], [0], [1], [0, 0, 1, 1], [], []>} : vector<64x64xbf16>, vector<64x8xbf16>, vector<64x8xf32> -> vector<64x8xf32>
    %266 = arith.truncf %265 : vector<64x8xf32> to vector<64x8xbf16>
    %267 = vector.extract_strided_slice %172 {offsets = [16, 0], sizes = [8, 32], strides = [1, 1]} : vector<32x32xbf16> to vector<8x32xbf16>
    %cst_83 = arith.constant dense<0.000000e+00> : vector<64x32xf32>
    %268 = tpu.matmul %266, %267, %cst_83 {dimension_numbers = #tpu.dot_dimension_numbers<[1], [0], [0], [1], [0, 0, 1, 1], [], []>} : vector<64x8xbf16>, vector<8x32xbf16>, vector<64x32xf32> -> vector<64x32xf32>
    %269 = arith.addf %262, %268 : vector<64x32xf32>
    %270 = vector.extract_strided_slice %222 {offsets = [448, 0], sizes = [64, 64], strides = [1, 1]} : vector<512x64xbf16> to vector<64x64xbf16>
    %271 = vector.extract_strided_slice %185 {offsets = [64, 88], sizes = [64, 8], strides = [1, 1]} : vector<128x96xbf16> to vector<64x8xbf16>
    %cst_84 = arith.constant dense<0.000000e+00> : vector<64x8xf32>
    %272 = tpu.matmul %270, %271, %cst_84 {dimension_numbers = #tpu.dot_dimension_numbers<[1], [0], [0], [1], [0, 0, 1, 1], [], []>} : vector<64x64xbf16>, vector<64x8xbf16>, vector<64x8xf32> -> vector<64x8xf32>
    %273 = arith.truncf %272 : vector<64x8xf32> to vector<64x8xbf16>
    %274 = vector.extract_strided_slice %172 {offsets = [24, 0], sizes = [8, 32], strides = [1, 1]} : vector<32x32xbf16> to vector<8x32xbf16>
    %cst_85 = arith.constant dense<0.000000e+00> : vector<64x32xf32>
    %275 = tpu.matmul %273, %274, %cst_85 {dimension_numbers = #tpu.dot_dimension_numbers<[1], [0], [0], [1], [0, 0, 1, 1], [], []>} : vector<64x8xbf16>, vector<8x32xbf16>, vector<64x32xf32> -> vector<64x32xf32>
    %276 = arith.addf %269, %275 : vector<64x32xf32>
    %277 = tpu.concatenate %249, %276 in 0 : vector<64x32xf32>, vector<64x32xf32> -> vector<128x32xf32>
    %278 = arith.addf %277, %168 : vector<128x32xf32>
    %cst_86 = arith.constant dense<0.000000e+00> : vector<128xf32>
    %279 = vector.multi_reduction <add>, %278, %cst_86 [1] : vector<128x32xf32> to vector<128xf32>
    %280 = vector.shape_cast %279 : vector<128xf32> to vector<128x1xf32>
    %cst_87 = arith.constant 3.200000e+01 : f32
    %281 = vector.broadcast %cst_87 : f32 to vector<128x1xf32>
    %282 = arith.divf %280, %281 : vector<128x1xf32>
    %283 = vector.broadcast %282 : vector<128x1xf32> to vector<128x32xf32>
    %284 = arith.subf %278, %283 : vector<128x32xf32>
    %285 = arith.mulf %284, %284 : vector<128x32xf32>
    %cst_88 = arith.constant dense<0.000000e+00> : vector<128xf32>
    %286 = vector.multi_reduction <add>, %285, %cst_88 [1] : vector<128x32xf32> to vector<128xf32>
    %287 = vector.shape_cast %286 : vector<128xf32> to vector<128x1xf32>
    %cst_89 = arith.constant 3.200000e+01 : f32
    %288 = vector.broadcast %cst_89 : f32 to vector<128x1xf32>
    %289 = arith.divf %287, %288 : vector<128x1xf32>
    %cst_90 = arith.constant 9.99999997E-7 : f32
    %290 = vector.broadcast %cst_90 : f32 to vector<128x1xf32>
    %291 = arith.addf %289, %290 : vector<128x1xf32>
    %292 = math.rsqrt %291 : vector<128x1xf32>
    %293 = vector.broadcast %292 : vector<128x1xf32> to vector<128x32xf32>
    %294 = arith.mulf %284, %293 : vector<128x32xf32>
    %295 = vector.broadcast %177 : vector<1x32xf32> to vector<128x32xf32>
    %296 = arith.mulf %294, %295 : vector<128x32xf32>
    %297 = vector.broadcast %178 : vector<1x32xf32> to vector<128x32xf32>
    %298 = arith.addf %296, %297 : vector<128x32xf32>
    %299 = arith.truncf %298 : vector<128x32xf32> to vector<128x32xbf16>
    %cst_91 = arith.constant dense<0.000000e+00> : vector<128x64xf32>
    %300 = tpu.matmul %299, %173, %cst_91 {dimension_numbers = #tpu.dot_dimension_numbers<[1], [0], [0], [1], [0, 0, 1, 1], [], []>} : vector<128x32xbf16>, vector<32x64xbf16>, vector<128x64xf32> -> vector<128x64xf32>
    %301 = vector.broadcast %179 : vector<1x64xf32> to vector<128x64xf32>
    %302 = arith.addf %300, %301 : vector<128x64xf32>
    %cst_92 = arith.constant 0.000000e+00 : f32
    %303 = vector.broadcast %cst_92 : f32 to vector<128x64xf32>
    %304 = arith.maximumf %302, %303 : vector<128x64xf32>
    %305 = arith.truncf %304 : vector<128x64xf32> to vector<128x64xbf16>
    %cst_93 = arith.constant dense<0.000000e+00> : vector<128x32xf32>
    %306 = tpu.matmul %305, %174, %cst_93 {dimension_numbers = #tpu.dot_dimension_numbers<[1], [1], [0], [0], [0, 0, 1, 0], [], []>} : vector<128x64xbf16>, vector<32x64xbf16>, vector<128x32xf32> -> vector<128x32xf32>
    %307 = vector.broadcast %180 : vector<1x32xf32> to vector<128x32xf32>
    %308 = arith.addf %306, %307 : vector<128x32xf32>
    %309 = arith.addf %308, %298 : vector<128x32xf32>
    %cst_94 = arith.constant dense<0.000000e+00> : vector<128xf32>
    %310 = vector.multi_reduction <add>, %309, %cst_94 [1] : vector<128x32xf32> to vector<128xf32>
    %311 = vector.shape_cast %310 : vector<128xf32> to vector<128x1xf32>
    %cst_95 = arith.constant 3.200000e+01 : f32
    %312 = vector.broadcast %cst_95 : f32 to vector<128x1xf32>
    %313 = arith.divf %311, %312 : vector<128x1xf32>
    %314 = vector.broadcast %313 : vector<128x1xf32> to vector<128x32xf32>
    %315 = arith.subf %309, %314 : vector<128x32xf32>
    %316 = arith.mulf %315, %315 : vector<128x32xf32>
    %cst_96 = arith.constant dense<0.000000e+00> : vector<128xf32>
    %317 = vector.multi_reduction <add>, %316, %cst_96 [1] : vector<128x32xf32> to vector<128xf32>
    %318 = vector.shape_cast %317 : vector<128xf32> to vector<128x1xf32>
    %cst_97 = arith.constant 3.200000e+01 : f32
    %319 = vector.broadcast %cst_97 : f32 to vector<128x1xf32>
    %320 = arith.divf %318, %319 : vector<128x1xf32>
    %cst_98 = arith.constant 9.99999997E-7 : f32
    %321 = vector.broadcast %cst_98 : f32 to vector<128x1xf32>
    %322 = arith.addf %320, %321 : vector<128x1xf32>
    %323 = math.rsqrt %322 : vector<128x1xf32>
    %324 = vector.broadcast %323 : vector<128x1xf32> to vector<128x32xf32>
    %325 = arith.mulf %315, %324 : vector<128x32xf32>
    %326 = vector.broadcast %181 : vector<1x32xf32> to vector<128x32xf32>
    %327 = arith.mulf %325, %326 : vector<128x32xf32>
    %328 = vector.broadcast %182 : vector<1x32xf32> to vector<128x32xf32>
    %329 = arith.addf %327, %328 : vector<128x32xf32>
    %c0_99 = arith.constant 0 : index
    %c0_100 = arith.constant 0 : index
    %330 = vector.load %arg7[%c0_99, %c0_100] : memref<24x32xbf16, #tpu.memory_space<vmem>>, vector<24x32xbf16>
    %331 = arith.truncf %329 : vector<128x32xf32> to vector<128x32xbf16>
    %cst_101 = arith.constant dense<0.000000e+00> : vector<24x128xf32>
    %332 = tpu.matmul %330, %331, %cst_101 {dimension_numbers = #tpu.dot_dimension_numbers<[1], [1], [0], [0], [0, 0, 1, 0], [], []>} : vector<24x32xbf16>, vector<128x32xbf16>, vector<24x128xf32> -> vector<24x128xf32>
    %333 = vector.shape_cast %332 : vector<24x128xf32> to vector<1x24x128xf32>
    %c0_102 = arith.constant 0 : index
    %c0_103 = arith.constant 0 : index
    %c0_104 = arith.constant 0 : index
    %334 = vector.load %arg8[%c0_102, %c0_103, %c0_104] : memref<1x24x128xf32, #tpu.memory_space<vmem>>, vector<1x24x128xf32>
    tpu.vector_store %arg8[%c0_102, %c0_103, %c0_104], %333 {strides = array<i32>} : memref<1x24x128xf32, #tpu.memory_space<vmem>>, vector<1x24x128xf32>,
    return
  }
  func.func @transform_0(%arg0: i32) -> (i32, i32) {
    %c0_i32 = arith.constant 0 : i32
    %c0_i32_0 = arith.constant 0 : i32
    return %arg0, %c0_i32 : i32, i32
  }
  func.func @transform_1(%arg0: i32) -> (i32, i32) {
    %c0_i32 = arith.constant 0 : i32
    %c0_i32_0 = arith.constant 0 : i32
    %c0_i32_1 = arith.constant 0 : i32
    return %c0_i32, %c0_i32_0 : i32, i32
  }
  func.func @transform_2(%arg0: i32) -> (i32, i32) {
    %c0_i32 = arith.constant 0 : i32
    %c0_i32_0 = arith.constant 0 : i32
    %c0_i32_1 = arith.constant 0 : i32
    return %c0_i32, %c0_i32_0 : i32, i32
  }
  func.func @transform_3(%arg0: i32) -> (i32, i32) {
    %c0_i32 = arith.constant 0 : i32
    %c0_i32_0 = arith.constant 0 : i32
    %c0_i32_1 = arith.constant 0 : i32
    return %c0_i32, %c0_i32_0 : i32, i32
  }
  func.func @transform_4(%arg0: i32) -> (i32, i32, i32) {
    %c0_i32 = arith.constant 0 : i32
    %c0_i32_0 = arith.constant 0 : i32
    %c0_i32_1 = arith.constant 0 : i32
    %c0_i32_2 = arith.constant 0 : i32
    return %c0_i32, %c0_i32_0, %c0_i32_1 : i32, i32, i32
  }
  func.func @transform_5(%arg0: i32) -> (i32, i32, i32) {
    %c0_i32 = arith.constant 0 : i32
    %c0_i32_0 = arith.constant 0 : i32
    %c0_i32_1 = arith.constant 0 : i32
    %c0_i32_2 = arith.constant 0 : i32
    return %c0_i32, %c0_i32_0, %c0_i32_1 : i32, i32, i32
  }
  func.func @transform_6(%arg0: i32) -> (i32, i32) {
    %c0_i32 = arith.constant 0 : i32
    %c0_i32_0 = arith.constant 0 : i32
    %c0_i32_1 = arith.constant 0 : i32
    return %c0_i32, %c0_i32_0 : i32, i32
  }
  func.func @transform_7(%arg0: i32) -> (i32, i32, i32) {
    %c0_i32 = arith.constant 0 : i32
    %c0_i32_0 = arith.constant 0 : i32
    %c0_i32_1 = arith.constant 0 : i32
    return %arg0, %c0_i32, %c0_i32_0 : i32, i32, i32
  }
}

</mosaic_0001>

<llo_original>
// kernel: pallas_forward.1
$region0: #{pallas_forward.1}
  #allocation0 [shape = 'u32[]', space=smem, size = 0x4, offset = 0x4, fixed_abs, tag = 'smem constant byte address 0x4 - core index']
  #allocation1 [shape = 'u32[144,128]{1,0:T(1,128)}', space=vmem, size = 0x12000, scoped, tag = 'internal scratch']
  %s0 = inlined_call_operand.vmem [shape: bf16[128,8], index: 0, kind: input, shape index: {}]
  %s1 = inlined_call_operand.vmem [shape: bf16[8,32], index: 1, kind: input, shape index: {}]
  %s2 = inlined_call_operand.vmem [shape: f32[128,32], index: 2, kind: input, shape index: {}]
  %s3 = inlined_call_operand.vmem [shape: f32[512,64], index: 3, kind: input, shape index: {}]
  %s4 = inlined_call_operand.vmem [shape: bf16[2,32,256], index: 4, kind: input, shape index: {}]
  %s5 = inlined_call_operand.vmem [shape: f32[2,8,64], index: 5, kind: input, shape index: {}]
  %s6 = inlined_call_operand.vmem [shape: bf16[24,32], index: 6, kind: input, shape index: {}]
  %s7 = inlined_call_operand.vmem [shape: f32[1,24,128], index: 7, kind: output, shape index: {}]
  %s8 = sld [smem:[#allocation0]]
  $region38: #{pallas_forward.1} parent=0
    _
  %s10 = ssub.s32 1, %s8
  %s11 = scalar_select 0, %s10, %s8
  // Predicated region
  $region2: #{pallas_forward.1} parent=0 // pred_check
    _
  $region3: #{pallas_forward.1} parent=0 // pred_check_branch
    %13 = sbr.rel (0) target = $region5
  $region4: #{pallas_forward.1} parent=0 // pred_region
    _
  $region5: #{pallas_forward.1} parent=0 // pred_fallthru
    _
  // Predicated region
  $region6: #{pallas_forward.1} parent=0 // pred_check
    _
  $region7: #{pallas_forward.1} parent=0 // pred_check_branch
    %15 = sbr.rel (0) target = $region9
  $region8: #{pallas_forward.1} parent=0 // pred_region
    _
  $region9: #{pallas_forward.1} parent=0 // pred_fallthru
    _
  // Predicated region
  $region10: #{pallas_forward.1} parent=0 // pred_check
    _
  $region11: #{pallas_forward.1} parent=0 // pred_check_branch
    %17 = sbr.rel (0) target = $region13
  $region12: #{pallas_forward.1} parent=0 // pred_region
    _
  $region13: #{pallas_forward.1} parent=0 // pred_fallthru
    _
  // Predicated region
  $region14: #{pallas_forward.1} parent=0 // pred_check
    _
  $region15: #{pallas_forward.1} parent=0 // pred_check_branch
    %19 = sbr.rel (0) target = $region17
  $region16: #{pallas_forward.1} parent=0 // pred_region
    _
  $region17: #{pallas_forward.1} parent=0 // pred_fallthru
    _
  // Predicated region
  $region18: #{pallas_forward.1} parent=0 // pred_check
    _
  $region19: #{pallas_forward.1} parent=0 // pred_check_branch
    %21 = sbr.rel (0) target = $region21
  $region20: #{pallas_forward.1} parent=0 // pred_region
    _
  $region21: #{pallas_forward.1} parent=0 // pred_fallthru
    _
  // Predicated region
  $region22: #{pallas_forward.1} parent=0 // pred_check
    _
  $region23: #{pallas_forward.1} parent=0 // pred_check_branch
    %23 = sbr.rel (0) target = $region25
  $region24: #{pallas_forward.1} parent=0 // pred_region
    _
  $region25: #{pallas_forward.1} parent=0 // pred_fallthru
    _
  // Predicated region
  $region26: #{pallas_forward.1} parent=0 // pred_check
    _
  $region27: #{pallas_forward.1} parent=0 // pred_check_branch
    %25 = sbr.rel (0) target = $region29
  $region28: #{pallas_forward.1} parent=0 // pred_region
    _
  $region29: #{pallas_forward.1} parent=0 // pred_fallthru
    _
  %v27 = vld [vmem:[%s0] sm:$0xf]
  %v28 = vld [vmem:[%s0 + $0x4] sm:$0xf]
  %v29 = vld [vmem:[%s0 + $0x8] sm:$0xf]
  %v30 = vld [vmem:[%s0 + $0xc] sm:$0xf]
  %v31 = vld [vmem:[%s0 + $0x10] sm:$0xf]
  %v32 = vld [vmem:[%s0 + $0x14] sm:$0xf]
  %v33 = vld [vmem:[%s0 + $0x18] sm:$0xf]
  %v34 = vld [vmem:[%s0 + $0x1c] sm:$0xf]
  %v35 = vld [vmem:[%s0 + $0x20] sm:$0xf]
  %v36 = vld [vmem:[%s0 + $0x24] sm:$0xf]
  %v37 = vld [vmem:[%s0 + $0x28] sm:$0xf]
  %v38 = vld [vmem:[%s0 + $0x2c] sm:$0xf]
  %v39 = vld [vmem:[%s0 + $0x30] sm:$0xf]
  %v40 = vld [vmem:[%s0 + $0x34] sm:$0xf]
  %v41 = vld [vmem:[%s0 + $0x38] sm:$0xf]
  %v42 = vld [vmem:[%s0 + $0x3c] sm:$0xf]
  %v43 = vld [vmem:[%s1] sm:$0xf]
  %v60 = vunpack.c.l.b16 %v27
  %v61 = vunpack.c.l.b16 %v28
  %v62 = vunpack.c.l.b16 %v29
  %v63 = vunpack.c.l.b16 %v30
  %v64 = vunpack.c.l.b16 %v31
  %v65 = vunpack.c.l.b16 %v32
  %v66 = vunpack.c.l.b16 %v33
  %v67 = vunpack.c.l.b16 %v34
  %v68 = vunpack.c.l.b16 %v35
  %v69 = vunpack.c.l.b16 %v36
  %v70 = vunpack.c.l.b16 %v37
  %v71 = vunpack.c.l.b16 %v38
  %v72 = vunpack.c.l.b16 %v39
  %v73 = vunpack.c.l.b16 %v40
  %v74 = vunpack.c.l.b16 %v41
  %v75 = vunpack.c.l.b16 %v42
  %v76 = vpack.c.b16 %v61, %v60
  %v77 = vpack.c.b16 %v63, %v62
  %v78 = vpack.c.b16 %v65, %v64
  %v79 = vpack.c.b16 %v67, %v66
  %v80 = vpack.c.b16 %v69, %v68
  %v81 = vpack.c.b16 %v71, %v70
  %v82 = vpack.c.b16 %v73, %v72
  %v83 = vpack.c.b16 %v75, %v74
  %vm84 = vcmask 64512
  %v86 = vsel %vm84, %v76, 0
  %v89 = vsel %vm84, %v77, 0
  %v92 = vsel %vm84, %v78, 0
  %v95 = vsel %vm84, %v79, 0
  %v98 = vsel %vm84, %v80, 0
  %v101 = vsel %vm84, %v81, 0
  %v104 = vsel %vm84, %v82, 0
  %v107 = vsel %vm84, %v83, 0
  %vm109 = vcmask 1043456
  %v111 = vsel %vm109, %v43, 0
  %113 = vmatprep.subr.bf16.mxu0 0
  %114 = vmatpush1.bf16.msra.mxu0 0
  %115 = vmatprep.subr.bf16.mxu0 0
  %116 = vmatpush1.bf16.msra.mxu0 0
  %117 = vmatprep.subr.bf16.mxu0 0
  %118 = vmatpush1.bf16.msra.mxu0 0
  %119 = vmatprep.subr.bf16.mxu0 0
  %120 = vmatpush1.bf16.msra.mxu0 0
  %121 = vmatprep.subr.bf16.mxu0 0
  %122 = vmatpush1.bf16.msra.mxu0 0
  %123 = vmatprep.subr.bf16.mxu0 0
  %124 = vmatpush1.bf16.msra.mxu0 0
  %125 = vmatprep.subr.bf16.mxu0 0
  %126 = vmatpush1.bf16.msra.mxu0 0
  %127 = vmatprep.subr.bf16.mxu0 0
  %128 = vmatpush1.bf16.msra.mxu0 %v111
  %129 = vmatprep.subr.bf16.mxu0 0
  %130 = vmatpush2.bf16.msra.mxu0 0
  %131 = vmatprep.subr.bf16.mxu0 0
  %132 = vmatpush2.bf16.msra.mxu0 0
  %133 = vmatprep.subr.bf16.mxu0 0
  %134 = vmatpush2.bf16.msra.mxu0 0
  %135 = vmatprep.subr.bf16.mxu0 0
  %136 = vmatpush2.bf16.msra.mxu0 0
  %137 = vmatprep.subr.bf16.mxu0 0
  %138 = vmatpush2.bf16.msra.mxu0 0
  %139 = vmatprep.subr.bf16.mxu0 0
  %140 = vmatpush2.bf16.msra.mxu0 0
  %141 = vmatprep.subr.bf16.mxu0 0
  %142 = vmatpush2.bf16.msra.mxu0 0
  %143 = vmatprep.subr.bf16.mxu0 0
  %144 = vmatpush2.bf16.msra.mxu0 0
  %145 = vmatprep.mubr.bf16.mxu0 0
  %146 = vmatmul.mubr.bf16.gmra.mxu0 %v86
  %v147 = vpop.f32.mrf.mxu0
  %v148 = vadd.f32 0.0, %v147
  %v149 = vpop.f32.mrf.mxu0
  %v150 = vpop.f32.mrf.mxu0
  %v151 = vadd.f32 0.0, %v150
  %v152 = vpop.f32.mrf.mxu0
  %153 = vmatprep.mubr.bf16.mxu0 0
  %154 = vmatmul.mubr.bf16.gmra.mxu0 %v89
  %v155 = vpop.f32.mrf.mxu0
  %v156 = vadd.f32 0.0, %v155
  %v157 = vpop.f32.mrf.mxu0
  %v158 = vpop.f32.mrf.mxu0
  %v159 = vadd.f32 0.0, %v158
  %v160 = vpop.f32.mrf.mxu0
  %161 = vmatprep.mubr.bf16.mxu0 0
  %162 = vmatmul.mubr.bf16.gmra.mxu0 %v92
  %v163 = vpop.f32.mrf.mxu0
  %v164 = vadd.f32 0.0, %v163
  %v165 = vpop.f32.mrf.mxu0
  %v166 = vpop.f32.mrf.mxu0
  %v167 = vadd.f32 0.0, %v166
  %v168 = vpop.f32.mrf.mxu0
  %169 = vmatprep.mubr.bf16.mxu0 0
  %170 = vmatmul.mubr.bf16.gmra.mxu0 %v95
  %v171 = vpop.f32.mrf.mxu0
  %v172 = vadd.f32 0.0, %v171
  %v173 = vpop.f32.mrf.mxu0
  %v174 = vpop.f32.mrf.mxu0
  %v175 = vadd.f32 0.0, %v174
  %v176 = vpop.f32.mrf.mxu0
  %177 = vmatprep.mubr.bf16.mxu0 0
  %178 = vmatmul.mubr.bf16.gmra.mxu0 %v98
  %v179 = vpop.f32.mrf.mxu0
  %v180 = vadd.f32 0.0, %v179
  %v181 = vpop.f32.mrf.mxu0
  %v182 = vpop.f32.mrf.mxu0
  %v183 = vadd.f32 0.0, %v182
  %v184 = vpop.f32.mrf.mxu0
  %185 = vmatprep.mubr.bf16.mxu0 0
  %186 = vmatmul.mubr.bf16.gmra.mxu0 %v101
  %v187 = vpop.f32.mrf.mxu0
  %v188 = vadd.f32 0.0, %v187
  %v189 = vpop.f32.mrf.mxu0
  %v190 = vpop.f32.mrf.mxu0
  %v191 = vadd.f32 0.0, %v190
  %v192 = vpop.f32.mrf.mxu0
  %193 = vmatprep.mubr.bf16.mxu0 0
  %194 = vmatmul.mubr.bf16.gmra.mxu0 %v104
  %v195 = vpop.f32.mrf.mxu0
  %v196 = vadd.f32 0.0, %v195
  %v197 = vpop.f32.mrf.mxu0
  %v198 = vpop.f32.mrf.mxu0
  %v199 = vadd.f32 0.0, %v198
  %v200 = vpop.f32.mrf.mxu0
  %201 = vmatprep.mubr.bf16.mxu0 0
  %202 = vmatmul.mubr.bf16.gmra.mxu0 %v107
  %v203 = vpop.f32.mrf.mxu0
  %v204 = vadd.f32 0.0, %v203
  %v205 = vpop.f32.mrf.mxu0
  %v206 = vpop.f32.mrf.mxu0
  %v207 = vadd.f32 0.0, %v206
  %v208 = vpop.f32.mrf.mxu0
  %209 = vdwg.mxu0
  %v210 = vmax.f32 %v148, 0.0
  %v211 = vmax.f32 %v151, 0.0
  %v212 = vmax.f32 %v156, 0.0
  %v213 = vmax.f32 %v159, 0.0
  %v214 = vmax.f32 %v164, 0.0
  %v215 = vmax.f32 %v167, 0.0
  %v216 = vmax.f32 %v172, 0.0
  %v217 = vmax.f32 %v175, 0.0
  %v218 = vmax.f32 %v180, 0.0
  %v219 = vmax.f32 %v183, 0.0
  %v220 = vmax.f32 %v188, 0.0
  %v221 = vmax.f32 %v191, 0.0
  %v222 = vmax.f32 %v196, 0.0
  %v223 = vmax.f32 %v199, 0.0
  %v224 = vmax.f32 %v204, 0.0
  %v225 = vmax.f32 %v207, 0.0
  %v226 = vld [vmem:[%s2] sm:$0xff]
  %v227 = vld [vmem:[%s2 + $0x8] sm:$0xff]
  %v228 = vld [vmem:[%s2 + $0x10] sm:$0xff]
  %v229 = vld [vmem:[%s2 + $0x18] sm:$0xff]
  %v230 = vld [vmem:[%s2 + $0x20] sm:$0xff]
  %v231 = vld [vmem:[%s2 + $0x28] sm:$0xff]
  %v232 = vld [vmem:[%s2 + $0x30] sm:$0xff]
  %v233 = vld [vmem:[%s2 + $0x38] sm:$0xff]
  %v234 = vld [vmem:[%s2 + $0x40] sm:$0xff]
  %v235 = vld [vmem:[%s2 + $0x48] sm:$0xff]
  %v236 = vld [vmem:[%s2 + $0x50] sm:$0xff]
  %v237 = vld [vmem:[%s2 + $0x58] sm:$0xff]
  %v238 = vld [vmem:[%s2 + $0x60] sm:$0xff]
  %v239 = vld [vmem:[%s2 + $0x68] sm:$0xff]
  %v240 = vld [vmem:[%s2 + $0x70] sm:$0xff]
  %v241 = vld [vmem:[%s2 + $0x78] sm:$0xff]
  %v242 = vadd.f32 %v210, %v226
  %v243 = vadd.f32 %v211, %v227
  %v244 = vadd.f32 %v212, %v228
  %v245 = vadd.f32 %v213, %v229
  %v246 = vadd.f32 %v214, %v230
  %v247 = vadd.f32 %v215, %v231
  %v248 = vadd.f32 %v216, %v232
  %v249 = vadd.f32 %v217, %v233
  %v250 = vadd.f32 %v218, %v234
  %v251 = vadd.f32 %v219, %v235
  %v252 = vadd.f32 %v220, %v236
  %v253 = vadd.f32 %v221, %v237
  %v254 = vadd.f32 %v222, %v238
  %v255 = vadd.f32 %v223, %v239
  %v256 = vadd.f32 %v224, %v240
  %v257 = vadd.f32 %v225, %v241
  %v258 = vld [vmem:[%s3] sm:$0xff]
  %v259 = vld [vmem:[%s3 + $0x8] sm:$0xff]
  %v260 = vld [vmem:[%s3 + $0x10] sm:$0xff]
  %v261 = vld [vmem:[%s3 + $0x18] sm:$0xff]
  %v262 = vld [vmem:[%s3 + $0x20] sm:$0xff]
  %v263 = vld [vmem:[%s3 + $0x28] sm:$0xff]
  %v264 = vld [vmem:[%s3 + $0x30] sm:$0xff]
  %v265 = vld [vmem:[%s3 + $0x38] sm:$0xff]
  %v266 = vld [vmem:[%s3 + $0x40] sm:$0xff]
  %v267 = vld [vmem:[%s3 + $0x48] sm:$0xff]
  %v268 = vld [vmem:[%s3 + $0x50] sm:$0xff]
  %v269 = vld [vmem:[%s3 + $0x58] sm:$0xff]
  %v270 = vld [vmem:[%s3 + $0x60] sm:$0xff]
  %v271 = vld [vmem:[%s3 + $0x68] sm:$0xff]
  %v272 = vld [vmem:[%s3 + $0x70] sm:$0xff]
  %v273 = vld [vmem:[%s3 + $0x78] sm:$0xff]
  %v274 = vld [vmem:[%s3 + $0x80] sm:$0xff]
  %v275 = vld [vmem:[%s3 + $0x88] sm:$0xff]
  %v276 = vld [vmem:[%s3 + $0x90] sm:$0xff]
  %v277 = vld [vmem:[%s3 + $0x98] sm:$0xff]
  %v278 = vld [vmem:[%s3 + $0xa0] sm:$0xff]
  %v279 = vld [vmem:[%s3 + $0xa8] sm:$0xff]
  %v280 = vld [vmem:[%s3 + $0xb0] sm:$0xff]
  %v281 = vld [vmem:[%s3 + $0xb8] sm:$0xff]
  %v282 = vld [vmem:[%s3 + $0xc0] sm:$0xff]
  %v283 = vld [vmem:[%s3 + $0xc8] sm:$0xff]
  %v284 = vld [vmem:[%s3 + $0xd0] sm:$0xff]
  %v285 = vld [vmem:[%s3 + $0xd8] sm:$0xff]
  %v286 = vld [vmem:[%s3 + $0xe0] sm:$0xff]
  %v287 = vld [vmem:[%s3 + $0xe8] sm:$0xff]
  %v288 = vld [vmem:[%s3 + $0xf0] sm:$0xff]
  %v289 = vld [vmem:[%s3 + $0xf8] sm:$0xff]
  %v290 = vld [vmem:[%s3 + $0x100] sm:$0xff]
  %v291 = vld [vmem:[%s3 + $0x108] sm:$0xff]
  %v292 = vld [vmem:[%s3 + $0x110] sm:$0xff]
  %v293 = vld [vmem:[%s3 + $0x118] sm:$0xff]
  %v294 = vld [vmem:[%s3 + $0x120] sm:$0xff]
  %v295 = vld [vmem:[%s3 + $0x128] sm:$0xff]
  %v296 = vld [vmem:[%s3 + $0x130] sm:$0xff]
  %v297 = vld [vmem:[%s3 + $0x138] sm:$0xff]
  %v298 = vld [vmem:[%s3 + $0x140] sm:$0xff]
  %v299 = vld [vmem:[%s3 + $0x148] sm:$0xff]
  %v300 = vld [vmem:[%s3 + $0x150] sm:$0xff]
  %v301 = vld [vmem:[%s3 + $0x158] sm:$0xff]
  %v302 = vld [vmem:[%s3 + $0x160] sm:$0xff]
  %v303 = vld [vmem:[%s3 + $0x168] sm:$0xff]
  %v304 = vld [vmem:[%s3 + $0x170] sm:$0xff]
  %v305 = vld [vmem:[%s3 + $0x178] sm:$0xff]
  %v306 = vld [vmem:[%s3 + $0x180] sm:$0xff]
  %v307 = vld [vmem:[%s3 + $0x188] sm:$0xff]
  %v308 = vld [vmem:[%s3 + $0x190] sm:$0xff]
  %v309 = vld [vmem:[%s3 + $0x198] sm:$0xff]
  %v310 = vld [vmem:[%s3 + $0x1a0] sm:$0xff]
  %v311 = vld [vmem:[%s3 + $0x1a8] sm:$0xff]
  %v312 = vld [vmem:[%s3 + $0x1b0] sm:$0xff]
  %v313 = vld [vmem:[%s3 + $0x1b8] sm:$0xff]
  %v314 = vld [vmem:[%s3 + $0x1c0] sm:$0xff]
  %v315 = vld [vmem:[%s3 + $0x1c8] sm:$0xff]
  %v316 = vld [vmem:[%s3 + $0x1d0] sm:$0xff]
  %v317 = vld [vmem:[%s3 + $0x1d8] sm:$0xff]
  %v318 = vld [vmem:[%s3 + $0x1e0] sm:$0xff]
  %v319 = vld [vmem:[%s3 + $0x1e8] sm:$0xff]
  %v320 = vld [vmem:[%s3 + $0x1f0] sm:$0xff]
  %v321 = vld [vmem:[%s3 + $0x1f8] sm:$0xff]
  %v322 = vld [vmem:[%s4] sm:$0xff]
  %v323 = vld [vmem:[%s4 + $0x8] sm:$0xff]
  %v324 = vld [vmem:[%s4 + $0x10] sm:$0xff]
  %v325 = vld [vmem:[%s4 + $0x18] sm:$0xff]
  %v326 = vld [vmem:[%s5] sm:$0xff]
  %v327 = vpack.c.bf16 %v243, %v242
  %v328 = vpack.c.bf16 %v245, %v244
  %v329 = vpack.c.bf16 %v247, %v246
  %v330 = vpack.c.bf16 %v249, %v248
  %v331 = vpack.c.bf16 %v251, %v250
  %v332 = vpack.c.bf16 %v253, %v252
  %v333 = vpack.c.bf16 %v255, %v254
  %v334 = vpack.c.bf16 %v257, %v256
  %v339 = vunpack.c.l.b16 %v322
  %v340 = vunpack.c.l.b16 %v323
  %v341 = vunpack.c.l.b16 %v324
  %v342 = vunpack.c.l.b16 %v325
  %v343 = vpack.c.b16 %v340, %v339
  %v344 = vpack.c.b16 %v342, %v341
  %vm347 = vcmask 261120
  %v349 = vsel %vm347, %v327, 0
  %v352 = vsel %vm347, %v328, 0
  %v355 = vsel %vm347, %v329, 0
  %v358 = vsel %vm347, %v330, 0
  %v361 = vsel %vm347, %v331, 0
  %v364 = vsel %vm347, %v332, 0
  %v367 = vsel %vm347, %v333, 0
  %v370 = vsel %vm347, %v334, 0
  %372 = vmatprep.subr.bf16.mxu0 0
  %373 = vmatpush1.bf16.msra.mxu0 0
  %374 = vmatprep.subr.bf16.mxu0 0
  %375 = vmatpush1.bf16.msra.mxu0 0
  %376 = vmatprep.subr.bf16.mxu0 0
  %377 = vmatpush1.bf16.msra.mxu0 0
  %378 = vmatprep.subr.bf16.mxu0 0
  %379 = vmatpush1.bf16.msra.mxu0 0
  %380 = vmatprep.subr.bf16.mxu0 0
  %381 = vmatpush1.bf16.msra.mxu0 0
  %382 = vmatprep.subr.bf16.mxu0 0
  %383 = vmatpush1.bf16.msra.mxu0 0
  %384 = vmatprep.subr.bf16.mxu0 0
  %385 = vmatpush1.bf16.msra.mxu0 %v344
  %386 = vmatprep.subr.bf16.mxu0 0
  %387 = vmatpush1.bf16.msra.mxu0 %v343
  %388 = vmatprep.subr.bf16.mxu0 0
  %389 = vmatpush2.bf16.msra.mxu0 0
  %390 = vmatprep.subr.bf16.mxu0 0
  %391 = vmatpush2.bf16.msra.mxu0 0
  %392 = vmatprep.subr.bf16.mxu0 0
  %393 = vmatpush2.bf16.msra.mxu0 0
  %394 = vmatprep.subr.bf16.mxu0 0
  %395 = vmatpush2.bf16.msra.mxu0 0
  %396 = vmatprep.subr.bf16.mxu0 0
  %397 = vmatpush2.bf16.msra.mxu0 0
  %398 = vmatprep.subr.bf16.mxu0 0
  %399 = vmatpush2.bf16.msra.mxu0 0
  %400 = vmatprep.subr.bf16.mxu0 0
  %401 = vmatpush2.bf16.msra.mxu0 0
  %402 = vmatprep.subr.bf16.mxu0 0
  %403 = vmatpush2.bf16.msra.mxu0 0
  %404 = vmatprep.mubr.bf16.mxu0 0
  %405 = vmatmul.mubr.bf16.gmra.mxu0 %v349
  %v406 = vpop.f32.mrf.mxu0
  %v407 = vadd.f32 0.0, %v406
  %v408 = vpop.f32.mrf.mxu0
  %v409 = vpop.f32.mrf.mxu0
  %v410 = vadd.f32 0.0, %v409
  %v411 = vpop.f32.mrf.mxu0
  %412 = vmatprep.mubr.bf16.mxu0 0
  %413 = vmatmul.mubr.bf16.gmra.mxu0 %v352
  %v414 = vpop.f32.mrf.mxu0
  %v415 = vadd.f32 0.0, %v414
  %v416 = vpop.f32.mrf.mxu0
  %v417 = vpop.f32.mrf.mxu0
  %v418 = vadd.f32 0.0, %v417
  %v419 = vpop.f32.mrf.mxu0
  %420 = vmatprep.mubr.bf16.mxu0 0
  %421 = vmatmul.mubr.bf16.gmra.mxu0 %v355
  %v422 = vpop.f32.mrf.mxu0
  %v423 = vadd.f32 0.0, %v422
  %v424 = vpop.f32.mrf.mxu0
  %v425 = vpop.f32.mrf.mxu0
  %v426 = vadd.f32 0.0, %v425
  %v427 = vpop.f32.mrf.mxu0
  %428 = vmatprep.mubr.bf16.mxu0 0
  %429 = vmatmul.mubr.bf16.gmra.mxu0 %v358
  %v430 = vpop.f32.mrf.mxu0
  %v431 = vadd.f32 0.0, %v430
  %v432 = vpop.f32.mrf.mxu0
  %v433 = vpop.f32.mrf.mxu0
  %v434 = vadd.f32 0.0, %v433
  %v435 = vpop.f32.mrf.mxu0
  %436 = vmatprep.mubr.bf16.mxu0 0
  %437 = vmatmul.mubr.bf16.gmra.mxu0 %v361
  %v438 = vpop.f32.mrf.mxu0
  %v439 = vadd.f32 0.0, %v438
  %v440 = vpop.f32.mrf.mxu0
  %v441 = vpop.f32.mrf.mxu0
  %v442 = vadd.f32 0.0, %v441
  %v443 = vpop.f32.mrf.mxu0
  %444 = vmatprep.mubr.bf16.mxu0 0
  %445 = vmatmul.mubr.bf16.gmra.mxu0 %v364
  %v446 = vpop.f32.mrf.mxu0
  %v447 = vadd.f32 0.0, %v446
  %v448 = vpop.f32.mrf.mxu0
  %v449 = vpop.f32.mrf.mxu0
  %v450 = vadd.f32 0.0, %v449
  %v451 = vpop.f32.mrf.mxu0
  %452 = vmatprep.mubr.bf16.mxu0 0
  %453 = vmatmul.mubr.bf16.gmra.mxu0 %v367
  %v454 = vpop.f32.mrf.mxu0
  %v455 = vadd.f32 0.0, %v454
  %v456 = vpop.f32.mrf.mxu0
  %v457 = vpop.f32.mrf.mxu0
  %v458 = vadd.f32 0.0, %v457
  %v459 = vpop.f32.mrf.mxu0
  %460 = vmatprep.mubr.bf16.mxu0 0
  %461 = vmatmul.mubr.bf16.gmra.mxu0 %v370
  %v462 = vpop.f32.mrf.mxu0
  %v463 = vadd.f32 0.0, %v462
  %v464 = vpop.f32.mrf.mxu0
  %v465 = vpop.f32.mrf.mxu0
  %v466 = vadd.f32 0.0, %v465
  %v467 = vpop.f32.mrf.mxu0
  %468 = vdwg.mxu0
  %v469 = vpack.c.bf16 %v410, %v407
  %v470 = vpack.c.bf16 %v418, %v415
  %v471 = vpack.c.bf16 %v426, %v423
  %v472 = vpack.c.bf16 %v434, %v431
  %v473 = vpack.c.bf16 %v442, %v439
  %v474 = vpack.c.bf16 %v450, %v447
  %v475 = vpack.c.bf16 %v458, %v455
  %v476 = vpack.c.bf16 %v466, %v463
  %481 = vrot.lane.b32.xlu0 %v469, 96
  %v482 = vpop.permute.xlu0 %481
  %483 = vrot.lane.b32.xlu0 %v470, 96
  %v484 = vpop.permute.xlu0 %483
  %485 = vrot.lane.b32.xlu0 %v471, 96
  %v486 = vpop.permute.xlu0 %485
  %487 = vrot.lane.b32.xlu0 %v472, 96
  %v488 = vpop.permute.xlu0 %487
  %v490 = vsel %vm84, %v469, 0
  %v493 = vsel %vm84, %v470, 0
  %v496 = vsel %vm84, %v471, 0
  %v499 = vsel %vm84, %v472, 0
  %v502 = vsel %vm84, %v482, 0
  %v505 = vsel %vm84, %v484, 0
  %v508 = vsel %vm84, %v486, 0
  %v511 = vsel %vm84, %v488, 0
  %513 = vmatprep.subr.bf16.mxu0 0
  %514 = vmatpush1.bf16.xpose.msra.mxu0 0
  %515 = vmatprep.subr.bf16.mxu0 0
  %516 = vmatpush1.bf16.xpose.msra.mxu0 0
  %517 = vmatprep.subr.bf16.mxu0 0
  %518 = vmatpush1.bf16.xpose.msra.mxu0 0
  %519 = vmatprep.subr.bf16.mxu0 0
  %520 = vmatpush1.bf16.xpose.msra.mxu0 0
  %521 = vmatprep.subr.bf16.mxu0 0
  %522 = vmatpush1.bf16.xpose.msra.mxu0 %v511
  %523 = vmatprep.subr.bf16.mxu0 0
  %524 = vmatpush1.bf16.xpose.msra.mxu0 %v508
  %525 = vmatprep.subr.bf16.mxu0 0
  %526 = vmatpush1.bf16.xpose.msra.mxu0 %v505
  %527 = vmatprep.subr.bf16.mxu0 0
  %528 = vmatpush1.bf16.xpose.msra.mxu0 %v502
  %529 = vmatprep.subr.bf16.mxu0 0
  %530 = vmatpush2.bf16.xpose.msra.mxu0 0
  %531 = vmatprep.subr.bf16.mxu0 0
  %532 = vmatpush2.bf16.xpose.msra.mxu0 0
  %533 = vmatprep.subr.bf16.mxu0 0
  %534 = vmatpush2.bf16.xpose.msra.mxu0 0
  %535 = vmatprep.subr.bf16.mxu0 0
  %536 = vmatpush2.bf16.xpose.msra.mxu0 0
  %537 = vmatprep.subr.bf16.mxu0 0
  %538 = vmatpush2.bf16.xpose.msra.mxu0 0
  %539 = vmatprep.subr.bf16.mxu0 0
  %540 = vmatpush2.bf16.xpose.msra.mxu0 0
  %541 = vmatprep.subr.bf16.mxu0 0
  %542 = vmatpush2.bf16.xpose.msra.mxu0 0
  %543 = vmatprep.subr.bf16.mxu0 0
  %544 = vmatpush2.bf16.xpose.msra.mxu0 0
  %545 = vmatprep.mubr.bf16.mxu0 0
  %546 = vmatmul.mubr.bf16.gmra.mxu0 %v490
  %v547 = vpop.f32.mrf.mxu0
  %v548 = vadd.f32 0.0, %v547
  %v549 = vpop.f32.mrf.mxu0
  %v550 = vpop.f32.mrf.mxu0
  %v551 = vadd.f32 0.0, %v550
  %v552 = vpop.f32.mrf.mxu0
  %553 = vmatprep.mubr.bf16.mxu0 0
  %554 = vmatmul.mubr.bf16.gmra.mxu0 %v493
  %v555 = vpop.f32.mrf.mxu0
  %v556 = vadd.f32 0.0, %v555
  %v557 = vpop.f32.mrf.mxu0
  %v558 = vpop.f32.mrf.mxu0
  %v559 = vadd.f32 0.0, %v558
  %v560 = vpop.f32.mrf.mxu0
  %561 = vmatprep.mubr.bf16.mxu0 0
  %562 = vmatmul.mubr.bf16.gmra.mxu0 %v496
  %v563 = vpop.f32.mrf.mxu0
  %v564 = vadd.f32 0.0, %v563
  %v565 = vpop.f32.mrf.mxu0
  %v566 = vpop.f32.mrf.mxu0
  %v567 = vadd.f32 0.0, %v566
  %v568 = vpop.f32.mrf.mxu0
  %569 = vmatprep.mubr.bf16.mxu0 0
  %570 = vmatmul.mubr.bf16.gmra.mxu0 %v499
  %v571 = vpop.f32.mrf.mxu0
  %v572 = vadd.f32 0.0, %v571
  %v573 = vpop.f32.mrf.mxu0
  %v574 = vpop.f32.mrf.mxu0
  %v575 = vadd.f32 0.0, %v574
  %v576 = vpop.f32.mrf.mxu0
  %577 = vdwg.mxu0
  %578 = vrot.lane.b32.xlu0 %v469, 120
  %v579 = vpop.permute.xlu0 %578
  %580 = vrot.lane.b32.xlu0 %v470, 120
  %v581 = vpop.permute.xlu0 %580
  %582 = vrot.lane.b32.xlu0 %v471, 120
  %v583 = vpop.permute.xlu0 %582
  %584 = vrot.lane.b32.xlu0 %v472, 120
  %v585 = vpop.permute.xlu0 %584
  %586 = vrot.lane.b32.xlu0 %v469, 88
  %v587 = vpop.permute.xlu0 %586
  %588 = vrot.lane.b32.xlu0 %v470, 88
  %v589 = vpop.permute.xlu0 %588
  %590 = vrot.lane.b32.xlu0 %v471, 88
  %v591 = vpop.permute.xlu0 %590
  %592 = vrot.lane.b32.xlu0 %v472, 88
  %v593 = vpop.permute.xlu0 %592
  %v595 = vsel %vm84, %v579, 0
  %v598 = vsel %vm84, %v581, 0
  %v601 = vsel %vm84, %v583, 0
  %v604 = vsel %vm84, %v585, 0
  %v607 = vsel %vm84, %v587, 0
  %v610 = vsel %vm84, %v589, 0
  %v613 = vsel %vm84, %v591, 0
  %v616 = vsel %vm84, %v593, 0
  %618 = vmatprep.subr.bf16.mxu0 0
  %619 = vmatpush1.bf16.xpose.msra.mxu0 0
  %620 = vmatprep.subr.bf16.mxu0 0
  %621 = vmatpush1.bf16.xpose.msra.mxu0 0
  %622 = vmatprep.subr.bf16.mxu0 0
  %623 = vmatpush1.bf16.xpose.msra.mxu0 0
  %624 = vmatprep.subr.bf16.mxu0 0
  %625 = vmatpush1.bf16.xpose.msra.mxu0 0
  %626 = vmatprep.subr.bf16.mxu0 0
  %627 = vmatpush1.bf16.xpose.msra.mxu0 %v616
  %628 = vmatprep.subr.bf16.mxu0 0
  %629 = vmatpush1.bf16.xpose.msra.mxu0 %v613
  %630 = vmatprep.subr.bf16.mxu0 0
  %631 = vmatpush1.bf16.xpose.msra.mxu0 %v610
  %632 = vmatprep.subr.bf16.mxu0 0
  %633 = vmatpush1.bf16.xpose.msra.mxu0 %v607
  %634 = vmatprep.subr.bf16.mxu0 0
  %635 = vmatpush2.bf16.xpose.msra.mxu0 0
  %636 = vmatprep.subr.bf16.mxu0 0
  %637 = vmatpush2.bf16.xpose.msra.mxu0 0
  %638 = vmatprep.subr.bf16.mxu0 0
  %639 = vmatpush2.bf16.xpose.msra.mxu0 0
  %640 = vmatprep.subr.bf16.mxu0 0
  %641 = vmatpush2.bf16.xpose.msra.mxu0 0
  %642 = vmatprep.subr.bf16.mxu0 0
  %643 = vmatpush2.bf16.xpose.msra.mxu0 0
  %644 = vmatprep.subr.bf16.mxu0 0
  %645 = vmatpush2.bf16.xpose.msra.mxu0 0
  %646 = vmatprep.subr.bf16.mxu0 0
  %647 = vmatpush2.bf16.xpose.msra.mxu0 0
  %648 = vmatprep.subr.bf16.mxu0 0
  %649 = vmatpush2.bf16.xpose.msra.mxu0 0
  %650 = vmatprep.mubr.bf16.mxu0 0
  %651 = vmatmul.mubr.bf16.gmra.mxu0 %v595
  %v652 = vpop.f32.mrf.mxu0
  %v653 = vadd.f32 0.0, %v652
  %v654 = vpop.f32.mrf.mxu0
  %v655 = vpop.f32.mrf.mxu0
  %v656 = vadd.f32 0.0, %v655
  %v657 = vpop.f32.mrf.mxu0
  %658 = vmatprep.mubr.bf16.mxu0 0
  %659 = vmatmul.mubr.bf16.gmra.mxu0 %v598
  %v660 = vpop.f32.mrf.mxu0
  %v661 = vadd.f32 0.0, %v660
  %v662 = vpop.f32.mrf.mxu0
  %v663 = vpop.f32.mrf.mxu0
  %v664 = vadd.f32 0.0, %v663
  %v665 = vpop.f32.mrf.mxu0
  %666 = vmatprep.mubr.bf16.mxu0 0
  %667 = vmatmul.mubr.bf16.gmra.mxu0 %v601
  %v668 = vpop.f32.mrf.mxu0
  %v669 = vadd.f32 0.0, %v668
  %v670 = vpop.f32.mrf.mxu0
  %v671 = vpop.f32.mrf.mxu0
  %v672 = vadd.f32 0.0, %v671
  %v673 = vpop.f32.mrf.mxu0
  %674 = vmatprep.mubr.bf16.mxu0 0
  %675 = vmatmul.mubr.bf16.gmra.mxu0 %v604
  %v676 = vpop.f32.mrf.mxu0
  %v677 = vadd.f32 0.0, %v676
  %v678 = vpop.f32.mrf.mxu0
  %v679 = vpop.f32.mrf.mxu0
  %v680 = vadd.f32 0.0, %v679
  %v681 = vpop.f32.mrf.mxu0
  %682 = vdwg.mxu0
  %683 = vrot.lane.b32.xlu0 %v469, 112
  %v684 = vpop.permute.xlu0 %683
  %685 = vrot.lane.b32.xlu0 %v470, 112
  %v686 = vpop.permute.xlu0 %685
  %687 = vrot.lane.b32.xlu0 %v471, 112
  %v688 = vpop.permute.xlu0 %687
  %689 = vrot.lane.b32.xlu0 %v472, 112
  %v690 = vpop.permute.xlu0 %689
  %691 = vrot.lane.b32.xlu0 %v469, 80
  %v692 = vpop.permute.xlu0 %691
  %693 = vrot.lane.b32.xlu0 %v470, 80
  %v694 = vpop.permute.xlu0 %693
  %695 = vrot.lane.b32.xlu0 %v471, 80
  %v696 = vpop.permute.xlu0 %695
  %697 = vrot.lane.b32.xlu0 %v472, 80
  %v698 = vpop.permute.xlu0 %697
  %v700 = vsel %vm84, %v684, 0
  %v703 = vsel %vm84, %v686, 0
  %v706 = vsel %vm84, %v688, 0
  %v709 = vsel %vm84, %v690, 0
  %v712 = vsel %vm84, %v692, 0
  %v715 = vsel %vm84, %v694, 0
  %v718 = vsel %vm84, %v696, 0
  %v721 = vsel %vm84, %v698, 0
  %723 = vmatprep.subr.bf16.mxu0 0
  %724 = vmatpush1.bf16.xpose.msra.mxu0 0
  %725 = vmatprep.subr.bf16.mxu0 0
  %726 = vmatpush1.bf16.xpose.msra.mxu0 0
  %727 = vmatprep.subr.bf16.mxu0 0
  %728 = vmatpush1.bf16.xpose.msra.mxu0 0
  %729 = vmatprep.subr.bf16.mxu0 0
  %730 = vmatpush1.bf16.xpose.msra.mxu0 0
  %731 = vmatprep.subr.bf16.mxu0 0
  %732 = vmatpush1.bf16.xpose.msra.mxu0 %v721
  %733 = vmatprep.subr.bf16.mxu0 0
  %734 = vmatpush1.bf16.xpose.msra.mxu0 %v718
  %735 = vmatprep.subr.bf16.mxu0 0
  %736 = vmatpush1.bf16.xpose.msra.mxu0 %v715
  %737 = vmatprep.subr.bf16.mxu0 0
  %738 = vmatpush1.bf16.xpose.msra.mxu0 %v712
  %739 = vmatprep.subr.bf16.mxu0 0
  %740 = vmatpush2.bf16.xpose.msra.mxu0 0
  %741 = vmatprep.subr.bf16.mxu0 0
  %742 = vmatpush2.bf16.xpose.msra.mxu0 0
  %743 = vmatprep.subr.bf16.mxu0 0
  %744 = vmatpush2.bf16.xpose.msra.mxu0 0
  %745 = vmatprep.subr.bf16.mxu0 0
  %746 = vmatpush2.bf16.xpose.msra.mxu0 0
  %747 = vmatprep.subr.bf16.mxu0 0
  %748 = vmatpush2.bf16.xpose.msra.mxu0 0
  %749 = vmatprep.subr.bf16.mxu0 0
  %750 = vmatpush2.bf16.xpose.msra.mxu0 0
  %751 = vmatprep.subr.bf16.mxu0 0
  %752 = vmatpush2.bf16.xpose.msra.mxu0 0
  %753 = vmatprep.subr.bf16.mxu0 0
  %754 = vmatpush2.bf16.xpose.msra.mxu0 0
  %755 = vmatprep.mubr.bf16.mxu0 0
  %756 = vmatmul.mubr.bf16.gmra.mxu0 %v700
  %v757 = vpop.f32.mrf.mxu0
  %v758 = vadd.f32 0.0, %v757
  %v759 = vpop.f32.mrf.mxu0
  %v760 = vpop.f32.mrf.mxu0
  %v761 = vadd.f32 0.0, %v760
  %v762 = vpop.f32.mrf.mxu0
  %763 = vmatprep.mubr.bf16.mxu0 0
  %764 = vmatmul.mubr.bf16.gmra.mxu0 %v703
  %v765 = vpop.f32.mrf.mxu0
  %v766 = vadd.f32 0.0, %v765
  %v767 = vpop.f32.mrf.mxu0
  %v768 = vpop.f32.mrf.mxu0
  %v769 = vadd.f32 0.0, %v768
  %v770 = vpop.f32.mrf.mxu0
  %771 = vmatprep.mubr.bf16.mxu0 0
  %772 = vmatmul.mubr.bf16.gmra.mxu0 %v706
  %v773 = vpop.f32.mrf.mxu0
  %v774 = vadd.f32 0.0, %v773
  %v775 = vpop.f32.mrf.mxu0
  %v776 = vpop.f32.mrf.mxu0
  %v777 = vadd.f32 0.0, %v776
  %v778 = vpop.f32.mrf.mxu0
  %779 = vmatprep.mubr.bf16.mxu0 0
  %780 = vmatmul.mubr.bf16.gmra.mxu0 %v709
  %v781 = vpop.f32.mrf.mxu0
  %v782 = vadd.f32 0.0, %v781
  %v783 = vpop.f32.mrf.mxu0
  %v784 = vpop.f32.mrf.mxu0
  %v785 = vadd.f32 0.0, %v784
  %v786 = vpop.f32.mrf.mxu0
  %787 = vdwg.mxu0
  %788 = vrot.lane.b32.xlu0 %v469, 104
  %v789 = vpop.permute.xlu0 %788
  %790 = vrot.lane.b32.xlu0 %v470, 104
  %v791 = vpop.permute.xlu0 %790
  %792 = vrot.lane.b32.xlu0 %v471, 104
  %v793 = vpop.permute.xlu0 %792
  %794 = vrot.lane.b32.xlu0 %v472, 104
  %v795 = vpop.permute.xlu0 %794
  %796 = vrot.lane.b32.xlu0 %v469, 72
  %v797 = vpop.permute.xlu0 %796
  %798 = vrot.lane.b32.xlu0 %v470, 72
  %v799 = vpop.permute.xlu0 %798
  %800 = vrot.lane.b32.xlu0 %v471, 72
  %v801 = vpop.permute.xlu0 %800
  %802 = vrot.lane.b32.xlu0 %v472, 72
  %v803 = vpop.permute.xlu0 %802
  %v805 = vsel %vm84, %v789, 0
  %v808 = vsel %vm84, %v791, 0
  %v811 = vsel %vm84, %v793, 0
  %v814 = vsel %vm84, %v795, 0
  %v817 = vsel %vm84, %v797, 0
  %v820 = vsel %vm84, %v799, 0
  %v823 = vsel %vm84, %v801, 0
  %v826 = vsel %vm84, %v803, 0
  %828 = vmatprep.subr.bf16.mxu0 0
  %829 = vmatpush1.bf16.xpose.msra.mxu0 0
  %830 = vmatprep.subr.bf16.mxu0 0
  %831 = vmatpush1.bf16.xpose.msra.mxu0 0
  %832 = vmatprep.subr.bf16.mxu0 0
  %833 = vmatpush1.bf16.xpose.msra.mxu0 0
  %834 = vmatprep.subr.bf16.mxu0 0
  %835 = vmatpush1.bf16.xpose.msra.mxu0 0
  %836 = vmatprep.subr.bf16.mxu0 0
  %837 = vmatpush1.bf16.xpose.msra.mxu0 %v826
  %838 = vmatprep.subr.bf16.mxu0 0
  %839 = vmatpush1.bf16.xpose.msra.mxu0 %v823
  %840 = vmatprep.subr.bf16.mxu0 0
  %841 = vmatpush1.bf16.xpose.msra.mxu0 %v820
  %842 = vmatprep.subr.bf16.mxu0 0
  %843 = vmatpush1.bf16.xpose.msra.mxu0 %v817
  %844 = vmatprep.subr.bf16.mxu0 0
  %845 = vmatpush2.bf16.xpose.msra.mxu0 0
  %846 = vmatprep.subr.bf16.mxu0 0
  %847 = vmatpush2.bf16.xpose.msra.mxu0 0
  %848 = vmatprep.subr.bf16.mxu0 0
  %849 = vmatpush2.bf16.xpose.msra.mxu0 0
  %850 = vmatprep.subr.bf16.mxu0 0
  %851 = vmatpush2.bf16.xpose.msra.mxu0 0
  %852 = vmatprep.subr.bf16.mxu0 0
  %853 = vmatpush2.bf16.xpose.msra.mxu0 0
  %854 = vmatprep.subr.bf16.mxu0 0
  %855 = vmatpush2.bf16.xpose.msra.mxu0 0
  %856 = vmatprep.subr.bf16.mxu0 0
  %857 = vmatpush2.bf16.xpose.msra.mxu0 0
  %858 = vmatprep.subr.bf16.mxu0 0
  %859 = vmatpush2.bf16.xpose.msra.mxu0 0
  %860 = vmatprep.mubr.bf16.mxu0 0
  %861 = vmatmul.mubr.bf16.gmra.mxu0 %v805
  %v862 = vpop.f32.mrf.mxu0
  %v863 = vadd.f32 0.0, %v862
  %v864 = vpop.f32.mrf.mxu0
  %v865 = vpop.f32.mrf.mxu0
  %v866 = vadd.f32 0.0, %v865
  %v867 = vpop.f32.mrf.mxu0
  %868 = vmatprep.mubr.bf16.mxu0 0
  %869 = vmatmul.mubr.bf16.gmra.mxu0 %v808
  %v870 = vpop.f32.mrf.mxu0
  %v871 = vadd.f32 0.0, %v870
  %v872 = vpop.f32.mrf.mxu0
  %v873 = vpop.f32.mrf.mxu0
  %v874 = vadd.f32 0.0, %v873
  %v875 = vpop.f32.mrf.mxu0
  %876 = vmatprep.mubr.bf16.mxu0 0
  %877 = vmatmul.mubr.bf16.gmra.mxu0 %v811
  %v878 = vpop.f32.mrf.mxu0
  %v879 = vadd.f32 0.0, %v878
  %v880 = vpop.f32.mrf.mxu0
  %v881 = vpop.f32.mrf.mxu0
  %v882 = vadd.f32 0.0, %v881
  %v883 = vpop.f32.mrf.mxu0
  %884 = vmatprep.mubr.bf16.mxu0 0
  %885 = vmatmul.mubr.bf16.gmra.mxu0 %v814
  %v886 = vpop.f32.mrf.mxu0
  %v887 = vadd.f32 0.0, %v886
  %v888 = vpop.f32.mrf.mxu0
  %v889 = vpop.f32.mrf.mxu0
  %v890 = vadd.f32 0.0, %v889
  %v891 = vpop.f32.mrf.mxu0
  %892 = vdwg.mxu0
  %897 = vrot.lane.b32.xlu0 %v473, 96
  %v898 = vpop.permute.xlu0 %897
  %899 = vrot.lane.b32.xlu0 %v474, 96
  %v900 = vpop.permute.xlu0 %899
  %901 = vrot.lane.b32.xlu0 %v475, 96
  %v902 = vpop.permute.xlu0 %901
  %903 = vrot.lane.b32.xlu0 %v476, 96
  %v904 = vpop.permute.xlu0 %903
  %v906 = vsel %vm84, %v473, 0
  %v909 = vsel %vm84, %v474, 0
  %v912 = vsel %vm84, %v475, 0
  %v915 = vsel %vm84, %v476, 0
  %v918 = vsel %vm84, %v898, 0
  %v921 = vsel %vm84, %v900, 0
  %v924 = vsel %vm84, %v902, 0
  %v927 = vsel %vm84, %v904, 0
  %929 = vmatprep.subr.bf16.mxu0 0
  %930 = vmatpush1.bf16.xpose.msra.mxu0 0
  %931 = vmatprep.subr.bf16.mxu0 0
  %932 = vmatpush1.bf16.xpose.msra.mxu0 0
  %933 = vmatprep.subr.bf16.mxu0 0
  %934 = vmatpush1.bf16.xpose.msra.mxu0 0
  %935 = vmatprep.subr.bf16.mxu0 0
  %936 = vmatpush1.bf16.xpose.msra.mxu0 0
  %937 = vmatprep.subr.bf16.mxu0 0
  %938 = vmatpush1.bf16.xpose.msra.mxu0 %v927
  %939 = vmatprep.subr.bf16.mxu0 0
  %940 = vmatpush1.bf16.xpose.msra.mxu0 %v924
  %941 = vmatprep.subr.bf16.mxu0 0
  %942 = vmatpush1.bf16.xpose.msra.mxu0 %v921
  %943 = vmatprep.subr.bf16.mxu0 0
  %944 = vmatpush1.bf16.xpose.msra.mxu0 %v918
  %945 = vmatprep.subr.bf16.mxu0 0
  %946 = vmatpush2.bf16.xpose.msra.mxu0 0
  %947 = vmatprep.subr.bf16.mxu0 0
  %948 = vmatpush2.bf16.xpose.msra.mxu0 0
  %949 = vmatprep.subr.bf16.mxu0 0
  %950 = vmatpush2.bf16.xpose.msra.mxu0 0
  %951 = vmatprep.subr.bf16.mxu0 0
  %952 = vmatpush2.bf16.xpose.msra.mxu0 0
  %953 = vmatprep.subr.bf16.mxu0 0
  %954 = vmatpush2.bf16.xpose.msra.mxu0 0
  %955 = vmatprep.subr.bf16.mxu0 0
  %956 = vmatpush2.bf16.xpose.msra.mxu0 0
  %957 = vmatprep.subr.bf16.mxu0 0
  %958 = vmatpush2.bf16.xpose.msra.mxu0 0
  %959 = vmatprep.subr.bf16.mxu0 0
  %960 = vmatpush2.bf16.xpose.msra.mxu0 0
  %961 = vmatprep.mubr.bf16.mxu0 0
  %962 = vmatmul.mubr.bf16.gmra.mxu0 %v906
  %v963 = vpop.f32.mrf.mxu0
  %v964 = vadd.f32 0.0, %v963
  %v965 = vpop.f32.mrf.mxu0
  %v966 = vpop.f32.mrf.mxu0
  %v967 = vadd.f32 0.0, %v966
  %v968 = vpop.f32.mrf.mxu0
  %969 = vmatprep.mubr.bf16.mxu0 0
  %970 = vmatmul.mubr.bf16.gmra.mxu0 %v909
  %v971 = vpop.f32.mrf.mxu0
  %v972 = vadd.f32 0.0, %v971
  %v973 = vpop.f32.mrf.mxu0
  %v974 = vpop.f32.mrf.mxu0
  %v975 = vadd.f32 0.0, %v974
  %v976 = vpop.f32.mrf.mxu0
  %977 = vmatprep.mubr.bf16.mxu0 0
  %978 = vmatmul.mubr.bf16.gmra.mxu0 %v912
  %v979 = vpop.f32.mrf.mxu0
  %v980 = vadd.f32 0.0, %v979
  %v981 = vpop.f32.mrf.mxu0
  %v982 = vpop.f32.mrf.mxu0
  %v983 = vadd.f32 0.0, %v982
  %v984 = vpop.f32.mrf.mxu0
  %985 = vmatprep.mubr.bf16.mxu0 0
  %986 = vmatmul.mubr.bf16.gmra.mxu0 %v915
  %v987 = vpop.f32.mrf.mxu0
  %v988 = vadd.f32 0.0, %v987
  %v989 = vpop.f32.mrf.mxu0
  %v990 = vpop.f32.mrf.mxu0
  %v991 = vadd.f32 0.0, %v990
  %v992 = vpop.f32.mrf.mxu0
  %993 = vdwg.mxu0
  %994 = vrot.lane.b32.xlu0 %v473, 120
  %v995 = vpop.permute.xlu0 %994
  %996 = vrot.lane.b32.xlu0 %v474, 120
  %v997 = vpop.permute.xlu0 %996
  %998 = vrot.lane.b32.xlu0 %v475, 120
  %v999 = vpop.permute.xlu0 %998
  %1000 = vrot.lane.b32.xlu0 %v476, 120
  %v1001 = vpop.permute.xlu0 %1000
  %1002 = vrot.lane.b32.xlu0 %v473, 88
  %v1003 = vpop.permute.xlu0 %1002
  %1004 = vrot.lane.b32.xlu0 %v474, 88
  %v1005 = vpop.permute.xlu0 %1004
  %1006 = vrot.lane.b32.xlu0 %v475, 88
  %v1007 = vpop.permute.xlu0 %1006
  %1008 = vrot.lane.b32.xlu0 %v476, 88
  %v1009 = vpop.permute.xlu0 %1008
  %v1011 = vsel %vm84, %v995, 0
  %v1014 = vsel %vm84, %v997, 0
  %v1017 = vsel %vm84, %v999, 0
  %v1020 = vsel %vm84, %v1001, 0
  %v1023 = vsel %vm84, %v1003, 0
  %v1026 = vsel %vm84, %v1005, 0
  %v1029 = vsel %vm84, %v1007, 0
  %v1032 = vsel %vm84, %v1009, 0
  %1034 = vmatprep.subr.bf16.mxu0 0
  %1035 = vmatpush1.bf16.xpose.msra.mxu0 0
  %1036 = vmatprep.subr.bf16.mxu0 0
  %1037 = vmatpush1.bf16.xpose.msra.mxu0 0
  %1038 = vmatprep.subr.bf16.mxu0 0
  %1039 = vmatpush1.bf16.xpose.msra.mxu0 0
  %1040 = vmatprep.subr.bf16.mxu0 0
  %1041 = vmatpush1.bf16.xpose.msra.mxu0 0
  %1042 = vmatprep.subr.bf16.mxu0 0
  %1043 = vmatpush1.bf16.xpose.msra.mxu0 %v1032
  %1044 = vmatprep.subr.bf16.mxu0 0
  %1045 = vmatpush1.bf16.xpose.msra.mxu0 %v1029
  %1046 = vmatprep.subr.bf16.mxu0 0
  %1047 = vmatpush1.bf16.xpose.msra.mxu0 %v1026
  %1048 = vmatprep.subr.bf16.mxu0 0
  %1049 = vmatpush1.bf16.xpose.msra.mxu0 %v1023
  %1050 = vmatprep.subr.bf16.mxu0 0
  %1051 = vmatpush2.bf16.xpose.msra.mxu0 0
  %1052 = vmatprep.subr.bf16.mxu0 0
  %1053 = vmatpush2.bf16.xpose.msra.mxu0 0
  %1054 = vmatprep.subr.bf16.mxu0 0
  %1055 = vmatpush2.bf16.xpose.msra.mxu0 0
  %1056 = vmatprep.subr.bf16.mxu0 0
  %1057 = vmatpush2.bf16.xpose.msra.mxu0 0
  %1058 = vmatprep.subr.bf16.mxu0 0
  %1059 = vmatpush2.bf16.xpose.msra.mxu0 0
  %1060 = vmatprep.subr.bf16.mxu0 0
  %1061 = vmatpush2.bf16.xpose.msra.mxu0 0
  %1062 = vmatprep.subr.bf16.mxu0 0
  %1063 = vmatpush2.bf16.xpose.msra.mxu0 0
  %1064 = vmatprep.subr.bf16.mxu0 0
  %1065 = vmatpush2.bf16.xpose.msra.mxu0 0
  %1066 = vmatprep.mubr.bf16.mxu0 0
  %1067 = vmatmul.mubr.bf16.gmra.mxu0 %v1011
  %v1068 = vpop.f32.mrf.mxu0
  %v1069 = vadd.f32 0.0, %v1068
  %v1070 = vpop.f32.mrf.mxu0
  %v1071 = vpop.f32.mrf.mxu0
  %v1072 = vadd.f32 0.0, %v1071
  %v1073 = vpop.f32.mrf.mxu0
  %1074 = vmatprep.mubr.bf16.mxu0 0
  %1075 = vmatmul.mubr.bf16.gmra.mxu0 %v1014
  %v1076 = vpop.f32.mrf.mxu0
  %v1077 = vadd.f32 0.0, %v1076
  %v1078 = vpop.f32.mrf.mxu0
  %v1079 = vpop.f32.mrf.mxu0
  %v1080 = vadd.f32 0.0, %v1079
  %v1081 = vpop.f32.mrf.mxu0
  %1082 = vmatprep.mubr.bf16.mxu0 0
  %1083 = vmatmul.mubr.bf16.gmra.mxu0 %v1017
  %v1084 = vpop.f32.mrf.mxu0
  %v1085 = vadd.f32 0.0, %v1084
  %v1086 = vpop.f32.mrf.mxu0
  %v1087 = vpop.f32.mrf.mxu0
  %v1088 = vadd.f32 0.0, %v1087
  %v1089 = vpop.f32.mrf.mxu0
  %1090 = vmatprep.mubr.bf16.mxu0 0
  %1091 = vmatmul.mubr.bf16.gmra.mxu0 %v1020
  %v1092 = vpop.f32.mrf.mxu0
  %v1093 = vadd.f32 0.0, %v1092
  %v1094 = vpop.f32.mrf.mxu0
  %v1095 = vpop.f32.mrf.mxu0
  %v1096 = vadd.f32 0.0, %v1095
  %v1097 = vpop.f32.mrf.mxu0
  %1098 = vdwg.mxu0
  %1099 = vrot.lane.b32.xlu0 %v473, 112
  %v1100 = vpop.permute.xlu0 %1099
  %1101 = vrot.lane.b32.xlu0 %v474, 112
  %v1102 = vpop.permute.xlu0 %1101
  %1103 = vrot.lane.b32.xlu0 %v475, 112
  %v1104 = vpop.permute.xlu0 %1103
  %1105 = vrot.lane.b32.xlu0 %v476, 112
  %v1106 = vpop.permute.xlu0 %1105
  %1107 = vrot.lane.b32.xlu0 %v473, 80
  %v1108 = vpop.permute.xlu0 %1107
  %1109 = vrot.lane.b32.xlu0 %v474, 80
  %v1110 = vpop.permute.xlu0 %1109
  %1111 = vrot.lane.b32.xlu0 %v475, 80
  %v1112 = vpop.permute.xlu0 %1111
  %1113 = vrot.lane.b32.xlu0 %v476, 80
  %v1114 = vpop.permute.xlu0 %1113
  %v1116 = vsel %vm84, %v1100, 0
  %v1119 = vsel %vm84, %v1102, 0
  %v1122 = vsel %vm84, %v1104, 0
  %v1125 = vsel %vm84, %v1106, 0
  %v1128 = vsel %vm84, %v1108, 0
  %v1131 = vsel %vm84, %v1110, 0
  %v1134 = vsel %vm84, %v1112, 0
  %v1137 = vsel %vm84, %v1114, 0
  %1139 = vmatprep.subr.bf16.mxu0 0
  %1140 = vmatpush1.bf16.xpose.msra.mxu0 0
  %1141 = vmatprep.subr.bf16.mxu0 0
  %1142 = vmatpush1.bf16.xpose.msra.mxu0 0
  %1143 = vmatprep.subr.bf16.mxu0 0
  %1144 = vmatpush1.bf16.xpose.msra.mxu0 0
  %1145 = vmatprep.subr.bf16.mxu0 0
  %1146 = vmatpush1.bf16.xpose.msra.mxu0 0
  %1147 = vmatprep.subr.bf16.mxu0 0
  %1148 = vmatpush1.bf16.xpose.msra.mxu0 %v1137
  %1149 = vmatprep.subr.bf16.mxu0 0
  %1150 = vmatpush1.bf16.xpose.msra.mxu0 %v1134
  %1151 = vmatprep.subr.bf16.mxu0 0
  %1152 = vmatpush1.bf16.xpose.msra.mxu0 %v1131
  %1153 = vmatprep.subr.bf16.mxu0 0
  %1154 = vmatpush1.bf16.xpose.msra.mxu0 %v1128
  %1155 = vmatprep.subr.bf16.mxu0 0
  %1156 = vmatpush2.bf16.xpose.msra.mxu0 0
  %1157 = vmatprep.subr.bf16.mxu0 0
  %1158 = vmatpush2.bf16.xpose.msra.mxu0 0
  %1159 = vmatprep.subr.bf16.mxu0 0
  %1160 = vmatpush2.bf16.xpose.msra.mxu0 0
  %1161 = vmatprep.subr.bf16.mxu0 0
  %1162 = vmatpush2.bf16.xpose.msra.mxu0 0
  %1163 = vmatprep.subr.bf16.mxu0 0
  %1164 = vmatpush2.bf16.xpose.msra.mxu0 0
  %1165 = vmatprep.subr.bf16.mxu0 0
  %1166 = vmatpush2.bf16.xpose.msra.mxu0 0
  %1167 = vmatprep.subr.bf16.mxu0 0
  %1168 = vmatpush2.bf16.xpose.msra.mxu0 0
  %1169 = vmatprep.subr.bf16.mxu0 0
  %1170 = vmatpush2.bf16.xpose.msra.mxu0 0
  %1171 = vmatprep.mubr.bf16.mxu0 0
  %1172 = vmatmul.mubr.bf16.gmra.mxu0 %v1116
  %v1173 = vpop.f32.mrf.mxu0
  %v1174 = vadd.f32 0.0, %v1173
  %v1175 = vpop.f32.mrf.mxu0
  %v1176 = vpop.f32.mrf.mxu0
  %v1177 = vadd.f32 0.0, %v1176
  %v1178 = vpop.f32.mrf.mxu0
  %1179 = vmatprep.mubr.bf16.mxu0 0
  %1180 = vmatmul.mubr.bf16.gmra.mxu0 %v1119
  %v1181 = vpop.f32.mrf.mxu0
  %v1182 = vadd.f32 0.0, %v1181
  %v1183 = vpop.f32.mrf.mxu0
  %v1184 = vpop.f32.mrf.mxu0
  %v1185 = vadd.f32 0.0, %v1184
  %v1186 = vpop.f32.mrf.mxu0
  %1187 = vmatprep.mubr.bf16.mxu0 0
  %1188 = vmatmul.mubr.bf16.gmra.mxu0 %v1122
  %v1189 = vpop.f32.mrf.mxu0
  %v1190 = vadd.f32 0.0, %v1189
  %v1191 = vpop.f32.mrf.mxu0
  %v1192 = vpop.f32.mrf.mxu0
  %v1193 = vadd.f32 0.0, %v1192
  %v1194 = vpop.f32.mrf.mxu0
  %1195 = vmatprep.mubr.bf16.mxu0 0
  %1196 = vmatmul.mubr.bf16.gmra.mxu0 %v1125
  %v1197 = vpop.f32.mrf.mxu0
  %v1198 = vadd.f32 0.0, %v1197
  %v1199 = vpop.f32.mrf.mxu0
  %v1200 = vpop.f32.mrf.mxu0
  %v1201 = vadd.f32 0.0, %v1200
  %v1202 = vpop.f32.mrf.mxu0
  %1203 = vdwg.mxu0
  %1204 = vrot.lane.b32.xlu0 %v473, 104
  %v1205 = vpop.permute.xlu0 %1204
  %1206 = vrot.lane.b32.xlu0 %v474, 104
  %v1207 = vpop.permute.xlu0 %1206
  %1208 = vrot.lane.b32.xlu0 %v475, 104
  %v1209 = vpop.permute.xlu0 %1208
  %1210 = vrot.lane.b32.xlu0 %v476, 104
  %v1211 = vpop.permute.xlu0 %1210
  %1212 = vrot.lane.b32.xlu0 %v473, 72
  %v1213 = vpop.permute.xlu0 %1212
  %1214 = vrot.lane.b32.xlu0 %v474, 72
  %v1215 = vpop.permute.xlu0 %1214
  %1216 = vrot.lane.b32.xlu0 %v475, 72
  %v1217 = vpop.permute.xlu0 %1216
  %1218 = vrot.lane.b32.xlu0 %v476, 72
  %v1219 = vpop.permute.xlu0 %1218
  %v1221 = vsel %vm84, %v1205, 0
  %v1224 = vsel %vm84, %v1207, 0
  %v1227 = vsel %vm84, %v1209, 0
  %v1230 = vsel %vm84, %v1211, 0
  %v1233 = vsel %vm84, %v1213, 0
  %v1236 = vsel %vm84, %v1215, 0
  %v1239 = vsel %vm84, %v1217, 0
  %v1242 = vsel %vm84, %v1219, 0
  %1244 = vmatprep.subr.bf16.mxu0 0
  %1245 = vmatpush1.bf16.xpose.msra.mxu0 0
  %1246 = vmatprep.subr.bf16.mxu0 0
  %1247 = vmatpush1.bf16.xpose.msra.mxu0 0
  %1248 = vmatprep.subr.bf16.mxu0 0
  %1249 = vmatpush1.bf16.xpose.msra.mxu0 0
  %1250 = vmatprep.subr.bf16.mxu0 0
  %1251 = vmatpush1.bf16.xpose.msra.mxu0 0
  %1252 = vmatprep.subr.bf16.mxu0 0
  %1253 = vmatpush1.bf16.xpose.msra.mxu0 %v1242
  %1254 = vmatprep.subr.bf16.mxu0 0
  %1255 = vmatpush1.bf16.xpose.msra.mxu0 %v1239
  %1256 = vmatprep.subr.bf16.mxu0 0
  %1257 = vmatpush1.bf16.xpose.msra.mxu0 %v1236
  %1258 = vmatprep.subr.bf16.mxu0 0
  %1259 = vmatpush1.bf16.xpose.msra.mxu0 %v1233
  %1260 = vmatprep.subr.bf16.mxu0 0
  %1261 = vmatpush2.bf16.xpose.msra.mxu0 0
  %1262 = vmatprep.subr.bf16.mxu0 0
  %1263 = vmatpush2.bf16.xpose.msra.mxu0 0
  %1264 = vmatprep.subr.bf16.mxu0 0
  %1265 = vmatpush2.bf16.xpose.msra.mxu0 0
  %1266 = vmatprep.subr.bf16.mxu0 0
  %1267 = vmatpush2.bf16.xpose.msra.mxu0 0
  %1268 = vmatprep.subr.bf16.mxu0 0
  %1269 = vmatpush2.bf16.xpose.msra.mxu0 0
  %1270 = vmatprep.subr.bf16.mxu0 0
  %1271 = vmatpush2.bf16.xpose.msra.mxu0 0
  %1272 = vmatprep.subr.bf16.mxu0 0
  %1273 = vmatpush2.bf16.xpose.msra.mxu0 0
  %1274 = vmatprep.subr.bf16.mxu0 0
  %1275 = vmatpush2.bf16.xpose.msra.mxu0 0
  %1276 = vmatprep.mubr.bf16.mxu0 0
  %1277 = vmatmul.mubr.bf16.gmra.mxu0 %v1221
  %v1278 = vpop.f32.mrf.mxu0
  %v1279 = vadd.f32 0.0, %v1278
  %v1280 = vpop.f32.mrf.mxu0
  %v1281 = vpop.f32.mrf.mxu0
  %v1282 = vadd.f32 0.0, %v1281
  %v1283 = vpop.f32.mrf.mxu0
  %1284 = vmatprep.mubr.bf16.mxu0 0
  %1285 = vmatmul.mubr.bf16.gmra.mxu0 %v1224
  %v1286 = vpop.f32.mrf.mxu0
  %v1287 = vadd.f32 0.0, %v1286
  %v1288 = vpop.f32.mrf.mxu0
  %v1289 = vpop.f32.mrf.mxu0
  %v1290 = vadd.f32 0.0, %v1289
  %v1291 = vpop.f32.mrf.mxu0
  %1292 = vmatprep.mubr.bf16.mxu0 0
  %1293 = vmatmul.mubr.bf16.gmra.mxu0 %v1227
  %v1294 = vpop.f32.mrf.mxu0
  %v1295 = vadd.f32 0.0, %v1294
  %v1296 = vpop.f32.mrf.mxu0
  %v1297 = vpop.f32.mrf.mxu0
  %v1298 = vadd.f32 0.0, %v1297
  %v1299 = vpop.f32.mrf.mxu0
  %1300 = vmatprep.mubr.bf16.mxu0 0
  %1301 = vmatmul.mubr.bf16.gmra.mxu0 %v1230
  %v1302 = vpop.f32.mrf.mxu0
  %v1303 = vadd.f32 0.0, %v1302
  %v1304 = vpop.f32.mrf.mxu0
  %v1305 = vpop.f32.mrf.mxu0
  %v1306 = vadd.f32 0.0, %v1305
  %v1307 = vpop.f32.mrf.mxu0
  %1308 = vdwg.mxu0
  %v1309 = vadd.f32 %v548, %v258
  %v1310 = vadd.f32 %v551, %v259
  %v1311 = vadd.f32 %v556, %v260
  %v1312 = vadd.f32 %v559, %v261
  %v1313 = vadd.f32 %v564, %v262
  %v1314 = vadd.f32 %v567, %v263
  %v1315 = vadd.f32 %v572, %v264
  %v1316 = vadd.f32 %v575, %v265
  %v1317 = vadd.f32 %v653, %v266
  %v1318 = vadd.f32 %v656, %v267
  %v1319 = vadd.f32 %v661, %v268
  %v1320 = vadd.f32 %v664, %v269
  %v1321 = vadd.f32 %v669, %v270
  %v1322 = vadd.f32 %v672, %v271
  %v1323 = vadd.f32 %v677, %v272
  %v1324 = vadd.f32 %v680, %v273
  %v1325 = vadd.f32 %v758, %v274
  %v1326 = vadd.f32 %v761, %v275
  %v1327 = vadd.f32 %v766, %v276
  %v1328 = vadd.f32 %v769, %v277
  %v1329 = vadd.f32 %v774, %v278
  %v1330 = vadd.f32 %v777, %v279
  %v1331 = vadd.f32 %v782, %v280
  %v1332 = vadd.f32 %v785, %v281
  %v1333 = vadd.f32 %v863, %v282
  %v1334 = vadd.f32 %v866, %v283
  %v1335 = vadd.f32 %v871, %v284
  %v1336 = vadd.f32 %v874, %v285
  %v1337 = vadd.f32 %v879, %v286
  %v1338 = vadd.f32 %v882, %v287
  %v1339 = vadd.f32 %v887, %v288
  %v1340 = vadd.f32 %v890, %v289
  %v1341 = vadd.f32 %v964, %v290
  %v1342 = vadd.f32 %v967, %v291
  %v1343 = vadd.f32 %v972, %v292
  %v1344 = vadd.f32 %v975, %v293
  %v1345 = vadd.f32 %v980, %v294
  %v1346 = vadd.f32 %v983, %v295
  %v1347 = vadd.f32 %v988, %v296
  %v1348 = vadd.f32 %v991, %v297
  %v1349 = vadd.f32 %v1069, %v298
  %v1350 = vadd.f32 %v1072, %v299
  %v1351 = vadd.f32 %v1077, %v300
  %v1352 = vadd.f32 %v1080, %v301
  %v1353 = vadd.f32 %v1085, %v302
  %v1354 = vadd.f32 %v1088, %v303
  %v1355 = vadd.f32 %v1093, %v304
  %v1356 = vadd.f32 %v1096, %v305
  %v1357 = vadd.f32 %v1174, %v306
  %v1358 = vadd.f32 %v1177, %v307
  %v1359 = vadd.f32 %v1182, %v308
  %v1360 = vadd.f32 %v1185, %v309
  %v1361 = vadd.f32 %v1190, %v310
  %v1362 = vadd.f32 %v1193, %v311
  %v1363 = vadd.f32 %v1198, %v312
  %v1364 = vadd.f32 %v1201, %v313
  %v1365 = vadd.f32 %v1279, %v314
  %v1366 = vadd.f32 %v1282, %v315
  %v1367 = vadd.f32 %v1287, %v316
  %v1368 = vadd.f32 %v1290, %v317
  %v1369 = vadd.f32 %v1295, %v318
  %v1370 = vadd.f32 %v1298, %v319
  %v1371 = vadd.f32 %v1303, %v320
  %v1372 = vadd.f32 %v1306, %v321
  %vm1373 = vcmask 523264
  %v1374 = vsel %vm1373, %v1309, -inf
  %1375 = vmax.xlane.f32.xlu0 %v1374
  %v1376 = vpop.xlane.xlu0 %1375
  %v1377 = vsel %vm1373, %v1310, -inf
  %1378 = vmax.xlane.f32.xlu0 %v1377
  %v1379 = vpop.xlane.xlu0 %1378
  %v1380 = vsel %vm1373, %v1311, -inf
  %1381 = vmax.xlane.f32.xlu0 %v1380
  %v1382 = vpop.xlane.xlu0 %1381
  %v1383 = vsel %vm1373, %v1312, -inf
  %1384 = vmax.xlane.f32.xlu0 %v1383
  %v1385 = vpop.xlane.xlu0 %1384
  %v1386 = vsel %vm1373, %v1313, -inf
  %1387 = vmax.xlane.f32.xlu0 %v1386
  %v1388 = vpop.xlane.xlu0 %1387
  %v1389 = vsel %vm1373, %v1314, -inf
  %1390 = vmax.xlane.f32.xlu0 %v1389
  %v1391 = vpop.xlane.xlu0 %1390
  %v1392 = vsel %vm1373, %v1315, -inf
  %1393 = vmax.xlane.f32.xlu0 %v1392
  %v1394 = vpop.xlane.xlu0 %1393
  %v1395 = vsel %vm1373, %v1316, -inf
  %1396 = vmax.xlane.f32.xlu0 %v1395
  %v1397 = vpop.xlane.xlu0 %1396
  %v1398 = vsel %vm1373, %v1317, -inf
  %1399 = vmax.xlane.f32.xlu0 %v1398
  %v1400 = vpop.xlane.xlu0 %1399
  %v1401 = vsel %vm1373, %v1318, -inf
  %1402 = vmax.xlane.f32.xlu0 %v1401
  %v1403 = vpop.xlane.xlu0 %1402
  %v1404 = vsel %vm1373, %v1319, -inf
  %1405 = vmax.xlane.f32.xlu0 %v1404
  %v1406 = vpop.xlane.xlu0 %1405
  %v1407 = vsel %vm1373, %v1320, -inf
  %1408 = vmax.xlane.f32.xlu0 %v1407
  %v1409 = vpop.xlane.xlu0 %1408
  %v1410 = vsel %vm1373, %v1321, -inf
  %1411 = vmax.xlane.f32.xlu0 %v1410
  %v1412 = vpop.xlane.xlu0 %1411
  %v1413 = vsel %vm1373, %v1322, -inf
  %1414 = vmax.xlane.f32.xlu0 %v1413
  %v1415 = vpop.xlane.xlu0 %1414
  %v1416 = vsel %vm1373, %v1323, -inf
  %1417 = vmax.xlane.f32.xlu0 %v1416
  %v1418 = vpop.xlane.xlu0 %1417
  %v1419 = vsel %vm1373, %v1324, -inf
  %1420 = vmax.xlane.f32.xlu0 %v1419
  %v1421 = vpop.xlane.xlu0 %1420
  %v1422 = vsel %vm1373, %v1325, -inf
  %1423 = vmax.xlane.f32.xlu0 %v1422
  %v1424 = vpop.xlane.xlu0 %1423
  %v1425 = vsel %vm1373, %v1326, -inf
  %1426 = vmax.xlane.f32.xlu0 %v1425
  %v1427 = vpop.xlane.xlu0 %1426
  %v1428 = vsel %vm1373, %v1327, -inf
  %1429 = vmax.xlane.f32.xlu0 %v1428
  %v1430 = vpop.xlane.xlu0 %1429
  %v1431 = vsel %vm1373, %v1328, -inf
  %1432 = vmax.xlane.f32.xlu0 %v1431
  %v1433 = vpop.xlane.xlu0 %1432
  %v1434 = vsel %vm1373, %v1329, -inf
  %1435 = vmax.xlane.f32.xlu0 %v1434
  %v1436 = vpop.xlane.xlu0 %1435
  %v1437 = vsel %vm1373, %v1330, -inf
  %1438 = vmax.xlane.f32.xlu0 %v1437
  %v1439 = vpop.xlane.xlu0 %1438
  %v1440 = vsel %vm1373, %v1331, -inf
  %1441 = vmax.xlane.f32.xlu0 %v1440
  %v1442 = vpop.xlane.xlu0 %1441
  %v1443 = vsel %vm1373, %v1332, -inf
  %1444 = vmax.xlane.f32.xlu0 %v1443
  %v1445 = vpop.xlane.xlu0 %1444
  %v1446 = vsel %vm1373, %v1333, -inf
  %1447 = vmax.xlane.f32.xlu0 %v1446
  %v1448 = vpop.xlane.xlu0 %1447
  %v1449 = vsel %vm1373, %v1334, -inf
  %1450 = vmax.xlane.f32.xlu0 %v1449
  %v1451 = vpop.xlane.xlu0 %1450
  %v1452 = vsel %vm1373, %v1335, -inf
  %1453 = vmax.xlane.f32.xlu0 %v1452
  %v1454 = vpop.xlane.xlu0 %1453
  %v1455 = vsel %vm1373, %v1336, -inf
  %1456 = vmax.xlane.f32.xlu0 %v1455
  %v1457 = vpop.xlane.xlu0 %1456
  %v1458 = vsel %vm1373, %v1337, -inf
  %1459 = vmax.xlane.f32.xlu0 %v1458
  %v1460 = vpop.xlane.xlu0 %1459
  %v1461 = vsel %vm1373, %v1338, -inf
  %1462 = vmax.xlane.f32.xlu0 %v1461
  %v1463 = vpop.xlane.xlu0 %1462
  %v1464 = vsel %vm1373, %v1339, -inf
  %1465 = vmax.xlane.f32.xlu0 %v1464
  %v1466 = vpop.xlane.xlu0 %1465
  %v1467 = vsel %vm1373, %v1340, -inf
  %1468 = vmax.xlane.f32.xlu0 %v1467
  %v1469 = vpop.xlane.xlu0 %1468
  %v1470 = vsel %vm1373, %v1341, -inf
  %1471 = vmax.xlane.f32.xlu0 %v1470
  %v1472 = vpop.xlane.xlu0 %1471
  %v1473 = vsel %vm1373, %v1342, -inf
  %1474 = vmax.xlane.f32.xlu0 %v1473
  %v1475 = vpop.xlane.xlu0 %1474
  %v1476 = vsel %vm1373, %v1343, -inf
  %1477 = vmax.xlane.f32.xlu0 %v1476
  %v1478 = vpop.xlane.xlu0 %1477
  %v1479 = vsel %vm1373, %v1344, -inf
  %1480 = vmax.xlane.f32.xlu0 %v1479
  %v1481 = vpop.xlane.xlu0 %1480
  %v1482 = vsel %vm1373, %v1345, -inf
  %1483 = vmax.xlane.f32.xlu0 %v1482
  %v1484 = vpop.xlane.xlu0 %1483
  %v1485 = vsel %vm1373, %v1346, -inf
  %1486 = vmax.xlane.f32.xlu0 %v1485
  %v1487 = vpop.xlane.xlu0 %1486
  %v1488 = vsel %vm1373, %v1347, -inf
  %1489 = vmax.xlane.f32.xlu0 %v1488
  %v1490 = vpop.xlane.xlu0 %1489
  %v1491 = vsel %vm1373, %v1348, -inf
  %1492 = vmax.xlane.f32.xlu0 %v1491
  %v1493 = vpop.xlane.xlu0 %1492
  %v1494 = vsel %vm1373, %v1349, -inf
  %1495 = vmax.xlane.f32.xlu0 %v1494
  %v1496 = vpop.xlane.xlu0 %1495
  %v1497 = vsel %vm1373, %v1350, -inf
  %1498 = vmax.xlane.f32.xlu0 %v1497
  %v1499 = vpop.xlane.xlu0 %1498
  %v1500 = vsel %vm1373, %v1351, -inf
  %1501 = vmax.xlane.f32.xlu0 %v1500
  %v1502 = vpop.xlane.xlu0 %1501
  %v1503 = vsel %vm1373, %v1352, -inf
  %1504 = vmax.xlane.f32.xlu0 %v1503
  %v1505 = vpop.xlane.xlu0 %1504
  %v1506 = vsel %vm1373, %v1353, -inf
  %1507 = vmax.xlane.f32.xlu0 %v1506
  %v1508 = vpop.xlane.xlu0 %1507
  %v1509 = vsel %vm1373, %v1354, -inf
  %1510 = vmax.xlane.f32.xlu0 %v1509
  %v1511 = vpop.xlane.xlu0 %1510
  %v1512 = vsel %vm1373, %v1355, -inf
  %1513 = vmax.xlane.f32.xlu0 %v1512
  %v1514 = vpop.xlane.xlu0 %1513
  %v1515 = vsel %vm1373, %v1356, -inf
  %1516 = vmax.xlane.f32.xlu0 %v1515
  %v1517 = vpop.xlane.xlu0 %1516
  %v1518 = vsel %vm1373, %v1357, -inf
  %1519 = vmax.xlane.f32.xlu0 %v1518
  %v1520 = vpop.xlane.xlu0 %1519
  %v1521 = vsel %vm1373, %v1358, -inf
  %1522 = vmax.xlane.f32.xlu0 %v1521
  %v1523 = vpop.xlane.xlu0 %1522
  %v1524 = vsel %vm1373, %v1359, -inf
  %1525 = vmax.xlane.f32.xlu0 %v1524
  %v1526 = vpop.xlane.xlu0 %1525
  %v1527 = vsel %vm1373, %v1360, -inf
  %1528 = vmax.xlane.f32.xlu0 %v1527
  %v1529 = vpop.xlane.xlu0 %1528
  %v1530 = vsel %vm1373, %v1361, -inf
  %1531 = vmax.xlane.f32.xlu0 %v1530
  %v1532 = vpop.xlane.xlu0 %1531
  %v1533 = vsel %vm1373, %v1362, -inf
  %1534 = vmax.xlane.f32.xlu0 %v1533
  %v1535 = vpop.xlane.xlu0 %1534
  %v1536 = vsel %vm1373, %v1363, -inf
  %1537 = vmax.xlane.f32.xlu0 %v1536
  %v1538 = vpop.xlane.xlu0 %1537
  %v1539 = vsel %vm1373, %v1364, -inf
  %1540 = vmax.xlane.f32.xlu0 %v1539
  %v1541 = vpop.xlane.xlu0 %1540
  %v1542 = vsel %vm1373, %v1365, -inf
  %1543 = vmax.xlane.f32.xlu0 %v1542
  %v1544 = vpop.xlane.xlu0 %1543
  %v1545 = vsel %vm1373, %v1366, -inf
  %1546 = vmax.xlane.f32.xlu0 %v1545
  %v1547 = vpop.xlane.xlu0 %1546
  %v1548 = vsel %vm1373, %v1367, -inf
  %1549 = vmax.xlane.f32.xlu0 %v1548
  %v1550 = vpop.xlane.xlu0 %1549
  %v1551 = vsel %vm1373, %v1368, -inf
  %1552 = vmax.xlane.f32.xlu0 %v1551
  %v1553 = vpop.xlane.xlu0 %1552
  %v1554 = vsel %vm1373, %v1369, -inf
  %1555 = vmax.xlane.f32.xlu0 %v1554
  %v1556 = vpop.xlane.xlu0 %1555
  %v1557 = vsel %vm1373, %v1370, -inf
  %1558 = vmax.xlane.f32.xlu0 %v1557
  %v1559 = vpop.xlane.xlu0 %1558
  %v1560 = vsel %vm1373, %v1371, -inf
  %1561 = vmax.xlane.f32.xlu0 %v1560
  %v1562 = vpop.xlane.xlu0 %1561
  %v1563 = vsel %vm1373, %v1372, -inf
  %1564 = vmax.xlane.f32.xlu0 %v1563
  %v1565 = vpop.xlane.xlu0 %1564
  %v1566 = vsub.f32 %v1309, %v1376
  %v1567 = vsub.f32 %v1310, %v1379
  %v1568 = vsub.f32 %v1311, %v1382
  %v1569 = vsub.f32 %v1312, %v1385
  %v1570 = vsub.f32 %v1313, %v1388
  %v1571 = vsub.f32 %v1314, %v1391
  %v1572 = vsub.f32 %v1315, %v1394
  %v1573 = vsub.f32 %v1316, %v1397
  %v1574 = vsub.f32 %v1317, %v1400
  %v1575 = vsub.f32 %v1318, %v1403
  %v1576 = vsub.f32 %v1319, %v1406
  %v1577 = vsub.f32 %v1320, %v1409
  %v1578 = vsub.f32 %v1321, %v1412
  %v1579 = vsub.f32 %v1322, %v1415
  %v1580 = vsub.f32 %v1323, %v1418
  %v1581 = vsub.f32 %v1324, %v1421
  %v1582 = vsub.f32 %v1325, %v1424
  %v1583 = vsub.f32 %v1326, %v1427
  %v1584 = vsub.f32 %v1327, %v1430
  %v1585 = vsub.f32 %v1328, %v1433
  %v1586 = vsub.f32 %v1329, %v1436
  %v1587 = vsub.f32 %v1330, %v1439
  %v1588 = vsub.f32 %v1331, %v1442
  %v1589 = vsub.f32 %v1332, %v1445
  %v1590 = vsub.f32 %v1333, %v1448
  %v1591 = vsub.f32 %v1334, %v1451
  %v1592 = vsub.f32 %v1335, %v1454
  %v1593 = vsub.f32 %v1336, %v1457
  %v1594 = vsub.f32 %v1337, %v1460
  %v1595 = vsub.f32 %v1338, %v1463
  %v1596 = vsub.f32 %v1339, %v1466
  %v1597 = vsub.f32 %v1340, %v1469
  %v1598 = vsub.f32 %v1341, %v1472
  %v1599 = vsub.f32 %v1342, %v1475
  %v1600 = vsub.f32 %v1343, %v1478
  %v1601 = vsub.f32 %v1344, %v1481
  %v1602 = vsub.f32 %v1345, %v1484
  %v1603 = vsub.f32 %v1346, %v1487
  %v1604 = vsub.f32 %v1347, %v1490
  %v1605 = vsub.f32 %v1348, %v1493
  %v1606 = vsub.f32 %v1349, %v1496
  %v1607 = vsub.f32 %v1350, %v1499
  %v1608 = vsub.f32 %v1351, %v1502
  %v1609 = vsub.f32 %v1352, %v1505
  %v1610 = vsub.f32 %v1353, %v1508
  %v1611 = vsub.f32 %v1354, %v1511
  %v1612 = vsub.f32 %v1355, %v1514
  %v1613 = vsub.f32 %v1356, %v1517
  %v1614 = vsub.f32 %v1357, %v1520
  %v1615 = vsub.f32 %v1358, %v1523
  %v1616 = vsub.f32 %v1359, %v1526
  %v1617 = vsub.f32 %v1360, %v1529
  %v1618 = vsub.f32 %v1361, %v1532
  %v1619 = vsub.f32 %v1362, %v1535
  %v1620 = vsub.f32 %v1363, %v1538
  %v1621 = vsub.f32 %v1364, %v1541
  %v1622 = vsub.f32 %v1365, %v1544
  %v1623 = vsub.f32 %v1366, %v1547
  %v1624 = vsub.f32 %v1367, %v1550
  %v1625 = vsub.f32 %v1368, %v1553
  %v1626 = vsub.f32 %v1369, %v1556
  %v1627 = vsub.f32 %v1370, %v1559
  %v1628 = vsub.f32 %v1371, %v1562
  %v1629 = vsub.f32 %v1372, %v1565
  %v1630 = vmul.f32 %v1566, 1.442695
  %v1631 = vpow.pop %v1630
  %v1632 = vmul.f32 %v1567, 1.442695
  %v1633 = vpow.pop %v1632
  %v1634 = vmul.f32 %v1568, 1.442695
  %v1635 = vpow.pop %v1634
  %v1636 = vmul.f32 %v1569, 1.442695
  %v1637 = vpow.pop %v1636
  %v1638 = vmul.f32 %v1570, 1.442695
  %v1639 = vpow.pop %v1638
  %v1640 = vmul.f32 %v1571, 1.442695
  %v1641 = vpow.pop %v1640
  %v1642 = vmul.f32 %v1572, 1.442695
  %v1643 = vpow.pop %v1642
  %v1644 = vmul.f32 %v1573, 1.442695
  %v1645 = vpow.pop %v1644
  %v1646 = vmul.f32 %v1574, 1.442695
  %v1647 = vpow.pop %v1646
  %v1648 = vmul.f32 %v1575, 1.442695
  %v1649 = vpow.pop %v1648
  %v1650 = vmul.f32 %v1576, 1.442695
  %v1651 = vpow.pop %v1650
  %v1652 = vmul.f32 %v1577, 1.442695
  %v1653 = vpow.pop %v1652
  %v1654 = vmul.f32 %v1578, 1.442695
  %v1655 = vpow.pop %v1654
  %v1656 = vmul.f32 %v1579, 1.442695
  %v1657 = vpow.pop %v1656
  %v1658 = vmul.f32 %v1580, 1.442695
  %v1659 = vpow.pop %v1658
  %v1660 = vmul.f32 %v1581, 1.442695
  %v1661 = vpow.pop %v1660
  %v1662 = vmul.f32 %v1582, 1.442695
  %v1663 = vpow.pop %v1662
  %v1664 = vmul.f32 %v1583, 1.442695
  %v1665 = vpow.pop %v1664
  %v1666 = vmul.f32 %v1584, 1.442695
  %v1667 = vpow.pop %v1666
  %v1668 = vmul.f32 %v1585, 1.442695
  %v1669 = vpow.pop %v1668
  %v1670 = vmul.f32 %v1586, 1.442695
  %v1671 = vpow.pop %v1670
  %v1672 = vmul.f32 %v1587, 1.442695
  %v1673 = vpow.pop %v1672
  %v1674 = vmul.f32 %v1588, 1.442695
  %v1675 = vpow.pop %v1674
  %v1676 = vmul.f32 %v1589, 1.442695
  %v1677 = vpow.pop %v1676
  %v1678 = vmul.f32 %v1590, 1.442695
  %v1679 = vpow.pop %v1678
  %v1680 = vmul.f32 %v1591, 1.442695
  %v1681 = vpow.pop %v1680
  %v1682 = vmul.f32 %v1592, 1.442695
  %v1683 = vpow.pop %v1682
  %v1684 = vmul.f32 %v1593, 1.442695
  %v1685 = vpow.pop %v1684
  %v1686 = vmul.f32 %v1594, 1.442695
  %v1687 = vpow.pop %v1686
  %v1688 = vmul.f32 %v1595, 1.442695
  %v1689 = vpow.pop %v1688
  %v1690 = vmul.f32 %v1596, 1.442695
  %v1691 = vpow.pop %v1690
  %v1692 = vmul.f32 %v1597, 1.442695
  %v1693 = vpow.pop %v1692
  %v1694 = vmul.f32 %v1598, 1.442695
  %v1695 = vpow.pop %v1694
  %v1696 = vmul.f32 %v1599, 1.442695
  %v1697 = vpow.pop %v1696
  %v1698 = vmul.f32 %v1600, 1.442695
  %v1699 = vpow.pop %v1698
  %v1700 = vmul.f32 %v1601, 1.442695
  %v1701 = vpow.pop %v1700
  %v1702 = vmul.f32 %v1602, 1.442695
  %v1703 = vpow.pop %v1702
  %v1704 = vmul.f32 %v1603, 1.442695
  %v1705 = vpow.pop %v1704
  %v1706 = vmul.f32 %v1604, 1.442695
  %v1707 = vpow.pop %v1706
  %v1708 = vmul.f32 %v1605, 1.442695
  %v1709 = vpow.pop %v1708
  %v1710 = vmul.f32 %v1606, 1.442695
  %v1711 = vpow.pop %v1710
  %v1712 = vmul.f32 %v1607, 1.442695
  %v1713 = vpow.pop %v1712
  %v1714 = vmul.f32 %v1608, 1.442695
  %v1715 = vpow.pop %v1714
  %v1716 = vmul.f32 %v1609, 1.442695
  %v1717 = vpow.pop %v1716
  %v1718 = vmul.f32 %v1610, 1.442695
  %v1719 = vpow.pop %v1718
  %v1720 = vmul.f32 %v1611, 1.442695
  %v1721 = vpow.pop %v1720
  %v1722 = vmul.f32 %v1612, 1.442695
  %v1723 = vpow.pop %v1722
  %v1724 = vmul.f32 %v1613, 1.442695
  %v1725 = vpow.pop %v1724
  %v1726 = vmul.f32 %v1614, 1.442695
  %v1727 = vpow.pop %v1726
  %v1728 = vmul.f32 %v1615, 1.442695
  %v1729 = vpow.pop %v1728
  %v1730 = vmul.f32 %v1616, 1.442695
  %v1731 = vpow.pop %v1730
  %v1732 = vmul.f32 %v1617, 1.442695
  %v1733 = vpow.pop %v1732
  %v1734 = vmul.f32 %v1618, 1.442695
  %v1735 = vpow.pop %v1734
  %v1736 = vmul.f32 %v1619, 1.442695
  %v1737 = vpow.pop %v1736
  %v1738 = vmul.f32 %v1620, 1.442695
  %v1739 = vpow.pop %v1738
  %v1740 = vmul.f32 %v1621, 1.442695
  %v1741 = vpow.pop %v1740
  %v1742 = vmul.f32 %v1622, 1.442695
  %v1743 = vpow.pop %v1742
  %v1744 = vmul.f32 %v1623, 1.442695
  %v1745 = vpow.pop %v1744
  %v1746 = vmul.f32 %v1624, 1.442695
  %v1747 = vpow.pop %v1746
  %v1748 = vmul.f32 %v1625, 1.442695
  %v1749 = vpow.pop %v1748
  %v1750 = vmul.f32 %v1626, 1.442695
  %v1751 = vpow.pop %v1750
  %v1752 = vmul.f32 %v1627, 1.442695
  %v1753 = vpow.pop %v1752
  %v1754 = vmul.f32 %v1628, 1.442695
  %v1755 = vpow.pop %v1754
  %v1756 = vmul.f32 %v1629, 1.442695
  %v1757 = vpow.pop %v1756
  %v1758 = vsel %vm1373, %v1631, 0.0
  %1759 = vadd.xlane.f32.xlu0 %v1758
  %v1760 = vpop.xlane.xlu0 %1759
  %v1761 = vsel %vm1373, %v1633, 0.0
  %1762 = vadd.xlane.f32.xlu0 %v1761
  %v1763 = vpop.xlane.xlu0 %1762
  %v1764 = vsel %vm1373, %v1635, 0.0
  %1765 = vadd.xlane.f32.xlu0 %v1764
  %v1766 = vpop.xlane.xlu0 %1765
  %v1767 = vsel %vm1373, %v1637, 0.0
  %1768 = vadd.xlane.f32.xlu0 %v1767
  %v1769 = vpop.xlane.xlu0 %1768
  %v1770 = vsel %vm1373, %v1639, 0.0
  %1771 = vadd.xlane.f32.xlu0 %v1770
  %v1772 = vpop.xlane.xlu0 %1771
  %v1773 = vsel %vm1373, %v1641, 0.0
  %1774 = vadd.xlane.f32.xlu0 %v1773
  %v1775 = vpop.xlane.xlu0 %1774
  %v1776 = vsel %vm1373, %v1643, 0.0
  %1777 = vadd.xlane.f32.xlu0 %v1776
  %v1778 = vpop.xlane.xlu0 %1777
  %v1779 = vsel %vm1373, %v1645, 0.0
  %1780 = vadd.xlane.f32.xlu0 %v1779
  %v1781 = vpop.xlane.xlu0 %1780
  %v1782 = vsel %vm1373, %v1647, 0.0
  %1783 = vadd.xlane.f32.xlu0 %v1782
  %v1784 = vpop.xlane.xlu0 %1783
  %v1785 = vsel %vm1373, %v1649, 0.0
  %1786 = vadd.xlane.f32.xlu0 %v1785
  %v1787 = vpop.xlane.xlu0 %1786
  %v1788 = vsel %vm1373, %v1651, 0.0
  %1789 = vadd.xlane.f32.xlu0 %v1788
  %v1790 = vpop.xlane.xlu0 %1789
  %v1791 = vsel %vm1373, %v1653, 0.0
  %1792 = vadd.xlane.f32.xlu0 %v1791
  %v1793 = vpop.xlane.xlu0 %1792
  %v1794 = vsel %vm1373, %v1655, 0.0
  %1795 = vadd.xlane.f32.xlu0 %v1794
  %v1796 = vpop.xlane.xlu0 %1795
  %v1797 = vsel %vm1373, %v1657, 0.0
  %1798 = vadd.xlane.f32.xlu0 %v1797
  %v1799 = vpop.xlane.xlu0 %1798
  %v1800 = vsel %vm1373, %v1659, 0.0
  %1801 = vadd.xlane.f32.xlu0 %v1800
  %v1802 = vpop.xlane.xlu0 %1801
  %v1803 = vsel %vm1373, %v1661, 0.0
  %1804 = vadd.xlane.f32.xlu0 %v1803
  %v1805 = vpop.xlane.xlu0 %1804
  %v1806 = vsel %vm1373, %v1663, 0.0
  %1807 = vadd.xlane.f32.xlu0 %v1806
  %v1808 = vpop.xlane.xlu0 %1807
  %v1809 = vsel %vm1373, %v1665, 0.0
  %1810 = vadd.xlane.f32.xlu0 %v1809
  %v1811 = vpop.xlane.xlu0 %1810
  %v1812 = vsel %vm1373, %v1667, 0.0
  %1813 = vadd.xlane.f32.xlu0 %v1812
  %v1814 = vpop.xlane.xlu0 %1813
  %v1815 = vsel %vm1373, %v1669, 0.0
  %1816 = vadd.xlane.f32.xlu0 %v1815
  %v1817 = vpop.xlane.xlu0 %1816
  %v1818 = vsel %vm1373, %v1671, 0.0
  %1819 = vadd.xlane.f32.xlu0 %v1818
  %v1820 = vpop.xlane.xlu0 %1819
  %v1821 = vsel %vm1373, %v1673, 0.0
  %1822 = vadd.xlane.f32.xlu0 %v1821
  %v1823 = vpop.xlane.xlu0 %1822
  %v1824 = vsel %vm1373, %v1675, 0.0
  %1825 = vadd.xlane.f32.xlu0 %v1824
  %v1826 = vpop.xlane.xlu0 %1825
  %v1827 = vsel %vm1373, %v1677, 0.0
  %1828 = vadd.xlane.f32.xlu0 %v1827
  %v1829 = vpop.xlane.xlu0 %1828
  %v1830 = vsel %vm1373, %v1679, 0.0
  %1831 = vadd.xlane.f32.xlu0 %v1830
  %v1832 = vpop.xlane.xlu0 %1831
  %v1833 = vsel %vm1373, %v1681, 0.0
  %1834 = vadd.xlane.f32.xlu0 %v1833
  %v1835 = vpop.xlane.xlu0 %1834
  %v1836 = vsel %vm1373, %v1683, 0.0
  %1837 = vadd.xlane.f32.xlu0 %v1836
  %v1838 = vpop.xlane.xlu0 %1837
  %v1839 = vsel %vm1373, %v1685, 0.0
  %1840 = vadd.xlane.f32.xlu0 %v1839
  %v1841 = vpop.xlane.xlu0 %1840
  %v1842 = vsel %vm1373, %v1687, 0.0
  %1843 = vadd.xlane.f32.xlu0 %v1842
  %v1844 = vpop.xlane.xlu0 %1843
  %v1845 = vsel %vm1373, %v1689, 0.0
  %1846 = vadd.xlane.f32.xlu0 %v1845
  %v1847 = vpop.xlane.xlu0 %1846
  %v1848 = vsel %vm1373, %v1691, 0.0
  %1849 = vadd.xlane.f32.xlu0 %v1848
  %v1850 = vpop.xlane.xlu0 %1849
  %v1851 = vsel %vm1373, %v1693, 0.0
  %1852 = vadd.xlane.f32.xlu0 %v1851
  %v1853 = vpop.xlane.xlu0 %1852
  %v1854 = vsel %vm1373, %v1695, 0.0
  %1855 = vadd.xlane.f32.xlu0 %v1854
  %v1856 = vpop.xlane.xlu0 %1855
  %v1857 = vsel %vm1373, %v1697, 0.0
  %1858 = vadd.xlane.f32.xlu0 %v1857
  %v1859 = vpop.xlane.xlu0 %1858
  %v1860 = vsel %vm1373, %v1699, 0.0
  %1861 = vadd.xlane.f32.xlu0 %v1860
  %v1862 = vpop.xlane.xlu0 %1861
  %v1863 = vsel %vm1373, %v1701, 0.0
  %1864 = vadd.xlane.f32.xlu0 %v1863
  %v1865 = vpop.xlane.xlu0 %1864
  %v1866 = vsel %vm1373, %v1703, 0.0
  %1867 = vadd.xlane.f32.xlu0 %v1866
  %v1868 = vpop.xlane.xlu0 %1867
  %v1869 = vsel %vm1373, %v1705, 0.0
  %1870 = vadd.xlane.f32.xlu0 %v1869
  %v1871 = vpop.xlane.xlu0 %1870
  %v1872 = vsel %vm1373, %v1707, 0.0
  %1873 = vadd.xlane.f32.xlu0 %v1872
  %v1874 = vpop.xlane.xlu0 %1873
  %v1875 = vsel %vm1373, %v1709, 0.0
  %1876 = vadd.xlane.f32.xlu0 %v1875
  %v1877 = vpop.xlane.xlu0 %1876
  %v1878 = vsel %vm1373, %v1711, 0.0
  %1879 = vadd.xlane.f32.xlu0 %v1878
  %v1880 = vpop.xlane.xlu0 %1879
  %v1881 = vsel %vm1373, %v1713, 0.0
  %1882 = vadd.xlane.f32.xlu0 %v1881
  %v1883 = vpop.xlane.xlu0 %1882
  %v1884 = vsel %vm1373, %v1715, 0.0
  %1885 = vadd.xlane.f32.xlu0 %v1884
  %v1886 = vpop.xlane.xlu0 %1885
  %v1887 = vsel %vm1373, %v1717, 0.0
  %1888 = vadd.xlane.f32.xlu0 %v1887
  %v1889 = vpop.xlane.xlu0 %1888
  %v1890 = vsel %vm1373, %v1719, 0.0
  %1891 = vadd.xlane.f32.xlu0 %v1890
  %v1892 = vpop.xlane.xlu0 %1891
  %v1893 = vsel %vm1373, %v1721, 0.0
  %1894 = vadd.xlane.f32.xlu0 %v1893
  %v1895 = vpop.xlane.xlu0 %1894
  %v1896 = vsel %vm1373, %v1723, 0.0
  %1897 = vadd.xlane.f32.xlu0 %v1896
  %v1898 = vpop.xlane.xlu0 %1897
  %v1899 = vsel %vm1373, %v1725, 0.0
  %1900 = vadd.xlane.f32.xlu0 %v1899
  %v1901 = vpop.xlane.xlu0 %1900
  %v1902 = vsel %vm1373, %v1727, 0.0
  %1903 = vadd.xlane.f32.xlu0 %v1902
  %v1904 = vpop.xlane.xlu0 %1903
  %v1905 = vsel %vm1373, %v1729, 0.0
  %1906 = vadd.xlane.f32.xlu0 %v1905
  %v1907 = vpop.xlane.xlu0 %1906
  %v1908 = vsel %vm1373, %v1731, 0.0
  %1909 = vadd.xlane.f32.xlu0 %v1908
  %v1910 = vpop.xlane.xlu0 %1909
  %v1911 = vsel %vm1373, %v1733, 0.0
  %1912 = vadd.xlane.f32.xlu0 %v1911
  %v1913 = vpop.xlane.xlu0 %1912
  %v1914 = vsel %vm1373, %v1735, 0.0
  %1915 = vadd.xlane.f32.xlu0 %v1914
  %v1916 = vpop.xlane.xlu0 %1915
  %v1917 = vsel %vm1373, %v1737, 0.0
  %1918 = vadd.xlane.f32.xlu0 %v1917
  %v1919 = vpop.xlane.xlu0 %1918
  %v1920 = vsel %vm1373, %v1739, 0.0
  %1921 = vadd.xlane.f32.xlu0 %v1920
  %v1922 = vpop.xlane.xlu0 %1921
  %v1923 = vsel %vm1373, %v1741, 0.0
  %1924 = vadd.xlane.f32.xlu0 %v1923
  %v1925 = vpop.xlane.xlu0 %1924
  %v1926 = vsel %vm1373, %v1743, 0.0
  %1927 = vadd.xlane.f32.xlu0 %v1926
  %v1928 = vpop.xlane.xlu0 %1927
  %v1929 = vsel %vm1373, %v1745, 0.0
  %1930 = vadd.xlane.f32.xlu0 %v1929
  %v1931 = vpop.xlane.xlu0 %1930
  %v1932 = vsel %vm1373, %v1747, 0.0
  %1933 = vadd.xlane.f32.xlu0 %v1932
  %v1934 = vpop.xlane.xlu0 %1933
  %v1935 = vsel %vm1373, %v1749, 0.0
  %1936 = vadd.xlane.f32.xlu0 %v1935
  %v1937 = vpop.xlane.xlu0 %1936
  %v1938 = vsel %vm1373, %v1751, 0.0
  %1939 = vadd.xlane.f32.xlu0 %v1938
  %v1940 = vpop.xlane.xlu0 %1939
  %v1941 = vsel %vm1373, %v1753, 0.0
  %1942 = vadd.xlane.f32.xlu0 %v1941
  %v1943 = vpop.xlane.xlu0 %1942
  %v1944 = vsel %vm1373, %v1755, 0.0
  %1945 = vadd.xlane.f32.xlu0 %v1944
  %v1946 = vpop.xlane.xlu0 %1945
  %v1947 = vsel %vm1373, %v1757, 0.0
  %1948 = vadd.xlane.f32.xlu0 %v1947
  %v1949 = vpop.xlane.xlu0 %1948
  %v1950 = vrcp.pop %v1760
  %v1951 = vrcp.pop %v1763
  %v1952 = vrcp.pop %v1766
  %v1953 = vrcp.pop %v1769
  %v1954 = vrcp.pop %v1772
  %v1955 = vrcp.pop %v1775
  %v1956 = vrcp.pop %v1778
  %v1957 = vrcp.pop %v1781
  %v1958 = vrcp.pop %v1784
  %v1959 = vrcp.pop %v1787
  %v1960 = vrcp.pop %v1790
  %v1961 = vrcp.pop %v1793
  %v1962 = vrcp.pop %v1796
  %v1963 = vrcp.pop %v1799
  %v1964 = vrcp.pop %v1802
  %v1965 = vrcp.pop %v1805
  %v1966 = vrcp.pop %v1808
  %v1967 = vrcp.pop %v1811
  %v1968 = vrcp.pop %v1814
  %v1969 = vrcp.pop %v1817
  %v1970 = vrcp.pop %v1820
  %v1971 = vrcp.pop %v1823
  %v1972 = vrcp.pop %v1826
  %v1973 = vrcp.pop %v1829
  %v1974 = vrcp.pop %v1832
  %v1975 = vrcp.pop %v1835
  %v1976 = vrcp.pop %v1838
  %v1977 = vrcp.pop %v1841
  %v1978 = vrcp.pop %v1844
  %v1979 = vrcp.pop %v1847
  %v1980 = vrcp.pop %v1850
  %v1981 = vrcp.pop %v1853
  %v1982 = vrcp.pop %v1856
  %v1983 = vrcp.pop %v1859
  %v1984 = vrcp.pop %v1862
  %v1985 = vrcp.pop %v1865
  %v1986 = vrcp.pop %v1868
  %v1987 = vrcp.pop %v1871
  %v1988 = vrcp.pop %v1874
  %v1989 = vrcp.pop %v1877
  %v1990 = vrcp.pop %v1880
  %v1991 = vrcp.pop %v1883
  %v1992 = vrcp.pop %v1886
  %v1993 = vrcp.pop %v1889
  %v1994 = vrcp.pop %v1892
  %v1995 = vrcp.pop %v1895
  %v1996 = vrcp.pop %v1898
  %v1997 = vrcp.pop %v1901
  %v1998 = vrcp.pop %v1904
  %v1999 = vrcp.pop %v1907
  %v2000 = vrcp.pop %v1910
  %v2001 = vrcp.pop %v1913
  %v2002 = vrcp.pop %v1916
  %v2003 = vrcp.pop %v1919
  %v2004 = vrcp.pop %v1922
  %v2005 = vrcp.pop %v1925
  %v2006 = vrcp.pop %v1928
  %v2007 = vrcp.pop %v1931
  %v2008 = vrcp.pop %v1934
  %v2009 = vrcp.pop %v1937
  %v2010 = vrcp.pop %v1940
  %v2011 = vrcp.pop %v1943
  %v2012 = vrcp.pop %v1946
  %v2013 = vrcp.pop %v1949
  %v2014 = vmul.f32 %v1631, %v1950
  %v2015 = vmul.f32 %v1633, %v1951
  %v2016 = vmul.f32 %v1635, %v1952
  %v2017 = vmul.f32 %v1637, %v1953
  %v2018 = vmul.f32 %v1639, %v1954
  %v2019 = vmul.f32 %v1641, %v1955
  %v2020 = vmul.f32 %v1643, %v1956
  %v2021 = vmul.f32 %v1645, %v1957
  %v2022 = vmul.f32 %v1647, %v1958
  %v2023 = vmul.f32 %v1649, %v1959
  %v2024 = vmul.f32 %v1651, %v1960
  %v2025 = vmul.f32 %v1653, %v1961
  %v2026 = vmul.f32 %v1655, %v1962
  %v2027 = vmul.f32 %v1657, %v1963
  %v2028 = vmul.f32 %v1659, %v1964
  %v2029 = vmul.f32 %v1661, %v1965
  %v2030 = vmul.f32 %v1663, %v1966
  %v2031 = vmul.f32 %v1665, %v1967
  %v2032 = vmul.f32 %v1667, %v1968
  %v2033 = vmul.f32 %v1669, %v1969
  %v2034 = vmul.f32 %v1671, %v1970
  %v2035 = vmul.f32 %v1673, %v1971
  %v2036 = vmul.f32 %v1675, %v1972
  %v2037 = vmul.f32 %v1677, %v1973
  %v2038 = vmul.f32 %v1679, %v1974
  %v2039 = vmul.f32 %v1681, %v1975
  %v2040 = vmul.f32 %v1683, %v1976
  %v2041 = vmul.f32 %v1685, %v1977
  %v2042 = vmul.f32 %v1687, %v1978
  %v2043 = vmul.f32 %v1689, %v1979
  %v2044 = vmul.f32 %v1691, %v1980
  %v2045 = vmul.f32 %v1693, %v1981
  %v2046 = vmul.f32 %v1695, %v1982
  %v2047 = vmul.f32 %v1697, %v1983
  %v2048 = vmul.f32 %v1699, %v1984
  %v2049 = vmul.f32 %v1701, %v1985
  %v2050 = vmul.f32 %v1703, %v1986
  %v2051 = vmul.f32 %v1705, %v1987
  %v2052 = vmul.f32 %v1707, %v1988
  %v2053 = vmul.f32 %v1709, %v1989
  %v2054 = vmul.f32 %v1711, %v1990
  %v2055 = vmul.f32 %v1713, %v1991
  %v2056 = vmul.f32 %v1715, %v1992
  %v2057 = vmul.f32 %v1717, %v1993
  %v2058 = vmul.f32 %v1719, %v1994
  %v2059 = vmul.f32 %v1721, %v1995
  %v2060 = vmul.f32 %v1723, %v1996
  %v2061 = vmul.f32 %v1725, %v1997
  %v2062 = vmul.f32 %v1727, %v1998
  %v2063 = vmul.f32 %v1729, %v1999
  %v2064 = vmul.f32 %v1731, %v2000
  %v2065 = vmul.f32 %v1733, %v2001
  %v2066 = vmul.f32 %v1735, %v2002
  %v2067 = vmul.f32 %v1737, %v2003
  %v2068 = vmul.f32 %v1739, %v2004
  %v2069 = vmul.f32 %v1741, %v2005
  %v2070 = vmul.f32 %v1743, %v2006
  %v2071 = vmul.f32 %v1745, %v2007
  %v2072 = vmul.f32 %v1747, %v2008
  %v2073 = vmul.f32 %v1749, %v2009
  %v2074 = vmul.f32 %v1751, %v2010
  %v2075 = vmul.f32 %v1753, %v2011
  %v2076 = vmul.f32 %v1755, %v2012
  %v2077 = vmul.f32 %v1757, %v2013
  %v2078 = vpack.c.bf16 %v2015, %v2014
  %v2079 = vpack.c.bf16 %v2017, %v2016
  %v2080 = vpack.c.bf16 %v2019, %v2018
  %v2081 = vpack.c.bf16 %v2021, %v2020
  %v2082 = vpack.c.bf16 %v2023, %v2022
  %v2083 = vpack.c.bf16 %v2025, %v2024
  %v2084 = vpack.c.bf16 %v2027, %v2026
  %v2085 = vpack.c.bf16 %v2029, %v2028
  %v2086 = vpack.c.bf16 %v2031, %v2030
  %v2087 = vpack.c.bf16 %v2033, %v2032
  %v2088 = vpack.c.bf16 %v2035, %v2034
  %v2089 = vpack.c.bf16 %v2037, %v2036
  %v2090 = vpack.c.bf16 %v2039, %v2038
  %v2091 = vpack.c.bf16 %v2041, %v2040
  %v2092 = vpack.c.bf16 %v2043, %v2042
  %v2093 = vpack.c.bf16 %v2045, %v2044
  %v2094 = vpack.c.bf16 %v2047, %v2046
  %v2095 = vpack.c.bf16 %v2049, %v2048
  %v2096 = vpack.c.bf16 %v2051, %v2050
  %v2097 = vpack.c.bf16 %v2053, %v2052
  %v2098 = vpack.c.bf16 %v2055, %v2054
  %v2099 = vpack.c.bf16 %v2057, %v2056
  %v2100 = vpack.c.bf16 %v2059, %v2058
  %v2101 = vpack.c.bf16 %v2061, %v2060
  %v2102 = vpack.c.bf16 %v2063, %v2062
  %v2103 = vpack.c.bf16 %v2065, %v2064
  %v2104 = vpack.c.bf16 %v2067, %v2066
  %v2105 = vpack.c.bf16 %v2069, %v2068
  %v2106 = vpack.c.bf16 %v2071, %v2070
  %v2107 = vpack.c.bf16 %v2073, %v2072
  %v2108 = vpack.c.bf16 %v2075, %v2074
  %v2109 = vpack.c.bf16 %v2077, %v2076
  %2110 = vrot.lane.b32.xlu0 %v469, 64
  %v2111 = vpop.permute.xlu0 %2110
  %2112 = vrot.lane.b32.xlu0 %v470, 64
  %v2113 = vpop.permute.xlu0 %2112
  %2114 = vrot.lane.b32.xlu0 %v471, 64
  %v2115 = vpop.permute.xlu0 %2114
  %2116 = vrot.lane.b32.xlu0 %v472, 64
  %v2117 = vpop.permute.xlu0 %2116
  %v2123 = vsel %vm1373, %v2078, 0
  %v2126 = vsel %vm1373, %v2079, 0
  %v2129 = vsel %vm1373, %v2080, 0
  %v2132 = vsel %vm1373, %v2081, 0
  %2134 = vmatprep.subr.bf16.mxu0 0
  %2135 = vmatpush1.bf16.msra.mxu0 0
  %2136 = vmatprep.subr.bf16.mxu0 0
  %2137 = vmatpush1.bf16.msra.mxu0 0
  %2138 = vmatprep.subr.bf16.mxu0 0
  %2139 = vmatpush1.bf16.msra.mxu0 0
  %2140 = vmatprep.subr.bf16.mxu0 0
  %2141 = vmatpush1.bf16.msra.mxu0 0
  %2142 = vmatprep.subr.bf16.mxu0 0
  %2143 = vmatpush1.bf16.msra.mxu0 %v2117
  %2144 = vmatprep.subr.bf16.mxu0 0
  %2145 = vmatpush1.bf16.msra.mxu0 %v2115
  %2146 = vmatprep.subr.bf16.mxu0 0
  %2147 = vmatpush1.bf16.msra.mxu0 %v2113
  %2148 = vmatprep.subr.bf16.mxu0 0
  %2149 = vmatpush1.bf16.msra.mxu0 %v2111
  %2150 = vmatprep.subr.bf16.mxu0 0
  %2151 = vmatpush2.bf16.msra.mxu0 0
  %2152 = vmatprep.subr.bf16.mxu0 0
  %2153 = vmatpush2.bf16.msra.mxu0 0
  %2154 = vmatprep.subr.bf16.mxu0 0
  %2155 = vmatpush2.bf16.msra.mxu0 0
  %2156 = vmatprep.subr.bf16.mxu0 0
  %2157 = vmatpush2.bf16.msra.mxu0 0
  %2158 = vmatprep.subr.bf16.mxu0 0
  %2159 = vmatpush2.bf16.msra.mxu0 0
  %2160 = vmatprep.subr.bf16.mxu0 0
  %2161 = vmatpush2.bf16.msra.mxu0 0
  %2162 = vmatprep.subr.bf16.mxu0 0
  %2163 = vmatpush2.bf16.msra.mxu0 0
  %2164 = vmatprep.subr.bf16.mxu0 0
  %2165 = vmatpush2.bf16.msra.mxu0 0
  %2166 = vmatprep.mubr.bf16.mxu0 0
  %2167 = vmatmul.mubr.bf16.gmra.mxu0 %v2123
  %v2168 = vpop.f32.mrf.mxu0
  %v2169 = vadd.f32 0.0, %v2168
  %v2170 = vpop.f32.mrf.mxu0
  %v2171 = vpop.f32.mrf.mxu0
  %v2172 = vadd.f32 0.0, %v2171
  %v2173 = vpop.f32.mrf.mxu0
  %2174 = vmatprep.mubr.bf16.mxu0 0
  %2175 = vmatmul.mubr.bf16.gmra.mxu0 %v2126
  %v2176 = vpop.f32.mrf.mxu0
  %v2177 = vadd.f32 0.0, %v2176
  %v2178 = vpop.f32.mrf.mxu0
  %v2179 = vpop.f32.mrf.mxu0
  %v2180 = vadd.f32 0.0, %v2179
  %v2181 = vpop.f32.mrf.mxu0
  %2182 = vmatprep.mubr.bf16.mxu0 0
  %2183 = vmatmul.mubr.bf16.gmra.mxu0 %v2129
  %v2184 = vpop.f32.mrf.mxu0
  %v2185 = vadd.f32 0.0, %v2184
  %v2186 = vpop.f32.mrf.mxu0
  %v2187 = vpop.f32.mrf.mxu0
  %v2188 = vadd.f32 0.0, %v2187
  %v2189 = vpop.f32.mrf.mxu0
  %2190 = vmatprep.mubr.bf16.mxu0 0
  %2191 = vmatmul.mubr.bf16.gmra.mxu0 %v2132
  %v2192 = vpop.f32.mrf.mxu0
  %v2193 = vadd.f32 0.0, %v2192
  %v2194 = vpop.f32.mrf.mxu0
  %v2195 = vpop.f32.mrf.mxu0
  %v2196 = vadd.f32 0.0, %v2195
  %v2197 = vpop.f32.mrf.mxu0
  %2198 = vdwg.mxu0
  %v2199 = vpack.c.bf16 %v2172, %v2169
  %v2200 = vpack.c.bf16 %v2180, %v2177
  %v2201 = vpack.c.bf16 %v2188, %v2185
  %v2202 = vpack.c.bf16 %v2196, %v2193
  %2203 = vrot.lane.b32.xlu0 %v469, 56
  %v2204 = vpop.permute.xlu0 %2203
  %2205 = vrot.lane.b32.xlu0 %v470, 56
  %v2206 = vpop.permute.xlu0 %2205
  %2207 = vrot.lane.b32.xlu0 %v471, 56
  %v2208 = vpop.permute.xlu0 %2207
  %2209 = vrot.lane.b32.xlu0 %v472, 56
  %v2210 = vpop.permute.xlu0 %2209
  %v2216 = vsel %vm1373, %v2082, 0
  %v2219 = vsel %vm1373, %v2083, 0
  %v2222 = vsel %vm1373, %v2084, 0
  %v2225 = vsel %vm1373, %v2085, 0
  %2227 = vmatprep.subr.bf16.mxu0 0
  %2228 = vmatpush1.bf16.msra.mxu0 0
  %2229 = vmatprep.subr.bf16.mxu0 0
  %2230 = vmatpush1.bf16.msra.mxu0 0
  %2231 = vmatprep.subr.bf16.mxu0 0
  %2232 = vmatpush1.bf16.msra.mxu0 0
  %2233 = vmatprep.subr.bf16.mxu0 0
  %2234 = vmatpush1.bf16.msra.mxu0 0
  %2235 = vmatprep.subr.bf16.mxu0 0
  %2236 = vmatpush1.bf16.msra.mxu0 %v2210
  %2237 = vmatprep.subr.bf16.mxu0 0
  %2238 = vmatpush1.bf16.msra.mxu0 %v2208
  %2239 = vmatprep.subr.bf16.mxu0 0
  %2240 = vmatpush1.bf16.msra.mxu0 %v2206
  %2241 = vmatprep.subr.bf16.mxu0 0
  %2242 = vmatpush1.bf16.msra.mxu0 %v2204
  %2243 = vmatprep.subr.bf16.mxu0 0
  %2244 = vmatpush2.bf16.msra.mxu0 0
  %2245 = vmatprep.subr.bf16.mxu0 0
  %2246 = vmatpush2.bf16.msra.mxu0 0
  %2247 = vmatprep.subr.bf16.mxu0 0
  %2248 = vmatpush2.bf16.msra.mxu0 0
  %2249 = vmatprep.subr.bf16.mxu0 0
  %2250 = vmatpush2.bf16.msra.mxu0 0
  %2251 = vmatprep.subr.bf16.mxu0 0
  %2252 = vmatpush2.bf16.msra.mxu0 0
  %2253 = vmatprep.subr.bf16.mxu0 0
  %2254 = vmatpush2.bf16.msra.mxu0 0
  %2255 = vmatprep.subr.bf16.mxu0 0
  %2256 = vmatpush2.bf16.msra.mxu0 0
  %2257 = vmatprep.subr.bf16.mxu0 0
  %2258 = vmatpush2.bf16.msra.mxu0 0
  %2259 = vmatprep.mubr.bf16.mxu0 0
  %2260 = vmatmul.mubr.bf16.gmra.mxu0 %v2216
  %v2261 = vpop.f32.mrf.mxu0
  %v2262 = vadd.f32 0.0, %v2261
  %v2263 = vpop.f32.mrf.mxu0
  %v2264 = vpop.f32.mrf.mxu0
  %v2265 = vadd.f32 0.0, %v2264
  %v2266 = vpop.f32.mrf.mxu0
  %2267 = vmatprep.mubr.bf16.mxu0 0
  %2268 = vmatmul.mubr.bf16.gmra.mxu0 %v2219
  %v2269 = vpop.f32.mrf.mxu0
  %v2270 = vadd.f32 0.0, %v2269
  %v2271 = vpop.f32.mrf.mxu0
  %v2272 = vpop.f32.mrf.mxu0
  %v2273 = vadd.f32 0.0, %v2272
  %v2274 = vpop.f32.mrf.mxu0
  %2275 = vmatprep.mubr.bf16.mxu0 0
  %2276 = vmatmul.mubr.bf16.gmra.mxu0 %v2222
  %v2277 = vpop.f32.mrf.mxu0
  %v2278 = vadd.f32 0.0, %v2277
  %v2279 = vpop.f32.mrf.mxu0
  %v2280 = vpop.f32.mrf.mxu0
  %v2281 = vadd.f32 0.0, %v2280
  %v2282 = vpop.f32.mrf.mxu0
  %2283 = vmatprep.mubr.bf16.mxu0 0
  %2284 = vmatmul.mubr.bf16.gmra.mxu0 %v2225
  %v2285 = vpop.f32.mrf.mxu0
  %v2286 = vadd.f32 0.0, %v2285
  %v2287 = vpop.f32.mrf.mxu0
  %v2288 = vpop.f32.mrf.mxu0
  %v2289 = vadd.f32 0.0, %v2288
  %v2290 = vpop.f32.mrf.mxu0
  %2291 = vdwg.mxu0
  %v2292 = vpack.c.bf16 %v2265, %v2262
  %v2293 = vpack.c.bf16 %v2273, %v2270
  %v2294 = vpack.c.bf16 %v2281, %v2278
  %v2295 = vpack.c.bf16 %v2289, %v2286
  %v2296 = vpack.c.b16 %v340, %v340
  %2297 = vrot.lane.b32.xlu0 %v2296, 32
  %v2298 = vpop.permute.xlu0 %2297
  %v2300 = vsel %vm84, %v2292, 0
  %v2303 = vsel %vm84, %v2293, 0
  %v2306 = vsel %vm84, %v2294, 0
  %v2309 = vsel %vm84, %v2295, 0
  %v2312 = vsel %vm109, %v2298, 0
  %2314 = vmatprep.subr.bf16.mxu0 0
  %2315 = vmatpush1.bf16.msra.mxu0 0
  %2316 = vmatprep.subr.bf16.mxu0 0
  %2317 = vmatpush1.bf16.msra.mxu0 0
  %2318 = vmatprep.subr.bf16.mxu0 0
  %2319 = vmatpush1.bf16.msra.mxu0 0
  %2320 = vmatprep.subr.bf16.mxu0 0
  %2321 = vmatpush1.bf16.msra.mxu0 0
  %2322 = vmatprep.subr.bf16.mxu0 0
  %2323 = vmatpush1.bf16.msra.mxu0 0
  %2324 = vmatprep.subr.bf16.mxu0 0
  %2325 = vmatpush1.bf16.msra.mxu0 0
  %2326 = vmatprep.subr.bf16.mxu0 0
  %2327 = vmatpush1.bf16.msra.mxu0 0
  %2328 = vmatprep.subr.bf16.mxu0 0
  %2329 = vmatpush1.bf16.msra.mxu0 %v2312
  %2330 = vmatprep.subr.bf16.mxu0 0
  %2331 = vmatpush2.bf16.msra.mxu0 0
  %2332 = vmatprep.subr.bf16.mxu0 0
  %2333 = vmatpush2.bf16.msra.mxu0 0
  %2334 = vmatprep.subr.bf16.mxu0 0
  %2335 = vmatpush2.bf16.msra.mxu0 0
  %2336 = vmatprep.subr.bf16.mxu0 0
  %2337 = vmatpush2.bf16.msra.mxu0 0
  %2338 = vmatprep.subr.bf16.mxu0 0
  %2339 = vmatpush2.bf16.msra.mxu0 0
  %2340 = vmatprep.subr.bf16.mxu0 0
  %2341 = vmatpush2.bf16.msra.mxu0 0
  %2342 = vmatprep.subr.bf16.mxu0 0
  %2343 = vmatpush2.bf16.msra.mxu0 0
  %2344 = vmatprep.subr.bf16.mxu0 0
  %2345 = vmatpush2.bf16.msra.mxu0 0
  %2346 = vmatprep.mubr.bf16.mxu0 0
  %2347 = vmatmul.mubr.bf16.gmra.mxu0 %v2300
  %v2348 = vpop.f32.mrf.mxu0
  %v2349 = vadd.f32 0.0, %v2348
  %v2350 = vpop.f32.mrf.mxu0
  %v2351 = vpop.f32.mrf.mxu0
  %v2352 = vadd.f32 0.0, %v2351
  %v2353 = vpop.f32.mrf.mxu0
  %2354 = vmatprep.mubr.bf16.mxu0 0
  %2355 = vmatmul.mubr.bf16.gmra.mxu0 %v2303
  %v2356 = vpop.f32.mrf.mxu0
  %v2357 = vadd.f32 0.0, %v2356
  %v2358 = vpop.f32.mrf.mxu0
  %v2359 = vpop.f32.mrf.mxu0
  %v2360 = vadd.f32 0.0, %v2359
  %v2361 = vpop.f32.mrf.mxu0
  %2362 = vmatprep.mubr.bf16.mxu0 0
  %2363 = vmatmul.mubr.bf16.gmra.mxu0 %v2306
  %v2364 = vpop.f32.mrf.mxu0
  %v2365 = vadd.f32 0.0, %v2364
  %v2366 = vpop.f32.mrf.mxu0
  %v2367 = vpop.f32.mrf.mxu0
  %v2368 = vadd.f32 0.0, %v2367
  %v2369 = vpop.f32.mrf.mxu0
  %2370 = vmatprep.mubr.bf16.mxu0 0
  %2371 = vmatmul.mubr.bf16.gmra.mxu0 %v2309
  %v2372 = vpop.f32.mrf.mxu0
  %v2373 = vadd.f32 0.0, %v2372
  %v2374 = vpop.f32.mrf.mxu0
  %v2375 = vpop.f32.mrf.mxu0
  %v2376 = vadd.f32 0.0, %v2375
  %v2377 = vpop.f32.mrf.mxu0
  %2378 = vdwg.mxu0
  %v2379 = vpack.c.b16 %v339, %v339
  %2380 = vrot.lane.b32.xlu0 %v2379, 32
  %v2381 = vpop.permute.xlu0 %2380
  %v2383 = vsel %vm84, %v2199, 0
  %v2386 = vsel %vm84, %v2200, 0
  %v2389 = vsel %vm84, %v2201, 0
  %v2392 = vsel %vm84, %v2202, 0
  %v2395 = vsel %vm109, %v2381, 0
  %2397 = vmatprep.subr.bf16.mxu0 0
  %2398 = vmatpush1.bf16.msra.mxu0 0
  %2399 = vmatprep.subr.bf16.mxu0 0
  %2400 = vmatpush1.bf16.msra.mxu0 0
  %2401 = vmatprep.subr.bf16.mxu0 0
  %2402 = vmatpush1.bf16.msra.mxu0 0
  %2403 = vmatprep.subr.bf16.mxu0 0
  %2404 = vmatpush1.bf16.msra.mxu0 0
  %2405 = vmatprep.subr.bf16.mxu0 0
  %2406 = vmatpush1.bf16.msra.mxu0 0
  %2407 = vmatprep.subr.bf16.mxu0 0
  %2408 = vmatpush1.bf16.msra.mxu0 0
  %2409 = vmatprep.subr.bf16.mxu0 0
  %2410 = vmatpush1.bf16.msra.mxu0 0
  %2411 = vmatprep.subr.bf16.mxu0 0
  %2412 = vmatpush1.bf16.msra.mxu0 %v2395
  %2413 = vmatprep.subr.bf16.mxu0 0
  %2414 = vmatpush2.bf16.msra.mxu0 0
  %2415 = vmatprep.subr.bf16.mxu0 0
  %2416 = vmatpush2.bf16.msra.mxu0 0
  %2417 = vmatprep.subr.bf16.mxu0 0
  %2418 = vmatpush2.bf16.msra.mxu0 0
  %2419 = vmatprep.subr.bf16.mxu0 0
  %2420 = vmatpush2.bf16.msra.mxu0 0
  %2421 = vmatprep.subr.bf16.mxu0 0
  %2422 = vmatpush2.bf16.msra.mxu0 0
  %2423 = vmatprep.subr.bf16.mxu0 0
  %2424 = vmatpush2.bf16.msra.mxu0 0
  %2425 = vmatprep.subr.bf16.mxu0 0
  %2426 = vmatpush2.bf16.msra.mxu0 0
  %2427 = vmatprep.subr.bf16.mxu0 0
  %2428 = vmatpush2.bf16.msra.mxu0 0
  %2429 = vmatprep.mubr.bf16.mxu0 0
  %2430 = vmatmul.mubr.bf16.gmra.mxu0 %v2383
  %v2431 = vpop.f32.mrf.mxu0
  %v2432 = vadd.f32 %v2349, %v2431
  %v2433 = vpop.f32.mrf.mxu0
  %v2434 = vpop.f32.mrf.mxu0
  %v2435 = vadd.f32 %v2352, %v2434
  %v2436 = vpop.f32.mrf.mxu0
  %2437 = vmatprep.mubr.bf16.mxu0 0
  %2438 = vmatmul.mubr.bf16.gmra.mxu0 %v2386
  %v2439 = vpop.f32.mrf.mxu0
  %v2440 = vadd.f32 %v2357, %v2439
  %v2441 = vpop.f32.mrf.mxu0
  %v2442 = vpop.f32.mrf.mxu0
  %v2443 = vadd.f32 %v2360, %v2442
  %v2444 = vpop.f32.mrf.mxu0
  %2445 = vmatprep.mubr.bf16.mxu0 0
  %2446 = vmatmul.mubr.bf16.gmra.mxu0 %v2389
  %v2447 = vpop.f32.mrf.mxu0
  %v2448 = vadd.f32 %v2365, %v2447
  %v2449 = vpop.f32.mrf.mxu0
  %v2450 = vpop.f32.mrf.mxu0
  %v2451 = vadd.f32 %v2368, %v2450
  %v2452 = vpop.f32.mrf.mxu0
  %2453 = vmatprep.mubr.bf16.mxu0 0
  %2454 = vmatmul.mubr.bf16.gmra.mxu0 %v2392
  %v2455 = vpop.f32.mrf.mxu0
  %v2456 = vadd.f32 %v2373, %v2455
  %v2457 = vpop.f32.mrf.mxu0
  %v2458 = vpop.f32.mrf.mxu0
  %v2459 = vadd.f32 %v2376, %v2458
  %v2460 = vpop.f32.mrf.mxu0
  %2461 = vdwg.mxu0
  %2462 = vrot.lane.b32.xlu0 %v469, 48
  %v2463 = vpop.permute.xlu0 %2462
  %2464 = vrot.lane.b32.xlu0 %v470, 48
  %v2465 = vpop.permute.xlu0 %2464
  %2466 = vrot.lane.b32.xlu0 %v471, 48
  %v2467 = vpop.permute.xlu0 %2466
  %2468 = vrot.lane.b32.xlu0 %v472, 48
  %v2469 = vpop.permute.xlu0 %2468
  %v2475 = vsel %vm1373, %v2086, 0
  %v2478 = vsel %vm1373, %v2087, 0
  %v2481 = vsel %vm1373, %v2088, 0
  %v2484 = vsel %vm1373, %v2089, 0
  %2486 = vmatprep.subr.bf16.mxu0 0
  %2487 = vmatpush1.bf16.msra.mxu0 0
  %2488 = vmatprep.subr.bf16.mxu0 0
  %2489 = vmatpush1.bf16.msra.mxu0 0
  %2490 = vmatprep.subr.bf16.mxu0 0
  %2491 = vmatpush1.bf16.msra.mxu0 0
  %2492 = vmatprep.subr.bf16.mxu0 0
  %2493 = vmatpush1.bf16.msra.mxu0 0
  %2494 = vmatprep.subr.bf16.mxu0 0
  %2495 = vmatpush1.bf16.msra.mxu0 %v2469
  %2496 = vmatprep.subr.bf16.mxu0 0
  %2497 = vmatpush1.bf16.msra.mxu0 %v2467
  %2498 = vmatprep.subr.bf16.mxu0 0
  %2499 = vmatpush1.bf16.msra.mxu0 %v2465
  %2500 = vmatprep.subr.bf16.mxu0 0
  %2501 = vmatpush1.bf16.msra.mxu0 %v2463
  %2502 = vmatprep.subr.bf16.mxu0 0
  %2503 = vmatpush2.bf16.msra.mxu0 0
  %2504 = vmatprep.subr.bf16.mxu0 0
  %2505 = vmatpush2.bf16.msra.mxu0 0
  %2506 = vmatprep.subr.bf16.mxu0 0
  %2507 = vmatpush2.bf16.msra.mxu0 0
  %2508 = vmatprep.subr.bf16.mxu0 0
  %2509 = vmatpush2.bf16.msra.mxu0 0
  %2510 = vmatprep.subr.bf16.mxu0 0
  %2511 = vmatpush2.bf16.msra.mxu0 0
  %2512 = vmatprep.subr.bf16.mxu0 0
  %2513 = vmatpush2.bf16.msra.mxu0 0
  %2514 = vmatprep.subr.bf16.mxu0 0
  %2515 = vmatpush2.bf16.msra.mxu0 0
  %2516 = vmatprep.subr.bf16.mxu0 0
  %2517 = vmatpush2.bf16.msra.mxu0 0
  %2518 = vmatprep.mubr.bf16.mxu0 0
  %2519 = vmatmul.mubr.bf16.gmra.mxu0 %v2475
  %v2520 = vpop.f32.mrf.mxu0
  %v2521 = vadd.f32 0.0, %v2520
  %v2522 = vpop.f32.mrf.mxu0
  %v2523 = vpop.f32.mrf.mxu0
  %v2524 = vadd.f32 0.0, %v2523
  %v2525 = vpop.f32.mrf.mxu0
  %2526 = vmatprep.mubr.bf16.mxu0 0
  %2527 = vmatmul.mubr.bf16.gmra.mxu0 %v2478
  %v2528 = vpop.f32.mrf.mxu0
  %v2529 = vadd.f32 0.0, %v2528
  %v2530 = vpop.f32.mrf.mxu0
  %v2531 = vpop.f32.mrf.mxu0
  %v2532 = vadd.f32 0.0, %v2531
  %v2533 = vpop.f32.mrf.mxu0
  %2534 = vmatprep.mubr.bf16.mxu0 0
  %2535 = vmatmul.mubr.bf16.gmra.mxu0 %v2481
  %v2536 = vpop.f32.mrf.mxu0
  %v2537 = vadd.f32 0.0, %v2536
  %v2538 = vpop.f32.mrf.mxu0
  %v2539 = vpop.f32.mrf.mxu0
  %v2540 = vadd.f32 0.0, %v2539
  %v2541 = vpop.f32.mrf.mxu0
  %2542 = vmatprep.mubr.bf16.mxu0 0
  %2543 = vmatmul.mubr.bf16.gmra.mxu0 %v2484
  %v2544 = vpop.f32.mrf.mxu0
  %v2545 = vadd.f32 0.0, %v2544
  %v2546 = vpop.f32.mrf.mxu0
  %v2547 = vpop.f32.mrf.mxu0
  %v2548 = vadd.f32 0.0, %v2547
  %v2549 = vpop.f32.mrf.mxu0
  %2550 = vdwg.mxu0
  %v2551 = vpack.c.bf16 %v2524, %v2521
  %v2552 = vpack.c.bf16 %v2532, %v2529
  %v2553 = vpack.c.bf16 %v2540, %v2537
  %v2554 = vpack.c.bf16 %v2548, %v2545
  %v2555 = vpack.c.b16 %v341, %v341
  %2556 = vrot.lane.b32.xlu0 %v2555, 32
  %v2557 = vpop.permute.xlu0 %2556
  %v2559 = vsel %vm84, %v2551, 0
  %v2562 = vsel %vm84, %v2552, 0
  %v2565 = vsel %vm84, %v2553, 0
  %v2568 = vsel %vm84, %v2554, 0
  %v2571 = vsel %vm109, %v2557, 0
  %2573 = vmatprep.subr.bf16.mxu0 0
  %2574 = vmatpush1.bf16.msra.mxu0 0
  %2575 = vmatprep.subr.bf16.mxu0 0
  %2576 = vmatpush1.bf16.msra.mxu0 0
  %2577 = vmatprep.subr.bf16.mxu0 0
  %2578 = vmatpush1.bf16.msra.mxu0 0
  %2579 = vmatprep.subr.bf16.mxu0 0
  %2580 = vmatpush1.bf16.msra.mxu0 0
  %2581 = vmatprep.subr.bf16.mxu0 0
  %2582 = vmatpush1.bf16.msra.mxu0 0
  %2583 = vmatprep.subr.bf16.mxu0 0
  %2584 = vmatpush1.bf16.msra.mxu0 0
  %2585 = vmatprep.subr.bf16.mxu0 0
  %2586 = vmatpush1.bf16.msra.mxu0 0
  %2587 = vmatprep.subr.bf16.mxu0 0
  %2588 = vmatpush1.bf16.msra.mxu0 %v2571
  %2589 = vmatprep.subr.bf16.mxu0 0
  %2590 = vmatpush2.bf16.msra.mxu0 0
  %2591 = vmatprep.subr.bf16.mxu0 0
  %2592 = vmatpush2.bf16.msra.mxu0 0
  %2593 = vmatprep.subr.bf16.mxu0 0
  %2594 = vmatpush2.bf16.msra.mxu0 0
  %2595 = vmatprep.subr.bf16.mxu0 0
  %2596 = vmatpush2.bf16.msra.mxu0 0
  %2597 = vmatprep.subr.bf16.mxu0 0
  %2598 = vmatpush2.bf16.msra.mxu0 0
  %2599 = vmatprep.subr.bf16.mxu0 0
  %2600 = vmatpush2.bf16.msra.mxu0 0
  %2601 = vmatprep.subr.bf16.mxu0 0
  %2602 = vmatpush2.bf16.msra.mxu0 0
  %2603 = vmatprep.subr.bf16.mxu0 0
  %2604 = vmatpush2.bf16.msra.mxu0 0
  %2605 = vmatprep.mubr.bf16.mxu0 0
  %2606 = vmatmul.mubr.bf16.gmra.mxu0 %v2559
  %v2607 = vpop.f32.mrf.mxu0
  %v2608 = vadd.f32 0.0, %v2607
  %v2609 = vpop.f32.mrf.mxu0
  %v2610 = vpop.f32.mrf.mxu0
  %v2611 = vadd.f32 0.0, %v2610
  %v2612 = vpop.f32.mrf.mxu0
  %2613 = vmatprep.mubr.bf16.mxu0 0
  %2614 = vmatmul.mubr.bf16.gmra.mxu0 %v2562
  %v2615 = vpop.f32.mrf.mxu0
  %v2616 = vadd.f32 0.0, %v2615
  %v2617 = vpop.f32.mrf.mxu0
  %v2618 = vpop.f32.mrf.mxu0
  %v2619 = vadd.f32 0.0, %v2618
  %v2620 = vpop.f32.mrf.mxu0
  %2621 = vmatprep.mubr.bf16.mxu0 0
  %2622 = vmatmul.mubr.bf16.gmra.mxu0 %v2565
  %v2623 = vpop.f32.mrf.mxu0
  %v2624 = vadd.f32 0.0, %v2623
  %v2625 = vpop.f32.mrf.mxu0
  %v2626 = vpop.f32.mrf.mxu0
  %v2627 = vadd.f32 0.0, %v2626
  %v2628 = vpop.f32.mrf.mxu0
  %2629 = vmatprep.mubr.bf16.mxu0 0
  %2630 = vmatmul.mubr.bf16.gmra.mxu0 %v2568
  %v2631 = vpop.f32.mrf.mxu0
  %v2632 = vadd.f32 0.0, %v2631
  %v2633 = vpop.f32.mrf.mxu0
  %v2634 = vpop.f32.mrf.mxu0
  %v2635 = vadd.f32 0.0, %v2634
  %v2636 = vpop.f32.mrf.mxu0
  %2637 = vdwg.mxu0
  %v2638 = vadd.f32 %v2432, %v2608
  %v2639 = vadd.f32 %v2435, %v2611
  %v2640 = vadd.f32 %v2440, %v2616
  %v2641 = vadd.f32 %v2443, %v2619
  %v2642 = vadd.f32 %v2448, %v2624
  %v2643 = vadd.f32 %v2451, %v2627
  %v2644 = vadd.f32 %v2456, %v2632
  %v2645 = vadd.f32 %v2459, %v2635
  %2646 = vrot.lane.b32.xlu0 %v469, 40
  %v2647 = vpop.permute.xlu0 %2646
  %2648 = vrot.lane.b32.xlu0 %v470, 40
  %v2649 = vpop.permute.xlu0 %2648
  %2650 = vrot.lane.b32.xlu0 %v471, 40
  %v2651 = vpop.permute.xlu0 %2650
  %2652 = vrot.lane.b32.xlu0 %v472, 40
  %v2653 = vpop.permute.xlu0 %2652
  %v2659 = vsel %vm1373, %v2090, 0
  %v2662 = vsel %vm1373, %v2091, 0
  %v2665 = vsel %vm1373, %v2092, 0
  %v2668 = vsel %vm1373, %v2093, 0
  %2670 = vmatprep.subr.bf16.mxu0 0
  %2671 = vmatpush1.bf16.msra.mxu0 0
  %2672 = vmatprep.subr.bf16.mxu0 0
  %2673 = vmatpush1.bf16.msra.mxu0 0
  %2674 = vmatprep.subr.bf16.mxu0 0
  %2675 = vmatpush1.bf16.msra.mxu0 0
  %2676 = vmatprep.subr.bf16.mxu0 0
  %2677 = vmatpush1.bf16.msra.mxu0 0
  %2678 = vmatprep.subr.bf16.mxu0 0
  %2679 = vmatpush1.bf16.msra.mxu0 %v2653
  %2680 = vmatprep.subr.bf16.mxu0 0
  %2681 = vmatpush1.bf16.msra.mxu0 %v2651
  %2682 = vmatprep.subr.bf16.mxu0 0
  %2683 = vmatpush1.bf16.msra.mxu0 %v2649
  %2684 = vmatprep.subr.bf16.mxu0 0
  %2685 = vmatpush1.bf16.msra.mxu0 %v2647
  %2686 = vmatprep.subr.bf16.mxu0 0
  %2687 = vmatpush2.bf16.msra.mxu0 0
  %2688 = vmatprep.subr.bf16.mxu0 0
  %2689 = vmatpush2.bf16.msra.mxu0 0
  %2690 = vmatprep.subr.bf16.mxu0 0
  %2691 = vmatpush2.bf16.msra.mxu0 0
  %2692 = vmatprep.subr.bf16.mxu0 0
  %2693 = vmatpush2.bf16.msra.mxu0 0
  %2694 = vmatprep.subr.bf16.mxu0 0
  %2695 = vmatpush2.bf16.msra.mxu0 0
  %2696 = vmatprep.subr.bf16.mxu0 0
  %2697 = vmatpush2.bf16.msra.mxu0 0
  %2698 = vmatprep.subr.bf16.mxu0 0
  %2699 = vmatpush2.bf16.msra.mxu0 0
  %2700 = vmatprep.subr.bf16.mxu0 0
  %2701 = vmatpush2.bf16.msra.mxu0 0
  %2702 = vmatprep.mubr.bf16.mxu0 0
  %2703 = vmatmul.mubr.bf16.gmra.mxu0 %v2659
  %v2704 = vpop.f32.mrf.mxu0
  %v2705 = vadd.f32 0.0, %v2704
  %v2706 = vpop.f32.mrf.mxu0
  %v2707 = vpop.f32.mrf.mxu0
  %v2708 = vadd.f32 0.0, %v2707
  %v2709 = vpop.f32.mrf.mxu0
  %2710 = vmatprep.mubr.bf16.mxu0 0
  %2711 = vmatmul.mubr.bf16.gmra.mxu0 %v2662
  %v2712 = vpop.f32.mrf.mxu0
  %v2713 = vadd.f32 0.0, %v2712
  %v2714 = vpop.f32.mrf.mxu0
  %v2715 = vpop.f32.mrf.mxu0
  %v2716 = vadd.f32 0.0, %v2715
  %v2717 = vpop.f32.mrf.mxu0
  %2718 = vmatprep.mubr.bf16.mxu0 0
  %2719 = vmatmul.mubr.bf16.gmra.mxu0 %v2665
  %v2720 = vpop.f32.mrf.mxu0
  %v2721 = vadd.f32 0.0, %v2720
  %v2722 = vpop.f32.mrf.mxu0
  %v2723 = vpop.f32.mrf.mxu0
  %v2724 = vadd.f32 0.0, %v2723
  %v2725 = vpop.f32.mrf.mxu0
  %2726 = vmatprep.mubr.bf16.mxu0 0
  %2727 = vmatmul.mubr.bf16.gmra.mxu0 %v2668
  %v2728 = vpop.f32.mrf.mxu0
  %v2729 = vadd.f32 0.0, %v2728
  %v2730 = vpop.f32.mrf.mxu0
  %v2731 = vpop.f32.mrf.mxu0
  %v2732 = vadd.f32 0.0, %v2731
  %v2733 = vpop.f32.mrf.mxu0
  %2734 = vdwg.mxu0
  %v2735 = vpack.c.bf16 %v2708, %v2705
  %v2736 = vpack.c.bf16 %v2716, %v2713
  %v2737 = vpack.c.bf16 %v2724, %v2721
  %v2738 = vpack.c.bf16 %v2732, %v2729
  %v2739 = vpack.c.b16 %v342, %v342
  %2740 = vrot.lane.b32.xlu0 %v2739, 32
  %v2741 = vpop.permute.xlu0 %2740
  %v2743 = vsel %vm84, %v2735, 0
  %v2746 = vsel %vm84, %v2736, 0
  %v2749 = vsel %vm84, %v2737, 0
  %v2752 = vsel %vm84, %v2738, 0
  %v2755 = vsel %vm109, %v2741, 0
  %2757 = vmatprep.subr.bf16.mxu0 0
  %2758 = vmatpush1.bf16.msra.mxu0 0
  %2759 = vmatprep.subr.bf16.mxu0 0
  %2760 = vmatpush1.bf16.msra.mxu0 0
  %2761 = vmatprep.subr.bf16.mxu0 0
  %2762 = vmatpush1.bf16.msra.mxu0 0
  %2763 = vmatprep.subr.bf16.mxu0 0
  %2764 = vmatpush1.bf16.msra.mxu0 0
  %2765 = vmatprep.subr.bf16.mxu0 0
  %2766 = vmatpush1.bf16.msra.mxu0 0
  %2767 = vmatprep.subr.bf16.mxu0 0
  %2768 = vmatpush1.bf16.msra.mxu0 0
  %2769 = vmatprep.subr.bf16.mxu0 0
  %2770 = vmatpush1.bf16.msra.mxu0 0
  %2771 = vmatprep.subr.bf16.mxu0 0
  %2772 = vmatpush1.bf16.msra.mxu0 %v2755
  %2773 = vmatprep.subr.bf16.mxu0 0
  %2774 = vmatpush2.bf16.msra.mxu0 0
  %2775 = vmatprep.subr.bf16.mxu0 0
  %2776 = vmatpush2.bf16.msra.mxu0 0
  %2777 = vmatprep.subr.bf16.mxu0 0
  %2778 = vmatpush2.bf16.msra.mxu0 0
  %2779 = vmatprep.subr.bf16.mxu0 0
  %2780 = vmatpush2.bf16.msra.mxu0 0
  %2781 = vmatprep.subr.bf16.mxu0 0
  %2782 = vmatpush2.bf16.msra.mxu0 0
  %2783 = vmatprep.subr.bf16.mxu0 0
  %2784 = vmatpush2.bf16.msra.mxu0 0
  %2785 = vmatprep.subr.bf16.mxu0 0
  %2786 = vmatpush2.bf16.msra.mxu0 0
  %2787 = vmatprep.subr.bf16.mxu0 0
  %2788 = vmatpush2.bf16.msra.mxu0 0
  %2789 = vmatprep.mubr.bf16.mxu0 0
  %2790 = vmatmul.mubr.bf16.gmra.mxu0 %v2743
  %v2791 = vpop.f32.mrf.mxu0
  %v2792 = vadd.f32 0.0, %v2791
  %v2793 = vpop.f32.mrf.mxu0
  %v2794 = vpop.f32.mrf.mxu0
  %v2795 = vadd.f32 0.0, %v2794
  %v2796 = vpop.f32.mrf.mxu0
  %2797 = vmatprep.mubr.bf16.mxu0 0
  %2798 = vmatmul.mubr.bf16.gmra.mxu0 %v2746
  %v2799 = vpop.f32.mrf.mxu0
  %v2800 = vadd.f32 0.0, %v2799
  %v2801 = vpop.f32.mrf.mxu0
  %v2802 = vpop.f32.mrf.mxu0
  %v2803 = vadd.f32 0.0, %v2802
  %v2804 = vpop.f32.mrf.mxu0
  %2805 = vmatprep.mubr.bf16.mxu0 0
  %2806 = vmatmul.mubr.bf16.gmra.mxu0 %v2749
  %v2807 = vpop.f32.mrf.mxu0
  %v2808 = vadd.f32 0.0, %v2807
  %v2809 = vpop.f32.mrf.mxu0
  %v2810 = vpop.f32.mrf.mxu0
  %v2811 = vadd.f32 0.0, %v2810
  %v2812 = vpop.f32.mrf.mxu0
  %2813 = vmatprep.mubr.bf16.mxu0 0
  %2814 = vmatmul.mubr.bf16.gmra.mxu0 %v2752
  %v2815 = vpop.f32.mrf.mxu0
  %v2816 = vadd.f32 0.0, %v2815
  %v2817 = vpop.f32.mrf.mxu0
  %v2818 = vpop.f32.mrf.mxu0
  %v2819 = vadd.f32 0.0, %v2818
  %v2820 = vpop.f32.mrf.mxu0
  %2821 = vdwg.mxu0
  %v2822 = vadd.f32 %v2638, %v2792
  %v2823 = vadd.f32 %v2639, %v2795
  %v2824 = vadd.f32 %v2640, %v2800
  %v2825 = vadd.f32 %v2641, %v2803
  %v2826 = vadd.f32 %v2642, %v2808
  %v2827 = vadd.f32 %v2643, %v2811
  %v2828 = vadd.f32 %v2644, %v2816
  %v2829 = vadd.f32 %v2645, %v2819
  %2830 = vrot.lane.b32.xlu0 %v473, 64
  %v2831 = vpop.permute.xlu0 %2830
  %2832 = vrot.lane.b32.xlu0 %v474, 64
  %v2833 = vpop.permute.xlu0 %2832
  %2834 = vrot.lane.b32.xlu0 %v475, 64
  %v2835 = vpop.permute.xlu0 %2834
  %2836 = vrot.lane.b32.xlu0 %v476, 64
  %v2837 = vpop.permute.xlu0 %2836
  %v2843 = vsel %vm1373, %v2094, 0
  %v2846 = vsel %vm1373, %v2095, 0
  %v2849 = vsel %vm1373, %v2096, 0
  %v2852 = vsel %vm1373, %v2097, 0
  %2854 = vmatprep.subr.bf16.mxu0 0
  %2855 = vmatpush1.bf16.msra.mxu0 0
  %2856 = vmatprep.subr.bf16.mxu0 0
  %2857 = vmatpush1.bf16.msra.mxu0 0
  %2858 = vmatprep.subr.bf16.mxu0 0
  %2859 = vmatpush1.bf16.msra.mxu0 0
  %2860 = vmatprep.subr.bf16.mxu0 0
  %2861 = vmatpush1.bf16.msra.mxu0 0
  %2862 = vmatprep.subr.bf16.mxu0 0
  %2863 = vmatpush1.bf16.msra.mxu0 %v2837
  %2864 = vmatprep.subr.bf16.mxu0 0
  %2865 = vmatpush1.bf16.msra.mxu0 %v2835
  %2866 = vmatprep.subr.bf16.mxu0 0
  %2867 = vmatpush1.bf16.msra.mxu0 %v2833
  %2868 = vmatprep.subr.bf16.mxu0 0
  %2869 = vmatpush1.bf16.msra.mxu0 %v2831
  %2870 = vmatprep.subr.bf16.mxu0 0
  %2871 = vmatpush2.bf16.msra.mxu0 0
  %2872 = vmatprep.subr.bf16.mxu0 0
  %2873 = vmatpush2.bf16.msra.mxu0 0
  %2874 = vmatprep.subr.bf16.mxu0 0
  %2875 = vmatpush2.bf16.msra.mxu0 0
  %2876 = vmatprep.subr.bf16.mxu0 0
  %2877 = vmatpush2.bf16.msra.mxu0 0
  %2878 = vmatprep.subr.bf16.mxu0 0
  %2879 = vmatpush2.bf16.msra.mxu0 0
  %2880 = vmatprep.subr.bf16.mxu0 0
  %2881 = vmatpush2.bf16.msra.mxu0 0
  %2882 = vmatprep.subr.bf16.mxu0 0
  %2883 = vmatpush2.bf16.msra.mxu0 0
  %2884 = vmatprep.subr.bf16.mxu0 0
  %2885 = vmatpush2.bf16.msra.mxu0 0
  %2886 = vmatprep.mubr.bf16.mxu0 0
  %2887 = vmatmul.mubr.bf16.gmra.mxu0 %v2843
  %v2888 = vpop.f32.mrf.mxu0
  %v2889 = vadd.f32 0.0, %v2888
  %v2890 = vpop.f32.mrf.mxu0
  %v2891 = vpop.f32.mrf.mxu0
  %v2892 = vadd.f32 0.0, %v2891
  %v2893 = vpop.f32.mrf.mxu0
  %2894 = vmatprep.mubr.bf16.mxu0 0
  %2895 = vmatmul.mubr.bf16.gmra.mxu0 %v2846
  %v2896 = vpop.f32.mrf.mxu0
  %v2897 = vadd.f32 0.0, %v2896
  %v2898 = vpop.f32.mrf.mxu0
  %v2899 = vpop.f32.mrf.mxu0
  %v2900 = vadd.f32 0.0, %v2899
  %v2901 = vpop.f32.mrf.mxu0
  %2902 = vmatprep.mubr.bf16.mxu0 0
  %2903 = vmatmul.mubr.bf16.gmra.mxu0 %v2849
  %v2904 = vpop.f32.mrf.mxu0
  %v2905 = vadd.f32 0.0, %v2904
  %v2906 = vpop.f32.mrf.mxu0
  %v2907 = vpop.f32.mrf.mxu0
  %v2908 = vadd.f32 0.0, %v2907
  %v2909 = vpop.f32.mrf.mxu0
  %2910 = vmatprep.mubr.bf16.mxu0 0
  %2911 = vmatmul.mubr.bf16.gmra.mxu0 %v2852
  %v2912 = vpop.f32.mrf.mxu0
  %v2913 = vadd.f32 0.0, %v2912
  %v2914 = vpop.f32.mrf.mxu0
  %v2915 = vpop.f32.mrf.mxu0
  %v2916 = vadd.f32 0.0, %v2915
  %v2917 = vpop.f32.mrf.mxu0
  %2918 = vdwg.mxu0
  %v2919 = vpack.c.bf16 %v2892, %v2889
  %v2920 = vpack.c.bf16 %v2900, %v2897
  %v2921 = vpack.c.bf16 %v2908, %v2905
  %v2922 = vpack.c.bf16 %v2916, %v2913
  %2923 = vrot.lane.b32.xlu0 %v473, 56
  %v2924 = vpop.permute.xlu0 %2923
  %2925 = vrot.lane.b32.xlu0 %v474, 56
  %v2926 = vpop.permute.xlu0 %2925
  %2927 = vrot.lane.b32.xlu0 %v475, 56
  %v2928 = vpop.permute.xlu0 %2927
  %2929 = vrot.lane.b32.xlu0 %v476, 56
  %v2930 = vpop.permute.xlu0 %2929
  %v2936 = vsel %vm1373, %v2098, 0
  %v2939 = vsel %vm1373, %v2099, 0
  %v2942 = vsel %vm1373, %v2100, 0
  %v2945 = vsel %vm1373, %v2101, 0
  %2947 = vmatprep.subr.bf16.mxu0 0
  %2948 = vmatpush1.bf16.msra.mxu0 0
  %2949 = vmatprep.subr.bf16.mxu0 0
  %2950 = vmatpush1.bf16.msra.mxu0 0
  %2951 = vmatprep.subr.bf16.mxu0 0
  %2952 = vmatpush1.bf16.msra.mxu0 0
  %2953 = vmatprep.subr.bf16.mxu0 0
  %2954 = vmatpush1.bf16.msra.mxu0 0
  %2955 = vmatprep.subr.bf16.mxu0 0
  %2956 = vmatpush1.bf16.msra.mxu0 %v2930
  %2957 = vmatprep.subr.bf16.mxu0 0
  %2958 = vmatpush1.bf16.msra.mxu0 %v2928
  %2959 = vmatprep.subr.bf16.mxu0 0
  %2960 = vmatpush1.bf16.msra.mxu0 %v2926
  %2961 = vmatprep.subr.bf16.mxu0 0
  %2962 = vmatpush1.bf16.msra.mxu0 %v2924
  %2963 = vmatprep.subr.bf16.mxu0 0
  %2964 = vmatpush2.bf16.msra.mxu0 0
  %2965 = vmatprep.subr.bf16.mxu0 0
  %2966 = vmatpush2.bf16.msra.mxu0 0
  %2967 = vmatprep.subr.bf16.mxu0 0
  %2968 = vmatpush2.bf16.msra.mxu0 0
  %2969 = vmatprep.subr.bf16.mxu0 0
  %2970 = vmatpush2.bf16.msra.mxu0 0
  %2971 = vmatprep.subr.bf16.mxu0 0
  %2972 = vmatpush2.bf16.msra.mxu0 0
  %2973 = vmatprep.subr.bf16.mxu0 0
  %2974 = vmatpush2.bf16.msra.mxu0 0
  %2975 = vmatprep.subr.bf16.mxu0 0
  %2976 = vmatpush2.bf16.msra.mxu0 0
  %2977 = vmatprep.subr.bf16.mxu0 0
  %2978 = vmatpush2.bf16.msra.mxu0 0
  %2979 = vmatprep.mubr.bf16.mxu0 0
  %2980 = vmatmul.mubr.bf16.gmra.mxu0 %v2936
  %v2981 = vpop.f32.mrf.mxu0
  %v2982 = vadd.f32 0.0, %v2981
  %v2983 = vpop.f32.mrf.mxu0
  %v2984 = vpop.f32.mrf.mxu0
  %v2985 = vadd.f32 0.0, %v2984
  %v2986 = vpop.f32.mrf.mxu0
  %2987 = vmatprep.mubr.bf16.mxu0 0
  %2988 = vmatmul.mubr.bf16.gmra.mxu0 %v2939
  %v2989 = vpop.f32.mrf.mxu0
  %v2990 = vadd.f32 0.0, %v2989
  %v2991 = vpop.f32.mrf.mxu0
  %v2992 = vpop.f32.mrf.mxu0
  %v2993 = vadd.f32 0.0, %v2992
  %v2994 = vpop.f32.mrf.mxu0
  %2995 = vmatprep.mubr.bf16.mxu0 0
  %2996 = vmatmul.mubr.bf16.gmra.mxu0 %v2942
  %v2997 = vpop.f32.mrf.mxu0
  %v2998 = vadd.f32 0.0, %v2997
  %v2999 = vpop.f32.mrf.mxu0
  %v3000 = vpop.f32.mrf.mxu0
  %v3001 = vadd.f32 0.0, %v3000
  %v3002 = vpop.f32.mrf.mxu0
  %3003 = vmatprep.mubr.bf16.mxu0 0
  %3004 = vmatmul.mubr.bf16.gmra.mxu0 %v2945
  %v3005 = vpop.f32.mrf.mxu0
  %v3006 = vadd.f32 0.0, %v3005
  %v3007 = vpop.f32.mrf.mxu0
  %v3008 = vpop.f32.mrf.mxu0
  %v3009 = vadd.f32 0.0, %v3008
  %v3010 = vpop.f32.mrf.mxu0
  %3011 = vdwg.mxu0
  %v3012 = vpack.c.bf16 %v2985, %v2982
  %v3013 = vpack.c.bf16 %v2993, %v2990
  %v3014 = vpack.c.bf16 %v3001, %v2998
  %v3015 = vpack.c.bf16 %v3009, %v3006
  %v3017 = vsel %vm84, %v3012, 0
  %v3020 = vsel %vm84, %v3013, 0
  %v3023 = vsel %vm84, %v3014, 0
  %v3026 = vsel %vm84, %v3015, 0
  %3028 = vmatprep.subr.bf16.mxu0 0
  %3029 = vmatpush1.bf16.msra.mxu0 0
  %3030 = vmatprep.subr.bf16.mxu0 0
  %3031 = vmatpush1.bf16.msra.mxu0 0
  %3032 = vmatprep.subr.bf16.mxu0 0
  %3033 = vmatpush1.bf16.msra.mxu0 0
  %3034 = vmatprep.subr.bf16.mxu0 0
  %3035 = vmatpush1.bf16.msra.mxu0 0
  %3036 = vmatprep.subr.bf16.mxu0 0
  %3037 = vmatpush1.bf16.msra.mxu0 0
  %3038 = vmatprep.subr.bf16.mxu0 0
  %3039 = vmatpush1.bf16.msra.mxu0 0
  %3040 = vmatprep.subr.bf16.mxu0 0
  %3041 = vmatpush1.bf16.msra.mxu0 0
  %3042 = vmatprep.subr.bf16.mxu0 0
  %3043 = vmatpush1.bf16.msra.mxu0 %v2312
  %3044 = vmatprep.subr.bf16.mxu0 0
  %3045 = vmatpush2.bf16.msra.mxu0 0
  %3046 = vmatprep.subr.bf16.mxu0 0
  %3047 = vmatpush2.bf16.msra.mxu0 0
  %3048 = vmatprep.subr.bf16.mxu0 0
  %3049 = vmatpush2.bf16.msra.mxu0 0
  %3050 = vmatprep.subr.bf16.mxu0 0
  %3051 = vmatpush2.bf16.msra.mxu0 0
  %3052 = vmatprep.subr.bf16.mxu0 0
  %3053 = vmatpush2.bf16.msra.mxu0 0
  %3054 = vmatprep.subr.bf16.mxu0 0
  %3055 = vmatpush2.bf16.msra.mxu0 0
  %3056 = vmatprep.subr.bf16.mxu0 0
  %3057 = vmatpush2.bf16.msra.mxu0 0
  %3058 = vmatprep.subr.bf16.mxu0 0
  %3059 = vmatpush2.bf16.msra.mxu0 0
  %3060 = vmatprep.mubr.bf16.mxu0 0
  %3061 = vmatmul.mubr.bf16.gmra.mxu0 %v3017
  %v3062 = vpop.f32.mrf.mxu0
  %v3063 = vadd.f32 0.0, %v3062
  %v3064 = vpop.f32.mrf.mxu0
  %v3065 = vpop.f32.mrf.mxu0
  %v3066 = vadd.f32 0.0, %v3065
  %v3067 = vpop.f32.mrf.mxu0
  %3068 = vmatprep.mubr.bf16.mxu0 0
  %3069 = vmatmul.mubr.bf16.gmra.mxu0 %v3020
  %v3070 = vpop.f32.mrf.mxu0
  %v3071 = vadd.f32 0.0, %v3070
  %v3072 = vpop.f32.mrf.mxu0
  %v3073 = vpop.f32.mrf.mxu0
  %v3074 = vadd.f32 0.0, %v3073
  %v3075 = vpop.f32.mrf.mxu0
  %3076 = vmatprep.mubr.bf16.mxu0 0
  %3077 = vmatmul.mubr.bf16.gmra.mxu0 %v3023
  %v3078 = vpop.f32.mrf.mxu0
  %v3079 = vadd.f32 0.0, %v3078
  %v3080 = vpop.f32.mrf.mxu0
  %v3081 = vpop.f32.mrf.mxu0
  %v3082 = vadd.f32 0.0, %v3081
  %v3083 = vpop.f32.mrf.mxu0
  %3084 = vmatprep.mubr.bf16.mxu0 0
  %3085 = vmatmul.mubr.bf16.gmra.mxu0 %v3026
  %v3086 = vpop.f32.mrf.mxu0
  %v3087 = vadd.f32 0.0, %v3086
  %v3088 = vpop.f32.mrf.mxu0
  %v3089 = vpop.f32.mrf.mxu0
  %v3090 = vadd.f32 0.0, %v3089
  %v3091 = vpop.f32.mrf.mxu0
  %3092 = vdwg.mxu0
  %v3094 = vsel %vm84, %v2919, 0
  %v3097 = vsel %vm84, %v2920, 0
  %v3100 = vsel %vm84, %v2921, 0
  %v3103 = vsel %vm84, %v2922, 0
  %3105 = vmatprep.subr.bf16.mxu0 0
  %3106 = vmatpush1.bf16.msra.mxu0 0
  %3107 = vmatprep.subr.bf16.mxu0 0
  %3108 = vmatpush1.bf16.msra.mxu0 0
  %3109 = vmatprep.subr.bf16.mxu0 0
  %3110 = vmatpush1.bf16.msra.mxu0 0
  %3111 = vmatprep.subr.bf16.mxu0 0
  %3112 = vmatpush1.bf16.msra.mxu0 0
  %3113 = vmatprep.subr.bf16.mxu0 0
  %3114 = vmatpush1.bf16.msra.mxu0 0
  %3115 = vmatprep.subr.bf16.mxu0 0
  %3116 = vmatpush1.bf16.msra.mxu0 0
  %3117 = vmatprep.subr.bf16.mxu0 0
  %3118 = vmatpush1.bf16.msra.mxu0 0
  %3119 = vmatprep.subr.bf16.mxu0 0
  %3120 = vmatpush1.bf16.msra.mxu0 %v2395
  %3121 = vmatprep.subr.bf16.mxu0 0
  %3122 = vmatpush2.bf16.msra.mxu0 0
  %3123 = vmatprep.subr.bf16.mxu0 0
  %3124 = vmatpush2.bf16.msra.mxu0 0
  %3125 = vmatprep.subr.bf16.mxu0 0
  %3126 = vmatpush2.bf16.msra.mxu0 0
  %3127 = vmatprep.subr.bf16.mxu0 0
  %3128 = vmatpush2.bf16.msra.mxu0 0
  %3129 = vmatprep.subr.bf16.mxu0 0
  %3130 = vmatpush2.bf16.msra.mxu0 0
  %3131 = vmatprep.subr.bf16.mxu0 0
  %3132 = vmatpush2.bf16.msra.mxu0 0
  %3133 = vmatprep.subr.bf16.mxu0 0
  %3134 = vmatpush2.bf16.msra.mxu0 0
  %3135 = vmatprep.subr.bf16.mxu0 0
  %3136 = vmatpush2.bf16.msra.mxu0 0
  %3137 = vmatprep.mubr.bf16.mxu0 0
  %3138 = vmatmul.mubr.bf16.gmra.mxu0 %v3094
  %v3139 = vpop.f32.mrf.mxu0
  %v3140 = vadd.f32 %v3063, %v3139
  %v3141 = vpop.f32.mrf.mxu0
  %v3142 = vpop.f32.mrf.mxu0
  %v3143 = vadd.f32 %v3066, %v3142
  %v3144 = vpop.f32.mrf.mxu0
  %3145 = vmatprep.mubr.bf16.mxu0 0
  %3146 = vmatmul.mubr.bf16.gmra.mxu0 %v3097
  %v3147 = vpop.f32.mrf.mxu0
  %v3148 = vadd.f32 %v3071, %v3147
  %v3149 = vpop.f32.mrf.mxu0
  %v3150 = vpop.f32.mrf.mxu0
  %v3151 = vadd.f32 %v3074, %v3150
  %v3152 = vpop.f32.mrf.mxu0
  %3153 = vmatprep.mubr.bf16.mxu0 0
  %3154 = vmatmul.mubr.bf16.gmra.mxu0 %v3100
  %v3155 = vpop.f32.mrf.mxu0
  %v3156 = vadd.f32 %v3079, %v3155
  %v3157 = vpop.f32.mrf.mxu0
  %v3158 = vpop.f32.mrf.mxu0
  %v3159 = vadd.f32 %v3082, %v3158
  %v3160 = vpop.f32.mrf.mxu0
  %3161 = vmatprep.mubr.bf16.mxu0 0
  %3162 = vmatmul.mubr.bf16.gmra.mxu0 %v3103
  %v3163 = vpop.f32.mrf.mxu0
  %v3164 = vadd.f32 %v3087, %v3163
  %v3165 = vpop.f32.mrf.mxu0
  %v3166 = vpop.f32.mrf.mxu0
  %v3167 = vadd.f32 %v3090, %v3166
  %v3168 = vpop.f32.mrf.mxu0
  %3169 = vdwg.mxu0
  %3170 = vrot.lane.b32.xlu0 %v473, 48
  %v3171 = vpop.permute.xlu0 %3170
  %3172 = vrot.lane.b32.xlu0 %v474, 48
  %v3173 = vpop.permute.xlu0 %3172
  %3174 = vrot.lane.b32.xlu0 %v475, 48
  %v3175 = vpop.permute.xlu0 %3174
  %3176 = vrot.lane.b32.xlu0 %v476, 48
  %v3177 = vpop.permute.xlu0 %3176
  %v3183 = vsel %vm1373, %v2102, 0
  %v3186 = vsel %vm1373, %v2103, 0
  %v3189 = vsel %vm1373, %v2104, 0
  %v3192 = vsel %vm1373, %v2105, 0
  %3194 = vmatprep.subr.bf16.mxu0 0
  %3195 = vmatpush1.bf16.msra.mxu0 0
  %3196 = vmatprep.subr.bf16.mxu0 0
  %3197 = vmatpush1.bf16.msra.mxu0 0
  %3198 = vmatprep.subr.bf16.mxu0 0
  %3199 = vmatpush1.bf16.msra.mxu0 0
  %3200 = vmatprep.subr.bf16.mxu0 0
  %3201 = vmatpush1.bf16.msra.mxu0 0
  %3202 = vmatprep.subr.bf16.mxu0 0
  %3203 = vmatpush1.bf16.msra.mxu0 %v3177
  %3204 = vmatprep.subr.bf16.mxu0 0
  %3205 = vmatpush1.bf16.msra.mxu0 %v3175
  %3206 = vmatprep.subr.bf16.mxu0 0
  %3207 = vmatpush1.bf16.msra.mxu0 %v3173
  %3208 = vmatprep.subr.bf16.mxu0 0
  %3209 = vmatpush1.bf16.msra.mxu0 %v3171
  %3210 = vmatprep.subr.bf16.mxu0 0
  %3211 = vmatpush2.bf16.msra.mxu0 0
  %3212 = vmatprep.subr.bf16.mxu0 0
  %3213 = vmatpush2.bf16.msra.mxu0 0
  %3214 = vmatprep.subr.bf16.mxu0 0
  %3215 = vmatpush2.bf16.msra.mxu0 0
  %3216 = vmatprep.subr.bf16.mxu0 0
  %3217 = vmatpush2.bf16.msra.mxu0 0
  %3218 = vmatprep.subr.bf16.mxu0 0
  %3219 = vmatpush2.bf16.msra.mxu0 0
  %3220 = vmatprep.subr.bf16.mxu0 0
  %3221 = vmatpush2.bf16.msra.mxu0 0
  %3222 = vmatprep.subr.bf16.mxu0 0
  %3223 = vmatpush2.bf16.msra.mxu0 0
  %3224 = vmatprep.subr.bf16.mxu0 0
  %3225 = vmatpush2.bf16.msra.mxu0 0
  %3226 = vmatprep.mubr.bf16.mxu0 0
  %3227 = vmatmul.mubr.bf16.gmra.mxu0 %v3183
  %v3228 = vpop.f32.mrf.mxu0
  %v3229 = vadd.f32 0.0, %v3228
  %v3230 = vpop.f32.mrf.mxu0
  %v3231 = vpop.f32.mrf.mxu0
  %v3232 = vadd.f32 0.0, %v3231
  %v3233 = vpop.f32.mrf.mxu0
  %3234 = vmatprep.mubr.bf16.mxu0 0
  %3235 = vmatmul.mubr.bf16.gmra.mxu0 %v3186
  %v3236 = vpop.f32.mrf.mxu0
  %v3237 = vadd.f32 0.0, %v3236
  %v3238 = vpop.f32.mrf.mxu0
  %v3239 = vpop.f32.mrf.mxu0
  %v3240 = vadd.f32 0.0, %v3239
  %v3241 = vpop.f32.mrf.mxu0
  %3242 = vmatprep.mubr.bf16.mxu0 0
  %3243 = vmatmul.mubr.bf16.gmra.mxu0 %v3189
  %v3244 = vpop.f32.mrf.mxu0
  %v3245 = vadd.f32 0.0, %v3244
  %v3246 = vpop.f32.mrf.mxu0
  %v3247 = vpop.f32.mrf.mxu0
  %v3248 = vadd.f32 0.0, %v3247
  %v3249 = vpop.f32.mrf.mxu0
  %3250 = vmatprep.mubr.bf16.mxu0 0
  %3251 = vmatmul.mubr.bf16.gmra.mxu0 %v3192
  %v3252 = vpop.f32.mrf.mxu0
  %v3253 = vadd.f32 0.0, %v3252
  %v3254 = vpop.f32.mrf.mxu0
  %v3255 = vpop.f32.mrf.mxu0
  %v3256 = vadd.f32 0.0, %v3255
  %v3257 = vpop.f32.mrf.mxu0
  %3258 = vdwg.mxu0
  %v3259 = vpack.c.bf16 %v3232, %v3229
  %v3260 = vpack.c.bf16 %v3240, %v3237
  %v3261 = vpack.c.bf16 %v3248, %v3245
  %v3262 = vpack.c.bf16 %v3256, %v3253
  %v3264 = vsel %vm84, %v3259, 0
  %v3267 = vsel %vm84, %v3260, 0
  %v3270 = vsel %vm84, %v3261, 0
  %v3273 = vsel %vm84, %v3262, 0
  %3275 = vmatprep.subr.bf16.mxu0 0
  %3276 = vmatpush1.bf16.msra.mxu0 0
  %3277 = vmatprep.subr.bf16.mxu0 0
  %3278 = vmatpush1.bf16.msra.mxu0 0
  %3279 = vmatprep.subr.bf16.mxu0 0
  %3280 = vmatpush1.bf16.msra.mxu0 0
  %3281 = vmatprep.subr.bf16.mxu0 0
  %3282 = vmatpush1.bf16.msra.mxu0 0
  %3283 = vmatprep.subr.bf16.mxu0 0
  %3284 = vmatpush1.bf16.msra.mxu0 0
  %3285 = vmatprep.subr.bf16.mxu0 0
  %3286 = vmatpush1.bf16.msra.mxu0 0
  %3287 = vmatprep.subr.bf16.mxu0 0
  %3288 = vmatpush1.bf16.msra.mxu0 0
  %3289 = vmatprep.subr.bf16.mxu0 0
  %3290 = vmatpush1.bf16.msra.mxu0 %v2571
  %3291 = vmatprep.subr.bf16.mxu0 0
  %3292 = vmatpush2.bf16.msra.mxu0 0
  %3293 = vmatprep.subr.bf16.mxu0 0
  %3294 = vmatpush2.bf16.msra.mxu0 0
  %3295 = vmatprep.subr.bf16.mxu0 0
  %3296 = vmatpush2.bf16.msra.mxu0 0
  %3297 = vmatprep.subr.bf16.mxu0 0
  %3298 = vmatpush2.bf16.msra.mxu0 0
  %3299 = vmatprep.subr.bf16.mxu0 0
  %3300 = vmatpush2.bf16.msra.mxu0 0
  %3301 = vmatprep.subr.bf16.mxu0 0
  %3302 = vmatpush2.bf16.msra.mxu0 0
  %3303 = vmatprep.subr.bf16.mxu0 0
  %3304 = vmatpush2.bf16.msra.mxu0 0
  %3305 = vmatprep.subr.bf16.mxu0 0
  %3306 = vmatpush2.bf16.msra.mxu0 0
  %3307 = vmatprep.mubr.bf16.mxu0 0
  %3308 = vmatmul.mubr.bf16.gmra.mxu0 %v3264
  %v3309 = vpop.f32.mrf.mxu0
  %v3310 = vadd.f32 0.0, %v3309
  %v3311 = vpop.f32.mrf.mxu0
  %v3312 = vpop.f32.mrf.mxu0
  %v3313 = vadd.f32 0.0, %v3312
  %v3314 = vpop.f32.mrf.mxu0
  %3315 = vmatprep.mubr.bf16.mxu0 0
  %3316 = vmatmul.mubr.bf16.gmra.mxu0 %v3267
  %v3317 = vpop.f32.mrf.mxu0
  %v3318 = vadd.f32 0.0, %v3317
  %v3319 = vpop.f32.mrf.mxu0
  %v3320 = vpop.f32.mrf.mxu0
  %v3321 = vadd.f32 0.0, %v3320
  %v3322 = vpop.f32.mrf.mxu0
  %3323 = vmatprep.mubr.bf16.mxu0 0
  %3324 = vmatmul.mubr.bf16.gmra.mxu0 %v3270
  %v3325 = vpop.f32.mrf.mxu0
  %v3326 = vadd.f32 0.0, %v3325
  %v3327 = vpop.f32.mrf.mxu0
  %v3328 = vpop.f32.mrf.mxu0
  %v3329 = vadd.f32 0.0, %v3328
  %v3330 = vpop.f32.mrf.mxu0
  %3331 = vmatprep.mubr.bf16.mxu0 0
  %3332 = vmatmul.mubr.bf16.gmra.mxu0 %v3273
  %v3333 = vpop.f32.mrf.mxu0
  %v3334 = vadd.f32 0.0, %v3333
  %v3335 = vpop.f32.mrf.mxu0
  %v3336 = vpop.f32.mrf.mxu0
  %v3337 = vadd.f32 0.0, %v3336
  %v3338 = vpop.f32.mrf.mxu0
  %3339 = vdwg.mxu0
  %v3340 = vadd.f32 %v3140, %v3310
  %v3341 = vadd.f32 %v3143, %v3313
  %v3342 = vadd.f32 %v3148, %v3318
  %v3343 = vadd.f32 %v3151, %v3321
  %v3344 = vadd.f32 %v3156, %v3326
  %v3345 = vadd.f32 %v3159, %v3329
  %v3346 = vadd.f32 %v3164, %v3334
  %v3347 = vadd.f32 %v3167, %v3337
  %3348 = vrot.lane.b32.xlu0 %v473, 40
  %v3349 = vpop.permute.xlu0 %3348
  %3350 = vrot.lane.b32.xlu0 %v474, 40
  %v3351 = vpop.permute.xlu0 %3350
  %3352 = vrot.lane.b32.xlu0 %v475, 40
  %v3353 = vpop.permute.xlu0 %3352
  %3354 = vrot.lane.b32.xlu0 %v476, 40
  %v3355 = vpop.permute.xlu0 %3354
  %v3361 = vsel %vm1373, %v2106, 0
  %v3364 = vsel %vm1373, %v2107, 0
  %v3367 = vsel %vm1373, %v2108, 0
  %v3370 = vsel %vm1373, %v2109, 0
  %3372 = vmatprep.subr.bf16.mxu0 0
  %3373 = vmatpush1.bf16.msra.mxu0 0
  %3374 = vmatprep.subr.bf16.mxu0 0
  %3375 = vmatpush1.bf16.msra.mxu0 0
  %3376 = vmatprep.subr.bf16.mxu0 0
  %3377 = vmatpush1.bf16.msra.mxu0 0
  %3378 = vmatprep.subr.bf16.mxu0 0
  %3379 = vmatpush1.bf16.msra.mxu0 0
  %3380 = vmatprep.subr.bf16.mxu0 0
  %3381 = vmatpush1.bf16.msra.mxu0 %v3355
  %3382 = vmatprep.subr.bf16.mxu0 0
  %3383 = vmatpush1.bf16.msra.mxu0 %v3353
  %3384 = vmatprep.subr.bf16.mxu0 0
  %3385 = vmatpush1.bf16.msra.mxu0 %v3351
  %3386 = vmatprep.subr.bf16.mxu0 0
  %3387 = vmatpush1.bf16.msra.mxu0 %v3349
  %3388 = vmatprep.subr.bf16.mxu0 0
  %3389 = vmatpush2.bf16.msra.mxu0 0
  %3390 = vmatprep.subr.bf16.mxu0 0
  %3391 = vmatpush2.bf16.msra.mxu0 0
  %3392 = vmatprep.subr.bf16.mxu0 0
  %3393 = vmatpush2.bf16.msra.mxu0 0
  %3394 = vmatprep.subr.bf16.mxu0 0
  %3395 = vmatpush2.bf16.msra.mxu0 0
  %3396 = vmatprep.subr.bf16.mxu0 0
  %3397 = vmatpush2.bf16.msra.mxu0 0
  %3398 = vmatprep.subr.bf16.mxu0 0
  %3399 = vmatpush2.bf16.msra.mxu0 0
  %3400 = vmatprep.subr.bf16.mxu0 0
  %3401 = vmatpush2.bf16.msra.mxu0 0
  %3402 = vmatprep.subr.bf16.mxu0 0
  %3403 = vmatpush2.bf16.msra.mxu0 0
  %3404 = vmatprep.mubr.bf16.mxu0 0
  %3405 = vmatmul.mubr.bf16.gmra.mxu0 %v3361
  %v3406 = vpop.f32.mrf.mxu0
  %v3407 = vadd.f32 0.0, %v3406
  %v3408 = vpop.f32.mrf.mxu0
  %v3409 = vpop.f32.mrf.mxu0
  %v3410 = vadd.f32 0.0, %v3409
  %v3411 = vpop.f32.mrf.mxu0
  %3412 = vmatprep.mubr.bf16.mxu0 0
  %3413 = vmatmul.mubr.bf16.gmra.mxu0 %v3364
  %v3414 = vpop.f32.mrf.mxu0
  %v3415 = vadd.f32 0.0, %v3414
  %v3416 = vpop.f32.mrf.mxu0
  %v3417 = vpop.f32.mrf.mxu0
  %v3418 = vadd.f32 0.0, %v3417
  %v3419 = vpop.f32.mrf.mxu0
  %3420 = vmatprep.mubr.bf16.mxu0 0
  %3421 = vmatmul.mubr.bf16.gmra.mxu0 %v3367
  %v3422 = vpop.f32.mrf.mxu0
  %v3423 = vadd.f32 0.0, %v3422
  %v3424 = vpop.f32.mrf.mxu0
  %v3425 = vpop.f32.mrf.mxu0
  %v3426 = vadd.f32 0.0, %v3425
  %v3427 = vpop.f32.mrf.mxu0
  %3428 = vmatprep.mubr.bf16.mxu0 0
  %3429 = vmatmul.mubr.bf16.gmra.mxu0 %v3370
  %v3430 = vpop.f32.mrf.mxu0
  %v3431 = vadd.f32 0.0, %v3430
  %v3432 = vpop.f32.mrf.mxu0
  %v3433 = vpop.f32.mrf.mxu0
  %v3434 = vadd.f32 0.0, %v3433
  %v3435 = vpop.f32.mrf.mxu0
  %3436 = vdwg.mxu0
  %v3437 = vpack.c.bf16 %v3410, %v3407
  %v3438 = vpack.c.bf16 %v3418, %v3415
  %v3439 = vpack.c.bf16 %v3426, %v3423
  %v3440 = vpack.c.bf16 %v3434, %v3431
  %v3442 = vsel %vm84, %v3437, 0
  %v3445 = vsel %vm84, %v3438, 0
  %v3448 = vsel %vm84, %v3439, 0
  %v3451 = vsel %vm84, %v3440, 0
  %3453 = vmatprep.subr.bf16.mxu0 0
  %3454 = vmatpush1.bf16.msra.mxu0 0
  %3455 = vmatprep.subr.bf16.mxu0 0
  %3456 = vmatpush1.bf16.msra.mxu0 0
  %3457 = vmatprep.subr.bf16.mxu0 0
  %3458 = vmatpush1.bf16.msra.mxu0 0
  %3459 = vmatprep.subr.bf16.mxu0 0
  %3460 = vmatpush1.bf16.msra.mxu0 0
  %3461 = vmatprep.subr.bf16.mxu0 0
  %3462 = vmatpush1.bf16.msra.mxu0 0
  %3463 = vmatprep.subr.bf16.mxu0 0
  %3464 = vmatpush1.bf16.msra.mxu0 0
  %3465 = vmatprep.subr.bf16.mxu0 0
  %3466 = vmatpush1.bf16.msra.mxu0 0
  %3467 = vmatprep.subr.bf16.mxu0 0
  %3468 = vmatpush1.bf16.msra.mxu0 %v2755
  %3469 = vmatprep.subr.bf16.mxu0 0
  %3470 = vmatpush2.bf16.msra.mxu0 0
  %3471 = vmatprep.subr.bf16.mxu0 0
  %3472 = vmatpush2.bf16.msra.mxu0 0
  %3473 = vmatprep.subr.bf16.mxu0 0
  %3474 = vmatpush2.bf16.msra.mxu0 0
  %3475 = vmatprep.subr.bf16.mxu0 0
  %3476 = vmatpush2.bf16.msra.mxu0 0
  %3477 = vmatprep.subr.bf16.mxu0 0
  %3478 = vmatpush2.bf16.msra.mxu0 0
  %3479 = vmatprep.subr.bf16.mxu0 0
  %3480 = vmatpush2.bf16.msra.mxu0 0
  %3481 = vmatprep.subr.bf16.mxu0 0
  %3482 = vmatpush2.bf16.msra.mxu0 0
  %3483 = vmatprep.subr.bf16.mxu0 0
  %3484 = vmatpush2.bf16.msra.mxu0 0
  %3485 = vmatprep.mubr.bf16.mxu0 0
  %3486 = vmatmul.mubr.bf16.gmra.mxu0 %v3442
  %v3487 = vpop.f32.mrf.mxu0
  %v3488 = vadd.f32 0.0, %v3487
  %v3489 = vpop.f32.mrf.mxu0
  %v3490 = vpop.f32.mrf.mxu0
  %v3491 = vadd.f32 0.0, %v3490
  %v3492 = vpop.f32.mrf.mxu0
  %3493 = vmatprep.mubr.bf16.mxu0 0
  %3494 = vmatmul.mubr.bf16.gmra.mxu0 %v3445
  %v3495 = vpop.f32.mrf.mxu0
  %v3496 = vadd.f32 0.0, %v3495
  %v3497 = vpop.f32.mrf.mxu0
  %v3498 = vpop.f32.mrf.mxu0
  %v3499 = vadd.f32 0.0, %v3498
  %v3500 = vpop.f32.mrf.mxu0
  %3501 = vmatprep.mubr.bf16.mxu0 0
  %3502 = vmatmul.mubr.bf16.gmra.mxu0 %v3448
  %v3503 = vpop.f32.mrf.mxu0
  %v3504 = vadd.f32 0.0, %v3503
  %v3505 = vpop.f32.mrf.mxu0
  %v3506 = vpop.f32.mrf.mxu0
  %v3507 = vadd.f32 0.0, %v3506
  %v3508 = vpop.f32.mrf.mxu0
  %3509 = vmatprep.mubr.bf16.mxu0 0
  %3510 = vmatmul.mubr.bf16.gmra.mxu0 %v3451
  %v3511 = vpop.f32.mrf.mxu0
  %v3512 = vadd.f32 0.0, %v3511
  %v3513 = vpop.f32.mrf.mxu0
  %v3514 = vpop.f32.mrf.mxu0
  %v3515 = vadd.f32 0.0, %v3514
  %v3516 = vpop.f32.mrf.mxu0
  %3517 = vdwg.mxu0
  %v3518 = vadd.f32 %v3340, %v3488
  %v3519 = vadd.f32 %v3341, %v3491
  %v3520 = vadd.f32 %v3342, %v3496
  %v3521 = vadd.f32 %v3343, %v3499
  %v3522 = vadd.f32 %v3344, %v3504
  %v3523 = vadd.f32 %v3345, %v3507
  %v3524 = vadd.f32 %v3346, %v3512
  %v3525 = vadd.f32 %v3347, %v3515
  %v3526 = vadd.f32 %v2822, %v242
  %v3527 = vadd.f32 %v2823, %v243
  %v3528 = vadd.f32 %v2824, %v244
  %v3529 = vadd.f32 %v2825, %v245
  %v3530 = vadd.f32 %v2826, %v246
  %v3531 = vadd.f32 %v2827, %v247
  %v3532 = vadd.f32 %v2828, %v248
  %v3533 = vadd.f32 %v2829, %v249
  %v3534 = vadd.f32 %v3518, %v250
  %v3535 = vadd.f32 %v3519, %v251
  %v3536 = vadd.f32 %v3520, %v252
  %v3537 = vadd.f32 %v3521, %v253
  %v3538 = vadd.f32 %v3522, %v254
  %v3539 = vadd.f32 %v3523, %v255
  %v3540 = vadd.f32 %v3524, %v256
  %v3541 = vadd.f32 %v3525, %v257
  %v3542 = vsel %vm347, %v3526, 0.0
  %3543 = vadd.xlane.f32.xlu0 %v3542
  %v3544 = vpop.xlane.xlu0 %3543
  %v3545 = vsel %vm347, %v3527, 0.0
  %3546 = vadd.xlane.f32.xlu0 %v3545
  %v3547 = vpop.xlane.xlu0 %3546
  %v3548 = vsel %vm347, %v3528, 0.0
  %3549 = vadd.xlane.f32.xlu0 %v3548
  %v3550 = vpop.xlane.xlu0 %3549
  %v3551 = vsel %vm347, %v3529, 0.0
  %3552 = vadd.xlane.f32.xlu0 %v3551
  %v3553 = vpop.xlane.xlu0 %3552
  %v3554 = vsel %vm347, %v3530, 0.0
  %3555 = vadd.xlane.f32.xlu0 %v3554
  %v3556 = vpop.xlane.xlu0 %3555
  %v3557 = vsel %vm347, %v3531, 0.0
  %3558 = vadd.xlane.f32.xlu0 %v3557
  %v3559 = vpop.xlane.xlu0 %3558
  %v3560 = vsel %vm347, %v3532, 0.0
  %3561 = vadd.xlane.f32.xlu0 %v3560
  %v3562 = vpop.xlane.xlu0 %3561
  %v3563 = vsel %vm347, %v3533, 0.0
  %3564 = vadd.xlane.f32.xlu0 %v3563
  %v3565 = vpop.xlane.xlu0 %3564
  %v3566 = vsel %vm347, %v3534, 0.0
  %3567 = vadd.xlane.f32.xlu0 %v3566
  %v3568 = vpop.xlane.xlu0 %3567
  %v3569 = vsel %vm347, %v3535, 0.0
  %3570 = vadd.xlane.f32.xlu0 %v3569
  %v3571 = vpop.xlane.xlu0 %3570
  %v3572 = vsel %vm347, %v3536, 0.0
  %3573 = vadd.xlane.f32.xlu0 %v3572
  %v3574 = vpop.xlane.xlu0 %3573
  %v3575 = vsel %vm347, %v3537, 0.0
  %3576 = vadd.xlane.f32.xlu0 %v3575
  %v3577 = vpop.xlane.xlu0 %3576
  %v3578 = vsel %vm347, %v3538, 0.0
  %3579 = vadd.xlane.f32.xlu0 %v3578
  %v3580 = vpop.xlane.xlu0 %3579
  %v3581 = vsel %vm347, %v3539, 0.0
  %3582 = vadd.xlane.f32.xlu0 %v3581
  %v3583 = vpop.xlane.xlu0 %3582
  %v3584 = vsel %vm347, %v3540, 0.0
  %3585 = vadd.xlane.f32.xlu0 %v3584
  %v3586 = vpop.xlane.xlu0 %3585
  %v3587 = vsel %vm347, %v3541, 0.0
  %3588 = vadd.xlane.f32.xlu0 %v3587
  %v3589 = vpop.xlane.xlu0 %3588
  %v3590 = vrcp.pop 32.0
  %v3591 = vmul.f32 %v3544, %v3590
  %v3592 = vmul.f32 %v3547, %v3590
  %v3593 = vmul.f32 %v3550, %v3590
  %v3594 = vmul.f32 %v3553, %v3590
  %v3595 = vmul.f32 %v3556, %v3590
  %v3596 = vmul.f32 %v3559, %v3590
  %v3597 = vmul.f32 %v3562, %v3590
  %v3598 = vmul.f32 %v3565, %v3590
  %v3599 = vmul.f32 %v3568, %v3590
  %v3600 = vmul.f32 %v3571, %v3590
  %v3601 = vmul.f32 %v3574, %v3590
  %v3602 = vmul.f32 %v3577, %v3590
  %v3603 = vmul.f32 %v3580, %v3590
  %v3604 = vmul.f32 %v3583, %v3590
  %v3605 = vmul.f32 %v3586, %v3590
  %v3606 = vmul.f32 %v3589, %v3590
  %v3607 = vsub.f32 %v3526, %v3591
  %v3608 = vsub.f32 %v3527, %v3592
  %v3609 = vsub.f32 %v3528, %v3593
  %v3610 = vsub.f32 %v3529, %v3594
  %v3611 = vsub.f32 %v3530, %v3595
  %v3612 = vsub.f32 %v3531, %v3596
  %v3613 = vsub.f32 %v3532, %v3597
  %v3614 = vsub.f32 %v3533, %v3598
  %v3615 = vsub.f32 %v3534, %v3599
  %v3616 = vsub.f32 %v3535, %v3600
  %v3617 = vsub.f32 %v3536, %v3601
  %v3618 = vsub.f32 %v3537, %v3602
  %v3619 = vsub.f32 %v3538, %v3603
  %v3620 = vsub.f32 %v3539, %v3604
  %v3621 = vsub.f32 %v3540, %v3605
  %v3622 = vsub.f32 %v3541, %v3606
  %v3623 = vmul.f32 %v3607, %v3607
  %v3624 = vmul.f32 %v3608, %v3608
  %v3625 = vmul.f32 %v3609, %v3609
  %v3626 = vmul.f32 %v3610, %v3610
  %v3627 = vmul.f32 %v3611, %v3611
  %v3628 = vmul.f32 %v3612, %v3612
  %v3629 = vmul.f32 %v3613, %v3613
  %v3630 = vmul.f32 %v3614, %v3614
  %v3631 = vmul.f32 %v3615, %v3615
  %v3632 = vmul.f32 %v3616, %v3616
  %v3633 = vmul.f32 %v3617, %v3617
  %v3634 = vmul.f32 %v3618, %v3618
  %v3635 = vmul.f32 %v3619, %v3619
  %v3636 = vmul.f32 %v3620, %v3620
  %v3637 = vmul.f32 %v3621, %v3621
  %v3638 = vmul.f32 %v3622, %v3622
  %v3639 = vsel %vm347, %v3623, 0.0
  %3640 = vadd.xlane.f32.xlu0 %v3639
  %v3641 = vpop.xlane.xlu0 %3640
  %v3642 = vsel %vm347, %v3624, 0.0
  %3643 = vadd.xlane.f32.xlu0 %v3642
  %v3644 = vpop.xlane.xlu0 %3643
  %v3645 = vsel %vm347, %v3625, 0.0
  %3646 = vadd.xlane.f32.xlu0 %v3645
  %v3647 = vpop.xlane.xlu0 %3646
  %v3648 = vsel %vm347, %v3626, 0.0
  %3649 = vadd.xlane.f32.xlu0 %v3648
  %v3650 = vpop.xlane.xlu0 %3649
  %v3651 = vsel %vm347, %v3627, 0.0
  %3652 = vadd.xlane.f32.xlu0 %v3651
  %v3653 = vpop.xlane.xlu0 %3652
  %v3654 = vsel %vm347, %v3628, 0.0
  %3655 = vadd.xlane.f32.xlu0 %v3654
  %v3656 = vpop.xlane.xlu0 %3655
  %v3657 = vsel %vm347, %v3629, 0.0
  %3658 = vadd.xlane.f32.xlu0 %v3657
  %v3659 = vpop.xlane.xlu0 %3658
  %v3660 = vsel %vm347, %v3630, 0.0
  %3661 = vadd.xlane.f32.xlu0 %v3660
  %v3662 = vpop.xlane.xlu0 %3661
  %v3663 = vsel %vm347, %v3631, 0.0
  %3664 = vadd.xlane.f32.xlu0 %v3663
  %v3665 = vpop.xlane.xlu0 %3664
  %v3666 = vsel %vm347, %v3632, 0.0
  %3667 = vadd.xlane.f32.xlu0 %v3666
  %v3668 = vpop.xlane.xlu0 %3667
  %v3669 = vsel %vm347, %v3633, 0.0
  %3670 = vadd.xlane.f32.xlu0 %v3669
  %v3671 = vpop.xlane.xlu0 %3670
  %v3672 = vsel %vm347, %v3634, 0.0
  %3673 = vadd.xlane.f32.xlu0 %v3672
  %v3674 = vpop.xlane.xlu0 %3673
  %v3675 = vsel %vm347, %v3635, 0.0
  %3676 = vadd.xlane.f32.xlu0 %v3675
  %v3677 = vpop.xlane.xlu0 %3676
  %v3678 = vsel %vm347, %v3636, 0.0
  %3679 = vadd.xlane.f32.xlu0 %v3678
  %v3680 = vpop.xlane.xlu0 %3679
  %v3681 = vsel %vm347, %v3637, 0.0
  %3682 = vadd.xlane.f32.xlu0 %v3681
  %v3683 = vpop.xlane.xlu0 %3682
  %v3684 = vsel %vm347, %v3638, 0.0
  %3685 = vadd.xlane.f32.xlu0 %v3684
  %v3686 = vpop.xlane.xlu0 %3685
  %v3687 = vmul.f32 %v3641, %v3590
  %v3688 = vmul.f32 %v3644, %v3590
  %v3689 = vmul.f32 %v3647, %v3590
  %v3690 = vmul.f32 %v3650, %v3590
  %v3691 = vmul.f32 %v3653, %v3590
  %v3692 = vmul.f32 %v3656, %v3590
  %v3693 = vmul.f32 %v3659, %v3590
  %v3694 = vmul.f32 %v3662, %v3590
  %v3695 = vmul.f32 %v3665, %v3590
  %v3696 = vmul.f32 %v3668, %v3590
  %v3697 = vmul.f32 %v3671, %v3590
  %v3698 = vmul.f32 %v3674, %v3590
  %v3699 = vmul.f32 %v3677, %v3590
  %v3700 = vmul.f32 %v3680, %v3590
  %v3701 = vmul.f32 %v3683, %v3590
  %v3702 = vmul.f32 %v3686, %v3590
  %v3703 = vadd.f32 %v3687, 1e-06
  %v3704 = vadd.f32 %v3688, 1e-06
  %v3705 = vadd.f32 %v3689, 1e-06
  %v3706 = vadd.f32 %v3690, 1e-06
  %v3707 = vadd.f32 %v3691, 1e-06
  %v3708 = vadd.f32 %v3692, 1e-06
  %v3709 = vadd.f32 %v3693, 1e-06
  %v3710 = vadd.f32 %v3694, 1e-06
  %v3711 = vadd.f32 %v3695, 1e-06
  %v3712 = vadd.f32 %v3696, 1e-06
  %v3713 = vadd.f32 %v3697, 1e-06
  %v3714 = vadd.f32 %v3698, 1e-06
  %v3715 = vadd.f32 %v3699, 1e-06
  %v3716 = vadd.f32 %v3700, 1e-06
  %v3717 = vadd.f32 %v3701, 1e-06
  %v3718 = vadd.f32 %v3702, 1e-06
  %v3719 = vrsqrt.pop %v3703
  %v3720 = vrsqrt.pop %v3704
  %v3721 = vrsqrt.pop %v3705
  %v3722 = vrsqrt.pop %v3706
  %v3723 = vrsqrt.pop %v3707
  %v3724 = vrsqrt.pop %v3708
  %v3725 = vrsqrt.pop %v3709
  %v3726 = vrsqrt.pop %v3710
  %v3727 = vrsqrt.pop %v3711
  %v3728 = vrsqrt.pop %v3712
  %v3729 = vrsqrt.pop %v3713
  %v3730 = vrsqrt.pop %v3714
  %v3731 = vrsqrt.pop %v3715
  %v3732 = vrsqrt.pop %v3716
  %v3733 = vrsqrt.pop %v3717
  %v3734 = vrsqrt.pop %v3718
  %v3735 = vmul.f32 %v3607, %v3719
  %v3736 = vmul.f32 %v3608, %v3720
  %v3737 = vmul.f32 %v3609, %v3721
  %v3738 = vmul.f32 %v3610, %v3722
  %v3739 = vmul.f32 %v3611, %v3723
  %v3740 = vmul.f32 %v3612, %v3724
  %v3741 = vmul.f32 %v3613, %v3725
  %v3742 = vmul.f32 %v3614, %v3726
  %v3743 = vmul.f32 %v3615, %v3727
  %v3744 = vmul.f32 %v3616, %v3728
  %v3745 = vmul.f32 %v3617, %v3729
  %v3746 = vmul.f32 %v3618, %v3730
  %v3747 = vmul.f32 %v3619, %v3731
  %v3748 = vmul.f32 %v3620, %v3732
  %v3749 = vmul.f32 %v3621, %v3733
  %v3750 = vmul.f32 %v3622, %v3734
  %v3751 = vlaneseq
  %v3752 = vshrl.u32 %v3751, 7
  %v3753 = vsub.s32 0, %v3752
  %v3754 = vrot.slane %v326, %v3753
  %v3755 = vmul.f32 %v3735, %v3754
  %v3756 = vmul.f32 %v3736, %v3754
  %v3757 = vmul.f32 %v3737, %v3754
  %v3758 = vmul.f32 %v3738, %v3754
  %v3759 = vmul.f32 %v3739, %v3754
  %v3760 = vmul.f32 %v3740, %v3754
  %v3761 = vmul.f32 %v3741, %v3754
  %v3762 = vmul.f32 %v3742, %v3754
  %v3763 = vmul.f32 %v3743, %v3754
  %v3764 = vmul.f32 %v3744, %v3754
  %v3765 = vmul.f32 %v3745, %v3754
  %v3766 = vmul.f32 %v3746, %v3754
  %v3767 = vmul.f32 %v3747, %v3754
  %v3768 = vmul.f32 %v3748, %v3754
  %v3769 = vmul.f32 %v3749, %v3754
  %v3770 = vmul.f32 %v3750, %v3754
  %v3771 = vlaneseq
  %v3772 = vshrl.u32 %v3771, 7
  %v3773 = vsub.s32 1, %v3772
  %v3774 = vrot.slane %v326, %v3773
  %v3775 = vadd.f32 %v3755, %v3774
  %v3776 = vadd.f32 %v3756, %v3774
  %v3777 = vadd.f32 %v3757, %v3774
  %v3778 = vadd.f32 %v3758, %v3774
  %v3779 = vadd.f32 %v3759, %v3774
  %v3780 = vadd.f32 %v3760, %v3774
  %v3781 = vadd.f32 %v3761, %v3774
  %v3782 = vadd.f32 %v3762, %v3774
  %v3783 = vadd.f32 %v3763, %v3774
  %v3784 = vadd.f32 %v3764, %v3774
  %v3785 = vadd.f32 %v3765, %v3774
  %v3786 = vadd.f32 %v3766, %v3774
  %v3787 = vadd.f32 %v3767, %v3774
  %v3788 = vadd.f32 %v3768, %v3774
  %v3789 = vadd.f32 %v3769, %v3774
  %v3790 = vadd.f32 %v3770, %v3774
  %v3791 = vpack.c.bf16 %v3776, %v3775
  %v3792 = vpack.c.bf16 %v3778, %v3777
  %v3793 = vpack.c.bf16 %v3780, %v3779
  %v3794 = vpack.c.bf16 %v3782, %v3781
  %v3795 = vpack.c.bf16 %v3784, %v3783
  %v3796 = vpack.c.bf16 %v3786, %v3785
  %v3797 = vpack.c.bf16 %v3788, %v3787
  %v3798 = vpack.c.bf16 %v3790, %v3789
  %v3799 = vlaneseq
  %v3800 = vshrl.u32 %v3799, 7
  %v3801 = vsub.s32 2, %v3800
  %v3802 = vrot.slane %v326, %v3801
  %v3803 = vunpack.c.h.b16 %v322
  %v3804 = vunpack.c.h.b16 %v323
  %v3805 = vunpack.c.h.b16 %v324
  %v3806 = vunpack.c.h.b16 %v325
  %v3807 = vpack.c.b16 %v3804, %v3803
  %v3808 = vpack.c.b16 %v3806, %v3805
  %v3812 = vsel %vm347, %v3791, 0
  %v3815 = vsel %vm347, %v3792, 0
  %v3818 = vsel %vm347, %v3793, 0
  %v3821 = vsel %vm347, %v3794, 0
  %v3824 = vsel %vm347, %v3795, 0
  %v3827 = vsel %vm347, %v3796, 0
  %v3830 = vsel %vm347, %v3797, 0
  %v3833 = vsel %vm347, %v3798, 0
  %3835 = vmatprep.subr.bf16.mxu0 0
  %3836 = vmatpush1.bf16.msra.mxu0 0
  %3837 = vmatprep.subr.bf16.mxu0 0
  %3838 = vmatpush1.bf16.msra.mxu0 0
  %3839 = vmatprep.subr.bf16.mxu0 0
  %3840 = vmatpush1.bf16.msra.mxu0 0
  %3841 = vmatprep.subr.bf16.mxu0 0
  %3842 = vmatpush1.bf16.msra.mxu0 0
  %3843 = vmatprep.subr.bf16.mxu0 0
  %3844 = vmatpush1.bf16.msra.mxu0 0
  %3845 = vmatprep.subr.bf16.mxu0 0
  %3846 = vmatpush1.bf16.msra.mxu0 0
  %3847 = vmatprep.subr.bf16.mxu0 0
  %3848 = vmatpush1.bf16.msra.mxu0 %v3808
  %3849 = vmatprep.subr.bf16.mxu0 0
  %3850 = vmatpush1.bf16.msra.mxu0 %v3807
  %3851 = vmatprep.subr.bf16.mxu0 0
  %3852 = vmatpush2.bf16.msra.mxu0 0
  %3853 = vmatprep.subr.bf16.mxu0 0
  %3854 = vmatpush2.bf16.msra.mxu0 0
  %3855 = vmatprep.subr.bf16.mxu0 0
  %3856 = vmatpush2.bf16.msra.mxu0 0
  %3857 = vmatprep.subr.bf16.mxu0 0
  %3858 = vmatpush2.bf16.msra.mxu0 0
  %3859 = vmatprep.subr.bf16.mxu0 0
  %3860 = vmatpush2.bf16.msra.mxu0 0
  %3861 = vmatprep.subr.bf16.mxu0 0
  %3862 = vmatpush2.bf16.msra.mxu0 0
  %3863 = vmatprep.subr.bf16.mxu0 0
  %3864 = vmatpush2.bf16.msra.mxu0 0
  %3865 = vmatprep.subr.bf16.mxu0 0
  %3866 = vmatpush2.bf16.msra.mxu0 0
  %3867 = vmatprep.mubr.bf16.mxu0 0
  %3868 = vmatmul.mubr.bf16.gmra.mxu0 %v3812
  %v3869 = vpop.f32.mrf.mxu0
  %v3870 = vadd.f32 %v3802, %v3869
  %v3871 = vpop.f32.mrf.mxu0
  %v3872 = vpop.f32.mrf.mxu0
  %v3873 = vadd.f32 %v3802, %v3872
  %v3874 = vpop.f32.mrf.mxu0
  %3875 = vmatprep.mubr.bf16.mxu0 0
  %3876 = vmatmul.mubr.bf16.gmra.mxu0 %v3815
  %v3877 = vpop.f32.mrf.mxu0
  %v3878 = vadd.f32 %v3802, %v3877
  %v3879 = vpop.f32.mrf.mxu0
  %v3880 = vpop.f32.mrf.mxu0
  %v3881 = vadd.f32 %v3802, %v3880
  %v3882 = vpop.f32.mrf.mxu0
  %3883 = vmatprep.mubr.bf16.mxu0 0
  %3884 = vmatmul.mubr.bf16.gmra.mxu0 %v3818
  %v3885 = vpop.f32.mrf.mxu0
  %v3886 = vadd.f32 %v3802, %v3885
  %v3887 = vpop.f32.mrf.mxu0
  %v3888 = vpop.f32.mrf.mxu0
  %v3889 = vadd.f32 %v3802, %v3888
  %v3890 = vpop.f32.mrf.mxu0
  %3891 = vmatprep.mubr.bf16.mxu0 0
  %3892 = vmatmul.mubr.bf16.gmra.mxu0 %v3821
  %v3893 = vpop.f32.mrf.mxu0
  %v3894 = vadd.f32 %v3802, %v3893
  %v3895 = vpop.f32.mrf.mxu0
  %v3896 = vpop.f32.mrf.mxu0
  %v3897 = vadd.f32 %v3802, %v3896
  %v3898 = vpop.f32.mrf.mxu0
  %3899 = vmatprep.mubr.bf16.mxu0 0
  %3900 = vmatmul.mubr.bf16.gmra.mxu0 %v3824
  %v3901 = vpop.f32.mrf.mxu0
  %v3902 = vadd.f32 %v3802, %v3901
  %v3903 = vpop.f32.mrf.mxu0
  %v3904 = vpop.f32.mrf.mxu0
  %v3905 = vadd.f32 %v3802, %v3904
  %v3906 = vpop.f32.mrf.mxu0
  %3907 = vmatprep.mubr.bf16.mxu0 0
  %3908 = vmatmul.mubr.bf16.gmra.mxu0 %v3827
  %v3909 = vpop.f32.mrf.mxu0
  %v3910 = vadd.f32 %v3802, %v3909
  %v3911 = vpop.f32.mrf.mxu0
  %v3912 = vpop.f32.mrf.mxu0
  %v3913 = vadd.f32 %v3802, %v3912
  %v3914 = vpop.f32.mrf.mxu0
  %3915 = vmatprep.mubr.bf16.mxu0 0
  %3916 = vmatmul.mubr.bf16.gmra.mxu0 %v3830
  %v3917 = vpop.f32.mrf.mxu0
  %v3918 = vadd.f32 %v3802, %v3917
  %v3919 = vpop.f32.mrf.mxu0
  %v3920 = vpop.f32.mrf.mxu0
  %v3921 = vadd.f32 %v3802, %v3920
  %v3922 = vpop.f32.mrf.mxu0
  %3923 = vmatprep.mubr.bf16.mxu0 0
  %3924 = vmatmul.mubr.bf16.gmra.mxu0 %v3833
  %v3925 = vpop.f32.mrf.mxu0
  %v3926 = vadd.f32 %v3802, %v3925
  %v3927 = vpop.f32.mrf.mxu0
  %v3928 = vpop.f32.mrf.mxu0
  %v3929 = vadd.f32 %v3802, %v3928
  %v3930 = vpop.f32.mrf.mxu0
  %3931 = vdwg.mxu0
  %v3932 = vmax.f32 %v3870, 0.0
  %v3933 = vmax.f32 %v3873, 0.0
  %v3934 = vmax.f32 %v3878, 0.0
  %v3935 = vmax.f32 %v3881, 0.0
  %v3936 = vmax.f32 %v3886, 0.0
  %v3937 = vmax.f32 %v3889, 0.0
  %v3938 = vmax.f32 %v3894, 0.0
  %v3939 = vmax.f32 %v3897, 0.0
  %v3940 = vmax.f32 %v3902, 0.0
  %v3941 = vmax.f32 %v3905, 0.0
  %v3942 = vmax.f32 %v3910, 0.0
  %v3943 = vmax.f32 %v3913, 0.0
  %v3944 = vmax.f32 %v3918, 0.0
  %v3945 = vmax.f32 %v3921, 0.0
  %v3946 = vmax.f32 %v3926, 0.0
  %v3947 = vmax.f32 %v3929, 0.0
  %v3948 = vpack.c.bf16 %v3933, %v3932
  %v3949 = vpack.c.bf16 %v3935, %v3934
  %v3950 = vpack.c.bf16 %v3937, %v3936
  %v3951 = vpack.c.bf16 %v3939, %v3938
  %v3952 = vpack.c.bf16 %v3941, %v3940
  %v3953 = vpack.c.bf16 %v3943, %v3942
  %v3954 = vpack.c.bf16 %v3945, %v3944
  %v3955 = vpack.c.bf16 %v3947, %v3946
  %v3956 = vlaneseq
  %v3957 = vshrl.u32 %v3956, 7
  %v3958 = vsub.s32 3, %v3957
  %v3959 = vrot.slane %v326, %v3958
  %3960 = vrot.lane.b32.xlu0 %v3807, 64
  %v3961 = vpop.permute.xlu0 %3960
  %3962 = vrot.lane.b32.xlu0 %v3808, 64
  %v3963 = vpop.permute.xlu0 %3962
  %v3965 = vsel %vm1373, %v3948, 0
  %v3968 = vsel %vm1373, %v3949, 0
  %v3971 = vsel %vm1373, %v3950, 0
  %v3974 = vsel %vm1373, %v3951, 0
  %v3977 = vsel %vm1373, %v3952, 0
  %v3980 = vsel %vm1373, %v3953, 0
  %v3983 = vsel %vm1373, %v3954, 0
  %v3986 = vsel %vm1373, %v3955, 0
  %v3989 = vsel %vm1373, %v3961, 0
  %v3992 = vsel %vm1373, %v3963, 0
  %3994 = vmatprep.subr.bf16.mxu0 0
  %3995 = vmatpush1.bf16.xpose.msra.mxu0 0
  %3996 = vmatprep.subr.bf16.mxu0 0
  %3997 = vmatpush1.bf16.xpose.msra.mxu0 0
  %3998 = vmatprep.subr.bf16.mxu0 0
  %3999 = vmatpush1.bf16.xpose.msra.mxu0 0
  %4000 = vmatprep.subr.bf16.mxu0 0
  %4001 = vmatpush1.bf16.xpose.msra.mxu0 0
  %4002 = vmatprep.subr.bf16.mxu0 0
  %4003 = vmatpush1.bf16.xpose.msra.mxu0 0
  %4004 = vmatprep.subr.bf16.mxu0 0
  %4005 = vmatpush1.bf16.xpose.msra.mxu0 0
  %4006 = vmatprep.subr.bf16.mxu0 0
  %4007 = vmatpush1.bf16.xpose.msra.mxu0 %v3992
  %4008 = vmatprep.subr.bf16.mxu0 0
  %4009 = vmatpush1.bf16.xpose.msra.mxu0 %v3989
  %4010 = vmatprep.subr.bf16.mxu0 0
  %4011 = vmatpush2.bf16.xpose.msra.mxu0 0
  %4012 = vmatprep.subr.bf16.mxu0 0
  %4013 = vmatpush2.bf16.xpose.msra.mxu0 0
  %4014 = vmatprep.subr.bf16.mxu0 0
  %4015 = vmatpush2.bf16.xpose.msra.mxu0 0
  %4016 = vmatprep.subr.bf16.mxu0 0
  %4017 = vmatpush2.bf16.xpose.msra.mxu0 0
  %4018 = vmatprep.subr.bf16.mxu0 0
  %4019 = vmatpush2.bf16.xpose.msra.mxu0 0
  %4020 = vmatprep.subr.bf16.mxu0 0
  %4021 = vmatpush2.bf16.xpose.msra.mxu0 0
  %4022 = vmatprep.subr.bf16.mxu0 0
  %4023 = vmatpush2.bf16.xpose.msra.mxu0 0
  %4024 = vmatprep.subr.bf16.mxu0 0
  %4025 = vmatpush2.bf16.xpose.msra.mxu0 0
  %4026 = vmatprep.mubr.bf16.mxu0 0
  %4027 = vmatmul.mubr.bf16.gmra.mxu0 %v3965
  %v4028 = vpop.f32.mrf.mxu0
  %v4029 = vadd.f32 %v3959, %v4028
  %v4030 = vpop.f32.mrf.mxu0
  %v4031 = vpop.f32.mrf.mxu0
  %v4032 = vadd.f32 %v3959, %v4031
  %v4033 = vpop.f32.mrf.mxu0
  %4034 = vmatprep.mubr.bf16.mxu0 0
  %4035 = vmatmul.mubr.bf16.gmra.mxu0 %v3968
  %v4036 = vpop.f32.mrf.mxu0
  %v4037 = vadd.f32 %v3959, %v4036
  %v4038 = vpop.f32.mrf.mxu0
  %v4039 = vpop.f32.mrf.mxu0
  %v4040 = vadd.f32 %v3959, %v4039
  %v4041 = vpop.f32.mrf.mxu0
  %4042 = vmatprep.mubr.bf16.mxu0 0
  %4043 = vmatmul.mubr.bf16.gmra.mxu0 %v3971
  %v4044 = vpop.f32.mrf.mxu0
  %v4045 = vadd.f32 %v3959, %v4044
  %v4046 = vpop.f32.mrf.mxu0
  %v4047 = vpop.f32.mrf.mxu0
  %v4048 = vadd.f32 %v3959, %v4047
  %v4049 = vpop.f32.mrf.mxu0
  %4050 = vmatprep.mubr.bf16.mxu0 0
  %4051 = vmatmul.mubr.bf16.gmra.mxu0 %v3974
  %v4052 = vpop.f32.mrf.mxu0
  %v4053 = vadd.f32 %v3959, %v4052
  %v4054 = vpop.f32.mrf.mxu0
  %v4055 = vpop.f32.mrf.mxu0
  %v4056 = vadd.f32 %v3959, %v4055
  %v4057 = vpop.f32.mrf.mxu0
  %4058 = vmatprep.mubr.bf16.mxu0 0
  %4059 = vmatmul.mubr.bf16.gmra.mxu0 %v3977
  %v4060 = vpop.f32.mrf.mxu0
  %v4061 = vadd.f32 %v3959, %v4060
  %v4062 = vpop.f32.mrf.mxu0
  %v4063 = vpop.f32.mrf.mxu0
  %v4064 = vadd.f32 %v3959, %v4063
  %v4065 = vpop.f32.mrf.mxu0
  %4066 = vmatprep.mubr.bf16.mxu0 0
  %4067 = vmatmul.mubr.bf16.gmra.mxu0 %v3980
  %v4068 = vpop.f32.mrf.mxu0
  %v4069 = vadd.f32 %v3959, %v4068
  %v4070 = vpop.f32.mrf.mxu0
  %v4071 = vpop.f32.mrf.mxu0
  %v4072 = vadd.f32 %v3959, %v4071
  %v4073 = vpop.f32.mrf.mxu0
  %4074 = vmatprep.mubr.bf16.mxu0 0
  %4075 = vmatmul.mubr.bf16.gmra.mxu0 %v3983
  %v4076 = vpop.f32.mrf.mxu0
  %v4077 = vadd.f32 %v3959, %v4076
  %v4078 = vpop.f32.mrf.mxu0
  %v4079 = vpop.f32.mrf.mxu0
  %v4080 = vadd.f32 %v3959, %v4079
  %v4081 = vpop.f32.mrf.mxu0
  %4082 = vmatprep.mubr.bf16.mxu0 0
  %4083 = vmatmul.mubr.bf16.gmra.mxu0 %v3986
  %v4084 = vpop.f32.mrf.mxu0
  %v4085 = vadd.f32 %v3959, %v4084
  %v4086 = vpop.f32.mrf.mxu0
  %v4087 = vpop.f32.mrf.mxu0
  %v4088 = vadd.f32 %v3959, %v4087
  %v4089 = vpop.f32.mrf.mxu0
  %4090 = vdwg.mxu0
  %v4091 = vadd.f32 %v4029, %v3775
  %v4092 = vadd.f32 %v4032, %v3776
  %v4093 = vadd.f32 %v4037, %v3777
  %v4094 = vadd.f32 %v4040, %v3778
  %v4095 = vadd.f32 %v4045, %v3779
  %v4096 = vadd.f32 %v4048, %v3780
  %v4097 = vadd.f32 %v4053, %v3781
  %v4098 = vadd.f32 %v4056, %v3782
  %v4099 = vadd.f32 %v4061, %v3783
  %v4100 = vadd.f32 %v4064, %v3784
  %v4101 = vadd.f32 %v4069, %v3785
  %v4102 = vadd.f32 %v4072, %v3786
  %v4103 = vadd.f32 %v4077, %v3787
  %v4104 = vadd.f32 %v4080, %v3788
  %v4105 = vadd.f32 %v4085, %v3789
  %v4106 = vadd.f32 %v4088, %v3790
  %v4107 = vsel %vm347, %v4091, 0.0
  %4108 = vadd.xlane.f32.xlu0 %v4107
  %v4109 = vpop.xlane.xlu0 %4108
  %v4110 = vsel %vm347, %v4092, 0.0
  %4111 = vadd.xlane.f32.xlu0 %v4110
  %v4112 = vpop.xlane.xlu0 %4111
  %v4113 = vsel %vm347, %v4093, 0.0
  %4114 = vadd.xlane.f32.xlu0 %v4113
  %v4115 = vpop.xlane.xlu0 %4114
  %v4116 = vsel %vm347, %v4094, 0.0
  %4117 = vadd.xlane.f32.xlu0 %v4116
  %v4118 = vpop.xlane.xlu0 %4117
  %v4119 = vsel %vm347, %v4095, 0.0
  %4120 = vadd.xlane.f32.xlu0 %v4119
  %v4121 = vpop.xlane.xlu0 %4120
  %v4122 = vsel %vm347, %v4096, 0.0
  %4123 = vadd.xlane.f32.xlu0 %v4122
  %v4124 = vpop.xlane.xlu0 %4123
  %v4125 = vsel %vm347, %v4097, 0.0
  %4126 = vadd.xlane.f32.xlu0 %v4125
  %v4127 = vpop.xlane.xlu0 %4126
  %v4128 = vsel %vm347, %v4098, 0.0
  %4129 = vadd.xlane.f32.xlu0 %v4128
  %v4130 = vpop.xlane.xlu0 %4129
  %v4131 = vsel %vm347, %v4099, 0.0
  %4132 = vadd.xlane.f32.xlu0 %v4131
  %v4133 = vpop.xlane.xlu0 %4132
  %v4134 = vsel %vm347, %v4100, 0.0
  %4135 = vadd.xlane.f32.xlu0 %v4134
  %v4136 = vpop.xlane.xlu0 %4135
  %v4137 = vsel %vm347, %v4101, 0.0
  %4138 = vadd.xlane.f32.xlu0 %v4137
  %v4139 = vpop.xlane.xlu0 %4138
  %v4140 = vsel %vm347, %v4102, 0.0
  %4141 = vadd.xlane.f32.xlu0 %v4140
  %v4142 = vpop.xlane.xlu0 %4141
  %v4143 = vsel %vm347, %v4103, 0.0
  %4144 = vadd.xlane.f32.xlu0 %v4143
  %v4145 = vpop.xlane.xlu0 %4144
  %v4146 = vsel %vm347, %v4104, 0.0
  %4147 = vadd.xlane.f32.xlu0 %v4146
  %v4148 = vpop.xlane.xlu0 %4147
  %v4149 = vsel %vm347, %v4105, 0.0
  %4150 = vadd.xlane.f32.xlu0 %v4149
  %v4151 = vpop.xlane.xlu0 %4150
  %v4152 = vsel %vm347, %v4106, 0.0
  %4153 = vadd.xlane.f32.xlu0 %v4152
  %v4154 = vpop.xlane.xlu0 %4153
  %v4155 = vmul.f32 %v4109, %v3590
  %v4156 = vmul.f32 %v4112, %v3590
  %v4157 = vmul.f32 %v4115, %v3590
  %v4158 = vmul.f32 %v4118, %v3590
  %v4159 = vmul.f32 %v4121, %v3590
  %v4160 = vmul.f32 %v4124, %v3590
  %v4161 = vmul.f32 %v4127, %v3590
  %v4162 = vmul.f32 %v4130, %v3590
  %v4163 = vmul.f32 %v4133, %v3590
  %v4164 = vmul.f32 %v4136, %v3590
  %v4165 = vmul.f32 %v4139, %v3590
  %v4166 = vmul.f32 %v4142, %v3590
  %v4167 = vmul.f32 %v4145, %v3590
  %v4168 = vmul.f32 %v4148, %v3590
  %v4169 = vmul.f32 %v4151, %v3590
  %v4170 = vmul.f32 %v4154, %v3590
  %v4171 = vsub.f32 %v4091, %v4155
  %v4172 = vsub.f32 %v4092, %v4156
  %v4173 = vsub.f32 %v4093, %v4157
  %v4174 = vsub.f32 %v4094, %v4158
  %v4175 = vsub.f32 %v4095, %v4159
  %v4176 = vsub.f32 %v4096, %v4160
  %v4177 = vsub.f32 %v4097, %v4161
  %v4178 = vsub.f32 %v4098, %v4162
  %v4179 = vsub.f32 %v4099, %v4163
  %v4180 = vsub.f32 %v4100, %v4164
  %v4181 = vsub.f32 %v4101, %v4165
  %v4182 = vsub.f32 %v4102, %v4166
  %v4183 = vsub.f32 %v4103, %v4167
  %v4184 = vsub.f32 %v4104, %v4168
  %v4185 = vsub.f32 %v4105, %v4169
  %v4186 = vsub.f32 %v4106, %v4170
  %v4187 = vmul.f32 %v4171, %v4171
  %v4188 = vmul.f32 %v4172, %v4172
  %v4189 = vmul.f32 %v4173, %v4173
  %v4190 = vmul.f32 %v4174, %v4174
  %v4191 = vmul.f32 %v4175, %v4175
  %v4192 = vmul.f32 %v4176, %v4176
  %v4193 = vmul.f32 %v4177, %v4177
  %v4194 = vmul.f32 %v4178, %v4178
  %v4195 = vmul.f32 %v4179, %v4179
  %v4196 = vmul.f32 %v4180, %v4180
  %v4197 = vmul.f32 %v4181, %v4181
  %v4198 = vmul.f32 %v4182, %v4182
  %v4199 = vmul.f32 %v4183, %v4183
  %v4200 = vmul.f32 %v4184, %v4184
  %v4201 = vmul.f32 %v4185, %v4185
  %v4202 = vmul.f32 %v4186, %v4186
  %v4203 = vsel %vm347, %v4187, 0.0
  %4204 = vadd.xlane.f32.xlu0 %v4203
  %v4205 = vpop.xlane.xlu0 %4204
  %v4206 = vsel %vm347, %v4188, 0.0
  %4207 = vadd.xlane.f32.xlu0 %v4206
  %v4208 = vpop.xlane.xlu0 %4207
  %v4209 = vsel %vm347, %v4189, 0.0
  %4210 = vadd.xlane.f32.xlu0 %v4209
  %v4211 = vpop.xlane.xlu0 %4210
  %v4212 = vsel %vm347, %v4190, 0.0
  %4213 = vadd.xlane.f32.xlu0 %v4212
  %v4214 = vpop.xlane.xlu0 %4213
  %v4215 = vsel %vm347, %v4191, 0.0
  %4216 = vadd.xlane.f32.xlu0 %v4215
  %v4217 = vpop.xlane.xlu0 %4216
  %v4218 = vsel %vm347, %v4192, 0.0
  %4219 = vadd.xlane.f32.xlu0 %v4218
  %v4220 = vpop.xlane.xlu0 %4219
  %v4221 = vsel %vm347, %v4193, 0.0
  %4222 = vadd.xlane.f32.xlu0 %v4221
  %v4223 = vpop.xlane.xlu0 %4222
  %v4224 = vsel %vm347, %v4194, 0.0
  %4225 = vadd.xlane.f32.xlu0 %v4224
  %v4226 = vpop.xlane.xlu0 %4225
  %v4227 = vsel %vm347, %v4195, 0.0
  %4228 = vadd.xlane.f32.xlu0 %v4227
  %v4229 = vpop.xlane.xlu0 %4228
  %v4230 = vsel %vm347, %v4196, 0.0
  %4231 = vadd.xlane.f32.xlu0 %v4230
  %v4232 = vpop.xlane.xlu0 %4231
  %v4233 = vsel %vm347, %v4197, 0.0
  %4234 = vadd.xlane.f32.xlu0 %v4233
  %v4235 = vpop.xlane.xlu0 %4234
  %v4236 = vsel %vm347, %v4198, 0.0
  %4237 = vadd.xlane.f32.xlu0 %v4236
  %v4238 = vpop.xlane.xlu0 %4237
  %v4239 = vsel %vm347, %v4199, 0.0
  %4240 = vadd.xlane.f32.xlu0 %v4239
  %v4241 = vpop.xlane.xlu0 %4240
  %v4242 = vsel %vm347, %v4200, 0.0
  %4243 = vadd.xlane.f32.xlu0 %v4242
  %v4244 = vpop.xlane.xlu0 %4243
  %v4245 = vsel %vm347, %v4201, 0.0
  %4246 = vadd.xlane.f32.xlu0 %v4245
  %v4247 = vpop.xlane.xlu0 %4246
  %v4248 = vsel %vm347, %v4202, 0.0
  %4249 = vadd.xlane.f32.xlu0 %v4248
  %v4250 = vpop.xlane.xlu0 %4249
  %v4251 = vmul.f32 %v4205, %v3590
  %v4252 = vmul.f32 %v4208, %v3590
  %v4253 = vmul.f32 %v4211, %v3590
  %v4254 = vmul.f32 %v4214, %v3590
  %v4255 = vmul.f32 %v4217, %v3590
  %v4256 = vmul.f32 %v4220, %v3590
  %v4257 = vmul.f32 %v4223, %v3590
  %v4258 = vmul.f32 %v4226, %v3590
  %v4259 = vmul.f32 %v4229, %v3590
  %v4260 = vmul.f32 %v4232, %v3590
  %v4261 = vmul.f32 %v4235, %v3590
  %v4262 = vmul.f32 %v4238, %v3590
  %v4263 = vmul.f32 %v4241, %v3590
  %v4264 = vmul.f32 %v4244, %v3590
  %v4265 = vmul.f32 %v4247, %v3590
  %v4266 = vmul.f32 %v4250, %v3590
  %v4267 = vadd.f32 %v4251, 1e-06
  %v4268 = vadd.f32 %v4252, 1e-06
  %v4269 = vadd.f32 %v4253, 1e-06
  %v4270 = vadd.f32 %v4254, 1e-06
  %v4271 = vadd.f32 %v4255, 1e-06
  %v4272 = vadd.f32 %v4256, 1e-06
  %v4273 = vadd.f32 %v4257, 1e-06
  %v4274 = vadd.f32 %v4258, 1e-06
  %v4275 = vadd.f32 %v4259, 1e-06
  %v4276 = vadd.f32 %v4260, 1e-06
  %v4277 = vadd.f32 %v4261, 1e-06
  %v4278 = vadd.f32 %v4262, 1e-06
  %v4279 = vadd.f32 %v4263, 1e-06
  %v4280 = vadd.f32 %v4264, 1e-06
  %v4281 = vadd.f32 %v4265, 1e-06
  %v4282 = vadd.f32 %v4266, 1e-06
  %v4283 = vrsqrt.pop %v4267
  %v4284 = vrsqrt.pop %v4268
  %v4285 = vrsqrt.pop %v4269
  %v4286 = vrsqrt.pop %v4270
  %v4287 = vrsqrt.pop %v4271
  %v4288 = vrsqrt.pop %v4272
  %v4289 = vrsqrt.pop %v4273
  %v4290 = vrsqrt.pop %v4274
  %v4291 = vrsqrt.pop %v4275
  %v4292 = vrsqrt.pop %v4276
  %v4293 = vrsqrt.pop %v4277
  %v4294 = vrsqrt.pop %v4278
  %v4295 = vrsqrt.pop %v4279
  %v4296 = vrsqrt.pop %v4280
  %v4297 = vrsqrt.pop %v4281
  %v4298 = vrsqrt.pop %v4282
  %v4299 = vmul.f32 %v4171, %v4283
  %v4300 = vmul.f32 %v4172, %v4284
  %v4301 = vmul.f32 %v4173, %v4285
  %v4302 = vmul.f32 %v4174, %v4286
  %v4303 = vmul.f32 %v4175, %v4287
  %v4304 = vmul.f32 %v4176, %v4288
  %v4305 = vmul.f32 %v4177, %v4289
  %v4306 = vmul.f32 %v4178, %v4290
  %v4307 = vmul.f32 %v4179, %v4291
  %v4308 = vmul.f32 %v4180, %v4292
  %v4309 = vmul.f32 %v4181, %v4293
  %v4310 = vmul.f32 %v4182, %v4294
  %v4311 = vmul.f32 %v4183, %v4295
  %v4312 = vmul.f32 %v4184, %v4296
  %v4313 = vmul.f32 %v4185, %v4297
  %v4314 = vmul.f32 %v4186, %v4298
  %v4315 = vlaneseq
  %v4316 = vshrl.u32 %v4315, 7
  %v4317 = vsub.s32 4, %v4316
  %v4318 = vrot.slane %v326, %v4317
  %v4319 = vmul.f32 %v4299, %v4318
  %v4320 = vmul.f32 %v4300, %v4318
  %v4321 = vmul.f32 %v4301, %v4318
  %v4322 = vmul.f32 %v4302, %v4318
  %v4323 = vmul.f32 %v4303, %v4318
  %v4324 = vmul.f32 %v4304, %v4318
  %v4325 = vmul.f32 %v4305, %v4318
  %v4326 = vmul.f32 %v4306, %v4318
  %v4327 = vmul.f32 %v4307, %v4318
  %v4328 = vmul.f32 %v4308, %v4318
  %v4329 = vmul.f32 %v4309, %v4318
  %v4330 = vmul.f32 %v4310, %v4318
  %v4331 = vmul.f32 %v4311, %v4318
  %v4332 = vmul.f32 %v4312, %v4318
  %v4333 = vmul.f32 %v4313, %v4318
  %v4334 = vmul.f32 %v4314, %v4318
  %v4335 = vlaneseq
  %v4336 = vshrl.u32 %v4335, 7
  %v4337 = vsub.s32 5, %v4336
  %v4338 = vrot.slane %v326, %v4337
  %v4339 = vadd.f32 %v4319, %v4338
  %v4340 = vadd.f32 %v4320, %v4338
  %v4341 = vadd.f32 %v4321, %v4338
  %v4342 = vadd.f32 %v4322, %v4338
  %v4343 = vadd.f32 %v4323, %v4338
  %v4344 = vadd.f32 %v4324, %v4338
  %v4345 = vadd.f32 %v4325, %v4338
  %v4346 = vadd.f32 %v4326, %v4338
  %v4347 = vadd.f32 %v4327, %v4338
  %v4348 = vadd.f32 %v4328, %v4338
  %v4349 = vadd.f32 %v4329, %v4338
  %v4350 = vadd.f32 %v4330, %v4338
  %v4351 = vadd.f32 %v4331, %v4338
  %v4352 = vadd.f32 %v4332, %v4338
  %v4353 = vadd.f32 %v4333, %v4338
  %v4354 = vadd.f32 %v4334, %v4338
  %s4355 = scalar_lea.vmem %s4, 32
  %v4356 = vld [vmem:[%s4355] sm:$0xff]
  %v4357 = vld [vmem:[%s4355 + $0x8] sm:$0xff]
  %v4358 = vld [vmem:[%s4355 + $0x10] sm:$0xff]
  %v4359 = vld [vmem:[%s4355 + $0x18] sm:$0xff]
  %s4360 = scalar_lea.vmem %s5, 8
  %v4361 = vld [vmem:[%s4360] sm:$0xff]
  %v4362 = vpack.c.bf16 %v4340, %v4339
  %v4363 = vpack.c.bf16 %v4342, %v4341
  %v4364 = vpack.c.bf16 %v4344, %v4343
  %v4365 = vpack.c.bf16 %v4346, %v4345
  %v4366 = vpack.c.bf16 %v4348, %v4347
  %v4367 = vpack.c.bf16 %v4350, %v4349
  %v4368 = vpack.c.bf16 %v4352, %v4351
  %v4369 = vpack.c.bf16 %v4354, %v4353
  %v4374 = vunpack.c.l.b16 %v4356
  %v4375 = vunpack.c.l.b16 %v4357
  %v4376 = vunpack.c.l.b16 %v4358
  %v4377 = vunpack.c.l.b16 %v4359
  %v4378 = vpack.c.b16 %v4375, %v4374
  %v4379 = vpack.c.b16 %v4377, %v4376
  %v4383 = vsel %vm347, %v4362, 0
  %v4386 = vsel %vm347, %v4363, 0
  %v4389 = vsel %vm347, %v4364, 0
  %v4392 = vsel %vm347, %v4365, 0
  %v4395 = vsel %vm347, %v4366, 0
  %v4398 = vsel %vm347, %v4367, 0
  %v4401 = vsel %vm347, %v4368, 0
  %v4404 = vsel %vm347, %v4369, 0
  %4406 = vmatprep.subr.bf16.mxu0 0
  %4407 = vmatpush1.bf16.msra.mxu0 0
  %4408 = vmatprep.subr.bf16.mxu0 0
  %4409 = vmatpush1.bf16.msra.mxu0 0
  %4410 = vmatprep.subr.bf16.mxu0 0
  %4411 = vmatpush1.bf16.msra.mxu0 0
  %4412 = vmatprep.subr.bf16.mxu0 0
  %4413 = vmatpush1.bf16.msra.mxu0 0
  %4414 = vmatprep.subr.bf16.mxu0 0
  %4415 = vmatpush1.bf16.msra.mxu0 0
  %4416 = vmatprep.subr.bf16.mxu0 0
  %4417 = vmatpush1.bf16.msra.mxu0 0
  %4418 = vmatprep.subr.bf16.mxu0 0
  %4419 = vmatpush1.bf16.msra.mxu0 %v4379
  %4420 = vmatprep.subr.bf16.mxu0 0
  %4421 = vmatpush1.bf16.msra.mxu0 %v4378
  %4422 = vmatprep.subr.bf16.mxu0 0
  %4423 = vmatpush2.bf16.msra.mxu0 0
  %4424 = vmatprep.subr.bf16.mxu0 0
  %4425 = vmatpush2.bf16.msra.mxu0 0
  %4426 = vmatprep.subr.bf16.mxu0 0
  %4427 = vmatpush2.bf16.msra.mxu0 0
  %4428 = vmatprep.subr.bf16.mxu0 0
  %4429 = vmatpush2.bf16.msra.mxu0 0
  %4430 = vmatprep.subr.bf16.mxu0 0
  %4431 = vmatpush2.bf16.msra.mxu0 0
  %4432 = vmatprep.subr.bf16.mxu0 0
  %4433 = vmatpush2.bf16.msra.mxu0 0
  %4434 = vmatprep.subr.bf16.mxu0 0
  %4435 = vmatpush2.bf16.msra.mxu0 0
  %4436 = vmatprep.subr.bf16.mxu0 0
  %4437 = vmatpush2.bf16.msra.mxu0 0
  %4438 = vmatprep.mubr.bf16.mxu0 0
  %4439 = vmatmul.mubr.bf16.gmra.mxu0 %v4383
  %v4440 = vpop.f32.mrf.mxu0
  %v4441 = vadd.f32 0.0, %v4440
  %v4442 = vpop.f32.mrf.mxu0
  %v4443 = vpop.f32.mrf.mxu0
  %v4444 = vadd.f32 0.0, %v4443
  %v4445 = vpop.f32.mrf.mxu0
  %4446 = vmatprep.mubr.bf16.mxu0 0
  %4447 = vmatmul.mubr.bf16.gmra.mxu0 %v4386
  %v4448 = vpop.f32.mrf.mxu0
  %v4449 = vadd.f32 0.0, %v4448
  %v4450 = vpop.f32.mrf.mxu0
  %v4451 = vpop.f32.mrf.mxu0
  %v4452 = vadd.f32 0.0, %v4451
  %v4453 = vpop.f32.mrf.mxu0
  %4454 = vmatprep.mubr.bf16.mxu0 0
  %4455 = vmatmul.mubr.bf16.gmra.mxu0 %v4389
  %v4456 = vpop.f32.mrf.mxu0
  %v4457 = vadd.f32 0.0, %v4456
  %v4458 = vpop.f32.mrf.mxu0
  %v4459 = vpop.f32.mrf.mxu0
  %v4460 = vadd.f32 0.0, %v4459
  %v4461 = vpop.f32.mrf.mxu0
  %4462 = vmatprep.mubr.bf16.mxu0 0
  %4463 = vmatmul.mubr.bf16.gmra.mxu0 %v4392
  %v4464 = vpop.f32.mrf.mxu0
  %v4465 = vadd.f32 0.0, %v4464
  %v4466 = vpop.f32.mrf.mxu0
  %v4467 = vpop.f32.mrf.mxu0
  %v4468 = vadd.f32 0.0, %v4467
  %v4469 = vpop.f32.mrf.mxu0
  %4470 = vmatprep.mubr.bf16.mxu0 0
  %4471 = vmatmul.mubr.bf16.gmra.mxu0 %v4395
  %v4472 = vpop.f32.mrf.mxu0
  %v4473 = vadd.f32 0.0, %v4472
  %v4474 = vpop.f32.mrf.mxu0
  %v4475 = vpop.f32.mrf.mxu0
  %v4476 = vadd.f32 0.0, %v4475
  %v4477 = vpop.f32.mrf.mxu0
  %4478 = vmatprep.mubr.bf16.mxu0 0
  %4479 = vmatmul.mubr.bf16.gmra.mxu0 %v4398
  %v4480 = vpop.f32.mrf.mxu0
  %v4481 = vadd.f32 0.0, %v4480
  %v4482 = vpop.f32.mrf.mxu0
  %v4483 = vpop.f32.mrf.mxu0
  %v4484 = vadd.f32 0.0, %v4483
  %v4485 = vpop.f32.mrf.mxu0
  %4486 = vmatprep.mubr.bf16.mxu0 0
  %4487 = vmatmul.mubr.bf16.gmra.mxu0 %v4401
  %v4488 = vpop.f32.mrf.mxu0
  %v4489 = vadd.f32 0.0, %v4488
  %v4490 = vpop.f32.mrf.mxu0
  %v4491 = vpop.f32.mrf.mxu0
  %v4492 = vadd.f32 0.0, %v4491
  %v4493 = vpop.f32.mrf.mxu0
  %4494 = vmatprep.mubr.bf16.mxu0 0
  %4495 = vmatmul.mubr.bf16.gmra.mxu0 %v4404
  %v4496 = vpop.f32.mrf.mxu0
  %v4497 = vadd.f32 0.0, %v4496
  %v4498 = vpop.f32.mrf.mxu0
  %v4499 = vpop.f32.mrf.mxu0
  %v4500 = vadd.f32 0.0, %v4499
  %v4501 = vpop.f32.mrf.mxu0
  %4502 = vdwg.mxu0
  %v4503 = vpack.c.bf16 %v4444, %v4441
  %v4504 = vpack.c.bf16 %v4452, %v4449
  %v4505 = vpack.c.bf16 %v4460, %v4457
  %v4506 = vpack.c.bf16 %v4468, %v4465
  %v4507 = vpack.c.bf16 %v4476, %v4473
  %v4508 = vpack.c.bf16 %v4484, %v4481
  %v4509 = vpack.c.bf16 %v4492, %v4489
  %v4510 = vpack.c.bf16 %v4500, %v4497
  %4515 = vrot.lane.b32.xlu0 %v4503, 96
  %v4516 = vpop.permute.xlu0 %4515
  %4517 = vrot.lane.b32.xlu0 %v4504, 96
  %v4518 = vpop.permute.xlu0 %4517
  %4519 = vrot.lane.b32.xlu0 %v4505, 96
  %v4520 = vpop.permute.xlu0 %4519
  %4521 = vrot.lane.b32.xlu0 %v4506, 96
  %v4522 = vpop.permute.xlu0 %4521
  %v4524 = vsel %vm84, %v4503, 0
  %v4527 = vsel %vm84, %v4504, 0
  %v4530 = vsel %vm84, %v4505, 0
  %v4533 = vsel %vm84, %v4506, 0
  %v4536 = vsel %vm84, %v4516, 0
  %v4539 = vsel %vm84, %v4518, 0
  %v4542 = vsel %vm84, %v4520, 0
  %v4545 = vsel %vm84, %v4522, 0
  %4547 = vmatprep.subr.bf16.mxu0 0
  %4548 = vmatpush1.bf16.xpose.msra.mxu0 0
  %4549 = vmatprep.subr.bf16.mxu0 0
  %4550 = vmatpush1.bf16.xpose.msra.mxu0 0
  %4551 = vmatprep.subr.bf16.mxu0 0
  %4552 = vmatpush1.bf16.xpose.msra.mxu0 0
  %4553 = vmatprep.subr.bf16.mxu0 0
  %4554 = vmatpush1.bf16.xpose.msra.mxu0 0
  %4555 = vmatprep.subr.bf16.mxu0 0
  %4556 = vmatpush1.bf16.xpose.msra.mxu0 %v4545
  %4557 = vmatprep.subr.bf16.mxu0 0
  %4558 = vmatpush1.bf16.xpose.msra.mxu0 %v4542
  %4559 = vmatprep.subr.bf16.mxu0 0
  %4560 = vmatpush1.bf16.xpose.msra.mxu0 %v4539
  %4561 = vmatprep.subr.bf16.mxu0 0
  %4562 = vmatpush1.bf16.xpose.msra.mxu0 %v4536
  %4563 = vmatprep.subr.bf16.mxu0 0
  %4564 = vmatpush2.bf16.xpose.msra.mxu0 0
  %4565 = vmatprep.subr.bf16.mxu0 0
  %4566 = vmatpush2.bf16.xpose.msra.mxu0 0
  %4567 = vmatprep.subr.bf16.mxu0 0
  %4568 = vmatpush2.bf16.xpose.msra.mxu0 0
  %4569 = vmatprep.subr.bf16.mxu0 0
  %4570 = vmatpush2.bf16.xpose.msra.mxu0 0
  %4571 = vmatprep.subr.bf16.mxu0 0
  %4572 = vmatpush2.bf16.xpose.msra.mxu0 0
  %4573 = vmatprep.subr.bf16.mxu0 0
  %4574 = vmatpush2.bf16.xpose.msra.mxu0 0
  %4575 = vmatprep.subr.bf16.mxu0 0
  %4576 = vmatpush2.bf16.xpose.msra.mxu0 0
  %4577 = vmatprep.subr.bf16.mxu0 0
  %4578 = vmatpush2.bf16.xpose.msra.mxu0 0
  %4579 = vmatprep.mubr.bf16.mxu0 0
  %4580 = vmatmul.mubr.bf16.gmra.mxu0 %v4524
  %v4581 = vpop.f32.mrf.mxu0
  %v4582 = vadd.f32 0.0, %v4581
  %v4583 = vpop.f32.mrf.mxu0
  %v4584 = vpop.f32.mrf.mxu0
  %v4585 = vadd.f32 0.0, %v4584
  %v4586 = vpop.f32.mrf.mxu0
  %4587 = vmatprep.mubr.bf16.mxu0 0
  %4588 = vmatmul.mubr.bf16.gmra.mxu0 %v4527
  %v4589 = vpop.f32.mrf.mxu0
  %v4590 = vadd.f32 0.0, %v4589
  %v4591 = vpop.f32.mrf.mxu0
  %v4592 = vpop.f32.mrf.mxu0
  %v4593 = vadd.f32 0.0, %v4592
  %v4594 = vpop.f32.mrf.mxu0
  %4595 = vmatprep.mubr.bf16.mxu0 0
  %4596 = vmatmul.mubr.bf16.gmra.mxu0 %v4530
  %v4597 = vpop.f32.mrf.mxu0
  %v4598 = vadd.f32 0.0, %v4597
  %v4599 = vpop.f32.mrf.mxu0
  %v4600 = vpop.f32.mrf.mxu0
  %v4601 = vadd.f32 0.0, %v4600
  %v4602 = vpop.f32.mrf.mxu0
  %4603 = vmatprep.mubr.bf16.mxu0 0
  %4604 = vmatmul.mubr.bf16.gmra.mxu0 %v4533
  %v4605 = vpop.f32.mrf.mxu0
  %v4606 = vadd.f32 0.0, %v4605
  %v4607 = vpop.f32.mrf.mxu0
  %v4608 = vpop.f32.mrf.mxu0
  %v4609 = vadd.f32 0.0, %v4608
  %v4610 = vpop.f32.mrf.mxu0
  %4611 = vdwg.mxu0
  %4612 = vrot.lane.b32.xlu0 %v4503, 120
  %v4613 = vpop.permute.xlu0 %4612
  %4614 = vrot.lane.b32.xlu0 %v4504, 120
  %v4615 = vpop.permute.xlu0 %4614
  %4616 = vrot.lane.b32.xlu0 %v4505, 120
  %v4617 = vpop.permute.xlu0 %4616
  %4618 = vrot.lane.b32.xlu0 %v4506, 120
  %v4619 = vpop.permute.xlu0 %4618
  %4620 = vrot.lane.b32.xlu0 %v4503, 88
  %v4621 = vpop.permute.xlu0 %4620
  %4622 = vrot.lane.b32.xlu0 %v4504, 88
  %v4623 = vpop.permute.xlu0 %4622
  %4624 = vrot.lane.b32.xlu0 %v4505, 88
  %v4625 = vpop.permute.xlu0 %4624
  %4626 = vrot.lane.b32.xlu0 %v4506, 88
  %v4627 = vpop.permute.xlu0 %4626
  %v4629 = vsel %vm84, %v4613, 0
  %v4632 = vsel %vm84, %v4615, 0
  %v4635 = vsel %vm84, %v4617, 0
  %v4638 = vsel %vm84, %v4619, 0
  %v4641 = vsel %vm84, %v4621, 0
  %v4644 = vsel %vm84, %v4623, 0
  %v4647 = vsel %vm84, %v4625, 0
  %v4650 = vsel %vm84, %v4627, 0
  %4652 = vmatprep.subr.bf16.mxu0 0
  %4653 = vmatpush1.bf16.xpose.msra.mxu0 0
  %4654 = vmatprep.subr.bf16.mxu0 0
  %4655 = vmatpush1.bf16.xpose.msra.mxu0 0
  %4656 = vmatprep.subr.bf16.mxu0 0
  %4657 = vmatpush1.bf16.xpose.msra.mxu0 0
  %4658 = vmatprep.subr.bf16.mxu0 0
  %4659 = vmatpush1.bf16.xpose.msra.mxu0 0
  %4660 = vmatprep.subr.bf16.mxu0 0
  %4661 = vmatpush1.bf16.xpose.msra.mxu0 %v4650
  %4662 = vmatprep.subr.bf16.mxu0 0
  %4663 = vmatpush1.bf16.xpose.msra.mxu0 %v4647
  %4664 = vmatprep.subr.bf16.mxu0 0
  %4665 = vmatpush1.bf16.xpose.msra.mxu0 %v4644
  %4666 = vmatprep.subr.bf16.mxu0 0
  %4667 = vmatpush1.bf16.xpose.msra.mxu0 %v4641
  %4668 = vmatprep.subr.bf16.mxu0 0
  %4669 = vmatpush2.bf16.xpose.msra.mxu0 0
  %4670 = vmatprep.subr.bf16.mxu0 0
  %4671 = vmatpush2.bf16.xpose.msra.mxu0 0
  %4672 = vmatprep.subr.bf16.mxu0 0
  %4673 = vmatpush2.bf16.xpose.msra.mxu0 0
  %4674 = vmatprep.subr.bf16.mxu0 0
  %4675 = vmatpush2.bf16.xpose.msra.mxu0 0
  %4676 = vmatprep.subr.bf16.mxu0 0
  %4677 = vmatpush2.bf16.xpose.msra.mxu0 0
  %4678 = vmatprep.subr.bf16.mxu0 0
  %4679 = vmatpush2.bf16.xpose.msra.mxu0 0
  %4680 = vmatprep.subr.bf16.mxu0 0
  %4681 = vmatpush2.bf16.xpose.msra.mxu0 0
  %4682 = vmatprep.subr.bf16.mxu0 0
  %4683 = vmatpush2.bf16.xpose.msra.mxu0 0
  %4684 = vmatprep.mubr.bf16.mxu0 0
  %4685 = vmatmul.mubr.bf16.gmra.mxu0 %v4629
  %v4686 = vpop.f32.mrf.mxu0
  %v4687 = vadd.f32 0.0, %v4686
  %v4688 = vpop.f32.mrf.mxu0
  %v4689 = vpop.f32.mrf.mxu0
  %v4690 = vadd.f32 0.0, %v4689
  %v4691 = vpop.f32.mrf.mxu0
  %4692 = vmatprep.mubr.bf16.mxu0 0
  %4693 = vmatmul.mubr.bf16.gmra.mxu0 %v4632
  %v4694 = vpop.f32.mrf.mxu0
  %v4695 = vadd.f32 0.0, %v4694
  %v4696 = vpop.f32.mrf.mxu0
  %v4697 = vpop.f32.mrf.mxu0
  %v4698 = vadd.f32 0.0, %v4697
  %v4699 = vpop.f32.mrf.mxu0
  %4700 = vmatprep.mubr.bf16.mxu0 0
  %4701 = vmatmul.mubr.bf16.gmra.mxu0 %v4635
  %v4702 = vpop.f32.mrf.mxu0
  %v4703 = vadd.f32 0.0, %v4702
  %v4704 = vpop.f32.mrf.mxu0
  %v4705 = vpop.f32.mrf.mxu0
  %v4706 = vadd.f32 0.0, %v4705
  %v4707 = vpop.f32.mrf.mxu0
  %4708 = vmatprep.mubr.bf16.mxu0 0
  %4709 = vmatmul.mubr.bf16.gmra.mxu0 %v4638
  %v4710 = vpop.f32.mrf.mxu0
  %v4711 = vadd.f32 0.0, %v4710
  %v4712 = vpop.f32.mrf.mxu0
  %v4713 = vpop.f32.mrf.mxu0
  %v4714 = vadd.f32 0.0, %v4713
  %v4715 = vpop.f32.mrf.mxu0
  %4716 = vdwg.mxu0
  %4717 = vrot.lane.b32.xlu0 %v4503, 112
  %v4718 = vpop.permute.xlu0 %4717
  %4719 = vrot.lane.b32.xlu0 %v4504, 112
  %v4720 = vpop.permute.xlu0 %4719
  %4721 = vrot.lane.b32.xlu0 %v4505, 112
  %v4722 = vpop.permute.xlu0 %4721
  %4723 = vrot.lane.b32.xlu0 %v4506, 112
  %v4724 = vpop.permute.xlu0 %4723
  %4725 = vrot.lane.b32.xlu0 %v4503, 80
  %v4726 = vpop.permute.xlu0 %4725
  %4727 = vrot.lane.b32.xlu0 %v4504, 80
  %v4728 = vpop.permute.xlu0 %4727
  %4729 = vrot.lane.b32.xlu0 %v4505, 80
  %v4730 = vpop.permute.xlu0 %4729
  %4731 = vrot.lane.b32.xlu0 %v4506, 80
  %v4732 = vpop.permute.xlu0 %4731
  %v4734 = vsel %vm84, %v4718, 0
  %v4737 = vsel %vm84, %v4720, 0
  %v4740 = vsel %vm84, %v4722, 0
  %v4743 = vsel %vm84, %v4724, 0
  %v4746 = vsel %vm84, %v4726, 0
  %v4749 = vsel %vm84, %v4728, 0
  %v4752 = vsel %vm84, %v4730, 0
  %v4755 = vsel %vm84, %v4732, 0
  %4757 = vmatprep.subr.bf16.mxu0 0
  %4758 = vmatpush1.bf16.xpose.msra.mxu0 0
  %4759 = vmatprep.subr.bf16.mxu0 0
  %4760 = vmatpush1.bf16.xpose.msra.mxu0 0
  %4761 = vmatprep.subr.bf16.mxu0 0
  %4762 = vmatpush1.bf16.xpose.msra.mxu0 0
  %4763 = vmatprep.subr.bf16.mxu0 0
  %4764 = vmatpush1.bf16.xpose.msra.mxu0 0
  %4765 = vmatprep.subr.bf16.mxu0 0
  %4766 = vmatpush1.bf16.xpose.msra.mxu0 %v4755
  %4767 = vmatprep.subr.bf16.mxu0 0
  %4768 = vmatpush1.bf16.xpose.msra.mxu0 %v4752
  %4769 = vmatprep.subr.bf16.mxu0 0
  %4770 = vmatpush1.bf16.xpose.msra.mxu0 %v4749
  %4771 = vmatprep.subr.bf16.mxu0 0
  %4772 = vmatpush1.bf16.xpose.msra.mxu0 %v4746
  %4773 = vmatprep.subr.bf16.mxu0 0
  %4774 = vmatpush2.bf16.xpose.msra.mxu0 0
  %4775 = vmatprep.subr.bf16.mxu0 0
  %4776 = vmatpush2.bf16.xpose.msra.mxu0 0
  %4777 = vmatprep.subr.bf16.mxu0 0
  %4778 = vmatpush2.bf16.xpose.msra.mxu0 0
  %4779 = vmatprep.subr.bf16.mxu0 0
  %4780 = vmatpush2.bf16.xpose.msra.mxu0 0
  %4781 = vmatprep.subr.bf16.mxu0 0
  %4782 = vmatpush2.bf16.xpose.msra.mxu0 0
  %4783 = vmatprep.subr.bf16.mxu0 0
  %4784 = vmatpush2.bf16.xpose.msra.mxu0 0
  %4785 = vmatprep.subr.bf16.mxu0 0
  %4786 = vmatpush2.bf16.xpose.msra.mxu0 0
  %4787 = vmatprep.subr.bf16.mxu0 0
  %4788 = vmatpush2.bf16.xpose.msra.mxu0 0
  %4789 = vmatprep.mubr.bf16.mxu0 0
  %4790 = vmatmul.mubr.bf16.gmra.mxu0 %v4734
  %v4791 = vpop.f32.mrf.mxu0
  %v4792 = vadd.f32 0.0, %v4791
  %v4793 = vpop.f32.mrf.mxu0
  %v4794 = vpop.f32.mrf.mxu0
  %v4795 = vadd.f32 0.0, %v4794
  %v4796 = vpop.f32.mrf.mxu0
  %4797 = vmatprep.mubr.bf16.mxu0 0
  %4798 = vmatmul.mubr.bf16.gmra.mxu0 %v4737
  %v4799 = vpop.f32.mrf.mxu0
  %v4800 = vadd.f32 0.0, %v4799
  %v4801 = vpop.f32.mrf.mxu0
  %v4802 = vpop.f32.mrf.mxu0
  %v4803 = vadd.f32 0.0, %v4802
  %v4804 = vpop.f32.mrf.mxu0
  %4805 = vmatprep.mubr.bf16.mxu0 0
  %4806 = vmatmul.mubr.bf16.gmra.mxu0 %v4740
  %v4807 = vpop.f32.mrf.mxu0
  %v4808 = vadd.f32 0.0, %v4807
  %v4809 = vpop.f32.mrf.mxu0
  %v4810 = vpop.f32.mrf.mxu0
  %v4811 = vadd.f32 0.0, %v4810
  %v4812 = vpop.f32.mrf.mxu0
  %4813 = vmatprep.mubr.bf16.mxu0 0
  %4814 = vmatmul.mubr.bf16.gmra.mxu0 %v4743
  %v4815 = vpop.f32.mrf.mxu0
  %v4816 = vadd.f32 0.0, %v4815
  %v4817 = vpop.f32.mrf.mxu0
  %v4818 = vpop.f32.mrf.mxu0
  %v4819 = vadd.f32 0.0, %v4818
  %v4820 = vpop.f32.mrf.mxu0
  %4821 = vdwg.mxu0
  %4822 = vrot.lane.b32.xlu0 %v4503, 104
  %v4823 = vpop.permute.xlu0 %4822
  %4824 = vrot.lane.b32.xlu0 %v4504, 104
  %v4825 = vpop.permute.xlu0 %4824
  %4826 = vrot.lane.b32.xlu0 %v4505, 104
  %v4827 = vpop.permute.xlu0 %4826
  %4828 = vrot.lane.b32.xlu0 %v4506, 104
  %v4829 = vpop.permute.xlu0 %4828
  %4830 = vrot.lane.b32.xlu0 %v4503, 72
  %v4831 = vpop.permute.xlu0 %4830
  %4832 = vrot.lane.b32.xlu0 %v4504, 72
  %v4833 = vpop.permute.xlu0 %4832
  %4834 = vrot.lane.b32.xlu0 %v4505, 72
  %v4835 = vpop.permute.xlu0 %4834
  %4836 = vrot.lane.b32.xlu0 %v4506, 72
  %v4837 = vpop.permute.xlu0 %4836
  %v4839 = vsel %vm84, %v4823, 0
  %v4842 = vsel %vm84, %v4825, 0
  %v4845 = vsel %vm84, %v4827, 0
  %v4848 = vsel %vm84, %v4829, 0
  %v4851 = vsel %vm84, %v4831, 0
  %v4854 = vsel %vm84, %v4833, 0
  %v4857 = vsel %vm84, %v4835, 0
  %v4860 = vsel %vm84, %v4837, 0
  %4862 = vmatprep.subr.bf16.mxu0 0
  %4863 = vmatpush1.bf16.xpose.msra.mxu0 0
  %4864 = vmatprep.subr.bf16.mxu0 0
  %4865 = vmatpush1.bf16.xpose.msra.mxu0 0
  %4866 = vmatprep.subr.bf16.mxu0 0
  %4867 = vmatpush1.bf16.xpose.msra.mxu0 0
  %4868 = vmatprep.subr.bf16.mxu0 0
  %4869 = vmatpush1.bf16.xpose.msra.mxu0 0
  %4870 = vmatprep.subr.bf16.mxu0 0
  %4871 = vmatpush1.bf16.xpose.msra.mxu0 %v4860
  %4872 = vmatprep.subr.bf16.mxu0 0
  %4873 = vmatpush1.bf16.xpose.msra.mxu0 %v4857
  %4874 = vmatprep.subr.bf16.mxu0 0
  %4875 = vmatpush1.bf16.xpose.msra.mxu0 %v4854
  %4876 = vmatprep.subr.bf16.mxu0 0
  %4877 = vmatpush1.bf16.xpose.msra.mxu0 %v4851
  %4878 = vmatprep.subr.bf16.mxu0 0
  %4879 = vmatpush2.bf16.xpose.msra.mxu0 0
  %4880 = vmatprep.subr.bf16.mxu0 0
  %4881 = vmatpush2.bf16.xpose.msra.mxu0 0
  %4882 = vmatprep.subr.bf16.mxu0 0
  %4883 = vmatpush2.bf16.xpose.msra.mxu0 0
  %4884 = vmatprep.subr.bf16.mxu0 0
  %4885 = vmatpush2.bf16.xpose.msra.mxu0 0
  %4886 = vmatprep.subr.bf16.mxu0 0
  %4887 = vmatpush2.bf16.xpose.msra.mxu0 0
  %4888 = vmatprep.subr.bf16.mxu0 0
  %4889 = vmatpush2.bf16.xpose.msra.mxu0 0
  %4890 = vmatprep.subr.bf16.mxu0 0
  %4891 = vmatpush2.bf16.xpose.msra.mxu0 0
  %4892 = vmatprep.subr.bf16.mxu0 0
  %4893 = vmatpush2.bf16.xpose.msra.mxu0 0
  %4894 = vmatprep.mubr.bf16.mxu0 0
  %4895 = vmatmul.mubr.bf16.gmra.mxu0 %v4839
  %v4896 = vpop.f32.mrf.mxu0
  %v4897 = vadd.f32 0.0, %v4896
  %v4898 = vpop.f32.mrf.mxu0
  %v4899 = vpop.f32.mrf.mxu0
  %v4900 = vadd.f32 0.0, %v4899
  %v4901 = vpop.f32.mrf.mxu0
  %4902 = vmatprep.mubr.bf16.mxu0 0
  %4903 = vmatmul.mubr.bf16.gmra.mxu0 %v4842
  %v4904 = vpop.f32.mrf.mxu0
  %v4905 = vadd.f32 0.0, %v4904
  %v4906 = vpop.f32.mrf.mxu0
  %v4907 = vpop.f32.mrf.mxu0
  %v4908 = vadd.f32 0.0, %v4907
  %v4909 = vpop.f32.mrf.mxu0
  %4910 = vmatprep.mubr.bf16.mxu0 0
  %4911 = vmatmul.mubr.bf16.gmra.mxu0 %v4845
  %v4912 = vpop.f32.mrf.mxu0
  %v4913 = vadd.f32 0.0, %v4912
  %v4914 = vpop.f32.mrf.mxu0
  %v4915 = vpop.f32.mrf.mxu0
  %v4916 = vadd.f32 0.0, %v4915
  %v4917 = vpop.f32.mrf.mxu0
  %4918 = vmatprep.mubr.bf16.mxu0 0
  %4919 = vmatmul.mubr.bf16.gmra.mxu0 %v4848
  %v4920 = vpop.f32.mrf.mxu0
  %v4921 = vadd.f32 0.0, %v4920
  %v4922 = vpop.f32.mrf.mxu0
  %v4923 = vpop.f32.mrf.mxu0
  %v4924 = vadd.f32 0.0, %v4923
  %v4925 = vpop.f32.mrf.mxu0
  %4926 = vdwg.mxu0
  %4931 = vrot.lane.b32.xlu0 %v4507, 96
  %v4932 = vpop.permute.xlu0 %4931
  %4933 = vrot.lane.b32.xlu0 %v4508, 96
  %v4934 = vpop.permute.xlu0 %4933
  %4935 = vrot.lane.b32.xlu0 %v4509, 96
  %v4936 = vpop.permute.xlu0 %4935
  %4937 = vrot.lane.b32.xlu0 %v4510, 96
  %v4938 = vpop.permute.xlu0 %4937
  %v4940 = vsel %vm84, %v4507, 0
  %v4943 = vsel %vm84, %v4508, 0
  %v4946 = vsel %vm84, %v4509, 0
  %v4949 = vsel %vm84, %v4510, 0
  %v4952 = vsel %vm84, %v4932, 0
  %v4955 = vsel %vm84, %v4934, 0
  %v4958 = vsel %vm84, %v4936, 0
  %v4961 = vsel %vm84, %v4938, 0
  %4963 = vmatprep.subr.bf16.mxu0 0
  %4964 = vmatpush1.bf16.xpose.msra.mxu0 0
  %4965 = vmatprep.subr.bf16.mxu0 0
  %4966 = vmatpush1.bf16.xpose.msra.mxu0 0
  %4967 = vmatprep.subr.bf16.mxu0 0
  %4968 = vmatpush1.bf16.xpose.msra.mxu0 0
  %4969 = vmatprep.subr.bf16.mxu0 0
  %4970 = vmatpush1.bf16.xpose.msra.mxu0 0
  %4971 = vmatprep.subr.bf16.mxu0 0
  %4972 = vmatpush1.bf16.xpose.msra.mxu0 %v4961
  %4973 = vmatprep.subr.bf16.mxu0 0
  %4974 = vmatpush1.bf16.xpose.msra.mxu0 %v4958
  %4975 = vmatprep.subr.bf16.mxu0 0
  %4976 = vmatpush1.bf16.xpose.msra.mxu0 %v4955
  %4977 = vmatprep.subr.bf16.mxu0 0
  %4978 = vmatpush1.bf16.xpose.msra.mxu0 %v4952
  %4979 = vmatprep.subr.bf16.mxu0 0
  %4980 = vmatpush2.bf16.xpose.msra.mxu0 0
  %4981 = vmatprep.subr.bf16.mxu0 0
  %4982 = vmatpush2.bf16.xpose.msra.mxu0 0
  %4983 = vmatprep.subr.bf16.mxu0 0
  %4984 = vmatpush2.bf16.xpose.msra.mxu0 0
  %4985 = vmatprep.subr.bf16.mxu0 0
  %4986 = vmatpush2.bf16.xpose.msra.mxu0 0
  %4987 = vmatprep.subr.bf16.mxu0 0
  %4988 = vmatpush2.bf16.xpose.msra.mxu0 0
  %4989 = vmatprep.subr.bf16.mxu0 0
  %4990 = vmatpush2.bf16.xpose.msra.mxu0 0
  %4991 = vmatprep.subr.bf16.mxu0 0
  %4992 = vmatpush2.bf16.xpose.msra.mxu0 0
  %4993 = vmatprep.subr.bf16.mxu0 0
  %4994 = vmatpush2.bf16.xpose.msra.mxu0 0
  %4995 = vmatprep.mubr.bf16.mxu0 0
  %4996 = vmatmul.mubr.bf16.gmra.mxu0 %v4940
  %v4997 = vpop.f32.mrf.mxu0
  %v4998 = vadd.f32 0.0, %v4997
  %v4999 = vpop.f32.mrf.mxu0
  %v5000 = vpop.f32.mrf.mxu0
  %v5001 = vadd.f32 0.0, %v5000
  %v5002 = vpop.f32.mrf.mxu0
  %5003 = vmatprep.mubr.bf16.mxu0 0
  %5004 = vmatmul.mubr.bf16.gmra.mxu0 %v4943
  %v5005 = vpop.f32.mrf.mxu0
  %v5006 = vadd.f32 0.0, %v5005
  %v5007 = vpop.f32.mrf.mxu0
  %v5008 = vpop.f32.mrf.mxu0
  %v5009 = vadd.f32 0.0, %v5008
  %v5010 = vpop.f32.mrf.mxu0
  %5011 = vmatprep.mubr.bf16.mxu0 0
  %5012 = vmatmul.mubr.bf16.gmra.mxu0 %v4946
  %v5013 = vpop.f32.mrf.mxu0
  %v5014 = vadd.f32 0.0, %v5013
  %v5015 = vpop.f32.mrf.mxu0
  %v5016 = vpop.f32.mrf.mxu0
  %v5017 = vadd.f32 0.0, %v5016
  %v5018 = vpop.f32.mrf.mxu0
  %5019 = vmatprep.mubr.bf16.mxu0 0
  %5020 = vmatmul.mubr.bf16.gmra.mxu0 %v4949
  %v5021 = vpop.f32.mrf.mxu0
  %v5022 = vadd.f32 0.0, %v5021
  %v5023 = vpop.f32.mrf.mxu0
  %v5024 = vpop.f32.mrf.mxu0
  %v5025 = vadd.f32 0.0, %v5024
  %v5026 = vpop.f32.mrf.mxu0
  %5027 = vdwg.mxu0
  %5028 = vrot.lane.b32.xlu0 %v4507, 120
  %v5029 = vpop.permute.xlu0 %5028
  %5030 = vrot.lane.b32.xlu0 %v4508, 120
  %v5031 = vpop.permute.xlu0 %5030
  %5032 = vrot.lane.b32.xlu0 %v4509, 120
  %v5033 = vpop.permute.xlu0 %5032
  %5034 = vrot.lane.b32.xlu0 %v4510, 120
  %v5035 = vpop.permute.xlu0 %5034
  %5036 = vrot.lane.b32.xlu0 %v4507, 88
  %v5037 = vpop.permute.xlu0 %5036
  %5038 = vrot.lane.b32.xlu0 %v4508, 88
  %v5039 = vpop.permute.xlu0 %5038
  %5040 = vrot.lane.b32.xlu0 %v4509, 88
  %v5041 = vpop.permute.xlu0 %5040
  %5042 = vrot.lane.b32.xlu0 %v4510, 88
  %v5043 = vpop.permute.xlu0 %5042
  %v5045 = vsel %vm84, %v5029, 0
  %v5048 = vsel %vm84, %v5031, 0
  %v5051 = vsel %vm84, %v5033, 0
  %v5054 = vsel %vm84, %v5035, 0
  %v5057 = vsel %vm84, %v5037, 0
  %v5060 = vsel %vm84, %v5039, 0
  %v5063 = vsel %vm84, %v5041, 0
  %v5066 = vsel %vm84, %v5043, 0
  %5068 = vmatprep.subr.bf16.mxu0 0
  %5069 = vmatpush1.bf16.xpose.msra.mxu0 0
  %5070 = vmatprep.subr.bf16.mxu0 0
  %5071 = vmatpush1.bf16.xpose.msra.mxu0 0
  %5072 = vmatprep.subr.bf16.mxu0 0
  %5073 = vmatpush1.bf16.xpose.msra.mxu0 0
  %5074 = vmatprep.subr.bf16.mxu0 0
  %5075 = vmatpush1.bf16.xpose.msra.mxu0 0
  %5076 = vmatprep.subr.bf16.mxu0 0
  %5077 = vmatpush1.bf16.xpose.msra.mxu0 %v5066
  %5078 = vmatprep.subr.bf16.mxu0 0
  %5079 = vmatpush1.bf16.xpose.msra.mxu0 %v5063
  %5080 = vmatprep.subr.bf16.mxu0 0
  %5081 = vmatpush1.bf16.xpose.msra.mxu0 %v5060
  %5082 = vmatprep.subr.bf16.mxu0 0
  %5083 = vmatpush1.bf16.xpose.msra.mxu0 %v5057
  %5084 = vmatprep.subr.bf16.mxu0 0
  %5085 = vmatpush2.bf16.xpose.msra.mxu0 0
  %5086 = vmatprep.subr.bf16.mxu0 0
  %5087 = vmatpush2.bf16.xpose.msra.mxu0 0
  %5088 = vmatprep.subr.bf16.mxu0 0
  %5089 = vmatpush2.bf16.xpose.msra.mxu0 0
  %5090 = vmatprep.subr.bf16.mxu0 0
  %5091 = vmatpush2.bf16.xpose.msra.mxu0 0
  %5092 = vmatprep.subr.bf16.mxu0 0
  %5093 = vmatpush2.bf16.xpose.msra.mxu0 0
  %5094 = vmatprep.subr.bf16.mxu0 0
  %5095 = vmatpush2.bf16.xpose.msra.mxu0 0
  %5096 = vmatprep.subr.bf16.mxu0 0
  %5097 = vmatpush2.bf16.xpose.msra.mxu0 0
  %5098 = vmatprep.subr.bf16.mxu0 0
  %5099 = vmatpush2.bf16.xpose.msra.mxu0 0
  %5100 = vmatprep.mubr.bf16.mxu0 0
  %5101 = vmatmul.mubr.bf16.gmra.mxu0 %v5045
  %v5102 = vpop.f32.mrf.mxu0
  %v5103 = vadd.f32 0.0, %v5102
  %v5104 = vpop.f32.mrf.mxu0
  %v5105 = vpop.f32.mrf.mxu0
  %v5106 = vadd.f32 0.0, %v5105
  %v5107 = vpop.f32.mrf.mxu0
  %5108 = vmatprep.mubr.bf16.mxu0 0
  %5109 = vmatmul.mubr.bf16.gmra.mxu0 %v5048
  %v5110 = vpop.f32.mrf.mxu0
  %v5111 = vadd.f32 0.0, %v5110
  %v5112 = vpop.f32.mrf.mxu0
  %v5113 = vpop.f32.mrf.mxu0
  %v5114 = vadd.f32 0.0, %v5113
  %v5115 = vpop.f32.mrf.mxu0
  %5116 = vmatprep.mubr.bf16.mxu0 0
  %5117 = vmatmul.mubr.bf16.gmra.mxu0 %v5051
  %v5118 = vpop.f32.mrf.mxu0
  %v5119 = vadd.f32 0.0, %v5118
  %v5120 = vpop.f32.mrf.mxu0
  %v5121 = vpop.f32.mrf.mxu0
  %v5122 = vadd.f32 0.0, %v5121
  %v5123 = vpop.f32.mrf.mxu0
  %5124 = vmatprep.mubr.bf16.mxu0 0
  %5125 = vmatmul.mubr.bf16.gmra.mxu0 %v5054
  %v5126 = vpop.f32.mrf.mxu0
  %v5127 = vadd.f32 0.0, %v5126
  %v5128 = vpop.f32.mrf.mxu0
  %v5129 = vpop.f32.mrf.mxu0
  %v5130 = vadd.f32 0.0, %v5129
  %v5131 = vpop.f32.mrf.mxu0
  %5132 = vdwg.mxu0
  %5133 = vrot.lane.b32.xlu0 %v4507, 112
  %v5134 = vpop.permute.xlu0 %5133
  %5135 = vrot.lane.b32.xlu0 %v4508, 112
  %v5136 = vpop.permute.xlu0 %5135
  %5137 = vrot.lane.b32.xlu0 %v4509, 112
  %v5138 = vpop.permute.xlu0 %5137
  %5139 = vrot.lane.b32.xlu0 %v4510, 112
  %v5140 = vpop.permute.xlu0 %5139
  %5141 = vrot.lane.b32.xlu0 %v4507, 80
  %v5142 = vpop.permute.xlu0 %5141
  %5143 = vrot.lane.b32.xlu0 %v4508, 80
  %v5144 = vpop.permute.xlu0 %5143
  %5145 = vrot.lane.b32.xlu0 %v4509, 80
  %v5146 = vpop.permute.xlu0 %5145
  %5147 = vrot.lane.b32.xlu0 %v4510, 80
  %v5148 = vpop.permute.xlu0 %5147
  %v5150 = vsel %vm84, %v5134, 0
  %v5153 = vsel %vm84, %v5136, 0
  %v5156 = vsel %vm84, %v5138, 0
  %v5159 = vsel %vm84, %v5140, 0
  %v5162 = vsel %vm84, %v5142, 0
  %v5165 = vsel %vm84, %v5144, 0
  %v5168 = vsel %vm84, %v5146, 0
  %v5171 = vsel %vm84, %v5148, 0
  %5173 = vmatprep.subr.bf16.mxu0 0
  %5174 = vmatpush1.bf16.xpose.msra.mxu0 0
  %5175 = vmatprep.subr.bf16.mxu0 0
  %5176 = vmatpush1.bf16.xpose.msra.mxu0 0
  %5177 = vmatprep.subr.bf16.mxu0 0
  %5178 = vmatpush1.bf16.xpose.msra.mxu0 0
  %5179 = vmatprep.subr.bf16.mxu0 0
  %5180 = vmatpush1.bf16.xpose.msra.mxu0 0
  %5181 = vmatprep.subr.bf16.mxu0 0
  %5182 = vmatpush1.bf16.xpose.msra.mxu0 %v5171
  %5183 = vmatprep.subr.bf16.mxu0 0
  %5184 = vmatpush1.bf16.xpose.msra.mxu0 %v5168
  %5185 = vmatprep.subr.bf16.mxu0 0
  %5186 = vmatpush1.bf16.xpose.msra.mxu0 %v5165
  %5187 = vmatprep.subr.bf16.mxu0 0
  %5188 = vmatpush1.bf16.xpose.msra.mxu0 %v5162
  %5189 = vmatprep.subr.bf16.mxu0 0
  %5190 = vmatpush2.bf16.xpose.msra.mxu0 0
  %5191 = vmatprep.subr.bf16.mxu0 0
  %5192 = vmatpush2.bf16.xpose.msra.mxu0 0
  %5193 = vmatprep.subr.bf16.mxu0 0
  %5194 = vmatpush2.bf16.xpose.msra.mxu0 0
  %5195 = vmatprep.subr.bf16.mxu0 0
  %5196 = vmatpush2.bf16.xpose.msra.mxu0 0
  %5197 = vmatprep.subr.bf16.mxu0 0
  %5198 = vmatpush2.bf16.xpose.msra.mxu0 0
  %5199 = vmatprep.subr.bf16.mxu0 0
  %5200 = vmatpush2.bf16.xpose.msra.mxu0 0
  %5201 = vmatprep.subr.bf16.mxu0 0
  %5202 = vmatpush2.bf16.xpose.msra.mxu0 0
  %5203 = vmatprep.subr.bf16.mxu0 0
  %5204 = vmatpush2.bf16.xpose.msra.mxu0 0
  %5205 = vmatprep.mubr.bf16.mxu0 0
  %5206 = vmatmul.mubr.bf16.gmra.mxu0 %v5150
  %v5207 = vpop.f32.mrf.mxu0
  %v5208 = vadd.f32 0.0, %v5207
  %v5209 = vpop.f32.mrf.mxu0
  %v5210 = vpop.f32.mrf.mxu0
  %v5211 = vadd.f32 0.0, %v5210
  %v5212 = vpop.f32.mrf.mxu0
  %5213 = vmatprep.mubr.bf16.mxu0 0
  %5214 = vmatmul.mubr.bf16.gmra.mxu0 %v5153
  %v5215 = vpop.f32.mrf.mxu0
  %v5216 = vadd.f32 0.0, %v5215
  %v5217 = vpop.f32.mrf.mxu0
  %v5218 = vpop.f32.mrf.mxu0
  %v5219 = vadd.f32 0.0, %v5218
  %v5220 = vpop.f32.mrf.mxu0
  %5221 = vmatprep.mubr.bf16.mxu0 0
  %5222 = vmatmul.mubr.bf16.gmra.mxu0 %v5156
  %v5223 = vpop.f32.mrf.mxu0
  %v5224 = vadd.f32 0.0, %v5223
  %v5225 = vpop.f32.mrf.mxu0
  %v5226 = vpop.f32.mrf.mxu0
  %v5227 = vadd.f32 0.0, %v5226
  %v5228 = vpop.f32.mrf.mxu0
  %5229 = vmatprep.mubr.bf16.mxu0 0
  %5230 = vmatmul.mubr.bf16.gmra.mxu0 %v5159
  %v5231 = vpop.f32.mrf.mxu0
  %v5232 = vadd.f32 0.0, %v5231
  %v5233 = vpop.f32.mrf.mxu0
  %v5234 = vpop.f32.mrf.mxu0
  %v5235 = vadd.f32 0.0, %v5234
  %v5236 = vpop.f32.mrf.mxu0
  %5237 = vdwg.mxu0
  %5238 = vrot.lane.b32.xlu0 %v4507, 104
  %v5239 = vpop.permute.xlu0 %5238
  %5240 = vrot.lane.b32.xlu0 %v4508, 104
  %v5241 = vpop.permute.xlu0 %5240
  %5242 = vrot.lane.b32.xlu0 %v4509, 104
  %v5243 = vpop.permute.xlu0 %5242
  %5244 = vrot.lane.b32.xlu0 %v4510, 104
  %v5245 = vpop.permute.xlu0 %5244
  %5246 = vrot.lane.b32.xlu0 %v4507, 72
  %v5247 = vpop.permute.xlu0 %5246
  %5248 = vrot.lane.b32.xlu0 %v4508, 72
  %v5249 = vpop.permute.xlu0 %5248
  %5250 = vrot.lane.b32.xlu0 %v4509, 72
  %v5251 = vpop.permute.xlu0 %5250
  %5252 = vrot.lane.b32.xlu0 %v4510, 72
  %v5253 = vpop.permute.xlu0 %5252
  %v5255 = vsel %vm84, %v5239, 0
  %v5258 = vsel %vm84, %v5241, 0
  %v5261 = vsel %vm84, %v5243, 0
  %v5264 = vsel %vm84, %v5245, 0
  %v5267 = vsel %vm84, %v5247, 0
  %v5270 = vsel %vm84, %v5249, 0
  %v5273 = vsel %vm84, %v5251, 0
  %v5276 = vsel %vm84, %v5253, 0
  %5278 = vmatprep.subr.bf16.mxu0 0
  %5279 = vmatpush1.bf16.xpose.msra.mxu0 0
  %5280 = vmatprep.subr.bf16.mxu0 0
  %5281 = vmatpush1.bf16.xpose.msra.mxu0 0
  %5282 = vmatprep.subr.bf16.mxu0 0
  %5283 = vmatpush1.bf16.xpose.msra.mxu0 0
  %5284 = vmatprep.subr.bf16.mxu0 0
  %5285 = vmatpush1.bf16.xpose.msra.mxu0 0
  %5286 = vmatprep.subr.bf16.mxu0 0
  %5287 = vmatpush1.bf16.xpose.msra.mxu0 %v5276
  %5288 = vmatprep.subr.bf16.mxu0 0
  %5289 = vmatpush1.bf16.xpose.msra.mxu0 %v5273
  %5290 = vmatprep.subr.bf16.mxu0 0
  %5291 = vmatpush1.bf16.xpose.msra.mxu0 %v5270
  %5292 = vmatprep.subr.bf16.mxu0 0
  %5293 = vmatpush1.bf16.xpose.msra.mxu0 %v5267
  %5294 = vmatprep.subr.bf16.mxu0 0
  %5295 = vmatpush2.bf16.xpose.msra.mxu0 0
  %5296 = vmatprep.subr.bf16.mxu0 0
  %5297 = vmatpush2.bf16.xpose.msra.mxu0 0
  %5298 = vmatprep.subr.bf16.mxu0 0
  %5299 = vmatpush2.bf16.xpose.msra.mxu0 0
  %5300 = vmatprep.subr.bf16.mxu0 0
  %5301 = vmatpush2.bf16.xpose.msra.mxu0 0
  %5302 = vmatprep.subr.bf16.mxu0 0
  %5303 = vmatpush2.bf16.xpose.msra.mxu0 0
  %5304 = vmatprep.subr.bf16.mxu0 0
  %5305 = vmatpush2.bf16.xpose.msra.mxu0 0
  %5306 = vmatprep.subr.bf16.mxu0 0
  %5307 = vmatpush2.bf16.xpose.msra.mxu0 0
  %5308 = vmatprep.subr.bf16.mxu0 0
  %5309 = vmatpush2.bf16.xpose.msra.mxu0 0
  %5310 = vmatprep.mubr.bf16.mxu0 0
  %5311 = vmatmul.mubr.bf16.gmra.mxu0 %v5255
  %v5312 = vpop.f32.mrf.mxu0
  %v5313 = vadd.f32 0.0, %v5312
  %v5314 = vpop.f32.mrf.mxu0
  %v5315 = vpop.f32.mrf.mxu0
  %v5316 = vadd.f32 0.0, %v5315
  %v5317 = vpop.f32.mrf.mxu0
  %5318 = vmatprep.mubr.bf16.mxu0 0
  %5319 = vmatmul.mubr.bf16.gmra.mxu0 %v5258
  %v5320 = vpop.f32.mrf.mxu0
  %v5321 = vadd.f32 0.0, %v5320
  %v5322 = vpop.f32.mrf.mxu0
  %v5323 = vpop.f32.mrf.mxu0
  %v5324 = vadd.f32 0.0, %v5323
  %v5325 = vpop.f32.mrf.mxu0
  %5326 = vmatprep.mubr.bf16.mxu0 0
  %5327 = vmatmul.mubr.bf16.gmra.mxu0 %v5261
  %v5328 = vpop.f32.mrf.mxu0
  %v5329 = vadd.f32 0.0, %v5328
  %v5330 = vpop.f32.mrf.mxu0
  %v5331 = vpop.f32.mrf.mxu0
  %v5332 = vadd.f32 0.0, %v5331
  %v5333 = vpop.f32.mrf.mxu0
  %5334 = vmatprep.mubr.bf16.mxu0 0
  %5335 = vmatmul.mubr.bf16.gmra.mxu0 %v5264
  %v5336 = vpop.f32.mrf.mxu0
  %v5337 = vadd.f32 0.0, %v5336
  %v5338 = vpop.f32.mrf.mxu0
  %v5339 = vpop.f32.mrf.mxu0
  %v5340 = vadd.f32 0.0, %v5339
  %v5341 = vpop.f32.mrf.mxu0
  %5342 = vdwg.mxu0
  %v5343 = vadd.f32 %v4582, %v258
  %v5344 = vadd.f32 %v4585, %v259
  %v5345 = vadd.f32 %v4590, %v260
  %v5346 = vadd.f32 %v4593, %v261
  %v5347 = vadd.f32 %v4598, %v262
  %v5348 = vadd.f32 %v4601, %v263
  %v5349 = vadd.f32 %v4606, %v264
  %v5350 = vadd.f32 %v4609, %v265
  %v5351 = vadd.f32 %v4687, %v266
  %v5352 = vadd.f32 %v4690, %v267
  %v5353 = vadd.f32 %v4695, %v268
  %v5354 = vadd.f32 %v4698, %v269
  %v5355 = vadd.f32 %v4703, %v270
  %v5356 = vadd.f32 %v4706, %v271
  %v5357 = vadd.f32 %v4711, %v272
  %v5358 = vadd.f32 %v4714, %v273
  %v5359 = vadd.f32 %v4792, %v274
  %v5360 = vadd.f32 %v4795, %v275
  %v5361 = vadd.f32 %v4800, %v276
  %v5362 = vadd.f32 %v4803, %v277
  %v5363 = vadd.f32 %v4808, %v278
  %v5364 = vadd.f32 %v4811, %v279
  %v5365 = vadd.f32 %v4816, %v280
  %v5366 = vadd.f32 %v4819, %v281
  %v5367 = vadd.f32 %v4897, %v282
  %v5368 = vadd.f32 %v4900, %v283
  %v5369 = vadd.f32 %v4905, %v284
  %v5370 = vadd.f32 %v4908, %v285
  %v5371 = vadd.f32 %v4913, %v286
  %v5372 = vadd.f32 %v4916, %v287
  %v5373 = vadd.f32 %v4921, %v288
  %v5374 = vadd.f32 %v4924, %v289
  %v5375 = vadd.f32 %v4998, %v290
  %v5376 = vadd.f32 %v5001, %v291
  %v5377 = vadd.f32 %v5006, %v292
  %v5378 = vadd.f32 %v5009, %v293
  %v5379 = vadd.f32 %v5014, %v294
  %v5380 = vadd.f32 %v5017, %v295
  %v5381 = vadd.f32 %v5022, %v296
  %v5382 = vadd.f32 %v5025, %v297
  %v5383 = vadd.f32 %v5103, %v298
  %v5384 = vadd.f32 %v5106, %v299
  %v5385 = vadd.f32 %v5111, %v300
  %v5386 = vadd.f32 %v5114, %v301
  %v5387 = vadd.f32 %v5119, %v302
  %v5388 = vadd.f32 %v5122, %v303
  %v5389 = vadd.f32 %v5127, %v304
  %v5390 = vadd.f32 %v5130, %v305
  %v5391 = vadd.f32 %v5208, %v306
  %v5392 = vadd.f32 %v5211, %v307
  %v5393 = vadd.f32 %v5216, %v308
  %v5394 = vadd.f32 %v5219, %v309
  %v5395 = vadd.f32 %v5224, %v310
  %v5396 = vadd.f32 %v5227, %v311
  %v5397 = vadd.f32 %v5232, %v312
  %v5398 = vadd.f32 %v5235, %v313
  %v5399 = vadd.f32 %v5313, %v314
  %v5400 = vadd.f32 %v5316, %v315
  %v5401 = vadd.f32 %v5321, %v316
  %v5402 = vadd.f32 %v5324, %v317
  %v5403 = vadd.f32 %v5329, %v318
  %v5404 = vadd.f32 %v5332, %v319
  %v5405 = vadd.f32 %v5337, %v320
  %v5406 = vadd.f32 %v5340, %v321
  %v5407 = vsel %vm1373, %v5343, -inf
  %5408 = vmax.xlane.f32.xlu0 %v5407
  %v5409 = vpop.xlane.xlu0 %5408
  %v5410 = vsel %vm1373, %v5344, -inf
  %5411 = vmax.xlane.f32.xlu0 %v5410
  %v5412 = vpop.xlane.xlu0 %5411
  %v5413 = vsel %vm1373, %v5345, -inf
  %5414 = vmax.xlane.f32.xlu0 %v5413
  %v5415 = vpop.xlane.xlu0 %5414
  %v5416 = vsel %vm1373, %v5346, -inf
  %5417 = vmax.xlane.f32.xlu0 %v5416
  %v5418 = vpop.xlane.xlu0 %5417
  %v5419 = vsel %vm1373, %v5347, -inf
  %5420 = vmax.xlane.f32.xlu0 %v5419
  %v5421 = vpop.xlane.xlu0 %5420
  %v5422 = vsel %vm1373, %v5348, -inf
  %5423 = vmax.xlane.f32.xlu0 %v5422
  %v5424 = vpop.xlane.xlu0 %5423
  %v5425 = vsel %vm1373, %v5349, -inf
  %5426 = vmax.xlane.f32.xlu0 %v5425
  %v5427 = vpop.xlane.xlu0 %5426
  %v5428 = vsel %vm1373, %v5350, -inf
  %5429 = vmax.xlane.f32.xlu0 %v5428
  %v5430 = vpop.xlane.xlu0 %5429
  %v5431 = vsel %vm1373, %v5351, -inf
  %5432 = vmax.xlane.f32.xlu0 %v5431
  %v5433 = vpop.xlane.xlu0 %5432
  %v5434 = vsel %vm1373, %v5352, -inf
  %5435 = vmax.xlane.f32.xlu0 %v5434
  %v5436 = vpop.xlane.xlu0 %5435
  %v5437 = vsel %vm1373, %v5353, -inf
  %5438 = vmax.xlane.f32.xlu0 %v5437
  %v5439 = vpop.xlane.xlu0 %5438
  %v5440 = vsel %vm1373, %v5354, -inf
  %5441 = vmax.xlane.f32.xlu0 %v5440
  %v5442 = vpop.xlane.xlu0 %5441
  %v5443 = vsel %vm1373, %v5355, -inf
  %5444 = vmax.xlane.f32.xlu0 %v5443
  %v5445 = vpop.xlane.xlu0 %5444
  %v5446 = vsel %vm1373, %v5356, -inf
  %5447 = vmax.xlane.f32.xlu0 %v5446
  %v5448 = vpop.xlane.xlu0 %5447
  %v5449 = vsel %vm1373, %v5357, -inf
  %5450 = vmax.xlane.f32.xlu0 %v5449
  %v5451 = vpop.xlane.xlu0 %5450
  %v5452 = vsel %vm1373, %v5358, -inf
  %5453 = vmax.xlane.f32.xlu0 %v5452
  %v5454 = vpop.xlane.xlu0 %5453
  %v5455 = vsel %vm1373, %v5359, -inf
  %5456 = vmax.xlane.f32.xlu0 %v5455
  %v5457 = vpop.xlane.xlu0 %5456
  %v5458 = vsel %vm1373, %v5360, -inf
  %5459 = vmax.xlane.f32.xlu0 %v5458
  %v5460 = vpop.xlane.xlu0 %5459
  %v5461 = vsel %vm1373, %v5361, -inf
  %5462 = vmax.xlane.f32.xlu0 %v5461
  %v5463 = vpop.xlane.xlu0 %5462
  %v5464 = vsel %vm1373, %v5362, -inf
  %5465 = vmax.xlane.f32.xlu0 %v5464
  %v5466 = vpop.xlane.xlu0 %5465
  %v5467 = vsel %vm1373, %v5363, -inf
  %5468 = vmax.xlane.f32.xlu0 %v5467
  %v5469 = vpop.xlane.xlu0 %5468
  %v5470 = vsel %vm1373, %v5364, -inf
  %5471 = vmax.xlane.f32.xlu0 %v5470
  %v5472 = vpop.xlane.xlu0 %5471
  %v5473 = vsel %vm1373, %v5365, -inf
  %5474 = vmax.xlane.f32.xlu0 %v5473
  %v5475 = vpop.xlane.xlu0 %5474
  %v5476 = vsel %vm1373, %v5366, -inf
  %5477 = vmax.xlane.f32.xlu0 %v5476
  %v5478 = vpop.xlane.xlu0 %5477
  %v5479 = vsel %vm1373, %v5367, -inf
  %5480 = vmax.xlane.f32.xlu0 %v5479
  %v5481 = vpop.xlane.xlu0 %5480
  %v5482 = vsel %vm1373, %v5368, -inf
  %5483 = vmax.xlane.f32.xlu0 %v5482
  %v5484 = vpop.xlane.xlu0 %5483
  %v5485 = vsel %vm1373, %v5369, -inf
  %5486 = vmax.xlane.f32.xlu0 %v5485
  %v5487 = vpop.xlane.xlu0 %5486
  %v5488 = vsel %vm1373, %v5370, -inf
  %5489 = vmax.xlane.f32.xlu0 %v5488
  %v5490 = vpop.xlane.xlu0 %5489
  %v5491 = vsel %vm1373, %v5371, -inf
  %5492 = vmax.xlane.f32.xlu0 %v5491
  %v5493 = vpop.xlane.xlu0 %5492
  %v5494 = vsel %vm1373, %v5372, -inf
  %5495 = vmax.xlane.f32.xlu0 %v5494
  %v5496 = vpop.xlane.xlu0 %5495
  %v5497 = vsel %vm1373, %v5373, -inf
  %5498 = vmax.xlane.f32.xlu0 %v5497
  %v5499 = vpop.xlane.xlu0 %5498
  %v5500 = vsel %vm1373, %v5374, -inf
  %5501 = vmax.xlane.f32.xlu0 %v5500
  %v5502 = vpop.xlane.xlu0 %5501
  %v5503 = vsel %vm1373, %v5375, -inf
  %5504 = vmax.xlane.f32.xlu0 %v5503
  %v5505 = vpop.xlane.xlu0 %5504
  %v5506 = vsel %vm1373, %v5376, -inf
  %5507 = vmax.xlane.f32.xlu0 %v5506
  %v5508 = vpop.xlane.xlu0 %5507
  %v5509 = vsel %vm1373, %v5377, -inf
  %5510 = vmax.xlane.f32.xlu0 %v5509
  %v5511 = vpop.xlane.xlu0 %5510
  %v5512 = vsel %vm1373, %v5378, -inf
  %5513 = vmax.xlane.f32.xlu0 %v5512
  %v5514 = vpop.xlane.xlu0 %5513
  %v5515 = vsel %vm1373, %v5379, -inf
  %5516 = vmax.xlane.f32.xlu0 %v5515
  %v5517 = vpop.xlane.xlu0 %5516
  %v5518 = vsel %vm1373, %v5380, -inf
  %5519 = vmax.xlane.f32.xlu0 %v5518
  %v5520 = vpop.xlane.xlu0 %5519
  %v5521 = vsel %vm1373, %v5381, -inf
  %5522 = vmax.xlane.f32.xlu0 %v5521
  %v5523 = vpop.xlane.xlu0 %5522
  %v5524 = vsel %vm1373, %v5382, -inf
  %5525 = vmax.xlane.f32.xlu0 %v5524
  %v5526 = vpop.xlane.xlu0 %5525
  %v5527 = vsel %vm1373, %v5383, -inf
  %5528 = vmax.xlane.f32.xlu0 %v5527
  %v5529 = vpop.xlane.xlu0 %5528
  %v5530 = vsel %vm1373, %v5384, -inf
  %5531 = vmax.xlane.f32.xlu0 %v5530
  %v5532 = vpop.xlane.xlu0 %5531
  %v5533 = vsel %vm1373, %v5385, -inf
  %5534 = vmax.xlane.f32.xlu0 %v5533
  %v5535 = vpop.xlane.xlu0 %5534
  %v5536 = vsel %vm1373, %v5386, -inf
  %5537 = vmax.xlane.f32.xlu0 %v5536
  %v5538 = vpop.xlane.xlu0 %5537
  %v5539 = vsel %vm1373, %v5387, -inf
  %5540 = vmax.xlane.f32.xlu0 %v5539
  %v5541 = vpop.xlane.xlu0 %5540
  %v5542 = vsel %vm1373, %v5388, -inf
  %5543 = vmax.xlane.f32.xlu0 %v5542
  %v5544 = vpop.xlane.xlu0 %5543
  %v5545 = vsel %vm1373, %v5389, -inf
  %5546 = vmax.xlane.f32.xlu0 %v5545
  %v5547 = vpop.xlane.xlu0 %5546
  %v5548 = vsel %vm1373, %v5390, -inf
  %5549 = vmax.xlane.f32.xlu0 %v5548
  %v5550 = vpop.xlane.xlu0 %5549
  %v5551 = vsel %vm1373, %v5391, -inf
  %5552 = vmax.xlane.f32.xlu0 %v5551
  %v5553 = vpop.xlane.xlu0 %5552
  %v5554 = vsel %vm1373, %v5392, -inf
  %5555 = vmax.xlane.f32.xlu0 %v5554
  %v5556 = vpop.xlane.xlu0 %5555
  %v5557 = vsel %vm1373, %v5393, -inf
  %5558 = vmax.xlane.f32.xlu0 %v5557
  %v5559 = vpop.xlane.xlu0 %5558
  %v5560 = vsel %vm1373, %v5394, -inf
  %5561 = vmax.xlane.f32.xlu0 %v5560
  %v5562 = vpop.xlane.xlu0 %5561
  %v5563 = vsel %vm1373, %v5395, -inf
  %5564 = vmax.xlane.f32.xlu0 %v5563
  %v5565 = vpop.xlane.xlu0 %5564
  %v5566 = vsel %vm1373, %v5396, -inf
  %5567 = vmax.xlane.f32.xlu0 %v5566
  %v5568 = vpop.xlane.xlu0 %5567
  %v5569 = vsel %vm1373, %v5397, -inf
  %5570 = vmax.xlane.f32.xlu0 %v5569
  %v5571 = vpop.xlane.xlu0 %5570
  %v5572 = vsel %vm1373, %v5398, -inf
  %5573 = vmax.xlane.f32.xlu0 %v5572
  %v5574 = vpop.xlane.xlu0 %5573
  %v5575 = vsel %vm1373, %v5399, -inf
  %5576 = vmax.xlane.f32.xlu0 %v5575
  %v5577 = vpop.xlane.xlu0 %5576
  %v5578 = vsel %vm1373, %v5400, -inf
  %5579 = vmax.xlane.f32.xlu0 %v5578
  %v5580 = vpop.xlane.xlu0 %5579
  %v5581 = vsel %vm1373, %v5401, -inf
  %5582 = vmax.xlane.f32.xlu0 %v5581
  %v5583 = vpop.xlane.xlu0 %5582
  %v5584 = vsel %vm1373, %v5402, -inf
  %5585 = vmax.xlane.f32.xlu0 %v5584
  %v5586 = vpop.xlane.xlu0 %5585
  %v5587 = vsel %vm1373, %v5403, -inf
  %5588 = vmax.xlane.f32.xlu0 %v5587
  %v5589 = vpop.xlane.xlu0 %5588
  %v5590 = vsel %vm1373, %v5404, -inf
  %5591 = vmax.xlane.f32.xlu0 %v5590
  %v5592 = vpop.xlane.xlu0 %5591
  %v5593 = vsel %vm1373, %v5405, -inf
  %5594 = vmax.xlane.f32.xlu0 %v5593
  %v5595 = vpop.xlane.xlu0 %5594
  %v5596 = vsel %vm1373, %v5406, -inf
  %5597 = vmax.xlane.f32.xlu0 %v5596
  %v5598 = vpop.xlane.xlu0 %5597
  %v5599 = vsub.f32 %v5343, %v5409
  %v5600 = vsub.f32 %v5344, %v5412
  %v5601 = vsub.f32 %v5345, %v5415
  %v5602 = vsub.f32 %v5346, %v5418
  %v5603 = vsub.f32 %v5347, %v5421
  %v5604 = vsub.f32 %v5348, %v5424
  %v5605 = vsub.f32 %v5349, %v5427
  %v5606 = vsub.f32 %v5350, %v5430
  %v5607 = vsub.f32 %v5351, %v5433
  %v5608 = vsub.f32 %v5352, %v5436
  %v5609 = vsub.f32 %v5353, %v5439
  %v5610 = vsub.f32 %v5354, %v5442
  %v5611 = vsub.f32 %v5355, %v5445
  %v5612 = vsub.f32 %v5356, %v5448
  %v5613 = vsub.f32 %v5357, %v5451
  %v5614 = vsub.f32 %v5358, %v5454
  %v5615 = vsub.f32 %v5359, %v5457
  %v5616 = vsub.f32 %v5360, %v5460
  %v5617 = vsub.f32 %v5361, %v5463
  %v5618 = vsub.f32 %v5362, %v5466
  %v5619 = vsub.f32 %v5363, %v5469
  %v5620 = vsub.f32 %v5364, %v5472
  %v5621 = vsub.f32 %v5365, %v5475
  %v5622 = vsub.f32 %v5366, %v5478
  %v5623 = vsub.f32 %v5367, %v5481
  %v5624 = vsub.f32 %v5368, %v5484
  %v5625 = vsub.f32 %v5369, %v5487
  %v5626 = vsub.f32 %v5370, %v5490
  %v5627 = vsub.f32 %v5371, %v5493
  %v5628 = vsub.f32 %v5372, %v5496
  %v5629 = vsub.f32 %v5373, %v5499
  %v5630 = vsub.f32 %v5374, %v5502
  %v5631 = vsub.f32 %v5375, %v5505
  %v5632 = vsub.f32 %v5376, %v5508
  %v5633 = vsub.f32 %v5377, %v5511
  %v5634 = vsub.f32 %v5378, %v5514
  %v5635 = vsub.f32 %v5379, %v5517
  %v5636 = vsub.f32 %v5380, %v5520
  %v5637 = vsub.f32 %v5381, %v5523
  %v5638 = vsub.f32 %v5382, %v5526
  %v5639 = vsub.f32 %v5383, %v5529
  %v5640 = vsub.f32 %v5384, %v5532
  %v5641 = vsub.f32 %v5385, %v5535
  %v5642 = vsub.f32 %v5386, %v5538
  %v5643 = vsub.f32 %v5387, %v5541
  %v5644 = vsub.f32 %v5388, %v5544
  %v5645 = vsub.f32 %v5389, %v5547
  %v5646 = vsub.f32 %v5390, %v5550
  %v5647 = vsub.f32 %v5391, %v5553
  %v5648 = vsub.f32 %v5392, %v5556
  %v5649 = vsub.f32 %v5393, %v5559
  %v5650 = vsub.f32 %v5394, %v5562
  %v5651 = vsub.f32 %v5395, %v5565
  %v5652 = vsub.f32 %v5396, %v5568
  %v5653 = vsub.f32 %v5397, %v5571
  %v5654 = vsub.f32 %v5398, %v5574
  %v5655 = vsub.f32 %v5399, %v5577
  %v5656 = vsub.f32 %v5400, %v5580
  %v5657 = vsub.f32 %v5401, %v5583
  %v5658 = vsub.f32 %v5402, %v5586
  %v5659 = vsub.f32 %v5403, %v5589
  %v5660 = vsub.f32 %v5404, %v5592
  %v5661 = vsub.f32 %v5405, %v5595
  %v5662 = vsub.f32 %v5406, %v5598
  %v5663 = vmul.f32 %v5599, 1.442695
  %v5664 = vpow.pop %v5663
  %v5665 = vmul.f32 %v5600, 1.442695
  %v5666 = vpow.pop %v5665
  %v5667 = vmul.f32 %v5601, 1.442695
  %v5668 = vpow.pop %v5667
  %v5669 = vmul.f32 %v5602, 1.442695
  %v5670 = vpow.pop %v5669
  %v5671 = vmul.f32 %v5603, 1.442695
  %v5672 = vpow.pop %v5671
  %v5673 = vmul.f32 %v5604, 1.442695
  %v5674 = vpow.pop %v5673
  %v5675 = vmul.f32 %v5605, 1.442695
  %v5676 = vpow.pop %v5675
  %v5677 = vmul.f32 %v5606, 1.442695
  %v5678 = vpow.pop %v5677
  %v5679 = vmul.f32 %v5607, 1.442695
  %v5680 = vpow.pop %v5679
  %v5681 = vmul.f32 %v5608, 1.442695
  %v5682 = vpow.pop %v5681
  %v5683 = vmul.f32 %v5609, 1.442695
  %v5684 = vpow.pop %v5683
  %v5685 = vmul.f32 %v5610, 1.442695
  %v5686 = vpow.pop %v5685
  %v5687 = vmul.f32 %v5611, 1.442695
  %v5688 = vpow.pop %v5687
  %v5689 = vmul.f32 %v5612, 1.442695
  %v5690 = vpow.pop %v5689
  %v5691 = vmul.f32 %v5613, 1.442695
  %v5692 = vpow.pop %v5691
  %v5693 = vmul.f32 %v5614, 1.442695
  %v5694 = vpow.pop %v5693
  %v5695 = vmul.f32 %v5615, 1.442695
  %v5696 = vpow.pop %v5695
  %v5697 = vmul.f32 %v5616, 1.442695
  %v5698 = vpow.pop %v5697
  %v5699 = vmul.f32 %v5617, 1.442695
  %v5700 = vpow.pop %v5699
  %v5701 = vmul.f32 %v5618, 1.442695
  %v5702 = vpow.pop %v5701
  %v5703 = vmul.f32 %v5619, 1.442695
  %v5704 = vpow.pop %v5703
  %v5705 = vmul.f32 %v5620, 1.442695
  %v5706 = vpow.pop %v5705
  %v5707 = vmul.f32 %v5621, 1.442695
  %v5708 = vpow.pop %v5707
  %v5709 = vmul.f32 %v5622, 1.442695
  %v5710 = vpow.pop %v5709
  %v5711 = vmul.f32 %v5623, 1.442695
  %v5712 = vpow.pop %v5711
  %v5713 = vmul.f32 %v5624, 1.442695
  %v5714 = vpow.pop %v5713
  %v5715 = vmul.f32 %v5625, 1.442695
  %v5716 = vpow.pop %v5715
  %v5717 = vmul.f32 %v5626, 1.442695
  %v5718 = vpow.pop %v5717
  %v5719 = vmul.f32 %v5627, 1.442695
  %v5720 = vpow.pop %v5719
  %v5721 = vmul.f32 %v5628, 1.442695
  %v5722 = vpow.pop %v5721
  %v5723 = vmul.f32 %v5629, 1.442695
  %v5724 = vpow.pop %v5723
  %v5725 = vmul.f32 %v5630, 1.442695
  %v5726 = vpow.pop %v5725
  %v5727 = vmul.f32 %v5631, 1.442695
  %v5728 = vpow.pop %v5727
  %v5729 = vmul.f32 %v5632, 1.442695
  %v5730 = vpow.pop %v5729
  %v5731 = vmul.f32 %v5633, 1.442695
  %v5732 = vpow.pop %v5731
  %v5733 = vmul.f32 %v5634, 1.442695
  %v5734 = vpow.pop %v5733
  %v5735 = vmul.f32 %v5635, 1.442695
  %v5736 = vpow.pop %v5735
  %v5737 = vmul.f32 %v5636, 1.442695
  %v5738 = vpow.pop %v5737
  %v5739 = vmul.f32 %v5637, 1.442695
  %v5740 = vpow.pop %v5739
  %v5741 = vmul.f32 %v5638, 1.442695
  %v5742 = vpow.pop %v5741
  %v5743 = vmul.f32 %v5639, 1.442695
  %v5744 = vpow.pop %v5743
  %v5745 = vmul.f32 %v5640, 1.442695
  %v5746 = vpow.pop %v5745
  %v5747 = vmul.f32 %v5641, 1.442695
  %v5748 = vpow.pop %v5747
  %v5749 = vmul.f32 %v5642, 1.442695
  %v5750 = vpow.pop %v5749
  %v5751 = vmul.f32 %v5643, 1.442695
  %v5752 = vpow.pop %v5751
  %v5753 = vmul.f32 %v5644, 1.442695
  %v5754 = vpow.pop %v5753
  %v5755 = vmul.f32 %v5645, 1.442695
  %v5756 = vpow.pop %v5755
  %v5757 = vmul.f32 %v5646, 1.442695
  %v5758 = vpow.pop %v5757
  %v5759 = vmul.f32 %v5647, 1.442695
  %v5760 = vpow.pop %v5759
  %v5761 = vmul.f32 %v5648, 1.442695
  %v5762 = vpow.pop %v5761
  %v5763 = vmul.f32 %v5649, 1.442695
  %v5764 = vpow.pop %v5763
  %v5765 = vmul.f32 %v5650, 1.442695
  %v5766 = vpow.pop %v5765
  %v5767 = vmul.f32 %v5651, 1.442695
  %v5768 = vpow.pop %v5767
  %v5769 = vmul.f32 %v5652, 1.442695
  %v5770 = vpow.pop %v5769
  %v5771 = vmul.f32 %v5653, 1.442695
  %v5772 = vpow.pop %v5771
  %v5773 = vmul.f32 %v5654, 1.442695
  %v5774 = vpow.pop %v5773
  %v5775 = vmul.f32 %v5655, 1.442695
  %v5776 = vpow.pop %v5775
  %v5777 = vmul.f32 %v5656, 1.442695
  %v5778 = vpow.pop %v5777
  %v5779 = vmul.f32 %v5657, 1.442695
  %v5780 = vpow.pop %v5779
  %v5781 = vmul.f32 %v5658, 1.442695
  %v5782 = vpow.pop %v5781
  %v5783 = vmul.f32 %v5659, 1.442695
  %v5784 = vpow.pop %v5783
  %v5785 = vmul.f32 %v5660, 1.442695
  %v5786 = vpow.pop %v5785
  %v5787 = vmul.f32 %v5661, 1.442695
  %v5788 = vpow.pop %v5787
  %v5789 = vmul.f32 %v5662, 1.442695
  %v5790 = vpow.pop %v5789
  %v5791 = vsel %vm1373, %v5664, 0.0
  %5792 = vadd.xlane.f32.xlu0 %v5791
  %v5793 = vpop.xlane.xlu0 %5792
  %v5794 = vsel %vm1373, %v5666, 0.0
  %5795 = vadd.xlane.f32.xlu0 %v5794
  %v5796 = vpop.xlane.xlu0 %5795
  %v5797 = vsel %vm1373, %v5668, 0.0
  %5798 = vadd.xlane.f32.xlu0 %v5797
  %v5799 = vpop.xlane.xlu0 %5798
  %v5800 = vsel %vm1373, %v5670, 0.0
  %5801 = vadd.xlane.f32.xlu0 %v5800
  %v5802 = vpop.xlane.xlu0 %5801
  %v5803 = vsel %vm1373, %v5672, 0.0
  %5804 = vadd.xlane.f32.xlu0 %v5803
  %v5805 = vpop.xlane.xlu0 %5804
  %v5806 = vsel %vm1373, %v5674, 0.0
  %5807 = vadd.xlane.f32.xlu0 %v5806
  %v5808 = vpop.xlane.xlu0 %5807
  %v5809 = vsel %vm1373, %v5676, 0.0
  %5810 = vadd.xlane.f32.xlu0 %v5809
  %v5811 = vpop.xlane.xlu0 %5810
  %v5812 = vsel %vm1373, %v5678, 0.0
  %5813 = vadd.xlane.f32.xlu0 %v5812
  %v5814 = vpop.xlane.xlu0 %5813
  %v5815 = vsel %vm1373, %v5680, 0.0
  %5816 = vadd.xlane.f32.xlu0 %v5815
  %v5817 = vpop.xlane.xlu0 %5816
  %v5818 = vsel %vm1373, %v5682, 0.0
  %5819 = vadd.xlane.f32.xlu0 %v5818
  %v5820 = vpop.xlane.xlu0 %5819
  %v5821 = vsel %vm1373, %v5684, 0.0
  %5822 = vadd.xlane.f32.xlu0 %v5821
  %v5823 = vpop.xlane.xlu0 %5822
  %v5824 = vsel %vm1373, %v5686, 0.0
  %5825 = vadd.xlane.f32.xlu0 %v5824
  %v5826 = vpop.xlane.xlu0 %5825
  %v5827 = vsel %vm1373, %v5688, 0.0
  %5828 = vadd.xlane.f32.xlu0 %v5827
  %v5829 = vpop.xlane.xlu0 %5828
  %v5830 = vsel %vm1373, %v5690, 0.0
  %5831 = vadd.xlane.f32.xlu0 %v5830
  %v5832 = vpop.xlane.xlu0 %5831
  %v5833 = vsel %vm1373, %v5692, 0.0
  %5834 = vadd.xlane.f32.xlu0 %v5833
  %v5835 = vpop.xlane.xlu0 %5834
  %v5836 = vsel %vm1373, %v5694, 0.0
  %5837 = vadd.xlane.f32.xlu0 %v5836
  %v5838 = vpop.xlane.xlu0 %5837
  %v5839 = vsel %vm1373, %v5696, 0.0
  %5840 = vadd.xlane.f32.xlu0 %v5839
  %v5841 = vpop.xlane.xlu0 %5840
  %v5842 = vsel %vm1373, %v5698, 0.0
  %5843 = vadd.xlane.f32.xlu0 %v5842
  %v5844 = vpop.xlane.xlu0 %5843
  %v5845 = vsel %vm1373, %v5700, 0.0
  %5846 = vadd.xlane.f32.xlu0 %v5845
  %v5847 = vpop.xlane.xlu0 %5846
  %v5848 = vsel %vm1373, %v5702, 0.0
  %5849 = vadd.xlane.f32.xlu0 %v5848
  %v5850 = vpop.xlane.xlu0 %5849
  %v5851 = vsel %vm1373, %v5704, 0.0
  %5852 = vadd.xlane.f32.xlu0 %v5851
  %v5853 = vpop.xlane.xlu0 %5852
  %v5854 = vsel %vm1373, %v5706, 0.0
  %5855 = vadd.xlane.f32.xlu0 %v5854
  %v5856 = vpop.xlane.xlu0 %5855
  %v5857 = vsel %vm1373, %v5708, 0.0
  %5858 = vadd.xlane.f32.xlu0 %v5857
  %v5859 = vpop.xlane.xlu0 %5858
  %v5860 = vsel %vm1373, %v5710, 0.0
  %5861 = vadd.xlane.f32.xlu0 %v5860
  %v5862 = vpop.xlane.xlu0 %5861
  %v5863 = vsel %vm1373, %v5712, 0.0
  %5864 = vadd.xlane.f32.xlu0 %v5863
  %v5865 = vpop.xlane.xlu0 %5864
  %v5866 = vsel %vm1373, %v5714, 0.0
  %5867 = vadd.xlane.f32.xlu0 %v5866
  %v5868 = vpop.xlane.xlu0 %5867
  %v5869 = vsel %vm1373, %v5716, 0.0
  %5870 = vadd.xlane.f32.xlu0 %v5869
  %v5871 = vpop.xlane.xlu0 %5870
  %v5872 = vsel %vm1373, %v5718, 0.0
  %5873 = vadd.xlane.f32.xlu0 %v5872
  %v5874 = vpop.xlane.xlu0 %5873
  %v5875 = vsel %vm1373, %v5720, 0.0
  %5876 = vadd.xlane.f32.xlu0 %v5875
  %v5877 = vpop.xlane.xlu0 %5876
  %v5878 = vsel %vm1373, %v5722, 0.0
  %5879 = vadd.xlane.f32.xlu0 %v5878
  %v5880 = vpop.xlane.xlu0 %5879
  %v5881 = vsel %vm1373, %v5724, 0.0
  %5882 = vadd.xlane.f32.xlu0 %v5881
  %v5883 = vpop.xlane.xlu0 %5882
  %v5884 = vsel %vm1373, %v5726, 0.0
  %5885 = vadd.xlane.f32.xlu0 %v5884
  %v5886 = vpop.xlane.xlu0 %5885
  %v5887 = vsel %vm1373, %v5728, 0.0
  %5888 = vadd.xlane.f32.xlu0 %v5887
  %v5889 = vpop.xlane.xlu0 %5888
  %v5890 = vsel %vm1373, %v5730, 0.0
  %5891 = vadd.xlane.f32.xlu0 %v5890
  %v5892 = vpop.xlane.xlu0 %5891
  %v5893 = vsel %vm1373, %v5732, 0.0
  %5894 = vadd.xlane.f32.xlu0 %v5893
  %v5895 = vpop.xlane.xlu0 %5894
  %v5896 = vsel %vm1373, %v5734, 0.0
  %5897 = vadd.xlane.f32.xlu0 %v5896
  %v5898 = vpop.xlane.xlu0 %5897
  %v5899 = vsel %vm1373, %v5736, 0.0
  %5900 = vadd.xlane.f32.xlu0 %v5899
  %v5901 = vpop.xlane.xlu0 %5900
  %v5902 = vsel %vm1373, %v5738, 0.0
  %5903 = vadd.xlane.f32.xlu0 %v5902
  %v5904 = vpop.xlane.xlu0 %5903
  %v5905 = vsel %vm1373, %v5740, 0.0
  %5906 = vadd.xlane.f32.xlu0 %v5905
  %v5907 = vpop.xlane.xlu0 %5906
  %v5908 = vsel %vm1373, %v5742, 0.0
  %5909 = vadd.xlane.f32.xlu0 %v5908
  %v5910 = vpop.xlane.xlu0 %5909
  %v5911 = vsel %vm1373, %v5744, 0.0
  %5912 = vadd.xlane.f32.xlu0 %v5911
  %v5913 = vpop.xlane.xlu0 %5912
  %v5914 = vsel %vm1373, %v5746, 0.0
  %5915 = vadd.xlane.f32.xlu0 %v5914
  %v5916 = vpop.xlane.xlu0 %5915
  %v5917 = vsel %vm1373, %v5748, 0.0
  %5918 = vadd.xlane.f32.xlu0 %v5917
  %v5919 = vpop.xlane.xlu0 %5918
  %v5920 = vsel %vm1373, %v5750, 0.0
  %5921 = vadd.xlane.f32.xlu0 %v5920
  %v5922 = vpop.xlane.xlu0 %5921
  %v5923 = vsel %vm1373, %v5752, 0.0
  %5924 = vadd.xlane.f32.xlu0 %v5923
  %v5925 = vpop.xlane.xlu0 %5924
  %v5926 = vsel %vm1373, %v5754, 0.0
  %5927 = vadd.xlane.f32.xlu0 %v5926
  %v5928 = vpop.xlane.xlu0 %5927
  %v5929 = vsel %vm1373, %v5756, 0.0
  %5930 = vadd.xlane.f32.xlu0 %v5929
  %v5931 = vpop.xlane.xlu0 %5930
  %v5932 = vsel %vm1373, %v5758, 0.0
  %5933 = vadd.xlane.f32.xlu0 %v5932
  %v5934 = vpop.xlane.xlu0 %5933
  %v5935 = vsel %vm1373, %v5760, 0.0
  %5936 = vadd.xlane.f32.xlu0 %v5935
  %v5937 = vpop.xlane.xlu0 %5936
  %v5938 = vsel %vm1373, %v5762, 0.0
  %5939 = vadd.xlane.f32.xlu0 %v5938
  %v5940 = vpop.xlane.xlu0 %5939
  %v5941 = vsel %vm1373, %v5764, 0.0
  %5942 = vadd.xlane.f32.xlu0 %v5941
  %v5943 = vpop.xlane.xlu0 %5942
  %v5944 = vsel %vm1373, %v5766, 0.0
  %5945 = vadd.xlane.f32.xlu0 %v5944
  %v5946 = vpop.xlane.xlu0 %5945
  %v5947 = vsel %vm1373, %v5768, 0.0
  %5948 = vadd.xlane.f32.xlu0 %v5947
  %v5949 = vpop.xlane.xlu0 %5948
  %v5950 = vsel %vm1373, %v5770, 0.0
  %5951 = vadd.xlane.f32.xlu0 %v5950
  %v5952 = vpop.xlane.xlu0 %5951
  %v5953 = vsel %vm1373, %v5772, 0.0
  %5954 = vadd.xlane.f32.xlu0 %v5953
  %v5955 = vpop.xlane.xlu0 %5954
  %v5956 = vsel %vm1373, %v5774, 0.0
  %5957 = vadd.xlane.f32.xlu0 %v5956
  %v5958 = vpop.xlane.xlu0 %5957
  %v5959 = vsel %vm1373, %v5776, 0.0
  %5960 = vadd.xlane.f32.xlu0 %v5959
  %v5961 = vpop.xlane.xlu0 %5960
  %v5962 = vsel %vm1373, %v5778, 0.0
  %5963 = vadd.xlane.f32.xlu0 %v5962
  %v5964 = vpop.xlane.xlu0 %5963
  %v5965 = vsel %vm1373, %v5780, 0.0
  %5966 = vadd.xlane.f32.xlu0 %v5965
  %v5967 = vpop.xlane.xlu0 %5966
  %v5968 = vsel %vm1373, %v5782, 0.0
  %5969 = vadd.xlane.f32.xlu0 %v5968
  %v5970 = vpop.xlane.xlu0 %5969
  %v5971 = vsel %vm1373, %v5784, 0.0
  %5972 = vadd.xlane.f32.xlu0 %v5971
  %v5973 = vpop.xlane.xlu0 %5972
  %v5974 = vsel %vm1373, %v5786, 0.0
  %5975 = vadd.xlane.f32.xlu0 %v5974
  %v5976 = vpop.xlane.xlu0 %5975
  %v5977 = vsel %vm1373, %v5788, 0.0
  %5978 = vadd.xlane.f32.xlu0 %v5977
  %v5979 = vpop.xlane.xlu0 %5978
  %v5980 = vsel %vm1373, %v5790, 0.0
  %5981 = vadd.xlane.f32.xlu0 %v5980
  %v5982 = vpop.xlane.xlu0 %5981
  %v5983 = vrcp.pop %v5793
  %v5984 = vrcp.pop %v5796
  %v5985 = vrcp.pop %v5799
  %v5986 = vrcp.pop %v5802
  %v5987 = vrcp.pop %v5805
  %v5988 = vrcp.pop %v5808
  %v5989 = vrcp.pop %v5811
  %v5990 = vrcp.pop %v5814
  %v5991 = vrcp.pop %v5817
  %v5992 = vrcp.pop %v5820
  %v5993 = vrcp.pop %v5823
  %v5994 = vrcp.pop %v5826
  %v5995 = vrcp.pop %v5829
  %v5996 = vrcp.pop %v5832
  %v5997 = vrcp.pop %v5835
  %v5998 = vrcp.pop %v5838
  %v5999 = vrcp.pop %v5841
  %v6000 = vrcp.pop %v5844
  %v6001 = vrcp.pop %v5847
  %v6002 = vrcp.pop %v5850
  %v6003 = vrcp.pop %v5853
  %v6004 = vrcp.pop %v5856
  %v6005 = vrcp.pop %v5859
  %v6006 = vrcp.pop %v5862
  %v6007 = vrcp.pop %v5865
  %v6008 = vrcp.pop %v5868
  %v6009 = vrcp.pop %v5871
  %v6010 = vrcp.pop %v5874
  %v6011 = vrcp.pop %v5877
  %v6012 = vrcp.pop %v5880
  %v6013 = vrcp.pop %v5883
  %v6014 = vrcp.pop %v5886
  %v6015 = vrcp.pop %v5889
  %v6016 = vrcp.pop %v5892
  %v6017 = vrcp.pop %v5895
  %v6018 = vrcp.pop %v5898
  %v6019 = vrcp.pop %v5901
  %v6020 = vrcp.pop %v5904
  %v6021 = vrcp.pop %v5907
  %v6022 = vrcp.pop %v5910
  %v6023 = vrcp.pop %v5913
  %v6024 = vrcp.pop %v5916
  %v6025 = vrcp.pop %v5919
  %v6026 = vrcp.pop %v5922
  %v6027 = vrcp.pop %v5925
  %v6028 = vrcp.pop %v5928
  %v6029 = vrcp.pop %v5931
  %v6030 = vrcp.pop %v5934
  %v6031 = vrcp.pop %v5937
  %v6032 = vrcp.pop %v5940
  %v6033 = vrcp.pop %v5943
  %v6034 = vrcp.pop %v5946
  %v6035 = vrcp.pop %v5949
  %v6036 = vrcp.pop %v5952
  %v6037 = vrcp.pop %v5955
  %v6038 = vrcp.pop %v5958
  %v6039 = vrcp.pop %v5961
  %v6040 = vrcp.pop %v5964
  %v6041 = vrcp.pop %v5967
  %v6042 = vrcp.pop %v5970
  %v6043 = vrcp.pop %v5973
  %v6044 = vrcp.pop %v5976
  %v6045 = vrcp.pop %v5979
  %v6046 = vrcp.pop %v5982
  %v6047 = vmul.f32 %v5664, %v5983
  %v6048 = vmul.f32 %v5666, %v5984
  %v6049 = vmul.f32 %v5668, %v5985
  %v6050 = vmul.f32 %v5670, %v5986
  %v6051 = vmul.f32 %v5672, %v5987
  %v6052 = vmul.f32 %v5674, %v5988
  %v6053 = vmul.f32 %v5676, %v5989
  %v6054 = vmul.f32 %v5678, %v5990
  %v6055 = vmul.f32 %v5680, %v5991
  %v6056 = vmul.f32 %v5682, %v5992
  %v6057 = vmul.f32 %v5684, %v5993
  %v6058 = vmul.f32 %v5686, %v5994
  %v6059 = vmul.f32 %v5688, %v5995
  %v6060 = vmul.f32 %v5690, %v5996
  %v6061 = vmul.f32 %v5692, %v5997
  %v6062 = vmul.f32 %v5694, %v5998
  %v6063 = vmul.f32 %v5696, %v5999
  %v6064 = vmul.f32 %v5698, %v6000
  %v6065 = vmul.f32 %v5700, %v6001
  %v6066 = vmul.f32 %v5702, %v6002
  %v6067 = vmul.f32 %v5704, %v6003
  %v6068 = vmul.f32 %v5706, %v6004
  %v6069 = vmul.f32 %v5708, %v6005
  %v6070 = vmul.f32 %v5710, %v6006
  %v6071 = vmul.f32 %v5712, %v6007
  %v6072 = vmul.f32 %v5714, %v6008
  %v6073 = vmul.f32 %v5716, %v6009
  %v6074 = vmul.f32 %v5718, %v6010
  %v6075 = vmul.f32 %v5720, %v6011
  %v6076 = vmul.f32 %v5722, %v6012
  %v6077 = vmul.f32 %v5724, %v6013
  %v6078 = vmul.f32 %v5726, %v6014
  %v6079 = vmul.f32 %v5728, %v6015
  %v6080 = vmul.f32 %v5730, %v6016
  %v6081 = vmul.f32 %v5732, %v6017
  %v6082 = vmul.f32 %v5734, %v6018
  %v6083 = vmul.f32 %v5736, %v6019
  %v6084 = vmul.f32 %v5738, %v6020
  %v6085 = vmul.f32 %v5740, %v6021
  %v6086 = vmul.f32 %v5742, %v6022
  %v6087 = vmul.f32 %v5744, %v6023
  %v6088 = vmul.f32 %v5746, %v6024
  %v6089 = vmul.f32 %v5748, %v6025
  %v6090 = vmul.f32 %v5750, %v6026
  %v6091 = vmul.f32 %v5752, %v6027
  %v6092 = vmul.f32 %v5754, %v6028
  %v6093 = vmul.f32 %v5756, %v6029
  %v6094 = vmul.f32 %v5758, %v6030
  %v6095 = vmul.f32 %v5760, %v6031
  %v6096 = vmul.f32 %v5762, %v6032
  %v6097 = vmul.f32 %v5764, %v6033
  %v6098 = vmul.f32 %v5766, %v6034
  %v6099 = vmul.f32 %v5768, %v6035
  %v6100 = vmul.f32 %v5770, %v6036
  %v6101 = vmul.f32 %v5772, %v6037
  %v6102 = vmul.f32 %v5774, %v6038
  %v6103 = vmul.f32 %v5776, %v6039
  %v6104 = vmul.f32 %v5778, %v6040
  %v6105 = vmul.f32 %v5780, %v6041
  %v6106 = vmul.f32 %v5782, %v6042
  %v6107 = vmul.f32 %v5784, %v6043
  %v6108 = vmul.f32 %v5786, %v6044
  %v6109 = vmul.f32 %v5788, %v6045
  %v6110 = vmul.f32 %v5790, %v6046
  %v6111 = vpack.c.bf16 %v6048, %v6047
  %v6112 = vpack.c.bf16 %v6050, %v6049
  %v6113 = vpack.c.bf16 %v6052, %v6051
  %v6114 = vpack.c.bf16 %v6054, %v6053
  %v6115 = vpack.c.bf16 %v6056, %v6055
  %v6116 = vpack.c.bf16 %v6058, %v6057
  %v6117 = vpack.c.bf16 %v6060, %v6059
  %v6118 = vpack.c.bf16 %v6062, %v6061
  %v6119 = vpack.c.bf16 %v6064, %v6063
  %v6120 = vpack.c.bf16 %v6066, %v6065
  %v6121 = vpack.c.bf16 %v6068, %v6067
  %v6122 = vpack.c.bf16 %v6070, %v6069
  %v6123 = vpack.c.bf16 %v6072, %v6071
  %v6124 = vpack.c.bf16 %v6074, %v6073
  %v6125 = vpack.c.bf16 %v6076, %v6075
  %v6126 = vpack.c.bf16 %v6078, %v6077
  %v6127 = vpack.c.bf16 %v6080, %v6079
  %v6128 = vpack.c.bf16 %v6082, %v6081
  %v6129 = vpack.c.bf16 %v6084, %v6083
  %v6130 = vpack.c.bf16 %v6086, %v6085
  %v6131 = vpack.c.bf16 %v6088, %v6087
  %v6132 = vpack.c.bf16 %v6090, %v6089
  %v6133 = vpack.c.bf16 %v6092, %v6091
  %v6134 = vpack.c.bf16 %v6094, %v6093
  %v6135 = vpack.c.bf16 %v6096, %v6095
  %v6136 = vpack.c.bf16 %v6098, %v6097
  %v6137 = vpack.c.bf16 %v6100, %v6099
  %v6138 = vpack.c.bf16 %v6102, %v6101
  %v6139 = vpack.c.bf16 %v6104, %v6103
  %v6140 = vpack.c.bf16 %v6106, %v6105
  %v6141 = vpack.c.bf16 %v6108, %v6107
  %v6142 = vpack.c.bf16 %v6110, %v6109
  %6143 = vrot.lane.b32.xlu0 %v4503, 64
  %v6144 = vpop.permute.xlu0 %6143
  %6145 = vrot.lane.b32.xlu0 %v4504, 64
  %v6146 = vpop.permute.xlu0 %6145
  %6147 = vrot.lane.b32.xlu0 %v4505, 64
  %v6148 = vpop.permute.xlu0 %6147
  %6149 = vrot.lane.b32.xlu0 %v4506, 64
  %v6150 = vpop.permute.xlu0 %6149
  %v6156 = vsel %vm1373, %v6111, 0
  %v6159 = vsel %vm1373, %v6112, 0
  %v6162 = vsel %vm1373, %v6113, 0
  %v6165 = vsel %vm1373, %v6114, 0
  %6167 = vmatprep.subr.bf16.mxu0 0
  %6168 = vmatpush1.bf16.msra.mxu0 0
  %6169 = vmatprep.subr.bf16.mxu0 0
  %6170 = vmatpush1.bf16.msra.mxu0 0
  %6171 = vmatprep.subr.bf16.mxu0 0
  %6172 = vmatpush1.bf16.msra.mxu0 0
  %6173 = vmatprep.subr.bf16.mxu0 0
  %6174 = vmatpush1.bf16.msra.mxu0 0
  %6175 = vmatprep.subr.bf16.mxu0 0
  %6176 = vmatpush1.bf16.msra.mxu0 %v6150
  %6177 = vmatprep.subr.bf16.mxu0 0
  %6178 = vmatpush1.bf16.msra.mxu0 %v6148
  %6179 = vmatprep.subr.bf16.mxu0 0
  %6180 = vmatpush1.bf16.msra.mxu0 %v6146
  %6181 = vmatprep.subr.bf16.mxu0 0
  %6182 = vmatpush1.bf16.msra.mxu0 %v6144
  %6183 = vmatprep.subr.bf16.mxu0 0
  %6184 = vmatpush2.bf16.msra.mxu0 0
  %6185 = vmatprep.subr.bf16.mxu0 0
  %6186 = vmatpush2.bf16.msra.mxu0 0
  %6187 = vmatprep.subr.bf16.mxu0 0
  %6188 = vmatpush2.bf16.msra.mxu0 0
  %6189 = vmatprep.subr.bf16.mxu0 0
  %6190 = vmatpush2.bf16.msra.mxu0 0
  %6191 = vmatprep.subr.bf16.mxu0 0
  %6192 = vmatpush2.bf16.msra.mxu0 0
  %6193 = vmatprep.subr.bf16.mxu0 0
  %6194 = vmatpush2.bf16.msra.mxu0 0
  %6195 = vmatprep.subr.bf16.mxu0 0
  %6196 = vmatpush2.bf16.msra.mxu0 0
  %6197 = vmatprep.subr.bf16.mxu0 0
  %6198 = vmatpush2.bf16.msra.mxu0 0
  %6199 = vmatprep.mubr.bf16.mxu0 0
  %6200 = vmatmul.mubr.bf16.gmra.mxu0 %v6156
  %v6201 = vpop.f32.mrf.mxu0
  %v6202 = vadd.f32 0.0, %v6201
  %v6203 = vpop.f32.mrf.mxu0
  %v6204 = vpop.f32.mrf.mxu0
  %v6205 = vadd.f32 0.0, %v6204
  %v6206 = vpop.f32.mrf.mxu0
  %6207 = vmatprep.mubr.bf16.mxu0 0
  %6208 = vmatmul.mubr.bf16.gmra.mxu0 %v6159
  %v6209 = vpop.f32.mrf.mxu0
  %v6210 = vadd.f32 0.0, %v6209
  %v6211 = vpop.f32.mrf.mxu0
  %v6212 = vpop.f32.mrf.mxu0
  %v6213 = vadd.f32 0.0, %v6212
  %v6214 = vpop.f32.mrf.mxu0
  %6215 = vmatprep.mubr.bf16.mxu0 0
  %6216 = vmatmul.mubr.bf16.gmra.mxu0 %v6162
  %v6217 = vpop.f32.mrf.mxu0
  %v6218 = vadd.f32 0.0, %v6217
  %v6219 = vpop.f32.mrf.mxu0
  %v6220 = vpop.f32.mrf.mxu0
  %v6221 = vadd.f32 0.0, %v6220
  %v6222 = vpop.f32.mrf.mxu0
  %6223 = vmatprep.mubr.bf16.mxu0 0
  %6224 = vmatmul.mubr.bf16.gmra.mxu0 %v6165
  %v6225 = vpop.f32.mrf.mxu0
  %v6226 = vadd.f32 0.0, %v6225
  %v6227 = vpop.f32.mrf.mxu0
  %v6228 = vpop.f32.mrf.mxu0
  %v6229 = vadd.f32 0.0, %v6228
  %v6230 = vpop.f32.mrf.mxu0
  %6231 = vdwg.mxu0
  %v6232 = vpack.c.bf16 %v6205, %v6202
  %v6233 = vpack.c.bf16 %v6213, %v6210
  %v6234 = vpack.c.bf16 %v6221, %v6218
  %v6235 = vpack.c.bf16 %v6229, %v6226
  %6236 = vrot.lane.b32.xlu0 %v4503, 56
  %v6237 = vpop.permute.xlu0 %6236
  %6238 = vrot.lane.b32.xlu0 %v4504, 56
  %v6239 = vpop.permute.xlu0 %6238
  %6240 = vrot.lane.b32.xlu0 %v4505, 56
  %v6241 = vpop.permute.xlu0 %6240
  %6242 = vrot.lane.b32.xlu0 %v4506, 56
  %v6243 = vpop.permute.xlu0 %6242
  %v6249 = vsel %vm1373, %v6115, 0
  %v6252 = vsel %vm1373, %v6116, 0
  %v6255 = vsel %vm1373, %v6117, 0
  %v6258 = vsel %vm1373, %v6118, 0
  %6260 = vmatprep.subr.bf16.mxu0 0
  %6261 = vmatpush1.bf16.msra.mxu0 0
  %6262 = vmatprep.subr.bf16.mxu0 0
  %6263 = vmatpush1.bf16.msra.mxu0 0
  %6264 = vmatprep.subr.bf16.mxu0 0
  %6265 = vmatpush1.bf16.msra.mxu0 0
  %6266 = vmatprep.subr.bf16.mxu0 0
  %6267 = vmatpush1.bf16.msra.mxu0 0
  %6268 = vmatprep.subr.bf16.mxu0 0
  %6269 = vmatpush1.bf16.msra.mxu0 %v6243
  %6270 = vmatprep.subr.bf16.mxu0 0
  %6271 = vmatpush1.bf16.msra.mxu0 %v6241
  %6272 = vmatprep.subr.bf16.mxu0 0
  %6273 = vmatpush1.bf16.msra.mxu0 %v6239
  %6274 = vmatprep.subr.bf16.mxu0 0
  %6275 = vmatpush1.bf16.msra.mxu0 %v6237
  %6276 = vmatprep.subr.bf16.mxu0 0
  %6277 = vmatpush2.bf16.msra.mxu0 0
  %6278 = vmatprep.subr.bf16.mxu0 0
  %6279 = vmatpush2.bf16.msra.mxu0 0
  %6280 = vmatprep.subr.bf16.mxu0 0
  %6281 = vmatpush2.bf16.msra.mxu0 0
  %6282 = vmatprep.subr.bf16.mxu0 0
  %6283 = vmatpush2.bf16.msra.mxu0 0
  %6284 = vmatprep.subr.bf16.mxu0 0
  %6285 = vmatpush2.bf16.msra.mxu0 0
  %6286 = vmatprep.subr.bf16.mxu0 0
  %6287 = vmatpush2.bf16.msra.mxu0 0
  %6288 = vmatprep.subr.bf16.mxu0 0
  %6289 = vmatpush2.bf16.msra.mxu0 0
  %6290 = vmatprep.subr.bf16.mxu0 0
  %6291 = vmatpush2.bf16.msra.mxu0 0
  %6292 = vmatprep.mubr.bf16.mxu0 0
  %6293 = vmatmul.mubr.bf16.gmra.mxu0 %v6249
  %v6294 = vpop.f32.mrf.mxu0
  %v6295 = vadd.f32 0.0, %v6294
  %v6296 = vpop.f32.mrf.mxu0
  %v6297 = vpop.f32.mrf.mxu0
  %v6298 = vadd.f32 0.0, %v6297
  %v6299 = vpop.f32.mrf.mxu0
  %6300 = vmatprep.mubr.bf16.mxu0 0
  %6301 = vmatmul.mubr.bf16.gmra.mxu0 %v6252
  %v6302 = vpop.f32.mrf.mxu0
  %v6303 = vadd.f32 0.0, %v6302
  %v6304 = vpop.f32.mrf.mxu0
  %v6305 = vpop.f32.mrf.mxu0
  %v6306 = vadd.f32 0.0, %v6305
  %v6307 = vpop.f32.mrf.mxu0
  %6308 = vmatprep.mubr.bf16.mxu0 0
  %6309 = vmatmul.mubr.bf16.gmra.mxu0 %v6255
  %v6310 = vpop.f32.mrf.mxu0
  %v6311 = vadd.f32 0.0, %v6310
  %v6312 = vpop.f32.mrf.mxu0
  %v6313 = vpop.f32.mrf.mxu0
  %v6314 = vadd.f32 0.0, %v6313
  %v6315 = vpop.f32.mrf.mxu0
  %6316 = vmatprep.mubr.bf16.mxu0 0
  %6317 = vmatmul.mubr.bf16.gmra.mxu0 %v6258
  %v6318 = vpop.f32.mrf.mxu0
  %v6319 = vadd.f32 0.0, %v6318
  %v6320 = vpop.f32.mrf.mxu0
  %v6321 = vpop.f32.mrf.mxu0
  %v6322 = vadd.f32 0.0, %v6321
  %v6323 = vpop.f32.mrf.mxu0
  %6324 = vdwg.mxu0
  %v6325 = vpack.c.bf16 %v6298, %v6295
  %v6326 = vpack.c.bf16 %v6306, %v6303
  %v6327 = vpack.c.bf16 %v6314, %v6311
  %v6328 = vpack.c.bf16 %v6322, %v6319
  %v6329 = vpack.c.b16 %v4375, %v4375
  %6330 = vrot.lane.b32.xlu0 %v6329, 32
  %v6331 = vpop.permute.xlu0 %6330
  %v6333 = vsel %vm84, %v6325, 0
  %v6336 = vsel %vm84, %v6326, 0
  %v6339 = vsel %vm84, %v6327, 0
  %v6342 = vsel %vm84, %v6328, 0
  %v6345 = vsel %vm109, %v6331, 0
  %6347 = vmatprep.subr.bf16.mxu0 0
  %6348 = vmatpush1.bf16.msra.mxu0 0
  %6349 = vmatprep.subr.bf16.mxu0 0
  %6350 = vmatpush1.bf16.msra.mxu0 0
  %6351 = vmatprep.subr.bf16.mxu0 0
  %6352 = vmatpush1.bf16.msra.mxu0 0
  %6353 = vmatprep.subr.bf16.mxu0 0
  %6354 = vmatpush1.bf16.msra.mxu0 0
  %6355 = vmatprep.subr.bf16.mxu0 0
  %6356 = vmatpush1.bf16.msra.mxu0 0
  %6357 = vmatprep.subr.bf16.mxu0 0
  %6358 = vmatpush1.bf16.msra.mxu0 0
  %6359 = vmatprep.subr.bf16.mxu0 0
  %6360 = vmatpush1.bf16.msra.mxu0 0
  %6361 = vmatprep.subr.bf16.mxu0 0
  %6362 = vmatpush1.bf16.msra.mxu0 %v6345
  %6363 = vmatprep.subr.bf16.mxu0 0
  %6364 = vmatpush2.bf16.msra.mxu0 0
  %6365 = vmatprep.subr.bf16.mxu0 0
  %6366 = vmatpush2.bf16.msra.mxu0 0
  %6367 = vmatprep.subr.bf16.mxu0 0
  %6368 = vmatpush2.bf16.msra.mxu0 0
  %6369 = vmatprep.subr.bf16.mxu0 0
  %6370 = vmatpush2.bf16.msra.mxu0 0
  %6371 = vmatprep.subr.bf16.mxu0 0
  %6372 = vmatpush2.bf16.msra.mxu0 0
  %6373 = vmatprep.subr.bf16.mxu0 0
  %6374 = vmatpush2.bf16.msra.mxu0 0
  %6375 = vmatprep.subr.bf16.mxu0 0
  %6376 = vmatpush2.bf16.msra.mxu0 0
  %6377 = vmatprep.subr.bf16.mxu0 0
  %6378 = vmatpush2.bf16.msra.mxu0 0
  %6379 = vmatprep.mubr.bf16.mxu0 0
  %6380 = vmatmul.mubr.bf16.gmra.mxu0 %v6333
  %v6381 = vpop.f32.mrf.mxu0
  %v6382 = vadd.f32 0.0, %v6381
  %v6383 = vpop.f32.mrf.mxu0
  %v6384 = vpop.f32.mrf.mxu0
  %v6385 = vadd.f32 0.0, %v6384
  %v6386 = vpop.f32.mrf.mxu0
  %6387 = vmatprep.mubr.bf16.mxu0 0
  %6388 = vmatmul.mubr.bf16.gmra.mxu0 %v6336
  %v6389 = vpop.f32.mrf.mxu0
  %v6390 = vadd.f32 0.0, %v6389
  %v6391 = vpop.f32.mrf.mxu0
  %v6392 = vpop.f32.mrf.mxu0
  %v6393 = vadd.f32 0.0, %v6392
  %v6394 = vpop.f32.mrf.mxu0
  %6395 = vmatprep.mubr.bf16.mxu0 0
  %6396 = vmatmul.mubr.bf16.gmra.mxu0 %v6339
  %v6397 = vpop.f32.mrf.mxu0
  %v6398 = vadd.f32 0.0, %v6397
  %v6399 = vpop.f32.mrf.mxu0
  %v6400 = vpop.f32.mrf.mxu0
  %v6401 = vadd.f32 0.0, %v6400
  %v6402 = vpop.f32.mrf.mxu0
  %6403 = vmatprep.mubr.bf16.mxu0 0
  %6404 = vmatmul.mubr.bf16.gmra.mxu0 %v6342
  %v6405 = vpop.f32.mrf.mxu0
  %v6406 = vadd.f32 0.0, %v6405
  %v6407 = vpop.f32.mrf.mxu0
  %v6408 = vpop.f32.mrf.mxu0
  %v6409 = vadd.f32 0.0, %v6408
  %v6410 = vpop.f32.mrf.mxu0
  %6411 = vdwg.mxu0
  %v6412 = vpack.c.b16 %v4374, %v4374
  %6413 = vrot.lane.b32.xlu0 %v6412, 32
  %v6414 = vpop.permute.xlu0 %6413
  %v6416 = vsel %vm84, %v6232, 0
  %v6419 = vsel %vm84, %v6233, 0
  %v6422 = vsel %vm84, %v6234, 0
  %v6425 = vsel %vm84, %v6235, 0
  %v6428 = vsel %vm109, %v6414, 0
  %6430 = vmatprep.subr.bf16.mxu0 0
  %6431 = vmatpush1.bf16.msra.mxu0 0
  %6432 = vmatprep.subr.bf16.mxu0 0
  %6433 = vmatpush1.bf16.msra.mxu0 0
  %6434 = vmatprep.subr.bf16.mxu0 0
  %6435 = vmatpush1.bf16.msra.mxu0 0
  %6436 = vmatprep.subr.bf16.mxu0 0
  %6437 = vmatpush1.bf16.msra.mxu0 0
  %6438 = vmatprep.subr.bf16.mxu0 0
  %6439 = vmatpush1.bf16.msra.mxu0 0
  %6440 = vmatprep.subr.bf16.mxu0 0
  %6441 = vmatpush1.bf16.msra.mxu0 0
  %6442 = vmatprep.subr.bf16.mxu0 0
  %6443 = vmatpush1.bf16.msra.mxu0 0
  %6444 = vmatprep.subr.bf16.mxu0 0
  %6445 = vmatpush1.bf16.msra.mxu0 %v6428
  %6446 = vmatprep.subr.bf16.mxu0 0
  %6447 = vmatpush2.bf16.msra.mxu0 0
  %6448 = vmatprep.subr.bf16.mxu0 0
  %6449 = vmatpush2.bf16.msra.mxu0 0
  %6450 = vmatprep.subr.bf16.mxu0 0
  %6451 = vmatpush2.bf16.msra.mxu0 0
  %6452 = vmatprep.subr.bf16.mxu0 0
  %6453 = vmatpush2.bf16.msra.mxu0 0
  %6454 = vmatprep.subr.bf16.mxu0 0
  %6455 = vmatpush2.bf16.msra.mxu0 0
  %6456 = vmatprep.subr.bf16.mxu0 0
  %6457 = vmatpush2.bf16.msra.mxu0 0
  %6458 = vmatprep.subr.bf16.mxu0 0
  %6459 = vmatpush2.bf16.msra.mxu0 0
  %6460 = vmatprep.subr.bf16.mxu0 0
  %6461 = vmatpush2.bf16.msra.mxu0 0
  %6462 = vmatprep.mubr.bf16.mxu0 0
  %6463 = vmatmul.mubr.bf16.gmra.mxu0 %v6416
  %v6464 = vpop.f32.mrf.mxu0
  %v6465 = vadd.f32 %v6382, %v6464
  %v6466 = vpop.f32.mrf.mxu0
  %v6467 = vpop.f32.mrf.mxu0
  %v6468 = vadd.f32 %v6385, %v6467
  %v6469 = vpop.f32.mrf.mxu0
  %6470 = vmatprep.mubr.bf16.mxu0 0
  %6471 = vmatmul.mubr.bf16.gmra.mxu0 %v6419
  %v6472 = vpop.f32.mrf.mxu0
  %v6473 = vadd.f32 %v6390, %v6472
  %v6474 = vpop.f32.mrf.mxu0
  %v6475 = vpop.f32.mrf.mxu0
  %v6476 = vadd.f32 %v6393, %v6475
  %v6477 = vpop.f32.mrf.mxu0
  %6478 = vmatprep.mubr.bf16.mxu0 0
  %6479 = vmatmul.mubr.bf16.gmra.mxu0 %v6422
  %v6480 = vpop.f32.mrf.mxu0
  %v6481 = vadd.f32 %v6398, %v6480
  %v6482 = vpop.f32.mrf.mxu0
  %v6483 = vpop.f32.mrf.mxu0
  %v6484 = vadd.f32 %v6401, %v6483
  %v6485 = vpop.f32.mrf.mxu0
  %6486 = vmatprep.mubr.bf16.mxu0 0
  %6487 = vmatmul.mubr.bf16.gmra.mxu0 %v6425
  %v6488 = vpop.f32.mrf.mxu0
  %v6489 = vadd.f32 %v6406, %v6488
  %v6490 = vpop.f32.mrf.mxu0
  %v6491 = vpop.f32.mrf.mxu0
  %v6492 = vadd.f32 %v6409, %v6491
  %v6493 = vpop.f32.mrf.mxu0
  %6494 = vdwg.mxu0
  %6495 = vrot.lane.b32.xlu0 %v4503, 48
  %v6496 = vpop.permute.xlu0 %6495
  %6497 = vrot.lane.b32.xlu0 %v4504, 48
  %v6498 = vpop.permute.xlu0 %6497
  %6499 = vrot.lane.b32.xlu0 %v4505, 48
  %v6500 = vpop.permute.xlu0 %6499
  %6501 = vrot.lane.b32.xlu0 %v4506, 48
  %v6502 = vpop.permute.xlu0 %6501
  %v6508 = vsel %vm1373, %v6119, 0
  %v6511 = vsel %vm1373, %v6120, 0
  %v6514 = vsel %vm1373, %v6121, 0
  %v6517 = vsel %vm1373, %v6122, 0
  %6519 = vmatprep.subr.bf16.mxu0 0
  %6520 = vmatpush1.bf16.msra.mxu0 0
  %6521 = vmatprep.subr.bf16.mxu0 0
  %6522 = vmatpush1.bf16.msra.mxu0 0
  %6523 = vmatprep.subr.bf16.mxu0 0
  %6524 = vmatpush1.bf16.msra.mxu0 0
  %6525 = vmatprep.subr.bf16.mxu0 0
  %6526 = vmatpush1.bf16.msra.mxu0 0
  %6527 = vmatprep.subr.bf16.mxu0 0
  %6528 = vmatpush1.bf16.msra.mxu0 %v6502
  %6529 = vmatprep.subr.bf16.mxu0 0
  %6530 = vmatpush1.bf16.msra.mxu0 %v6500
  %6531 = vmatprep.subr.bf16.mxu0 0
  %6532 = vmatpush1.bf16.msra.mxu0 %v6498
  %6533 = vmatprep.subr.bf16.mxu0 0
  %6534 = vmatpush1.bf16.msra.mxu0 %v6496
  %6535 = vmatprep.subr.bf16.mxu0 0
  %6536 = vmatpush2.bf16.msra.mxu0 0
  %6537 = vmatprep.subr.bf16.mxu0 0
  %6538 = vmatpush2.bf16.msra.mxu0 0
  %6539 = vmatprep.subr.bf16.mxu0 0
  %6540 = vmatpush2.bf16.msra.mxu0 0
  %6541 = vmatprep.subr.bf16.mxu0 0
  %6542 = vmatpush2.bf16.msra.mxu0 0
  %6543 = vmatprep.subr.bf16.mxu0 0
  %6544 = vmatpush2.bf16.msra.mxu0 0
  %6545 = vmatprep.subr.bf16.mxu0 0
  %6546 = vmatpush2.bf16.msra.mxu0 0
  %6547 = vmatprep.subr.bf16.mxu0 0
  %6548 = vmatpush2.bf16.msra.mxu0 0
  %6549 = vmatprep.subr.bf16.mxu0 0
  %6550 = vmatpush2.bf16.msra.mxu0 0
  %6551 = vmatprep.mubr.bf16.mxu0 0
  %6552 = vmatmul.mubr.bf16.gmra.mxu0 %v6508
  %v6553 = vpop.f32.mrf.mxu0
  %v6554 = vadd.f32 0.0, %v6553
  %v6555 = vpop.f32.mrf.mxu0
  %v6556 = vpop.f32.mrf.mxu0
  %v6557 = vadd.f32 0.0, %v6556
  %v6558 = vpop.f32.mrf.mxu0
  %6559 = vmatprep.mubr.bf16.mxu0 0
  %6560 = vmatmul.mubr.bf16.gmra.mxu0 %v6511
  %v6561 = vpop.f32.mrf.mxu0
  %v6562 = vadd.f32 0.0, %v6561
  %v6563 = vpop.f32.mrf.mxu0
  %v6564 = vpop.f32.mrf.mxu0
  %v6565 = vadd.f32 0.0, %v6564
  %v6566 = vpop.f32.mrf.mxu0
  %6567 = vmatprep.mubr.bf16.mxu0 0
  %6568 = vmatmul.mubr.bf16.gmra.mxu0 %v6514
  %v6569 = vpop.f32.mrf.mxu0
  %v6570 = vadd.f32 0.0, %v6569
  %v6571 = vpop.f32.mrf.mxu0
  %v6572 = vpop.f32.mrf.mxu0
  %v6573 = vadd.f32 0.0, %v6572
  %v6574 = vpop.f32.mrf.mxu0
  %6575 = vmatprep.mubr.bf16.mxu0 0
  %6576 = vmatmul.mubr.bf16.gmra.mxu0 %v6517
  %v6577 = vpop.f32.mrf.mxu0
  %v6578 = vadd.f32 0.0, %v6577
  %v6579 = vpop.f32.mrf.mxu0
  %v6580 = vpop.f32.mrf.mxu0
  %v6581 = vadd.f32 0.0, %v6580
  %v6582 = vpop.f32.mrf.mxu0
  %6583 = vdwg.mxu0
  %v6584 = vpack.c.bf16 %v6557, %v6554
  %v6585 = vpack.c.bf16 %v6565, %v6562
  %v6586 = vpack.c.bf16 %v6573, %v6570
  %v6587 = vpack.c.bf16 %v6581, %v6578
  %v6588 = vpack.c.b16 %v4376, %v4376
  %6589 = vrot.lane.b32.xlu0 %v6588, 32
  %v6590 = vpop.permute.xlu0 %6589
  %v6592 = vsel %vm84, %v6584, 0
  %v6595 = vsel %vm84, %v6585, 0
  %v6598 = vsel %vm84, %v6586, 0
  %v6601 = vsel %vm84, %v6587, 0
  %v6604 = vsel %vm109, %v6590, 0
  %6606 = vmatprep.subr.bf16.mxu0 0
  %6607 = vmatpush1.bf16.msra.mxu0 0
  %6608 = vmatprep.subr.bf16.mxu0 0
  %6609 = vmatpush1.bf16.msra.mxu0 0
  %6610 = vmatprep.subr.bf16.mxu0 0
  %6611 = vmatpush1.bf16.msra.mxu0 0
  %6612 = vmatprep.subr.bf16.mxu0 0
  %6613 = vmatpush1.bf16.msra.mxu0 0
  %6614 = vmatprep.subr.bf16.mxu0 0
  %6615 = vmatpush1.bf16.msra.mxu0 0
  %6616 = vmatprep.subr.bf16.mxu0 0
  %6617 = vmatpush1.bf16.msra.mxu0 0
  %6618 = vmatprep.subr.bf16.mxu0 0
  %6619 = vmatpush1.bf16.msra.mxu0 0
  %6620 = vmatprep.subr.bf16.mxu0 0
  %6621 = vmatpush1.bf16.msra.mxu0 %v6604
  %6622 = vmatprep.subr.bf16.mxu0 0
  %6623 = vmatpush2.bf16.msra.mxu0 0
  %6624 = vmatprep.subr.bf16.mxu0 0
  %6625 = vmatpush2.bf16.msra.mxu0 0
  %6626 = vmatprep.subr.bf16.mxu0 0
  %6627 = vmatpush2.bf16.msra.mxu0 0
  %6628 = vmatprep.subr.bf16.mxu0 0
  %6629 = vmatpush2.bf16.msra.mxu0 0
  %6630 = vmatprep.subr.bf16.mxu0 0
  %6631 = vmatpush2.bf16.msra.mxu0 0
  %6632 = vmatprep.subr.bf16.mxu0 0
  %6633 = vmatpush2.bf16.msra.mxu0 0
  %6634 = vmatprep.subr.bf16.mxu0 0
  %6635 = vmatpush2.bf16.msra.mxu0 0
  %6636 = vmatprep.subr.bf16.mxu0 0
  %6637 = vmatpush2.bf16.msra.mxu0 0
  %6638 = vmatprep.mubr.bf16.mxu0 0
  %6639 = vmatmul.mubr.bf16.gmra.mxu0 %v6592
  %v6640 = vpop.f32.mrf.mxu0
  %v6641 = vadd.f32 0.0, %v6640
  %v6642 = vpop.f32.mrf.mxu0
  %v6643 = vpop.f32.mrf.mxu0
  %v6644 = vadd.f32 0.0, %v6643
  %v6645 = vpop.f32.mrf.mxu0
  %6646 = vmatprep.mubr.bf16.mxu0 0
  %6647 = vmatmul.mubr.bf16.gmra.mxu0 %v6595
  %v6648 = vpop.f32.mrf.mxu0
  %v6649 = vadd.f32 0.0, %v6648
  %v6650 = vpop.f32.mrf.mxu0
  %v6651 = vpop.f32.mrf.mxu0
  %v6652 = vadd.f32 0.0, %v6651
  %v6653 = vpop.f32.mrf.mxu0
  %6654 = vmatprep.mubr.bf16.mxu0 0
  %6655 = vmatmul.mubr.bf16.gmra.mxu0 %v6598
  %v6656 = vpop.f32.mrf.mxu0
  %v6657 = vadd.f32 0.0, %v6656
  %v6658 = vpop.f32.mrf.mxu0
  %v6659 = vpop.f32.mrf.mxu0
  %v6660 = vadd.f32 0.0, %v6659
  %v6661 = vpop.f32.mrf.mxu0
  %6662 = vmatprep.mubr.bf16.mxu0 0
  %6663 = vmatmul.mubr.bf16.gmra.mxu0 %v6601
  %v6664 = vpop.f32.mrf.mxu0
  %v6665 = vadd.f32 0.0, %v6664
  %v6666 = vpop.f32.mrf.mxu0
  %v6667 = vpop.f32.mrf.mxu0
  %v6668 = vadd.f32 0.0, %v6667
  %v6669 = vpop.f32.mrf.mxu0
  %6670 = vdwg.mxu0
  %v6671 = vadd.f32 %v6465, %v6641
  %v6672 = vadd.f32 %v6468, %v6644
  %v6673 = vadd.f32 %v6473, %v6649
  %v6674 = vadd.f32 %v6476, %v6652
  %v6675 = vadd.f32 %v6481, %v6657
  %v6676 = vadd.f32 %v6484, %v6660
  %v6677 = vadd.f32 %v6489, %v6665
  %v6678 = vadd.f32 %v6492, %v6668
  %6679 = vrot.lane.b32.xlu0 %v4503, 40
  %v6680 = vpop.permute.xlu0 %6679
  %6681 = vrot.lane.b32.xlu0 %v4504, 40
  %v6682 = vpop.permute.xlu0 %6681
  %6683 = vrot.lane.b32.xlu0 %v4505, 40
  %v6684 = vpop.permute.xlu0 %6683
  %6685 = vrot.lane.b32.xlu0 %v4506, 40
  %v6686 = vpop.permute.xlu0 %6685
  %v6692 = vsel %vm1373, %v6123, 0
  %v6695 = vsel %vm1373, %v6124, 0
  %v6698 = vsel %vm1373, %v6125, 0
  %v6701 = vsel %vm1373, %v6126, 0
  %6703 = vmatprep.subr.bf16.mxu0 0
  %6704 = vmatpush1.bf16.msra.mxu0 0
  %6705 = vmatprep.subr.bf16.mxu0 0
  %6706 = vmatpush1.bf16.msra.mxu0 0
  %6707 = vmatprep.subr.bf16.mxu0 0
  %6708 = vmatpush1.bf16.msra.mxu0 0
  %6709 = vmatprep.subr.bf16.mxu0 0
  %6710 = vmatpush1.bf16.msra.mxu0 0
  %6711 = vmatprep.subr.bf16.mxu0 0
  %6712 = vmatpush1.bf16.msra.mxu0 %v6686
  %6713 = vmatprep.subr.bf16.mxu0 0
  %6714 = vmatpush1.bf16.msra.mxu0 %v6684
  %6715 = vmatprep.subr.bf16.mxu0 0
  %6716 = vmatpush1.bf16.msra.mxu0 %v6682
  %6717 = vmatprep.subr.bf16.mxu0 0
  %6718 = vmatpush1.bf16.msra.mxu0 %v6680
  %6719 = vmatprep.subr.bf16.mxu0 0
  %6720 = vmatpush2.bf16.msra.mxu0 0
  %6721 = vmatprep.subr.bf16.mxu0 0
  %6722 = vmatpush2.bf16.msra.mxu0 0
  %6723 = vmatprep.subr.bf16.mxu0 0
  %6724 = vmatpush2.bf16.msra.mxu0 0
  %6725 = vmatprep.subr.bf16.mxu0 0
  %6726 = vmatpush2.bf16.msra.mxu0 0
  %6727 = vmatprep.subr.bf16.mxu0 0
  %6728 = vmatpush2.bf16.msra.mxu0 0
  %6729 = vmatprep.subr.bf16.mxu0 0
  %6730 = vmatpush2.bf16.msra.mxu0 0
  %6731 = vmatprep.subr.bf16.mxu0 0
  %6732 = vmatpush2.bf16.msra.mxu0 0
  %6733 = vmatprep.subr.bf16.mxu0 0
  %6734 = vmatpush2.bf16.msra.mxu0 0
  %6735 = vmatprep.mubr.bf16.mxu0 0
  %6736 = vmatmul.mubr.bf16.gmra.mxu0 %v6692
  %v6737 = vpop.f32.mrf.mxu0
  %v6738 = vadd.f32 0.0, %v6737
  %v6739 = vpop.f32.mrf.mxu0
  %v6740 = vpop.f32.mrf.mxu0
  %v6741 = vadd.f32 0.0, %v6740
  %v6742 = vpop.f32.mrf.mxu0
  %6743 = vmatprep.mubr.bf16.mxu0 0
  %6744 = vmatmul.mubr.bf16.gmra.mxu0 %v6695
  %v6745 = vpop.f32.mrf.mxu0
  %v6746 = vadd.f32 0.0, %v6745
  %v6747 = vpop.f32.mrf.mxu0
  %v6748 = vpop.f32.mrf.mxu0
  %v6749 = vadd.f32 0.0, %v6748
  %v6750 = vpop.f32.mrf.mxu0
  %6751 = vmatprep.mubr.bf16.mxu0 0
  %6752 = vmatmul.mubr.bf16.gmra.mxu0 %v6698
  %v6753 = vpop.f32.mrf.mxu0
  %v6754 = vadd.f32 0.0, %v6753
  %v6755 = vpop.f32.mrf.mxu0
  %v6756 = vpop.f32.mrf.mxu0
  %v6757 = vadd.f32 0.0, %v6756
  %v6758 = vpop.f32.mrf.mxu0
  %6759 = vmatprep.mubr.bf16.mxu0 0
  %6760 = vmatmul.mubr.bf16.gmra.mxu0 %v6701
  %v6761 = vpop.f32.mrf.mxu0
  %v6762 = vadd.f32 0.0, %v6761
  %v6763 = vpop.f32.mrf.mxu0
  %v6764 = vpop.f32.mrf.mxu0
  %v6765 = vadd.f32 0.0, %v6764
  %v6766 = vpop.f32.mrf.mxu0
  %6767 = vdwg.mxu0
  %v6768 = vpack.c.bf16 %v6741, %v6738
  %v6769 = vpack.c.bf16 %v6749, %v6746
  %v6770 = vpack.c.bf16 %v6757, %v6754
  %v6771 = vpack.c.bf16 %v6765, %v6762
  %v6772 = vpack.c.b16 %v4377, %v4377
  %6773 = vrot.lane.b32.xlu0 %v6772, 32
  %v6774 = vpop.permute.xlu0 %6773
  %v6776 = vsel %vm84, %v6768, 0
  %v6779 = vsel %vm84, %v6769, 0
  %v6782 = vsel %vm84, %v6770, 0
  %v6785 = vsel %vm84, %v6771, 0
  %v6788 = vsel %vm109, %v6774, 0
  %6790 = vmatprep.subr.bf16.mxu0 0
  %6791 = vmatpush1.bf16.msra.mxu0 0
  %6792 = vmatprep.subr.bf16.mxu0 0
  %6793 = vmatpush1.bf16.msra.mxu0 0
  %6794 = vmatprep.subr.bf16.mxu0 0
  %6795 = vmatpush1.bf16.msra.mxu0 0
  %6796 = vmatprep.subr.bf16.mxu0 0
  %6797 = vmatpush1.bf16.msra.mxu0 0
  %6798 = vmatprep.subr.bf16.mxu0 0
  %6799 = vmatpush1.bf16.msra.mxu0 0
  %6800 = vmatprep.subr.bf16.mxu0 0
  %6801 = vmatpush1.bf16.msra.mxu0 0
  %6802 = vmatprep.subr.bf16.mxu0 0
  %6803 = vmatpush1.bf16.msra.mxu0 0
  %6804 = vmatprep.subr.bf16.mxu0 0
  %6805 = vmatpush1.bf16.msra.mxu0 %v6788
  %6806 = vmatprep.subr.bf16.mxu0 0
  %6807 = vmatpush2.bf16.msra.mxu0 0
  %6808 = vmatprep.subr.bf16.mxu0 0
  %6809 = vmatpush2.bf16.msra.mxu0 0
  %6810 = vmatprep.subr.bf16.mxu0 0
  %6811 = vmatpush2.bf16.msra.mxu0 0
  %6812 = vmatprep.subr.bf16.mxu0 0
  %6813 = vmatpush2.bf16.msra.mxu0 0
  %6814 = vmatprep.subr.bf16.mxu0 0
  %6815 = vmatpush2.bf16.msra.mxu0 0
  %6816 = vmatprep.subr.bf16.mxu0 0
  %6817 = vmatpush2.bf16.msra.mxu0 0
  %6818 = vmatprep.subr.bf16.mxu0 0
  %6819 = vmatpush2.bf16.msra.mxu0 0
  %6820 = vmatprep.subr.bf16.mxu0 0
  %6821 = vmatpush2.bf16.msra.mxu0 0
  %6822 = vmatprep.mubr.bf16.mxu0 0
  %6823 = vmatmul.mubr.bf16.gmra.mxu0 %v6776
  %v6824 = vpop.f32.mrf.mxu0
  %v6825 = vadd.f32 0.0, %v6824
  %v6826 = vpop.f32.mrf.mxu0
  %v6827 = vpop.f32.mrf.mxu0
  %v6828 = vadd.f32 0.0, %v6827
  %v6829 = vpop.f32.mrf.mxu0
  %6830 = vmatprep.mubr.bf16.mxu0 0
  %6831 = vmatmul.mubr.bf16.gmra.mxu0 %v6779
  %v6832 = vpop.f32.mrf.mxu0
  %v6833 = vadd.f32 0.0, %v6832
  %v6834 = vpop.f32.mrf.mxu0
  %v6835 = vpop.f32.mrf.mxu0
  %v6836 = vadd.f32 0.0, %v6835
  %v6837 = vpop.f32.mrf.mxu0
  %6838 = vmatprep.mubr.bf16.mxu0 0
  %6839 = vmatmul.mubr.bf16.gmra.mxu0 %v6782
  %v6840 = vpop.f32.mrf.mxu0
  %v6841 = vadd.f32 0.0, %v6840
  %v6842 = vpop.f32.mrf.mxu0
  %v6843 = vpop.f32.mrf.mxu0
  %v6844 = vadd.f32 0.0, %v6843
  %v6845 = vpop.f32.mrf.mxu0
  %6846 = vmatprep.mubr.bf16.mxu0 0
  %6847 = vmatmul.mubr.bf16.gmra.mxu0 %v6785
  %v6848 = vpop.f32.mrf.mxu0
  %v6849 = vadd.f32 0.0, %v6848
  %v6850 = vpop.f32.mrf.mxu0
  %v6851 = vpop.f32.mrf.mxu0
  %v6852 = vadd.f32 0.0, %v6851
  %v6853 = vpop.f32.mrf.mxu0
  %6854 = vdwg.mxu0
  %v6855 = vadd.f32 %v6671, %v6825
  %v6856 = vadd.f32 %v6672, %v6828
  %v6857 = vadd.f32 %v6673, %v6833
  %v6858 = vadd.f32 %v6674, %v6836
  %v6859 = vadd.f32 %v6675, %v6841
  %v6860 = vadd.f32 %v6676, %v6844
  %v6861 = vadd.f32 %v6677, %v6849
  %v6862 = vadd.f32 %v6678, %v6852
  %6863 = vrot.lane.b32.xlu0 %v4507, 64
  %v6864 = vpop.permute.xlu0 %6863
  %6865 = vrot.lane.b32.xlu0 %v4508, 64
  %v6866 = vpop.permute.xlu0 %6865
  %6867 = vrot.lane.b32.xlu0 %v4509, 64
  %v6868 = vpop.permute.xlu0 %6867
  %6869 = vrot.lane.b32.xlu0 %v4510, 64
  %v6870 = vpop.permute.xlu0 %6869
  %v6876 = vsel %vm1373, %v6127, 0
  %v6879 = vsel %vm1373, %v6128, 0
  %v6882 = vsel %vm1373, %v6129, 0
  %v6885 = vsel %vm1373, %v6130, 0
  %6887 = vmatprep.subr.bf16.mxu0 0
  %6888 = vmatpush1.bf16.msra.mxu0 0
  %6889 = vmatprep.subr.bf16.mxu0 0
  %6890 = vmatpush1.bf16.msra.mxu0 0
  %6891 = vmatprep.subr.bf16.mxu0 0
  %6892 = vmatpush1.bf16.msra.mxu0 0
  %6893 = vmatprep.subr.bf16.mxu0 0
  %6894 = vmatpush1.bf16.msra.mxu0 0
  %6895 = vmatprep.subr.bf16.mxu0 0
  %6896 = vmatpush1.bf16.msra.mxu0 %v6870
  %6897 = vmatprep.subr.bf16.mxu0 0
  %6898 = vmatpush1.bf16.msra.mxu0 %v6868
  %6899 = vmatprep.subr.bf16.mxu0 0
  %6900 = vmatpush1.bf16.msra.mxu0 %v6866
  %6901 = vmatprep.subr.bf16.mxu0 0
  %6902 = vmatpush1.bf16.msra.mxu0 %v6864
  %6903 = vmatprep.subr.bf16.mxu0 0
  %6904 = vmatpush2.bf16.msra.mxu0 0
  %6905 = vmatprep.subr.bf16.mxu0 0
  %6906 = vmatpush2.bf16.msra.mxu0 0
  %6907 = vmatprep.subr.bf16.mxu0 0
  %6908 = vmatpush2.bf16.msra.mxu0 0
  %6909 = vmatprep.subr.bf16.mxu0 0
  %6910 = vmatpush2.bf16.msra.mxu0 0
  %6911 = vmatprep.subr.bf16.mxu0 0
  %6912 = vmatpush2.bf16.msra.mxu0 0
  %6913 = vmatprep.subr.bf16.mxu0 0
  %6914 = vmatpush2.bf16.msra.mxu0 0
  %6915 = vmatprep.subr.bf16.mxu0 0
  %6916 = vmatpush2.bf16.msra.mxu0 0
  %6917 = vmatprep.subr.bf16.mxu0 0
  %6918 = vmatpush2.bf16.msra.mxu0 0
  %6919 = vmatprep.mubr.bf16.mxu0 0
  %6920 = vmatmul.mubr.bf16.gmra.mxu0 %v6876
  %v6921 = vpop.f32.mrf.mxu0
  %v6922 = vadd.f32 0.0, %v6921
  %v6923 = vpop.f32.mrf.mxu0
  %v6924 = vpop.f32.mrf.mxu0
  %v6925 = vadd.f32 0.0, %v6924
  %v6926 = vpop.f32.mrf.mxu0
  %6927 = vmatprep.mubr.bf16.mxu0 0
  %6928 = vmatmul.mubr.bf16.gmra.mxu0 %v6879
  %v6929 = vpop.f32.mrf.mxu0
  %v6930 = vadd.f32 0.0, %v6929
  %v6931 = vpop.f32.mrf.mxu0
  %v6932 = vpop.f32.mrf.mxu0
  %v6933 = vadd.f32 0.0, %v6932
  %v6934 = vpop.f32.mrf.mxu0
  %6935 = vmatprep.mubr.bf16.mxu0 0
  %6936 = vmatmul.mubr.bf16.gmra.mxu0 %v6882
  %v6937 = vpop.f32.mrf.mxu0
  %v6938 = vadd.f32 0.0, %v6937
  %v6939 = vpop.f32.mrf.mxu0
  %v6940 = vpop.f32.mrf.mxu0
  %v6941 = vadd.f32 0.0, %v6940
  %v6942 = vpop.f32.mrf.mxu0
  %6943 = vmatprep.mubr.bf16.mxu0 0
  %6944 = vmatmul.mubr.bf16.gmra.mxu0 %v6885
  %v6945 = vpop.f32.mrf.mxu0
  %v6946 = vadd.f32 0.0, %v6945
  %v6947 = vpop.f32.mrf.mxu0
  %v6948 = vpop.f32.mrf.mxu0
  %v6949 = vadd.f32 0.0, %v6948
  %v6950 = vpop.f32.mrf.mxu0
  %6951 = vdwg.mxu0
  %v6952 = vpack.c.bf16 %v6925, %v6922
  %v6953 = vpack.c.bf16 %v6933, %v6930
  %v6954 = vpack.c.bf16 %v6941, %v6938
  %v6955 = vpack.c.bf16 %v6949, %v6946
  %6956 = vrot.lane.b32.xlu0 %v4507, 56
  %v6957 = vpop.permute.xlu0 %6956
  %6958 = vrot.lane.b32.xlu0 %v4508, 56
  %v6959 = vpop.permute.xlu0 %6958
  %6960 = vrot.lane.b32.xlu0 %v4509, 56
  %v6961 = vpop.permute.xlu0 %6960
  %6962 = vrot.lane.b32.xlu0 %v4510, 56
  %v6963 = vpop.permute.xlu0 %6962
  %v6969 = vsel %vm1373, %v6131, 0
  %v6972 = vsel %vm1373, %v6132, 0
  %v6975 = vsel %vm1373, %v6133, 0
  %v6978 = vsel %vm1373, %v6134, 0
  %6980 = vmatprep.subr.bf16.mxu0 0
  %6981 = vmatpush1.bf16.msra.mxu0 0
  %6982 = vmatprep.subr.bf16.mxu0 0
  %6983 = vmatpush1.bf16.msra.mxu0 0
  %6984 = vmatprep.subr.bf16.mxu0 0
  %6985 = vmatpush1.bf16.msra.mxu0 0
  %6986 = vmatprep.subr.bf16.mxu0 0
  %6987 = vmatpush1.bf16.msra.mxu0 0
  %6988 = vmatprep.subr.bf16.mxu0 0
  %6989 = vmatpush1.bf16.msra.mxu0 %v6963
  %6990 = vmatprep.subr.bf16.mxu0 0
  %6991 = vmatpush1.bf16.msra.mxu0 %v6961
  %6992 = vmatprep.subr.bf16.mxu0 0
  %6993 = vmatpush1.bf16.msra.mxu0 %v6959
  %6994 = vmatprep.subr.bf16.mxu0 0
  %6995 = vmatpush1.bf16.msra.mxu0 %v6957
  %6996 = vmatprep.subr.bf16.mxu0 0
  %6997 = vmatpush2.bf16.msra.mxu0 0
  %6998 = vmatprep.subr.bf16.mxu0 0
  %6999 = vmatpush2.bf16.msra.mxu0 0
  %7000 = vmatprep.subr.bf16.mxu0 0
  %7001 = vmatpush2.bf16.msra.mxu0 0
  %7002 = vmatprep.subr.bf16.mxu0 0
  %7003 = vmatpush2.bf16.msra.mxu0 0
  %7004 = vmatprep.subr.bf16.mxu0 0
  %7005 = vmatpush2.bf16.msra.mxu0 0
  %7006 = vmatprep.subr.bf16.mxu0 0
  %7007 = vmatpush2.bf16.msra.mxu0 0
  %7008 = vmatprep.subr.bf16.mxu0 0
  %7009 = vmatpush2.bf16.msra.mxu0 0
  %7010 = vmatprep.subr.bf16.mxu0 0
  %7011 = vmatpush2.bf16.msra.mxu0 0
  %7012 = vmatprep.mubr.bf16.mxu0 0
  %7013 = vmatmul.mubr.bf16.gmra.mxu0 %v6969
  %v7014 = vpop.f32.mrf.mxu0
  %v7015 = vadd.f32 0.0, %v7014
  %v7016 = vpop.f32.mrf.mxu0
  %v7017 = vpop.f32.mrf.mxu0
  %v7018 = vadd.f32 0.0, %v7017
  %v7019 = vpop.f32.mrf.mxu0
  %7020 = vmatprep.mubr.bf16.mxu0 0
  %7021 = vmatmul.mubr.bf16.gmra.mxu0 %v6972
  %v7022 = vpop.f32.mrf.mxu0
  %v7023 = vadd.f32 0.0, %v7022
  %v7024 = vpop.f32.mrf.mxu0
  %v7025 = vpop.f32.mrf.mxu0
  %v7026 = vadd.f32 0.0, %v7025
  %v7027 = vpop.f32.mrf.mxu0
  %7028 = vmatprep.mubr.bf16.mxu0 0
  %7029 = vmatmul.mubr.bf16.gmra.mxu0 %v6975
  %v7030 = vpop.f32.mrf.mxu0
  %v7031 = vadd.f32 0.0, %v7030
  %v7032 = vpop.f32.mrf.mxu0
  %v7033 = vpop.f32.mrf.mxu0
  %v7034 = vadd.f32 0.0, %v7033
  %v7035 = vpop.f32.mrf.mxu0
  %7036 = vmatprep.mubr.bf16.mxu0 0
  %7037 = vmatmul.mubr.bf16.gmra.mxu0 %v6978
  %v7038 = vpop.f32.mrf.mxu0
  %v7039 = vadd.f32 0.0, %v7038
  %v7040 = vpop.f32.mrf.mxu0
  %v7041 = vpop.f32.mrf.mxu0
  %v7042 = vadd.f32 0.0, %v7041
  %v7043 = vpop.f32.mrf.mxu0
  %7044 = vdwg.mxu0
  %v7045 = vpack.c.bf16 %v7018, %v7015
  %v7046 = vpack.c.bf16 %v7026, %v7023
  %v7047 = vpack.c.bf16 %v7034, %v7031
  %v7048 = vpack.c.bf16 %v7042, %v7039
  %v7050 = vsel %vm84, %v7045, 0
  %v7053 = vsel %vm84, %v7046, 0
  %v7056 = vsel %vm84, %v7047, 0
  %v7059 = vsel %vm84, %v7048, 0
  %7061 = vmatprep.subr.bf16.mxu0 0
  %7062 = vmatpush1.bf16.msra.mxu0 0
  %7063 = vmatprep.subr.bf16.mxu0 0
  %7064 = vmatpush1.bf16.msra.mxu0 0
  %7065 = vmatprep.subr.bf16.mxu0 0
  %7066 = vmatpush1.bf16.msra.mxu0 0
  %7067 = vmatprep.subr.bf16.mxu0 0
  %7068 = vmatpush1.bf16.msra.mxu0 0
  %7069 = vmatprep.subr.bf16.mxu0 0
  %7070 = vmatpush1.bf16.msra.mxu0 0
  %7071 = vmatprep.subr.bf16.mxu0 0
  %7072 = vmatpush1.bf16.msra.mxu0 0
  %7073 = vmatprep.subr.bf16.mxu0 0
  %7074 = vmatpush1.bf16.msra.mxu0 0
  %7075 = vmatprep.subr.bf16.mxu0 0
  %7076 = vmatpush1.bf16.msra.mxu0 %v6345
  %7077 = vmatprep.subr.bf16.mxu0 0
  %7078 = vmatpush2.bf16.msra.mxu0 0
  %7079 = vmatprep.subr.bf16.mxu0 0
  %7080 = vmatpush2.bf16.msra.mxu0 0
  %7081 = vmatprep.subr.bf16.mxu0 0
  %7082 = vmatpush2.bf16.msra.mxu0 0
  %7083 = vmatprep.subr.bf16.mxu0 0
  %7084 = vmatpush2.bf16.msra.mxu0 0
  %7085 = vmatprep.subr.bf16.mxu0 0
  %7086 = vmatpush2.bf16.msra.mxu0 0
  %7087 = vmatprep.subr.bf16.mxu0 0
  %7088 = vmatpush2.bf16.msra.mxu0 0
  %7089 = vmatprep.subr.bf16.mxu0 0
  %7090 = vmatpush2.bf16.msra.mxu0 0
  %7091 = vmatprep.subr.bf16.mxu0 0
  %7092 = vmatpush2.bf16.msra.mxu0 0
  %7093 = vmatprep.mubr.bf16.mxu0 0
  %7094 = vmatmul.mubr.bf16.gmra.mxu0 %v7050
  %v7095 = vpop.f32.mrf.mxu0
  %v7096 = vadd.f32 0.0, %v7095
  %v7097 = vpop.f32.mrf.mxu0
  %v7098 = vpop.f32.mrf.mxu0
  %v7099 = vadd.f32 0.0, %v7098
  %v7100 = vpop.f32.mrf.mxu0
  %7101 = vmatprep.mubr.bf16.mxu0 0
  %7102 = vmatmul.mubr.bf16.gmra.mxu0 %v7053
  %v7103 = vpop.f32.mrf.mxu0
  %v7104 = vadd.f32 0.0, %v7103
  %v7105 = vpop.f32.mrf.mxu0
  %v7106 = vpop.f32.mrf.mxu0
  %v7107 = vadd.f32 0.0, %v7106
  %v7108 = vpop.f32.mrf.mxu0
  %7109 = vmatprep.mubr.bf16.mxu0 0
  %7110 = vmatmul.mubr.bf16.gmra.mxu0 %v7056
  %v7111 = vpop.f32.mrf.mxu0
  %v7112 = vadd.f32 0.0, %v7111
  %v7113 = vpop.f32.mrf.mxu0
  %v7114 = vpop.f32.mrf.mxu0
  %v7115 = vadd.f32 0.0, %v7114
  %v7116 = vpop.f32.mrf.mxu0
  %7117 = vmatprep.mubr.bf16.mxu0 0
  %7118 = vmatmul.mubr.bf16.gmra.mxu0 %v7059
  %v7119 = vpop.f32.mrf.mxu0
  %v7120 = vadd.f32 0.0, %v7119
  %v7121 = vpop.f32.mrf.mxu0
  %v7122 = vpop.f32.mrf.mxu0
  %v7123 = vadd.f32 0.0, %v7122
  %v7124 = vpop.f32.mrf.mxu0
  %7125 = vdwg.mxu0
  %v7127 = vsel %vm84, %v6952, 0
  %v7130 = vsel %vm84, %v6953, 0
  %v7133 = vsel %vm84, %v6954, 0
  %v7136 = vsel %vm84, %v6955, 0
  %7138 = vmatprep.subr.bf16.mxu0 0
  %7139 = vmatpush1.bf16.msra.mxu0 0
  %7140 = vmatprep.subr.bf16.mxu0 0
  %7141 = vmatpush1.bf16.msra.mxu0 0
  %7142 = vmatprep.subr.bf16.mxu0 0
  %7143 = vmatpush1.bf16.msra.mxu0 0
  %7144 = vmatprep.subr.bf16.mxu0 0
  %7145 = vmatpush1.bf16.msra.mxu0 0
  %7146 = vmatprep.subr.bf16.mxu0 0
  %7147 = vmatpush1.bf16.msra.mxu0 0
  %7148 = vmatprep.subr.bf16.mxu0 0
  %7149 = vmatpush1.bf16.msra.mxu0 0
  %7150 = vmatprep.subr.bf16.mxu0 0
  %7151 = vmatpush1.bf16.msra.mxu0 0
  %7152 = vmatprep.subr.bf16.mxu0 0
  %7153 = vmatpush1.bf16.msra.mxu0 %v6428
  %7154 = vmatprep.subr.bf16.mxu0 0
  %7155 = vmatpush2.bf16.msra.mxu0 0
  %7156 = vmatprep.subr.bf16.mxu0 0
  %7157 = vmatpush2.bf16.msra.mxu0 0
  %7158 = vmatprep.subr.bf16.mxu0 0
  %7159 = vmatpush2.bf16.msra.mxu0 0
  %7160 = vmatprep.subr.bf16.mxu0 0
  %7161 = vmatpush2.bf16.msra.mxu0 0
  %7162 = vmatprep.subr.bf16.mxu0 0
  %7163 = vmatpush2.bf16.msra.mxu0 0
  %7164 = vmatprep.subr.bf16.mxu0 0
  %7165 = vmatpush2.bf16.msra.mxu0 0
  %7166 = vmatprep.subr.bf16.mxu0 0
  %7167 = vmatpush2.bf16.msra.mxu0 0
  %7168 = vmatprep.subr.bf16.mxu0 0
  %7169 = vmatpush2.bf16.msra.mxu0 0
  %7170 = vmatprep.mubr.bf16.mxu0 0
  %7171 = vmatmul.mubr.bf16.gmra.mxu0 %v7127
  %v7172 = vpop.f32.mrf.mxu0
  %v7173 = vadd.f32 %v7096, %v7172
  %v7174 = vpop.f32.mrf.mxu0
  %v7175 = vpop.f32.mrf.mxu0
  %v7176 = vadd.f32 %v7099, %v7175
  %v7177 = vpop.f32.mrf.mxu0
  %7178 = vmatprep.mubr.bf16.mxu0 0
  %7179 = vmatmul.mubr.bf16.gmra.mxu0 %v7130
  %v7180 = vpop.f32.mrf.mxu0
  %v7181 = vadd.f32 %v7104, %v7180
  %v7182 = vpop.f32.mrf.mxu0
  %v7183 = vpop.f32.mrf.mxu0
  %v7184 = vadd.f32 %v7107, %v7183
  %v7185 = vpop.f32.mrf.mxu0
  %7186 = vmatprep.mubr.bf16.mxu0 0
  %7187 = vmatmul.mubr.bf16.gmra.mxu0 %v7133
  %v7188 = vpop.f32.mrf.mxu0
  %v7189 = vadd.f32 %v7112, %v7188
  %v7190 = vpop.f32.mrf.mxu0
  %v7191 = vpop.f32.mrf.mxu0
  %v7192 = vadd.f32 %v7115, %v7191
  %v7193 = vpop.f32.mrf.mxu0
  %7194 = vmatprep.mubr.bf16.mxu0 0
  %7195 = vmatmul.mubr.bf16.gmra.mxu0 %v7136
  %v7196 = vpop.f32.mrf.mxu0
  %v7197 = vadd.f32 %v7120, %v7196
  %v7198 = vpop.f32.mrf.mxu0
  %v7199 = vpop.f32.mrf.mxu0
  %v7200 = vadd.f32 %v7123, %v7199
  %v7201 = vpop.f32.mrf.mxu0
  %7202 = vdwg.mxu0
  %7203 = vrot.lane.b32.xlu0 %v4507, 48
  %v7204 = vpop.permute.xlu0 %7203
  %7205 = vrot.lane.b32.xlu0 %v4508, 48
  %v7206 = vpop.permute.xlu0 %7205
  %7207 = vrot.lane.b32.xlu0 %v4509, 48
  %v7208 = vpop.permute.xlu0 %7207
  %7209 = vrot.lane.b32.xlu0 %v4510, 48
  %v7210 = vpop.permute.xlu0 %7209
  %v7216 = vsel %vm1373, %v6135, 0
  %v7219 = vsel %vm1373, %v6136, 0
  %v7222 = vsel %vm1373, %v6137, 0
  %v7225 = vsel %vm1373, %v6138, 0
  %7227 = vmatprep.subr.bf16.mxu0 0
  %7228 = vmatpush1.bf16.msra.mxu0 0
  %7229 = vmatprep.subr.bf16.mxu0 0
  %7230 = vmatpush1.bf16.msra.mxu0 0
  %7231 = vmatprep.subr.bf16.mxu0 0
  %7232 = vmatpush1.bf16.msra.mxu0 0
  %7233 = vmatprep.subr.bf16.mxu0 0
  %7234 = vmatpush1.bf16.msra.mxu0 0
  %7235 = vmatprep.subr.bf16.mxu0 0
  %7236 = vmatpush1.bf16.msra.mxu0 %v7210
  %7237 = vmatprep.subr.bf16.mxu0 0
  %7238 = vmatpush1.bf16.msra.mxu0 %v7208
  %7239 = vmatprep.subr.bf16.mxu0 0
  %7240 = vmatpush1.bf16.msra.mxu0 %v7206
  %7241 = vmatprep.subr.bf16.mxu0 0
  %7242 = vmatpush1.bf16.msra.mxu0 %v7204
  %7243 = vmatprep.subr.bf16.mxu0 0
  %7244 = vmatpush2.bf16.msra.mxu0 0
  %7245 = vmatprep.subr.bf16.mxu0 0
  %7246 = vmatpush2.bf16.msra.mxu0 0
  %7247 = vmatprep.subr.bf16.mxu0 0
  %7248 = vmatpush2.bf16.msra.mxu0 0
  %7249 = vmatprep.subr.bf16.mxu0 0
  %7250 = vmatpush2.bf16.msra.mxu0 0
  %7251 = vmatprep.subr.bf16.mxu0 0
  %7252 = vmatpush2.bf16.msra.mxu0 0
  %7253 = vmatprep.subr.bf16.mxu0 0
  %7254 = vmatpush2.bf16.msra.mxu0 0
  %7255 = vmatprep.subr.bf16.mxu0 0
  %7256 = vmatpush2.bf16.msra.mxu0 0
  %7257 = vmatprep.subr.bf16.mxu0 0
  %7258 = vmatpush2.bf16.msra.mxu0 0
  %7259 = vmatprep.mubr.bf16.mxu0 0
  %7260 = vmatmul.mubr.bf16.gmra.mxu0 %v7216
  %v7261 = vpop.f32.mrf.mxu0
  %v7262 = vadd.f32 0.0, %v7261
  %v7263 = vpop.f32.mrf.mxu0
  %v7264 = vpop.f32.mrf.mxu0
  %v7265 = vadd.f32 0.0, %v7264
  %v7266 = vpop.f32.mrf.mxu0
  %7267 = vmatprep.mubr.bf16.mxu0 0
  %7268 = vmatmul.mubr.bf16.gmra.mxu0 %v7219
  %v7269 = vpop.f32.mrf.mxu0
  %v7270 = vadd.f32 0.0, %v7269
  %v7271 = vpop.f32.mrf.mxu0
  %v7272 = vpop.f32.mrf.mxu0
  %v7273 = vadd.f32 0.0, %v7272
  %v7274 = vpop.f32.mrf.mxu0
  %7275 = vmatprep.mubr.bf16.mxu0 0
  %7276 = vmatmul.mubr.bf16.gmra.mxu0 %v7222
  %v7277 = vpop.f32.mrf.mxu0
  %v7278 = vadd.f32 0.0, %v7277
  %v7279 = vpop.f32.mrf.mxu0
  %v7280 = vpop.f32.mrf.mxu0
  %v7281 = vadd.f32 0.0, %v7280
  %v7282 = vpop.f32.mrf.mxu0
  %7283 = vmatprep.mubr.bf16.mxu0 0
  %7284 = vmatmul.mubr.bf16.gmra.mxu0 %v7225
  %v7285 = vpop.f32.mrf.mxu0
  %v7286 = vadd.f32 0.0, %v7285
  %v7287 = vpop.f32.mrf.mxu0
  %v7288 = vpop.f32.mrf.mxu0
  %v7289 = vadd.f32 0.0, %v7288
  %v7290 = vpop.f32.mrf.mxu0
  %7291 = vdwg.mxu0
  %v7292 = vpack.c.bf16 %v7265, %v7262
  %v7293 = vpack.c.bf16 %v7273, %v7270
  %v7294 = vpack.c.bf16 %v7281, %v7278
  %v7295 = vpack.c.bf16 %v7289, %v7286
  %v7297 = vsel %vm84, %v7292, 0
  %v7300 = vsel %vm84, %v7293, 0
  %v7303 = vsel %vm84, %v7294, 0
  %v7306 = vsel %vm84, %v7295, 0
  %7308 = vmatprep.subr.bf16.mxu0 0
  %7309 = vmatpush1.bf16.msra.mxu0 0
  %7310 = vmatprep.subr.bf16.mxu0 0
  %7311 = vmatpush1.bf16.msra.mxu0 0
  %7312 = vmatprep.subr.bf16.mxu0 0
  %7313 = vmatpush1.bf16.msra.mxu0 0
  %7314 = vmatprep.subr.bf16.mxu0 0
  %7315 = vmatpush1.bf16.msra.mxu0 0
  %7316 = vmatprep.subr.bf16.mxu0 0
  %7317 = vmatpush1.bf16.msra.mxu0 0
  %7318 = vmatprep.subr.bf16.mxu0 0
  %7319 = vmatpush1.bf16.msra.mxu0 0
  %7320 = vmatprep.subr.bf16.mxu0 0
  %7321 = vmatpush1.bf16.msra.mxu0 0
  %7322 = vmatprep.subr.bf16.mxu0 0
  %7323 = vmatpush1.bf16.msra.mxu0 %v6604
  %7324 = vmatprep.subr.bf16.mxu0 0
  %7325 = vmatpush2.bf16.msra.mxu0 0
  %7326 = vmatprep.subr.bf16.mxu0 0
  %7327 = vmatpush2.bf16.msra.mxu0 0
  %7328 = vmatprep.subr.bf16.mxu0 0
  %7329 = vmatpush2.bf16.msra.mxu0 0
  %7330 = vmatprep.subr.bf16.mxu0 0
  %7331 = vmatpush2.bf16.msra.mxu0 0
  %7332 = vmatprep.subr.bf16.mxu0 0
  %7333 = vmatpush2.bf16.msra.mxu0 0
  %7334 = vmatprep.subr.bf16.mxu0 0
  %7335 = vmatpush2.bf16.msra.mxu0 0
  %7336 = vmatprep.subr.bf16.mxu0 0
  %7337 = vmatpush2.bf16.msra.mxu0 0
  %7338 = vmatprep.subr.bf16.mxu0 0
  %7339 = vmatpush2.bf16.msra.mxu0 0
  %7340 = vmatprep.mubr.bf16.mxu0 0
  %7341 = vmatmul.mubr.bf16.gmra.mxu0 %v7297
  %v7342 = vpop.f32.mrf.mxu0
  %v7343 = vadd.f32 0.0, %v7342
  %v7344 = vpop.f32.mrf.mxu0
  %v7345 = vpop.f32.mrf.mxu0
  %v7346 = vadd.f32 0.0, %v7345
  %v7347 = vpop.f32.mrf.mxu0
  %7348 = vmatprep.mubr.bf16.mxu0 0
  %7349 = vmatmul.mubr.bf16.gmra.mxu0 %v7300
  %v7350 = vpop.f32.mrf.mxu0
  %v7351 = vadd.f32 0.0, %v7350
  %v7352 = vpop.f32.mrf.mxu0
  %v7353 = vpop.f32.mrf.mxu0
  %v7354 = vadd.f32 0.0, %v7353
  %v7355 = vpop.f32.mrf.mxu0
  %7356 = vmatprep.mubr.bf16.mxu0 0
  %7357 = vmatmul.mubr.bf16.gmra.mxu0 %v7303
  %v7358 = vpop.f32.mrf.mxu0
  %v7359 = vadd.f32 0.0, %v7358
  %v7360 = vpop.f32.mrf.mxu0
  %v7361 = vpop.f32.mrf.mxu0
  %v7362 = vadd.f32 0.0, %v7361
  %v7363 = vpop.f32.mrf.mxu0
  %7364 = vmatprep.mubr.bf16.mxu0 0
  %7365 = vmatmul.mubr.bf16.gmra.mxu0 %v7306
  %v7366 = vpop.f32.mrf.mxu0
  %v7367 = vadd.f32 0.0, %v7366
  %v7368 = vpop.f32.mrf.mxu0
  %v7369 = vpop.f32.mrf.mxu0
  %v7370 = vadd.f32 0.0, %v7369
  %v7371 = vpop.f32.mrf.mxu0
  %7372 = vdwg.mxu0
  %v7373 = vadd.f32 %v7173, %v7343
  %v7374 = vadd.f32 %v7176, %v7346
  %v7375 = vadd.f32 %v7181, %v7351
  %v7376 = vadd.f32 %v7184, %v7354
  %v7377 = vadd.f32 %v7189, %v7359
  %v7378 = vadd.f32 %v7192, %v7362
  %v7379 = vadd.f32 %v7197, %v7367
  %v7380 = vadd.f32 %v7200, %v7370
  %7381 = vrot.lane.b32.xlu0 %v4507, 40
  %v7382 = vpop.permute.xlu0 %7381
  %7383 = vrot.lane.b32.xlu0 %v4508, 40
  %v7384 = vpop.permute.xlu0 %7383
  %7385 = vrot.lane.b32.xlu0 %v4509, 40
  %v7386 = vpop.permute.xlu0 %7385
  %7387 = vrot.lane.b32.xlu0 %v4510, 40
  %v7388 = vpop.permute.xlu0 %7387
  %v7394 = vsel %vm1373, %v6139, 0
  %v7397 = vsel %vm1373, %v6140, 0
  %v7400 = vsel %vm1373, %v6141, 0
  %v7403 = vsel %vm1373, %v6142, 0
  %7405 = vmatprep.subr.bf16.mxu0 0
  %7406 = vmatpush1.bf16.msra.mxu0 0
  %7407 = vmatprep.subr.bf16.mxu0 0
  %7408 = vmatpush1.bf16.msra.mxu0 0
  %7409 = vmatprep.subr.bf16.mxu0 0
  %7410 = vmatpush1.bf16.msra.mxu0 0
  %7411 = vmatprep.subr.bf16.mxu0 0
  %7412 = vmatpush1.bf16.msra.mxu0 0
  %7413 = vmatprep.subr.bf16.mxu0 0
  %7414 = vmatpush1.bf16.msra.mxu0 %v7388
  %7415 = vmatprep.subr.bf16.mxu0 0
  %7416 = vmatpush1.bf16.msra.mxu0 %v7386
  %7417 = vmatprep.subr.bf16.mxu0 0
  %7418 = vmatpush1.bf16.msra.mxu0 %v7384
  %7419 = vmatprep.subr.bf16.mxu0 0
  %7420 = vmatpush1.bf16.msra.mxu0 %v7382
  %7421 = vmatprep.subr.bf16.mxu0 0
  %7422 = vmatpush2.bf16.msra.mxu0 0
  %7423 = vmatprep.subr.bf16.mxu0 0
  %7424 = vmatpush2.bf16.msra.mxu0 0
  %7425 = vmatprep.subr.bf16.mxu0 0
  %7426 = vmatpush2.bf16.msra.mxu0 0
  %7427 = vmatprep.subr.bf16.mxu0 0
  %7428 = vmatpush2.bf16.msra.mxu0 0
  %7429 = vmatprep.subr.bf16.mxu0 0
  %7430 = vmatpush2.bf16.msra.mxu0 0
  %7431 = vmatprep.subr.bf16.mxu0 0
  %7432 = vmatpush2.bf16.msra.mxu0 0
  %7433 = vmatprep.subr.bf16.mxu0 0
  %7434 = vmatpush2.bf16.msra.mxu0 0
  %7435 = vmatprep.subr.bf16.mxu0 0
  %7436 = vmatpush2.bf16.msra.mxu0 0
  %7437 = vmatprep.mubr.bf16.mxu0 0
  %7438 = vmatmul.mubr.bf16.gmra.mxu0 %v7394
  %v7439 = vpop.f32.mrf.mxu0
  %v7440 = vadd.f32 0.0, %v7439
  %v7441 = vpop.f32.mrf.mxu0
  %v7442 = vpop.f32.mrf.mxu0
  %v7443 = vadd.f32 0.0, %v7442
  %v7444 = vpop.f32.mrf.mxu0
  %7445 = vmatprep.mubr.bf16.mxu0 0
  %7446 = vmatmul.mubr.bf16.gmra.mxu0 %v7397
  %v7447 = vpop.f32.mrf.mxu0
  %v7448 = vadd.f32 0.0, %v7447
  %v7449 = vpop.f32.mrf.mxu0
  %v7450 = vpop.f32.mrf.mxu0
  %v7451 = vadd.f32 0.0, %v7450
  %v7452 = vpop.f32.mrf.mxu0
  %7453 = vmatprep.mubr.bf16.mxu0 0
  %7454 = vmatmul.mubr.bf16.gmra.mxu0 %v7400
  %v7455 = vpop.f32.mrf.mxu0
  %v7456 = vadd.f32 0.0, %v7455
  %v7457 = vpop.f32.mrf.mxu0
  %v7458 = vpop.f32.mrf.mxu0
  %v7459 = vadd.f32 0.0, %v7458
  %v7460 = vpop.f32.mrf.mxu0
  %7461 = vmatprep.mubr.bf16.mxu0 0
  %7462 = vmatmul.mubr.bf16.gmra.mxu0 %v7403
  %v7463 = vpop.f32.mrf.mxu0
  %v7464 = vadd.f32 0.0, %v7463
  %v7465 = vpop.f32.mrf.mxu0
  %v7466 = vpop.f32.mrf.mxu0
  %v7467 = vadd.f32 0.0, %v7466
  %v7468 = vpop.f32.mrf.mxu0
  %7469 = vdwg.mxu0
  %v7470 = vpack.c.bf16 %v7443, %v7440
  %v7471 = vpack.c.bf16 %v7451, %v7448
  %v7472 = vpack.c.bf16 %v7459, %v7456
  %v7473 = vpack.c.bf16 %v7467, %v7464
  %v7475 = vsel %vm84, %v7470, 0
  %v7478 = vsel %vm84, %v7471, 0
  %v7481 = vsel %vm84, %v7472, 0
  %v7484 = vsel %vm84, %v7473, 0
  %7486 = vmatprep.subr.bf16.mxu0 0
  %7487 = vmatpush1.bf16.msra.mxu0 0
  %7488 = vmatprep.subr.bf16.mxu0 0
  %7489 = vmatpush1.bf16.msra.mxu0 0
  %7490 = vmatprep.subr.bf16.mxu0 0
  %7491 = vmatpush1.bf16.msra.mxu0 0
  %7492 = vmatprep.subr.bf16.mxu0 0
  %7493 = vmatpush1.bf16.msra.mxu0 0
  %7494 = vmatprep.subr.bf16.mxu0 0
  %7495 = vmatpush1.bf16.msra.mxu0 0
  %7496 = vmatprep.subr.bf16.mxu0 0
  %7497 = vmatpush1.bf16.msra.mxu0 0
  %7498 = vmatprep.subr.bf16.mxu0 0
  %7499 = vmatpush1.bf16.msra.mxu0 0
  %7500 = vmatprep.subr.bf16.mxu0 0
  %7501 = vmatpush1.bf16.msra.mxu0 %v6788
  %7502 = vmatprep.subr.bf16.mxu0 0
  %7503 = vmatpush2.bf16.msra.mxu0 0
  %7504 = vmatprep.subr.bf16.mxu0 0
  %7505 = vmatpush2.bf16.msra.mxu0 0
  %7506 = vmatprep.subr.bf16.mxu0 0
  %7507 = vmatpush2.bf16.msra.mxu0 0
  %7508 = vmatprep.subr.bf16.mxu0 0
  %7509 = vmatpush2.bf16.msra.mxu0 0
  %7510 = vmatprep.subr.bf16.mxu0 0
  %7511 = vmatpush2.bf16.msra.mxu0 0
  %7512 = vmatprep.subr.bf16.mxu0 0
  %7513 = vmatpush2.bf16.msra.mxu0 0
  %7514 = vmatprep.subr.bf16.mxu0 0
  %7515 = vmatpush2.bf16.msra.mxu0 0
  %7516 = vmatprep.subr.bf16.mxu0 0
  %7517 = vmatpush2.bf16.msra.mxu0 0
  %7518 = vmatprep.mubr.bf16.mxu0 0
  %7519 = vmatmul.mubr.bf16.gmra.mxu0 %v7475
  %v7520 = vpop.f32.mrf.mxu0
  %v7521 = vadd.f32 0.0, %v7520
  %v7522 = vpop.f32.mrf.mxu0
  %v7523 = vpop.f32.mrf.mxu0
  %v7524 = vadd.f32 0.0, %v7523
  %v7525 = vpop.f32.mrf.mxu0
  %7526 = vmatprep.mubr.bf16.mxu0 0
  %7527 = vmatmul.mubr.bf16.gmra.mxu0 %v7478
  %v7528 = vpop.f32.mrf.mxu0
  %v7529 = vadd.f32 0.0, %v7528
  %v7530 = vpop.f32.mrf.mxu0
  %v7531 = vpop.f32.mrf.mxu0
  %v7532 = vadd.f32 0.0, %v7531
  %v7533 = vpop.f32.mrf.mxu0
  %7534 = vmatprep.mubr.bf16.mxu0 0
  %7535 = vmatmul.mubr.bf16.gmra.mxu0 %v7481
  %v7536 = vpop.f32.mrf.mxu0
  %v7537 = vadd.f32 0.0, %v7536
  %v7538 = vpop.f32.mrf.mxu0
  %v7539 = vpop.f32.mrf.mxu0
  %v7540 = vadd.f32 0.0, %v7539
  %v7541 = vpop.f32.mrf.mxu0
  %7542 = vmatprep.mubr.bf16.mxu0 0
  %7543 = vmatmul.mubr.bf16.gmra.mxu0 %v7484
  %v7544 = vpop.f32.mrf.mxu0
  %v7545 = vadd.f32 0.0, %v7544
  %v7546 = vpop.f32.mrf.mxu0
  %v7547 = vpop.f32.mrf.mxu0
  %v7548 = vadd.f32 0.0, %v7547
  %v7549 = vpop.f32.mrf.mxu0
  %7550 = vdwg.mxu0
  %v7551 = vadd.f32 %v7373, %v7521
  %v7552 = vadd.f32 %v7374, %v7524
  %v7553 = vadd.f32 %v7375, %v7529
  %v7554 = vadd.f32 %v7376, %v7532
  %v7555 = vadd.f32 %v7377, %v7537
  %v7556 = vadd.f32 %v7378, %v7540
  %v7557 = vadd.f32 %v7379, %v7545
  %v7558 = vadd.f32 %v7380, %v7548
  %v7559 = vadd.f32 %v6855, %v4339
  %v7560 = vadd.f32 %v6856, %v4340
  %v7561 = vadd.f32 %v6857, %v4341
  %v7562 = vadd.f32 %v6858, %v4342
  %v7563 = vadd.f32 %v6859, %v4343
  %v7564 = vadd.f32 %v6860, %v4344
  %v7565 = vadd.f32 %v6861, %v4345
  %v7566 = vadd.f32 %v6862, %v4346
  %v7567 = vadd.f32 %v7551, %v4347
  %v7568 = vadd.f32 %v7552, %v4348
  %v7569 = vadd.f32 %v7553, %v4349
  %v7570 = vadd.f32 %v7554, %v4350
  %v7571 = vadd.f32 %v7555, %v4351
  %v7572 = vadd.f32 %v7556, %v4352
  %v7573 = vadd.f32 %v7557, %v4353
  %v7574 = vadd.f32 %v7558, %v4354
  %v7575 = vsel %vm347, %v7559, 0.0
  %7576 = vadd.xlane.f32.xlu0 %v7575
  %v7577 = vpop.xlane.xlu0 %7576
  %v7578 = vsel %vm347, %v7560, 0.0
  %7579 = vadd.xlane.f32.xlu0 %v7578
  %v7580 = vpop.xlane.xlu0 %7579
  %v7581 = vsel %vm347, %v7561, 0.0
  %7582 = vadd.xlane.f32.xlu0 %v7581
  %v7583 = vpop.xlane.xlu0 %7582
  %v7584 = vsel %vm347, %v7562, 0.0
  %7585 = vadd.xlane.f32.xlu0 %v7584
  %v7586 = vpop.xlane.xlu0 %7585
  %v7587 = vsel %vm347, %v7563, 0.0
  %7588 = vadd.xlane.f32.xlu0 %v7587
  %v7589 = vpop.xlane.xlu0 %7588
  %v7590 = vsel %vm347, %v7564, 0.0
  %7591 = vadd.xlane.f32.xlu0 %v7590
  %v7592 = vpop.xlane.xlu0 %7591
  %v7593 = vsel %vm347, %v7565, 0.0
  %7594 = vadd.xlane.f32.xlu0 %v7593
  %v7595 = vpop.xlane.xlu0 %7594
  %v7596 = vsel %vm347, %v7566, 0.0
  %7597 = vadd.xlane.f32.xlu0 %v7596
  %v7598 = vpop.xlane.xlu0 %7597
  %v7599 = vsel %vm347, %v7567, 0.0
  %7600 = vadd.xlane.f32.xlu0 %v7599
  %v7601 = vpop.xlane.xlu0 %7600
  %v7602 = vsel %vm347, %v7568, 0.0
  %7603 = vadd.xlane.f32.xlu0 %v7602
  %v7604 = vpop.xlane.xlu0 %7603
  %v7605 = vsel %vm347, %v7569, 0.0
  %7606 = vadd.xlane.f32.xlu0 %v7605
  %v7607 = vpop.xlane.xlu0 %7606
  %v7608 = vsel %vm347, %v7570, 0.0
  %7609 = vadd.xlane.f32.xlu0 %v7608
  %v7610 = vpop.xlane.xlu0 %7609
  %v7611 = vsel %vm347, %v7571, 0.0
  %7612 = vadd.xlane.f32.xlu0 %v7611
  %v7613 = vpop.xlane.xlu0 %7612
  %v7614 = vsel %vm347, %v7572, 0.0
  %7615 = vadd.xlane.f32.xlu0 %v7614
  %v7616 = vpop.xlane.xlu0 %7615
  %v7617 = vsel %vm347, %v7573, 0.0
  %7618 = vadd.xlane.f32.xlu0 %v7617
  %v7619 = vpop.xlane.xlu0 %7618
  %v7620 = vsel %vm347, %v7574, 0.0
  %7621 = vadd.xlane.f32.xlu0 %v7620
  %v7622 = vpop.xlane.xlu0 %7621
  %v7623 = vmul.f32 %v7577, %v3590
  %v7624 = vmul.f32 %v7580, %v3590
  %v7625 = vmul.f32 %v7583, %v3590
  %v7626 = vmul.f32 %v7586, %v3590
  %v7627 = vmul.f32 %v7589, %v3590
  %v7628 = vmul.f32 %v7592, %v3590
  %v7629 = vmul.f32 %v7595, %v3590
  %v7630 = vmul.f32 %v7598, %v3590
  %v7631 = vmul.f32 %v7601, %v3590
  %v7632 = vmul.f32 %v7604, %v3590
  %v7633 = vmul.f32 %v7607, %v3590
  %v7634 = vmul.f32 %v7610, %v3590
  %v7635 = vmul.f32 %v7613, %v3590
  %v7636 = vmul.f32 %v7616, %v3590
  %v7637 = vmul.f32 %v7619, %v3590
  %v7638 = vmul.f32 %v7622, %v3590
  %v7639 = vsub.f32 %v7559, %v7623
  %v7640 = vsub.f32 %v7560, %v7624
  %v7641 = vsub.f32 %v7561, %v7625
  %v7642 = vsub.f32 %v7562, %v7626
  %v7643 = vsub.f32 %v7563, %v7627
  %v7644 = vsub.f32 %v7564, %v7628
  %v7645 = vsub.f32 %v7565, %v7629
  %v7646 = vsub.f32 %v7566, %v7630
  %v7647 = vsub.f32 %v7567, %v7631
  %v7648 = vsub.f32 %v7568, %v7632
  %v7649 = vsub.f32 %v7569, %v7633
  %v7650 = vsub.f32 %v7570, %v7634
  %v7651 = vsub.f32 %v7571, %v7635
  %v7652 = vsub.f32 %v7572, %v7636
  %v7653 = vsub.f32 %v7573, %v7637
  %v7654 = vsub.f32 %v7574, %v7638
  %v7655 = vmul.f32 %v7639, %v7639
  %v7656 = vmul.f32 %v7640, %v7640
  %v7657 = vmul.f32 %v7641, %v7641
  %v7658 = vmul.f32 %v7642, %v7642
  %v7659 = vmul.f32 %v7643, %v7643
  %v7660 = vmul.f32 %v7644, %v7644
  %v7661 = vmul.f32 %v7645, %v7645
  %v7662 = vmul.f32 %v7646, %v7646
  %v7663 = vmul.f32 %v7647, %v7647
  %v7664 = vmul.f32 %v7648, %v7648
  %v7665 = vmul.f32 %v7649, %v7649
  %v7666 = vmul.f32 %v7650, %v7650
  %v7667 = vmul.f32 %v7651, %v7651
  %v7668 = vmul.f32 %v7652, %v7652
  %v7669 = vmul.f32 %v7653, %v7653
  %v7670 = vmul.f32 %v7654, %v7654
  %v7671 = vsel %vm347, %v7655, 0.0
  %7672 = vadd.xlane.f32.xlu0 %v7671
  %v7673 = vpop.xlane.xlu0 %7672
  %v7674 = vsel %vm347, %v7656, 0.0
  %7675 = vadd.xlane.f32.xlu0 %v7674
  %v7676 = vpop.xlane.xlu0 %7675
  %v7677 = vsel %vm347, %v7657, 0.0
  %7678 = vadd.xlane.f32.xlu0 %v7677
  %v7679 = vpop.xlane.xlu0 %7678
  %v7680 = vsel %vm347, %v7658, 0.0
  %7681 = vadd.xlane.f32.xlu0 %v7680
  %v7682 = vpop.xlane.xlu0 %7681
  %v7683 = vsel %vm347, %v7659, 0.0
  %7684 = vadd.xlane.f32.xlu0 %v7683
  %v7685 = vpop.xlane.xlu0 %7684
  %v7686 = vsel %vm347, %v7660, 0.0
  %7687 = vadd.xlane.f32.xlu0 %v7686
  %v7688 = vpop.xlane.xlu0 %7687
  %v7689 = vsel %vm347, %v7661, 0.0
  %7690 = vadd.xlane.f32.xlu0 %v7689
  %v7691 = vpop.xlane.xlu0 %7690
  %v7692 = vsel %vm347, %v7662, 0.0
  %7693 = vadd.xlane.f32.xlu0 %v7692
  %v7694 = vpop.xlane.xlu0 %7693
  %v7695 = vsel %vm347, %v7663, 0.0
  %7696 = vadd.xlane.f32.xlu0 %v7695
  %v7697 = vpop.xlane.xlu0 %7696
  %v7698 = vsel %vm347, %v7664, 0.0
  %7699 = vadd.xlane.f32.xlu0 %v7698
  %v7700 = vpop.xlane.xlu0 %7699
  %v7701 = vsel %vm347, %v7665, 0.0
  %7702 = vadd.xlane.f32.xlu0 %v7701
  %v7703 = vpop.xlane.xlu0 %7702
  %v7704 = vsel %vm347, %v7666, 0.0
  %7705 = vadd.xlane.f32.xlu0 %v7704
  %v7706 = vpop.xlane.xlu0 %7705
  %v7707 = vsel %vm347, %v7667, 0.0
  %7708 = vadd.xlane.f32.xlu0 %v7707
  %v7709 = vpop.xlane.xlu0 %7708
  %v7710 = vsel %vm347, %v7668, 0.0
  %7711 = vadd.xlane.f32.xlu0 %v7710
  %v7712 = vpop.xlane.xlu0 %7711
  %v7713 = vsel %vm347, %v7669, 0.0
  %7714 = vadd.xlane.f32.xlu0 %v7713
  %v7715 = vpop.xlane.xlu0 %7714
  %v7716 = vsel %vm347, %v7670, 0.0
  %7717 = vadd.xlane.f32.xlu0 %v7716
  %v7718 = vpop.xlane.xlu0 %7717
  %v7719 = vmul.f32 %v7673, %v3590
  %v7720 = vmul.f32 %v7676, %v3590
  %v7721 = vmul.f32 %v7679, %v3590
  %v7722 = vmul.f32 %v7682, %v3590
  %v7723 = vmul.f32 %v7685, %v3590
  %v7724 = vmul.f32 %v7688, %v3590
  %v7725 = vmul.f32 %v7691, %v3590
  %v7726 = vmul.f32 %v7694, %v3590
  %v7727 = vmul.f32 %v7697, %v3590
  %v7728 = vmul.f32 %v7700, %v3590
  %v7729 = vmul.f32 %v7703, %v3590
  %v7730 = vmul.f32 %v7706, %v3590
  %v7731 = vmul.f32 %v7709, %v3590
  %v7732 = vmul.f32 %v7712, %v3590
  %v7733 = vmul.f32 %v7715, %v3590
  %v7734 = vmul.f32 %v7718, %v3590
  %v7735 = vadd.f32 %v7719, 1e-06
  %v7736 = vadd.f32 %v7720, 1e-06
  %v7737 = vadd.f32 %v7721, 1e-06
  %v7738 = vadd.f32 %v7722, 1e-06
  %v7739 = vadd.f32 %v7723, 1e-06
  %v7740 = vadd.f32 %v7724, 1e-06
  %v7741 = vadd.f32 %v7725, 1e-06
  %v7742 = vadd.f32 %v7726, 1e-06
  %v7743 = vadd.f32 %v7727, 1e-06
  %v7744 = vadd.f32 %v7728, 1e-06
  %v7745 = vadd.f32 %v7729, 1e-06
  %v7746 = vadd.f32 %v7730, 1e-06
  %v7747 = vadd.f32 %v7731, 1e-06
  %v7748 = vadd.f32 %v7732, 1e-06
  %v7749 = vadd.f32 %v7733, 1e-06
  %v7750 = vadd.f32 %v7734, 1e-06
  %v7751 = vrsqrt.pop %v7735
  %v7752 = vrsqrt.pop %v7736
  %v7753 = vrsqrt.pop %v7737
  %v7754 = vrsqrt.pop %v7738
  %v7755 = vrsqrt.pop %v7739
  %v7756 = vrsqrt.pop %v7740
  %v7757 = vrsqrt.pop %v7741
  %v7758 = vrsqrt.pop %v7742
  %v7759 = vrsqrt.pop %v7743
  %v7760 = vrsqrt.pop %v7744
  %v7761 = vrsqrt.pop %v7745
  %v7762 = vrsqrt.pop %v7746
  %v7763 = vrsqrt.pop %v7747
  %v7764 = vrsqrt.pop %v7748
  %v7765 = vrsqrt.pop %v7749
  %v7766 = vrsqrt.pop %v7750
  %v7767 = vmul.f32 %v7639, %v7751
  %v7768 = vmul.f32 %v7640, %v7752
  %v7769 = vmul.f32 %v7641, %v7753
  %v7770 = vmul.f32 %v7642, %v7754
  %v7771 = vmul.f32 %v7643, %v7755
  %v7772 = vmul.f32 %v7644, %v7756
  %v7773 = vmul.f32 %v7645, %v7757
  %v7774 = vmul.f32 %v7646, %v7758
  %v7775 = vmul.f32 %v7647, %v7759
  %v7776 = vmul.f32 %v7648, %v7760
  %v7777 = vmul.f32 %v7649, %v7761
  %v7778 = vmul.f32 %v7650, %v7762
  %v7779 = vmul.f32 %v7651, %v7763
  %v7780 = vmul.f32 %v7652, %v7764
  %v7781 = vmul.f32 %v7653, %v7765
  %v7782 = vmul.f32 %v7654, %v7766
  %v7783 = vlaneseq
  %v7784 = vshrl.u32 %v7783, 7
  %v7785 = vsub.s32 0, %v7784
  %v7786 = vrot.slane %v4361, %v7785
  %v7787 = vmul.f32 %v7767, %v7786
  %v7788 = vmul.f32 %v7768, %v7786
  %v7789 = vmul.f32 %v7769, %v7786
  %v7790 = vmul.f32 %v7770, %v7786
  %v7791 = vmul.f32 %v7771, %v7786
  %v7792 = vmul.f32 %v7772, %v7786
  %v7793 = vmul.f32 %v7773, %v7786
  %v7794 = vmul.f32 %v7774, %v7786
  %v7795 = vmul.f32 %v7775, %v7786
  %v7796 = vmul.f32 %v7776, %v7786
  %v7797 = vmul.f32 %v7777, %v7786
  %v7798 = vmul.f32 %v7778, %v7786
  %v7799 = vmul.f32 %v7779, %v7786
  %v7800 = vmul.f32 %v7780, %v7786
  %v7801 = vmul.f32 %v7781, %v7786
  %v7802 = vmul.f32 %v7782, %v7786
  %v7803 = vlaneseq
  %v7804 = vshrl.u32 %v7803, 7
  %v7805 = vsub.s32 1, %v7804
  %v7806 = vrot.slane %v4361, %v7805
  %v7807 = vadd.f32 %v7787, %v7806
  %v7808 = vadd.f32 %v7788, %v7806
  %v7809 = vadd.f32 %v7789, %v7806
  %v7810 = vadd.f32 %v7790, %v7806
  %v7811 = vadd.f32 %v7791, %v7806
  %v7812 = vadd.f32 %v7792, %v7806
  %v7813 = vadd.f32 %v7793, %v7806
  %v7814 = vadd.f32 %v7794, %v7806
  %v7815 = vadd.f32 %v7795, %v7806
  %v7816 = vadd.f32 %v7796, %v7806
  %v7817 = vadd.f32 %v7797, %v7806
  %v7818 = vadd.f32 %v7798, %v7806
  %v7819 = vadd.f32 %v7799, %v7806
  %v7820 = vadd.f32 %v7800, %v7806
  %v7821 = vadd.f32 %v7801, %v7806
  %v7822 = vadd.f32 %v7802, %v7806
  %v7823 = vpack.c.bf16 %v7808, %v7807
  %v7824 = vpack.c.bf16 %v7810, %v7809
  %v7825 = vpack.c.bf16 %v7812, %v7811
  %v7826 = vpack.c.bf16 %v7814, %v7813
  %v7827 = vpack.c.bf16 %v7816, %v7815
  %v7828 = vpack.c.bf16 %v7818, %v7817
  %v7829 = vpack.c.bf16 %v7820, %v7819
  %v7830 = vpack.c.bf16 %v7822, %v7821
  %v7831 = vlaneseq
  %v7832 = vshrl.u32 %v7831, 7
  %v7833 = vsub.s32 2, %v7832
  %v7834 = vrot.slane %v4361, %v7833
  %v7835 = vunpack.c.h.b16 %v4356
  %v7836 = vunpack.c.h.b16 %v4357
  %v7837 = vunpack.c.h.b16 %v4358
  %v7838 = vunpack.c.h.b16 %v4359
  %v7839 = vpack.c.b16 %v7836, %v7835
  %v7840 = vpack.c.b16 %v7838, %v7837
  %v7844 = vsel %vm347, %v7823, 0
  %v7847 = vsel %vm347, %v7824, 0
  %v7850 = vsel %vm347, %v7825, 0
  %v7853 = vsel %vm347, %v7826, 0
  %v7856 = vsel %vm347, %v7827, 0
  %v7859 = vsel %vm347, %v7828, 0
  %v7862 = vsel %vm347, %v7829, 0
  %v7865 = vsel %vm347, %v7830, 0
  %7867 = vmatprep.subr.bf16.mxu0 0
  %7868 = vmatpush1.bf16.msra.mxu0 0
  %7869 = vmatprep.subr.bf16.mxu0 0
  %7870 = vmatpush1.bf16.msra.mxu0 0
  %7871 = vmatprep.subr.bf16.mxu0 0
  %7872 = vmatpush1.bf16.msra.mxu0 0
  %7873 = vmatprep.subr.bf16.mxu0 0
  %7874 = vmatpush1.bf16.msra.mxu0 0
  %7875 = vmatprep.subr.bf16.mxu0 0
  %7876 = vmatpush1.bf16.msra.mxu0 0
  %7877 = vmatprep.subr.bf16.mxu0 0
  %7878 = vmatpush1.bf16.msra.mxu0 0
  %7879 = vmatprep.subr.bf16.mxu0 0
  %7880 = vmatpush1.bf16.msra.mxu0 %v7840
  %7881 = vmatprep.subr.bf16.mxu0 0
  %7882 = vmatpush1.bf16.msra.mxu0 %v7839
  %7883 = vmatprep.subr.bf16.mxu0 0
  %7884 = vmatpush2.bf16.msra.mxu0 0
  %7885 = vmatprep.subr.bf16.mxu0 0
  %7886 = vmatpush2.bf16.msra.mxu0 0
  %7887 = vmatprep.subr.bf16.mxu0 0
  %7888 = vmatpush2.bf16.msra.mxu0 0
  %7889 = vmatprep.subr.bf16.mxu0 0
  %7890 = vmatpush2.bf16.msra.mxu0 0
  %7891 = vmatprep.subr.bf16.mxu0 0
  %7892 = vmatpush2.bf16.msra.mxu0 0
  %7893 = vmatprep.subr.bf16.mxu0 0
  %7894 = vmatpush2.bf16.msra.mxu0 0
  %7895 = vmatprep.subr.bf16.mxu0 0
  %7896 = vmatpush2.bf16.msra.mxu0 0
  %7897 = vmatprep.subr.bf16.mxu0 0
  %7898 = vmatpush2.bf16.msra.mxu0 0
  %7899 = vmatprep.mubr.bf16.mxu0 0
  %7900 = vmatmul.mubr.bf16.gmra.mxu0 %v7844
  %v7901 = vpop.f32.mrf.mxu0
  %v7902 = vadd.f32 %v7834, %v7901
  %v7903 = vpop.f32.mrf.mxu0
  %v7904 = vpop.f32.mrf.mxu0
  %v7905 = vadd.f32 %v7834, %v7904
  %v7906 = vpop.f32.mrf.mxu0
  %7907 = vmatprep.mubr.bf16.mxu0 0
  %7908 = vmatmul.mubr.bf16.gmra.mxu0 %v7847
  %v7909 = vpop.f32.mrf.mxu0
  %v7910 = vadd.f32 %v7834, %v7909
  %v7911 = vpop.f32.mrf.mxu0
  %v7912 = vpop.f32.mrf.mxu0
  %v7913 = vadd.f32 %v7834, %v7912
  %v7914 = vpop.f32.mrf.mxu0
  %7915 = vmatprep.mubr.bf16.mxu0 0
  %7916 = vmatmul.mubr.bf16.gmra.mxu0 %v7850
  %v7917 = vpop.f32.mrf.mxu0
  %v7918 = vadd.f32 %v7834, %v7917
  %v7919 = vpop.f32.mrf.mxu0
  %v7920 = vpop.f32.mrf.mxu0
  %v7921 = vadd.f32 %v7834, %v7920
  %v7922 = vpop.f32.mrf.mxu0
  %7923 = vmatprep.mubr.bf16.mxu0 0
  %7924 = vmatmul.mubr.bf16.gmra.mxu0 %v7853
  %v7925 = vpop.f32.mrf.mxu0
  %v7926 = vadd.f32 %v7834, %v7925
  %v7927 = vpop.f32.mrf.mxu0
  %v7928 = vpop.f32.mrf.mxu0
  %v7929 = vadd.f32 %v7834, %v7928
  %v7930 = vpop.f32.mrf.mxu0
  %7931 = vmatprep.mubr.bf16.mxu0 0
  %7932 = vmatmul.mubr.bf16.gmra.mxu0 %v7856
  %v7933 = vpop.f32.mrf.mxu0
  %v7934 = vadd.f32 %v7834, %v7933
  %v7935 = vpop.f32.mrf.mxu0
  %v7936 = vpop.f32.mrf.mxu0
  %v7937 = vadd.f32 %v7834, %v7936
  %v7938 = vpop.f32.mrf.mxu0
  %7939 = vmatprep.mubr.bf16.mxu0 0
  %7940 = vmatmul.mubr.bf16.gmra.mxu0 %v7859
  %v7941 = vpop.f32.mrf.mxu0
  %v7942 = vadd.f32 %v7834, %v7941
  %v7943 = vpop.f32.mrf.mxu0
  %v7944 = vpop.f32.mrf.mxu0
  %v7945 = vadd.f32 %v7834, %v7944
  %v7946 = vpop.f32.mrf.mxu0
  %7947 = vmatprep.mubr.bf16.mxu0 0
  %7948 = vmatmul.mubr.bf16.gmra.mxu0 %v7862
  %v7949 = vpop.f32.mrf.mxu0
  %v7950 = vadd.f32 %v7834, %v7949
  %v7951 = vpop.f32.mrf.mxu0
  %v7952 = vpop.f32.mrf.mxu0
  %v7953 = vadd.f32 %v7834, %v7952
  %v7954 = vpop.f32.mrf.mxu0
  %7955 = vmatprep.mubr.bf16.mxu0 0
  %7956 = vmatmul.mubr.bf16.gmra.mxu0 %v7865
  %v7957 = vpop.f32.mrf.mxu0
  %v7958 = vadd.f32 %v7834, %v7957
  %v7959 = vpop.f32.mrf.mxu0
  %v7960 = vpop.f32.mrf.mxu0
  %v7961 = vadd.f32 %v7834, %v7960
  %v7962 = vpop.f32.mrf.mxu0
  %7963 = vdwg.mxu0
  %v7964 = vmax.f32 %v7902, 0.0
  %v7965 = vmax.f32 %v7905, 0.0
  %v7966 = vmax.f32 %v7910, 0.0
  %v7967 = vmax.f32 %v7913, 0.0
  %v7968 = vmax.f32 %v7918, 0.0
  %v7969 = vmax.f32 %v7921, 0.0
  %v7970 = vmax.f32 %v7926, 0.0
  %v7971 = vmax.f32 %v7929, 0.0
  %v7972 = vmax.f32 %v7934, 0.0
  %v7973 = vmax.f32 %v7937, 0.0
  %v7974 = vmax.f32 %v7942, 0.0
  %v7975 = vmax.f32 %v7945, 0.0
  %v7976 = vmax.f32 %v7950, 0.0
  %v7977 = vmax.f32 %v7953, 0.0
  %v7978 = vmax.f32 %v7958, 0.0
  %v7979 = vmax.f32 %v7961, 0.0
  %v7980 = vpack.c.bf16 %v7965, %v7964
  %v7981 = vpack.c.bf16 %v7967, %v7966
  %v7982 = vpack.c.bf16 %v7969, %v7968
  %v7983 = vpack.c.bf16 %v7971, %v7970
  %v7984 = vpack.c.bf16 %v7973, %v7972
  %v7985 = vpack.c.bf16 %v7975, %v7974
  %v7986 = vpack.c.bf16 %v7977, %v7976
  %v7987 = vpack.c.bf16 %v7979, %v7978
  %v7988 = vlaneseq
  %v7989 = vshrl.u32 %v7988, 7
  %v7990 = vsub.s32 3, %v7989
  %v7991 = vrot.slane %v4361, %v7990
  %7992 = vrot.lane.b32.xlu0 %v7839, 64
  %v7993 = vpop.permute.xlu0 %7992
  %7994 = vrot.lane.b32.xlu0 %v7840, 64
  %v7995 = vpop.permute.xlu0 %7994
  %v7997 = vsel %vm1373, %v7980, 0
  %v8000 = vsel %vm1373, %v7981, 0
  %v8003 = vsel %vm1373, %v7982, 0
  %v8006 = vsel %vm1373, %v7983, 0
  %v8009 = vsel %vm1373, %v7984, 0
  %v8012 = vsel %vm1373, %v7985, 0
  %v8015 = vsel %vm1373, %v7986, 0
  %v8018 = vsel %vm1373, %v7987, 0
  %v8021 = vsel %vm1373, %v7993, 0
  %v8024 = vsel %vm1373, %v7995, 0
  %8026 = vmatprep.subr.bf16.mxu0 0
  %8027 = vmatpush1.bf16.xpose.msra.mxu0 0
  %8028 = vmatprep.subr.bf16.mxu0 0
  %8029 = vmatpush1.bf16.xpose.msra.mxu0 0
  %8030 = vmatprep.subr.bf16.mxu0 0
  %8031 = vmatpush1.bf16.xpose.msra.mxu0 0
  %8032 = vmatprep.subr.bf16.mxu0 0
  %8033 = vmatpush1.bf16.xpose.msra.mxu0 0
  %8034 = vmatprep.subr.bf16.mxu0 0
  %8035 = vmatpush1.bf16.xpose.msra.mxu0 0
  %8036 = vmatprep.subr.bf16.mxu0 0
  %8037 = vmatpush1.bf16.xpose.msra.mxu0 0
  %8038 = vmatprep.subr.bf16.mxu0 0
  %8039 = vmatpush1.bf16.xpose.msra.mxu0 %v8024
  %8040 = vmatprep.subr.bf16.mxu0 0
  %8041 = vmatpush1.bf16.xpose.msra.mxu0 %v8021
  %8042 = vmatprep.subr.bf16.mxu0 0
  %8043 = vmatpush2.bf16.xpose.msra.mxu0 0
  %8044 = vmatprep.subr.bf16.mxu0 0
  %8045 = vmatpush2.bf16.xpose.msra.mxu0 0
  %8046 = vmatprep.subr.bf16.mxu0 0
  %8047 = vmatpush2.bf16.xpose.msra.mxu0 0
  %8048 = vmatprep.subr.bf16.mxu0 0
  %8049 = vmatpush2.bf16.xpose.msra.mxu0 0
  %8050 = vmatprep.subr.bf16.mxu0 0
  %8051 = vmatpush2.bf16.xpose.msra.mxu0 0
  %8052 = vmatprep.subr.bf16.mxu0 0
  %8053 = vmatpush2.bf16.xpose.msra.mxu0 0
  %8054 = vmatprep.subr.bf16.mxu0 0
  %8055 = vmatpush2.bf16.xpose.msra.mxu0 0
  %8056 = vmatprep.subr.bf16.mxu0 0
  %8057 = vmatpush2.bf16.xpose.msra.mxu0 0
  %8058 = vmatprep.mubr.bf16.mxu0 0
  %8059 = vmatmul.mubr.bf16.gmra.mxu0 %v7997
  %v8060 = vpop.f32.mrf.mxu0
  %v8061 = vadd.f32 %v7991, %v8060
  %v8062 = vpop.f32.mrf.mxu0
  %v8063 = vpop.f32.mrf.mxu0
  %v8064 = vadd.f32 %v7991, %v8063
  %v8065 = vpop.f32.mrf.mxu0
  %8066 = vmatprep.mubr.bf16.mxu0 0
  %8067 = vmatmul.mubr.bf16.gmra.mxu0 %v8000
  %v8068 = vpop.f32.mrf.mxu0
  %v8069 = vadd.f32 %v7991, %v8068
  %v8070 = vpop.f32.mrf.mxu0
  %v8071 = vpop.f32.mrf.mxu0
  %v8072 = vadd.f32 %v7991, %v8071
  %v8073 = vpop.f32.mrf.mxu0
  %8074 = vmatprep.mubr.bf16.mxu0 0
  %8075 = vmatmul.mubr.bf16.gmra.mxu0 %v8003
  %v8076 = vpop.f32.mrf.mxu0
  %v8077 = vadd.f32 %v7991, %v8076
  %v8078 = vpop.f32.mrf.mxu0
  %v8079 = vpop.f32.mrf.mxu0
  %v8080 = vadd.f32 %v7991, %v8079
  %v8081 = vpop.f32.mrf.mxu0
  %8082 = vmatprep.mubr.bf16.mxu0 0
  %8083 = vmatmul.mubr.bf16.gmra.mxu0 %v8006
  %v8084 = vpop.f32.mrf.mxu0
  %v8085 = vadd.f32 %v7991, %v8084
  %v8086 = vpop.f32.mrf.mxu0
  %v8087 = vpop.f32.mrf.mxu0
  %v8088 = vadd.f32 %v7991, %v8087
  %v8089 = vpop.f32.mrf.mxu0
  %8090 = vmatprep.mubr.bf16.mxu0 0
  %8091 = vmatmul.mubr.bf16.gmra.mxu0 %v8009
  %v8092 = vpop.f32.mrf.mxu0
  %v8093 = vadd.f32 %v7991, %v8092
  %v8094 = vpop.f32.mrf.mxu0
  %v8095 = vpop.f32.mrf.mxu0
  %v8096 = vadd.f32 %v7991, %v8095
  %v8097 = vpop.f32.mrf.mxu0
  %8098 = vmatprep.mubr.bf16.mxu0 0
  %8099 = vmatmul.mubr.bf16.gmra.mxu0 %v8012
  %v8100 = vpop.f32.mrf.mxu0
  %v8101 = vadd.f32 %v7991, %v8100
  %v8102 = vpop.f32.mrf.mxu0
  %v8103 = vpop.f32.mrf.mxu0
  %v8104 = vadd.f32 %v7991, %v8103
  %v8105 = vpop.f32.mrf.mxu0
  %8106 = vmatprep.mubr.bf16.mxu0 0
  %8107 = vmatmul.mubr.bf16.gmra.mxu0 %v8015
  %v8108 = vpop.f32.mrf.mxu0
  %v8109 = vadd.f32 %v7991, %v8108
  %v8110 = vpop.f32.mrf.mxu0
  %v8111 = vpop.f32.mrf.mxu0
  %v8112 = vadd.f32 %v7991, %v8111
  %v8113 = vpop.f32.mrf.mxu0
  %8114 = vmatprep.mubr.bf16.mxu0 0
  %8115 = vmatmul.mubr.bf16.gmra.mxu0 %v8018
  %v8116 = vpop.f32.mrf.mxu0
  %v8117 = vadd.f32 %v7991, %v8116
  %v8118 = vpop.f32.mrf.mxu0
  %v8119 = vpop.f32.mrf.mxu0
  %v8120 = vadd.f32 %v7991, %v8119
  %v8121 = vpop.f32.mrf.mxu0
  %8122 = vdwg.mxu0
  %v8123 = vadd.f32 %v8061, %v7807
  %v8124 = vadd.f32 %v8064, %v7808
  %v8125 = vadd.f32 %v8069, %v7809
  %v8126 = vadd.f32 %v8072, %v7810
  %v8127 = vadd.f32 %v8077, %v7811
  %v8128 = vadd.f32 %v8080, %v7812
  %v8129 = vadd.f32 %v8085, %v7813
  %v8130 = vadd.f32 %v8088, %v7814
  %v8131 = vadd.f32 %v8093, %v7815
  %v8132 = vadd.f32 %v8096, %v7816
  %v8133 = vadd.f32 %v8101, %v7817
  %v8134 = vadd.f32 %v8104, %v7818
  %v8135 = vadd.f32 %v8109, %v7819
  %v8136 = vadd.f32 %v8112, %v7820
  %v8137 = vadd.f32 %v8117, %v7821
  %v8138 = vadd.f32 %v8120, %v7822
  %v8139 = vsel %vm347, %v8123, 0.0
  %8140 = vadd.xlane.f32.xlu0 %v8139
  %v8141 = vpop.xlane.xlu0 %8140
  %v8142 = vsel %vm347, %v8124, 0.0
  %8143 = vadd.xlane.f32.xlu0 %v8142
  %v8144 = vpop.xlane.xlu0 %8143
  %v8145 = vsel %vm347, %v8125, 0.0
  %8146 = vadd.xlane.f32.xlu0 %v8145
  %v8147 = vpop.xlane.xlu0 %8146
  %v8148 = vsel %vm347, %v8126, 0.0
  %8149 = vadd.xlane.f32.xlu0 %v8148
  %v8150 = vpop.xlane.xlu0 %8149
  %v8151 = vsel %vm347, %v8127, 0.0
  %8152 = vadd.xlane.f32.xlu0 %v8151
  %v8153 = vpop.xlane.xlu0 %8152
  %v8154 = vsel %vm347, %v8128, 0.0
  %8155 = vadd.xlane.f32.xlu0 %v8154
  %v8156 = vpop.xlane.xlu0 %8155
  %v8157 = vsel %vm347, %v8129, 0.0
  %8158 = vadd.xlane.f32.xlu0 %v8157
  %v8159 = vpop.xlane.xlu0 %8158
  %v8160 = vsel %vm347, %v8130, 0.0
  %8161 = vadd.xlane.f32.xlu0 %v8160
  %v8162 = vpop.xlane.xlu0 %8161
  %v8163 = vsel %vm347, %v8131, 0.0
  %8164 = vadd.xlane.f32.xlu0 %v8163
  %v8165 = vpop.xlane.xlu0 %8164
  %v8166 = vsel %vm347, %v8132, 0.0
  %8167 = vadd.xlane.f32.xlu0 %v8166
  %v8168 = vpop.xlane.xlu0 %8167
  %v8169 = vsel %vm347, %v8133, 0.0
  %8170 = vadd.xlane.f32.xlu0 %v8169
  %v8171 = vpop.xlane.xlu0 %8170
  %v8172 = vsel %vm347, %v8134, 0.0
  %8173 = vadd.xlane.f32.xlu0 %v8172
  %v8174 = vpop.xlane.xlu0 %8173
  %v8175 = vsel %vm347, %v8135, 0.0
  %8176 = vadd.xlane.f32.xlu0 %v8175
  %v8177 = vpop.xlane.xlu0 %8176
  %v8178 = vsel %vm347, %v8136, 0.0
  %8179 = vadd.xlane.f32.xlu0 %v8178
  %v8180 = vpop.xlane.xlu0 %8179
  %v8181 = vsel %vm347, %v8137, 0.0
  %8182 = vadd.xlane.f32.xlu0 %v8181
  %v8183 = vpop.xlane.xlu0 %8182
  %v8184 = vsel %vm347, %v8138, 0.0
  %8185 = vadd.xlane.f32.xlu0 %v8184
  %v8186 = vpop.xlane.xlu0 %8185
  %v8187 = vmul.f32 %v8141, %v3590
  %v8188 = vmul.f32 %v8144, %v3590
  %v8189 = vmul.f32 %v8147, %v3590
  %v8190 = vmul.f32 %v8150, %v3590
  %v8191 = vmul.f32 %v8153, %v3590
  %v8192 = vmul.f32 %v8156, %v3590
  %v8193 = vmul.f32 %v8159, %v3590
  %v8194 = vmul.f32 %v8162, %v3590
  %v8195 = vmul.f32 %v8165, %v3590
  %v8196 = vmul.f32 %v8168, %v3590
  %v8197 = vmul.f32 %v8171, %v3590
  %v8198 = vmul.f32 %v8174, %v3590
  %v8199 = vmul.f32 %v8177, %v3590
  %v8200 = vmul.f32 %v8180, %v3590
  %v8201 = vmul.f32 %v8183, %v3590
  %v8202 = vmul.f32 %v8186, %v3590
  %v8203 = vsub.f32 %v8123, %v8187
  %v8204 = vsub.f32 %v8124, %v8188
  %v8205 = vsub.f32 %v8125, %v8189
  %v8206 = vsub.f32 %v8126, %v8190
  %v8207 = vsub.f32 %v8127, %v8191
  %v8208 = vsub.f32 %v8128, %v8192
  %v8209 = vsub.f32 %v8129, %v8193
  %v8210 = vsub.f32 %v8130, %v8194
  %v8211 = vsub.f32 %v8131, %v8195
  %v8212 = vsub.f32 %v8132, %v8196
  %v8213 = vsub.f32 %v8133, %v8197
  %v8214 = vsub.f32 %v8134, %v8198
  %v8215 = vsub.f32 %v8135, %v8199
  %v8216 = vsub.f32 %v8136, %v8200
  %v8217 = vsub.f32 %v8137, %v8201
  %v8218 = vsub.f32 %v8138, %v8202
  %v8219 = vmul.f32 %v8203, %v8203
  %v8220 = vmul.f32 %v8204, %v8204
  %v8221 = vmul.f32 %v8205, %v8205
  %v8222 = vmul.f32 %v8206, %v8206
  %v8223 = vmul.f32 %v8207, %v8207
  %v8224 = vmul.f32 %v8208, %v8208
  %v8225 = vmul.f32 %v8209, %v8209
  %v8226 = vmul.f32 %v8210, %v8210
  %v8227 = vmul.f32 %v8211, %v8211
  %v8228 = vmul.f32 %v8212, %v8212
  %v8229 = vmul.f32 %v8213, %v8213
  %v8230 = vmul.f32 %v8214, %v8214
  %v8231 = vmul.f32 %v8215, %v8215
  %v8232 = vmul.f32 %v8216, %v8216
  %v8233 = vmul.f32 %v8217, %v8217
  %v8234 = vmul.f32 %v8218, %v8218
  %v8235 = vsel %vm347, %v8219, 0.0
  %8236 = vadd.xlane.f32.xlu0 %v8235
  %v8237 = vpop.xlane.xlu0 %8236
  %v8238 = vsel %vm347, %v8220, 0.0
  %8239 = vadd.xlane.f32.xlu0 %v8238
  %v8240 = vpop.xlane.xlu0 %8239
  %v8241 = vsel %vm347, %v8221, 0.0
  %8242 = vadd.xlane.f32.xlu0 %v8241
  %v8243 = vpop.xlane.xlu0 %8242
  %v8244 = vsel %vm347, %v8222, 0.0
  %8245 = vadd.xlane.f32.xlu0 %v8244
  %v8246 = vpop.xlane.xlu0 %8245
  %v8247 = vsel %vm347, %v8223, 0.0
  %8248 = vadd.xlane.f32.xlu0 %v8247
  %v8249 = vpop.xlane.xlu0 %8248
  %v8250 = vsel %vm347, %v8224, 0.0
  %8251 = vadd.xlane.f32.xlu0 %v8250
  %v8252 = vpop.xlane.xlu0 %8251
  %v8253 = vsel %vm347, %v8225, 0.0
  %8254 = vadd.xlane.f32.xlu0 %v8253
  %v8255 = vpop.xlane.xlu0 %8254
  %v8256 = vsel %vm347, %v8226, 0.0
  %8257 = vadd.xlane.f32.xlu0 %v8256
  %v8258 = vpop.xlane.xlu0 %8257
  %v8259 = vsel %vm347, %v8227, 0.0
  %8260 = vadd.xlane.f32.xlu0 %v8259
  %v8261 = vpop.xlane.xlu0 %8260
  %v8262 = vsel %vm347, %v8228, 0.0
  %8263 = vadd.xlane.f32.xlu0 %v8262
  %v8264 = vpop.xlane.xlu0 %8263
  %v8265 = vsel %vm347, %v8229, 0.0
  %8266 = vadd.xlane.f32.xlu0 %v8265
  %v8267 = vpop.xlane.xlu0 %8266
  %v8268 = vsel %vm347, %v8230, 0.0
  %8269 = vadd.xlane.f32.xlu0 %v8268
  %v8270 = vpop.xlane.xlu0 %8269
  %v8271 = vsel %vm347, %v8231, 0.0
  %8272 = vadd.xlane.f32.xlu0 %v8271
  %v8273 = vpop.xlane.xlu0 %8272
  %v8274 = vsel %vm347, %v8232, 0.0
  %8275 = vadd.xlane.f32.xlu0 %v8274
  %v8276 = vpop.xlane.xlu0 %8275
  %v8277 = vsel %vm347, %v8233, 0.0
  %8278 = vadd.xlane.f32.xlu0 %v8277
  %v8279 = vpop.xlane.xlu0 %8278
  %v8280 = vsel %vm347, %v8234, 0.0
  %8281 = vadd.xlane.f32.xlu0 %v8280
  %v8282 = vpop.xlane.xlu0 %8281
  %v8283 = vmul.f32 %v8237, %v3590
  %v8284 = vmul.f32 %v8240, %v3590
  %v8285 = vmul.f32 %v8243, %v3590
  %v8286 = vmul.f32 %v8246, %v3590
  %v8287 = vmul.f32 %v8249, %v3590
  %v8288 = vmul.f32 %v8252, %v3590
  %v8289 = vmul.f32 %v8255, %v3590
  %v8290 = vmul.f32 %v8258, %v3590
  %v8291 = vmul.f32 %v8261, %v3590
  %v8292 = vmul.f32 %v8264, %v3590
  %v8293 = vmul.f32 %v8267, %v3590
  %v8294 = vmul.f32 %v8270, %v3590
  %v8295 = vmul.f32 %v8273, %v3590
  %v8296 = vmul.f32 %v8276, %v3590
  %v8297 = vmul.f32 %v8279, %v3590
  %v8298 = vmul.f32 %v8282, %v3590
  %v8299 = vadd.f32 %v8283, 1e-06
  %v8300 = vadd.f32 %v8284, 1e-06
  %v8301 = vadd.f32 %v8285, 1e-06
  %v8302 = vadd.f32 %v8286, 1e-06
  %v8303 = vadd.f32 %v8287, 1e-06
  %v8304 = vadd.f32 %v8288, 1e-06
  %v8305 = vadd.f32 %v8289, 1e-06
  %v8306 = vadd.f32 %v8290, 1e-06
  %v8307 = vadd.f32 %v8291, 1e-06
  %v8308 = vadd.f32 %v8292, 1e-06
  %v8309 = vadd.f32 %v8293, 1e-06
  %v8310 = vadd.f32 %v8294, 1e-06
  %v8311 = vadd.f32 %v8295, 1e-06
  %v8312 = vadd.f32 %v8296, 1e-06
  %v8313 = vadd.f32 %v8297, 1e-06
  %v8314 = vadd.f32 %v8298, 1e-06
  %v8315 = vrsqrt.pop %v8299
  %v8316 = vrsqrt.pop %v8300
  %v8317 = vrsqrt.pop %v8301
  %v8318 = vrsqrt.pop %v8302
  %v8319 = vrsqrt.pop %v8303
  %v8320 = vrsqrt.pop %v8304
  %v8321 = vrsqrt.pop %v8305
  %v8322 = vrsqrt.pop %v8306
  %v8323 = vrsqrt.pop %v8307
  %v8324 = vrsqrt.pop %v8308
  %v8325 = vrsqrt.pop %v8309
  %v8326 = vrsqrt.pop %v8310
  %v8327 = vrsqrt.pop %v8311
  %v8328 = vrsqrt.pop %v8312
  %v8329 = vrsqrt.pop %v8313
  %v8330 = vrsqrt.pop %v8314
  %v8331 = vmul.f32 %v8203, %v8315
  %v8332 = vmul.f32 %v8204, %v8316
  %v8333 = vmul.f32 %v8205, %v8317
  %v8334 = vmul.f32 %v8206, %v8318
  %v8335 = vmul.f32 %v8207, %v8319
  %v8336 = vmul.f32 %v8208, %v8320
  %v8337 = vmul.f32 %v8209, %v8321
  %v8338 = vmul.f32 %v8210, %v8322
  %v8339 = vmul.f32 %v8211, %v8323
  %v8340 = vmul.f32 %v8212, %v8324
  %v8341 = vmul.f32 %v8213, %v8325
  %v8342 = vmul.f32 %v8214, %v8326
  %v8343 = vmul.f32 %v8215, %v8327
  %v8344 = vmul.f32 %v8216, %v8328
  %v8345 = vmul.f32 %v8217, %v8329
  %v8346 = vmul.f32 %v8218, %v8330
  %v8347 = vlaneseq
  %v8348 = vshrl.u32 %v8347, 7
  %v8349 = vsub.s32 4, %v8348
  %v8350 = vrot.slane %v4361, %v8349
  %v8351 = vmul.f32 %v8331, %v8350
  %v8352 = vmul.f32 %v8332, %v8350
  %v8353 = vmul.f32 %v8333, %v8350
  %v8354 = vmul.f32 %v8334, %v8350
  %v8355 = vmul.f32 %v8335, %v8350
  %v8356 = vmul.f32 %v8336, %v8350
  %v8357 = vmul.f32 %v8337, %v8350
  %v8358 = vmul.f32 %v8338, %v8350
  %v8359 = vmul.f32 %v8339, %v8350
  %v8360 = vmul.f32 %v8340, %v8350
  %v8361 = vmul.f32 %v8341, %v8350
  %v8362 = vmul.f32 %v8342, %v8350
  %v8363 = vmul.f32 %v8343, %v8350
  %v8364 = vmul.f32 %v8344, %v8350
  %v8365 = vmul.f32 %v8345, %v8350
  %v8366 = vmul.f32 %v8346, %v8350
  %v8367 = vlaneseq
  %v8368 = vshrl.u32 %v8367, 7
  %v8369 = vsub.s32 5, %v8368
  %v8370 = vrot.slane %v4361, %v8369
  %v8371 = vadd.f32 %v8351, %v8370
  %v8372 = vadd.f32 %v8352, %v8370
  %v8373 = vadd.f32 %v8353, %v8370
  %v8374 = vadd.f32 %v8354, %v8370
  %v8375 = vadd.f32 %v8355, %v8370
  %v8376 = vadd.f32 %v8356, %v8370
  %v8377 = vadd.f32 %v8357, %v8370
  %v8378 = vadd.f32 %v8358, %v8370
  %v8379 = vadd.f32 %v8359, %v8370
  %v8380 = vadd.f32 %v8360, %v8370
  %v8381 = vadd.f32 %v8361, %v8370
  %v8382 = vadd.f32 %v8362, %v8370
  %v8383 = vadd.f32 %v8363, %v8370
  %v8384 = vadd.f32 %v8364, %v8370
  %v8385 = vadd.f32 %v8365, %v8370
  %v8386 = vadd.f32 %v8366, %v8370
  %v8387 = vld [vmem:[%s6] sm:$0xf]
  %v8388 = vld [vmem:[%s6 + $0x4] sm:$0xf]
  %v8389 = vld [vmem:[%s6 + $0x8] sm:$0xf]
  %v8390 = vpack.c.bf16 %v8372, %v8371
  %v8391 = vpack.c.bf16 %v8374, %v8373
  %v8392 = vpack.c.bf16 %v8376, %v8375
  %v8393 = vpack.c.bf16 %v8378, %v8377
  %v8394 = vpack.c.bf16 %v8380, %v8379
  %v8395 = vpack.c.bf16 %v8382, %v8381
  %v8396 = vpack.c.bf16 %v8384, %v8383
  %v8397 = vpack.c.bf16 %v8386, %v8385
  %v8401 = vunpack.c.l.b16 %v8387
  %v8402 = vunpack.c.l.b16 %v8388
  %v8403 = vunpack.c.l.b16 %v8389
  %v8404 = vpack.c.b16 %v8402, %v8401
  %v8405 = vpack.c.b16 %v8403, %v8403
  %v8407 = vsel %vm347, %v8404, 0
  %v8410 = vsel %vm347, %v8405, 0
  %v8413 = vsel %vm347, %v8390, 0
  %v8416 = vsel %vm347, %v8391, 0
  %v8419 = vsel %vm347, %v8392, 0
  %v8422 = vsel %vm347, %v8393, 0
  %v8425 = vsel %vm347, %v8394, 0
  %v8428 = vsel %vm347, %v8395, 0
  %v8431 = vsel %vm347, %v8396, 0
  %v8434 = vsel %vm347, %v8397, 0
  %8436 = vmatprep.subr.bf16.mxu0 0
  %8437 = vmatpush1.bf16.xpose.msra.mxu0 %v8434
  %8438 = vmatprep.subr.bf16.mxu0 0
  %8439 = vmatpush1.bf16.xpose.msra.mxu0 %v8431
  %8440 = vmatprep.subr.bf16.mxu0 0
  %8441 = vmatpush1.bf16.xpose.msra.mxu0 %v8428
  %8442 = vmatprep.subr.bf16.mxu0 0
  %8443 = vmatpush1.bf16.xpose.msra.mxu0 %v8425
  %8444 = vmatprep.subr.bf16.mxu0 0
  %8445 = vmatpush1.bf16.xpose.msra.mxu0 %v8422
  %8446 = vmatprep.subr.bf16.mxu0 0
  %8447 = vmatpush1.bf16.xpose.msra.mxu0 %v8419
  %8448 = vmatprep.subr.bf16.mxu0 0
  %8449 = vmatpush1.bf16.xpose.msra.mxu0 %v8416
  %8450 = vmatprep.subr.bf16.mxu0 0
  %8451 = vmatpush1.bf16.xpose.msra.mxu0 %v8413
  %8452 = vmatprep.subr.bf16.mxu0 0
  %8453 = vmatpush2.bf16.xpose.msra.mxu0 0
  %8454 = vmatprep.subr.bf16.mxu0 0
  %8455 = vmatpush2.bf16.xpose.msra.mxu0 0
  %8456 = vmatprep.subr.bf16.mxu0 0
  %8457 = vmatpush2.bf16.xpose.msra.mxu0 0
  %8458 = vmatprep.subr.bf16.mxu0 0
  %8459 = vmatpush2.bf16.xpose.msra.mxu0 0
  %8460 = vmatprep.subr.bf16.mxu0 0
  %8461 = vmatpush2.bf16.xpose.msra.mxu0 0
  %8462 = vmatprep.subr.bf16.mxu0 0
  %8463 = vmatpush2.bf16.xpose.msra.mxu0 0
  %8464 = vmatprep.subr.bf16.mxu0 0
  %8465 = vmatpush2.bf16.xpose.msra.mxu0 0
  %8466 = vmatprep.subr.bf16.mxu0 0
  %8467 = vmatpush2.bf16.xpose.msra.mxu0 0
  %8468 = vmatprep.mubr.bf16.mxu0 0
  %8469 = vmatmul.mubr.bf16.gmra.mxu0 %v8407
  %v8470 = vpop.f32.mrf.mxu0
  %v8471 = vadd.f32 0.0, %v8470
  %v8472 = vpop.f32.mrf.mxu0
  %v8473 = vpop.f32.mrf.mxu0
  %v8474 = vadd.f32 0.0, %v8473
  %v8475 = vpop.f32.mrf.mxu0
  %8476 = vmatprep.mubr.bf16.mxu0 0
  %8477 = vmatmul.mubr.bf16.gmra.mxu0 %v8410
  %v8478 = vpop.f32.mrf.mxu0
  %v8479 = vadd.f32 0.0, %v8478
  %v8480 = vpop.f32.mrf.mxu0
  %v8481 = vpop.f32.mrf.mxu0
  %v8482 = vpop.f32.mrf.mxu0
  %8483 = vdwg.mxu0
  %8484 = vst [vmem:[%s7] sm:$0xff] %v8471
  %8485 = vst [vmem:[%s7 + $0x8] sm:$0xff] %v8474
  %8486 = vst [vmem:[%s7 + $0x10] sm:$0xff] %v8479
  // Predicated region
  $region30: #{pallas_forward.1} parent=0 // pred_check
    _
  $region31: #{pallas_forward.1} parent=0 // pred_check_branch
    %8488 = sbr.rel (0) target = $region33
  $region32: #{pallas_forward.1} parent=0 // pred_region
    _
  $region33: #{pallas_forward.1} parent=0 // pred_fallthru
    _
  // Predicated region
  $region34: #{pallas_forward.1} parent=0 // pred_check
    _
  $region35: #{pallas_forward.1} parent=0 // pred_check_branch
    %8490 = sbr.rel (0) target = $region37
  $region36: #{pallas_forward.1} parent=0 // pred_region
    _
  $region37: #{pallas_forward.1} parent=0 // pred_fallthru
    _

</llo_original>
